<compile_context>
chip_gen: v7x
topology: tpu7x:2x2x1
jax: 0.10.0
libtpu: 0.0.40
codegen_flags: <defaults>
</compile_context>

<pallas_src>
import functools

import jax
import jax.numpy as jnp
from jax.experimental import pallas as pl
from jax.experimental.pallas import tpu as pltpu


def _layer_norm(v, g, b, eps=1e-5):
    # CLIP's fp16-safe LayerNorm: statistics and normalization in f32.
    mu = jnp.mean(v, axis=-1, keepdims=True)
    var = jnp.mean(jnp.square(v - mu), axis=-1, keepdims=True)
    return (v - mu) * jax.lax.rsqrt(var + eps) * g + b


# ----------------------------------------------------------------------------
# Kernel 1: the whole CLIP transformer stack fused into one pallas_call.
# ----------------------------------------------------------------------------
def _stack_kernel(x_ref, sel_ref,                  # (Bb,T,D) bf16, (1,Bb,Bb*T) bf16
                  ln1_g_ref, ln1_b_ref,            # (1,1,D) f32
                  w_in_ref, b_in_ref,              # (1,D,3D) bf16, (1,1,3D) f32
                  w_out_ref, b_out_ref,            # (1,D,D) bf16, (1,1,D) f32
                  ln2_g_ref, ln2_b_ref,            # (1,1,D) f32
                  w1_ref, b1_ref,                  # (1,D,4D) bf16, (1,1,4D) f32
                  w2_ref, b2_ref,                  # (1,4D,D) bf16, (1,1,D) f32
                  feat_ref,                        # out (1,Bb,D) bf16 (EOT rows)
                  act_ref,                         # scratch (Bb,T,D) bf16, resident
                  *, num_heads):
    f32, bf = jnp.float32, jnp.bfloat16

    # Layer 0 of this batch tile: pull activations from HBM once; afterwards
    # they stay VMEM-resident in act_ref across the (arbitrary) layer axis.
    @pl.when(pl.program_id(1) == 0)
    def _():
        act_ref[...] = x_ref[...]

    bb, t, d = act_ref.shape
    dh = d // num_heads
    scale = dh ** -0.5

    x2 = act_ref[...].astype(f32).reshape(bb * t, d)              # (Bb*T, D)

    # ---- attention branch: x + out_proj(MHA(ln_1(x), causal)) --------------
    xn = _layer_norm(x2, ln1_g_ref[0], ln1_b_ref[0])
    qkv = jnp.dot(xn.astype(bf), w_in_ref[0],
                  preferred_element_type=f32) + b_in_ref[0]       # (Bb*T, 3D)

    # causal mask, hoisted out of the per-head loop
    q_pos = jax.lax.broadcasted_iota(jnp.int32, (t, t), 0)
    k_pos = jax.lax.broadcasted_iota(jnp.int32, (t, t), 1)
    mask_bias = jnp.where(k_pos <= q_pos, 0.0, -1e30).astype(f32)

    heads = []
    for h in range(num_heads):            # unrolled; dh is 128-lane aligned here
        lo = h * dh
        q = (qkv[:, lo:lo + dh] * scale).astype(bf).reshape(bb, t, dh)
        k = qkv[:, d + lo:d + lo + dh].astype(bf).reshape(bb, t, dh)
        v = qkv[:, 2 * d + lo:2 * d + lo + dh].astype(bf).reshape(bb, t, dh)
        s = jnp.einsum("bqe,bke->bqk", q, k,
                       preferred_element_type=f32) + mask_bias
        s = s - jnp.max(s, axis=-1, keepdims=True)
        p = jnp.exp(s)
        p = p * pl.reciprocal(jnp.sum(p, axis=-1, keepdims=True), approx=True)
        heads.append(jnp.einsum("bqk,bke->bqe", p.astype(bf), v,
                                preferred_element_type=f32))      # (Bb,T,dh)
    # one full-K out-projection matmul instead of per-head K=dh partials
    attn = jnp.concatenate(heads, axis=-1).reshape(bb * t, d)
    x2 = x2 + jnp.dot(attn.astype(bf), w_out_ref[0],
                      preferred_element_type=f32) + b_out_ref[0]

    # ---- MLP branch: x + c_proj(QuickGELU(c_fc(ln_2(x)))) ------------------
    xn2 = _layer_norm(x2, ln2_g_ref[0], ln2_b_ref[0])
    h1 = jnp.dot(xn2.astype(bf), w1_ref[0],
                 preferred_element_type=f32) + b1_ref[0]
    h1 = h1 * jax.nn.sigmoid(1.702 * h1)                          # QuickGELU
    h2 = jnp.dot(h1.astype(bf), w2_ref[0],
                 preferred_element_type=f32) + b2_ref[0]

    y_bf = (x2 + h2).astype(bf)                                   # (Bb*T, D)
    act_ref[...] = y_bf.reshape(bb, t, d)                         # next layer input

    # ---- per-layer EOT rows: block-diagonal one-hot gather on the MXU -------
    # Gathers the *bf16* activation (matches torch's fp16 feats exactly).
    feat_ref[0] = jnp.dot(sel_ref[0], y_bf,
                          preferred_element_type=f32).astype(feat_ref.dtype)


def _stack_vmem_bytes(bb, t, d):
    weights = 2 * (24 * d * d)                     # double-buffered bf16 weights
    acts = 3 * (bb * t * d * 2)                    # x-in (2 bufs) + resident scratch
    interm = bb * t * (16 * d) * 4                 # f32 temporaries (qkv, h1, heads)
    total = int(1.25 * (weights + acts + interm)) + (4 << 20)
    return max(16 << 20, min(total, 56 << 20))     # stay under v7x's 64 MiB VMEM


def transformer_stack_pallas(x, sel, stack, *, num_heads):
    """x: (B, T, D) bf16; sel: (nt, Bb, Bb*T) bf16 block-diagonal EOT one-hot;
    stack: dict of per-layer-stacked, pre-transposed, pre-cast weights.
    Returns feats: (L, B, D) bf16, the per-layer EOT rows."""
    b, t, d = x.shape
    nt, block_b, _ = sel.shape
    L = stack["w_in"].shape[0]
    bf = jnp.bfloat16

    per_layer = lambda shape: pl.BlockSpec(shape, lambda i, l: (l, 0, 0))

    flops = L * b * (24 * t * d * d + 4 * t * t * d) + L * b * 2 * block_b * t * d
    transcendentals = L * b * (num_heads * t * t + 8 * t * d)
    weight_bytes = L * (2 * 12 * d * d + 4 * 13 * d)
    bytes_accessed = 2 * b * t * d + 2 * L * b * d + 2 * b * block_b * t + weight_bytes

    kernel = functools.partial(_stack_kernel, num_heads=num_heads)
    feats = pl.pallas_call(
        kernel,
        out_shape=jax.ShapeDtypeStruct((L, b, d), bf),
        grid_spec=pltpu.PrefetchScalarGridSpec(
            num_scalar_prefetch=0,
            grid=(nt, L),                                  # layer axis innermost
            in_specs=[
                pl.BlockSpec((block_b, t, d), lambda i, l: (i, 0, 0)),            # x
                pl.BlockSpec((1, block_b, block_b * t), lambda i, l: (i, 0, 0)),  # sel
                per_layer((1, 1, d)), per_layer((1, 1, d)),                       # ln_1
                per_layer((1, d, 3 * d)), per_layer((1, 1, 3 * d)),               # in_proj
                per_layer((1, d, d)), per_layer((1, 1, d)),                       # out_proj
                per_layer((1, 1, d)), per_layer((1, 1, d)),                       # ln_2
                per_layer((1, d, 4 * d)), per_layer((1, 1, 4 * d)),               # c_fc
                per_layer((1, 4 * d, d)), per_layer((1, 1, d)),                   # c_proj
            ],
            out_specs=pl.BlockSpec((1, block_b, d), lambda i, l: (l, i, 0)),
            scratch_shapes=[pltpu.VMEM((block_b, t, d), bf)],  # resident activations
        ),
        compiler_params=pltpu.CompilerParams(
            dimension_semantics=("parallel", "arbitrary"),
            vmem_limit_bytes=_stack_vmem_bytes(block_b, t, d)),
        cost_estimate=pl.CostEstimate(flops=flops,
                                      transcendentals=transcendentals,
                                      bytes_accessed=bytes_accessed),
    )(x, sel,
      stack["ln1_g"], stack["ln1_b"], stack["w_in"], stack["b_in"],
      stack["w_out"], stack["b_out"], stack["ln2_g"], stack["ln2_b"],
      stack["w1"], stack["b1"], stack["w2"], stack["b2"])
    return feats


# ----------------------------------------------------------------------------
# Kernel 2: final head -- ln_final + text_projection on the EOT rows only
# ----------------------------------------------------------------------------
def _text_head_kernel(x_ref, g_ref, b_ref, proj_ref, out_ref):
    x = x_ref[...].astype(jnp.float32)
    xn = _layer_norm(x, g_ref[...], b_ref[...])
    out_ref[...] = jnp.dot(xn.astype(jnp.bfloat16), proj_ref[...],
                           preferred_element_type=jnp.float32).astype(out_ref.dtype)


def text_head_pallas(eot_x, g2, b2, proj_bf):
    """eot_x: (B, D) bf16 EOT rows of the last layer. Returns (B, Dp) bf16."""
    bsz, d = eot_x.shape
    dp = proj_bf.shape[1]
    tb = 256 if bsz >= 256 else max(8, ((bsz + 7) // 8) * 8)
    bp = ((bsz + tb - 1) // tb) * tb
    if bp != bsz:                                   # pad, slice output (no % assert)
        eot_x = jnp.pad(eot_x, ((0, bp - bsz), (0, 0)))
    out = pl.pallas_call(
        _text_head_kernel,
        out_shape=jax.ShapeDtypeStruct((bp, dp), jnp.bfloat16),
        grid_spec=pltpu.PrefetchScalarGridSpec(
            num_scalar_prefetch=0,
            grid=(bp // tb,),
            in_specs=[
                pl.BlockSpec((tb, d), lambda i: (i, 0)),
                pl.BlockSpec((1, d), lambda i: (0, 0)),
                pl.BlockSpec((1, d), lambda i: (0, 0)),
                pl.BlockSpec((d, dp), lambda i: (0, 0)),
            ],
            out_specs=pl.BlockSpec((tb, dp), lambda i: (i, 0)),
        ),
        compiler_params=pltpu.CompilerParams(
            dimension_semantics=("parallel",),
            vmem_limit_bytes=32 * 1024 * 1024),
    )(eot_x, g2, b2, proj_bf)
    return out[:bsz]


# ----------------------------------------------------------------------------
# Forward glue (jitted) + module wrapper
# ----------------------------------------------------------------------------
def _pick_block_b(batch, seq):
    # Enough sequences per grid step to fill ~256 MXU rows (v6e/v7x); must
    # divide the batch.  (v5e's 128-row MXU saturates even earlier.)
    target = max(1, -(-256 // max(seq, 1)))
    bb = min(batch, target)
    while batch % bb:
        bb -= 1
    return max(bb, 1)


@functools.partial(jax.jit, static_argnames=("num_heads", "block_b"))
def _forward_impl(params, text, *, num_heads, block_b):
    bf = jnp.bfloat16
    eot = jnp.argmax(text, axis=-1).astype(jnp.int32)     # EOT position per sequence
    # TODO(synk): token-embedding vocab gather + argmax stay as XLA glue; a
    # Pallas Element-indexed gather adds nothing at these sizes.
    x = jnp.take(params["tok_emb"], text, axis=0)
    x = x + params["pos_emb"]                              # (B, T, D) bf16, batch-first
    b, t, d = x.shape
    t_pad = (-t) % 8                                       # e.g. real CLIP T=77 -> 80
    if t_pad:
        # padded keys are causally masked for all real queries; padded rows
        # never reach the outputs (EOT < T).
        x = jnp.pad(x, ((0, 0), (0, t_pad), (0, 0)))
        t = t + t_pad
    nt = b // block_b
    # Per-tile block-diagonal one-hot: the in-kernel EOT gather becomes one
    # tiny (Bb, Bb*T)@(Bb*T, D) MXU matmul (no dynamic sublane reads).
    onehot = jax.nn.one_hot(eot, t, dtype=bf)                               # (B, T)
    eye = jnp.eye(block_b, dtype=bf)
    sel = (onehot.reshape(nt, block_b, 1, t) *
           eye.reshape(1, block_b, block_b, 1)).reshape(nt, block_b, block_b * t)

    feats = transformer_stack_pallas(x, sel, params["stack"], num_heads=num_heads)
    out = text_head_pallas(feats[-1], params["lnf_g"], params["lnf_b"], params["proj"])
    return out, feats


class TextEncoderZS:
    def __init__(self, key, *, vocab, ctx_len, width, heads, layers, proj_dim):
        assert width % heads == 0 and width % 128 == 0      # lane-dense D
        # TODO(synk): real CLIP head dim (dh=64) needs a packed two-heads-per-128-lane
        # Q/K/V layout to keep head lane-slices aligned; here dh is a multiple of 128.
        assert (width // heads) % 128 == 0
        self.heads, self.layers = heads, layers
        f32, bf = jnp.float32, jnp.bfloat16
        ks = jax.random.split(key, 4 + layers)
        self.tok_emb = jax.random.normal(ks[0], (vocab, width), f32) * 0.02
        self.pos_emb = jax.random.normal(ks[1], (ctx_len, width), f32) * 0.01
        self.lnf_g = jnp.ones((width,), f32)
        self.lnf_b = jnp.zeros((width,), f32)
        self.text_projection = (jax.random.normal(ks[2], (width, proj_dim), f32)
                                * (width ** -0.5))
        s = width ** -0.5
        self.blocks = []
        for l in range(layers):
            kb = jax.random.split(ks[4 + l], 4)
            self.blocks.append(dict(
                ln1_g=jnp.ones((width,), f32), ln1_b=jnp.zeros((width,), f32),
                w_in=jax.random.normal(kb[0], (3 * width, width), f32) * s,
                b_in=jnp.zeros((3 * width,), f32),
                w_out=jax.random.normal(kb[1], (width, width), f32) * s,
                b_out=jnp.zeros((width,), f32),
                ln2_g=jnp.ones((width,), f32), ln2_b=jnp.zeros((width,), f32),
                w1=jax.random.normal(kb[2], (4 * width, width), f32) * s,
                b1=jnp.zeros((4 * width,), f32),
                w2=jax.random.normal(kb[3], (width, 4 * width), f32) * (s * 0.5),
                b2=jnp.zeros((width,), f32),
            ))
        # Kernel-side parameters: stacked across layers, pre-transposed and
        # pre-cast ONCE here (no per-forward transpose/cast glue).
        stk = lambda name, f: jnp.stack([f(blk[name]) for blk in self.blocks])
        row = lambda v: v.reshape(1, -1)
        self._params = dict(
            tok_emb=self.tok_emb.astype(bf),
            pos_emb=self.pos_emb.astype(bf),
            lnf_g=self.lnf_g.reshape(1, -1).astype(f32),
            lnf_b=self.lnf_b.reshape(1, -1).astype(f32),
            proj=self.text_projection.astype(bf),
            stack=dict(
                ln1_g=stk("ln1_g", row).astype(f32), ln1_b=stk("ln1_b", row).astype(f32),
                w_in=stk("w_in", lambda w: w.T).astype(bf), b_in=stk("b_in", row).astype(f32),
                w_out=stk("w_out", lambda w: w.T).astype(bf), b_out=stk("b_out", row).astype(f32),
                ln2_g=stk("ln2_g", row).astype(f32), ln2_b=stk("ln2_b", row).astype(f32),
                w1=stk("w1", lambda w: w.T).astype(bf), b1=stk("b1", row).astype(f32),
                w2=stk("w2", lambda w: w.T).astype(bf), b2=stk("b2", row).astype(f32),
            ),
        )

    def forward(self, text):
        """text: (B, T) int32 token ids. Returns (x, txt_feats) like the torch module."""
        b, t = text.shape
        block_b = _pick_block_b(b, t + ((-t) % 8))
        return _forward_impl(self._params, text, num_heads=self.heads, block_b=block_b)


# ----------------------------------------------------------------------------
# Plain-JAX reference (same dtype handling) for a numerical cross-check
# ----------------------------------------------------------------------------
def _ref_forward(model, text):
    bf, f32 = jnp.bfloat16, jnp.float32
    eot = jnp.argmax(text, axis=-1)
    x = jnp.take(model.tok_emb, text, axis=0).astype(bf)
    x = x + model.pos_emb.astype(bf)
    b, t, d = x.shape
    nh = model.heads
    dh = d // nh
    scale = dh ** -0.5
    mask = jnp.where(jnp.arange(t)[:, None] >= jnp.arange(t)[None, :],
                     0.0, -1e30).astype(f32)
    feats = []
    for blk in model.blocks:
        xf = x.astype(f32).reshape(b * t, d)
        xn = _layer_norm(xf, blk["ln1_g"], blk["ln1_b"])
        qkv = jnp.dot(xn.astype(bf), blk["w_in"].T.astype(bf),
                      preferred_element_type=f32) + blk["b_in"]
        heads = []
        for h in range(nh):
            lo = h * dh
            q = (qkv[:, lo:lo + dh] * scale).astype(bf).reshape(b, t, dh)
            k = qkv[:, d + lo:d + lo + dh].astype(bf).reshape(b, t, dh)
            v = qkv[:, 2 * d + lo:2 * d + lo + dh].astype(bf).reshape(b, t, dh)
            s = jnp.einsum("bqe,bke->bqk", q, k, preferred_element_type=f32) + mask
            s = s - jnp.max(s, axis=-1, keepdims=True)
            p = jnp.exp(s)
            p = p / jnp.sum(p, axis=-1, keepdims=True)
            heads.append(jnp.einsum("bqk,bke->bqe", p.astype(bf), v,
                                    preferred_element_type=f32))
        attn = jnp.concatenate(heads, axis=-1).reshape(b * t, d)
        xf = xf + jnp.dot(attn.astype(bf), blk["w_out"].T.astype(bf),
                          preferred_element_type=f32) + blk["b_out"]
        xn2 = _layer_norm(xf, blk["ln2_g"], blk["ln2_b"])
        h1 = jnp.dot(xn2.astype(bf), blk["w1"].T.astype(bf),
                     preferred_element_type=f32) + blk["b1"]
        h1 = h1 * jax.nn.sigmoid(1.702 * h1)
        h2 = jnp.dot(h1.astype(bf), blk["w2"].T.astype(bf),
                     preferred_element_type=f32) + blk["b2"]
        x = (xf + h2).astype(bf).reshape(b, t, d)
        feats.append(x[jnp.arange(b), eot])
    txt_feats = jnp.stack(feats)
    e = feats[-1].astype(f32)
    en = _layer_norm(e, model.lnf_g, model.lnf_b)
    out = jnp.dot(en.astype(bf), model.text_projection.astype(bf),
                  preferred_element_type=f32).astype(bf)
    return out, txt_feats


# ----------------------------------------------------------------------------
if __name__ == "__main__":
    key = jax.random.PRNGKey(0)
    # Small, module-consistent, lane-dense shapes.
    B, T = 8, 16                     # batch, context length
    D, H, L = 256, 2, 2              # width (multiple of 128), heads, layers
    Dp, vocab = 128, 512             # projection dim, vocab size

    k_text, k_mod = jax.random.split(key)
    text = jax.random.randint(k_text, (B, T), 0, vocab, jnp.int32)

    model = TextEncoderZS(k_mod, vocab=vocab, ctx_len=T, width=D,
                          heads=H, layers=L, proj_dim=Dp)

    out, txt_feats = model.forward(text)
    jax.block_until_ready((out, txt_feats))

    assert out.shape == (B, Dp)
    assert txt_feats.shape == (L, B, D)

    ref_out, ref_feats = _ref_forward(model, text)
    assert jnp.allclose(out.astype(jnp.float32), ref_out.astype(jnp.float32),
                        atol=5e-2, rtol=5e-2)
    assert jnp.allclose(txt_feats.astype(jnp.float32), ref_feats.astype(jnp.float32),
                        atol=5e-2, rtol=5e-2)

    print("KERNEL_OK")
</pallas_src>

<mosaic_0001>
module attributes {stable_mosaic.version = 11 : i64} {
  func.func @_text_head_kernel(%arg0: i32, %arg1: memref<8x256xbf16, #tpu.memory_space<vmem>>, %arg2: memref<1x256xf32, #tpu.memory_space<vmem>>, %arg3: memref<1x256xf32, #tpu.memory_space<vmem>>, %arg4: memref<256x128xbf16, #tpu.memory_space<vmem>>, %arg5: memref<8x128xbf16, #tpu.memory_space<vmem>>) attributes {dimension_semantics = [#tpu.dimension_semantics<parallel>], iteration_bounds = array<i64: 1>, scalar_prefetch = 0 : i64, scratch_operands = 0 : i64, tpu.core_type = #tpu.core_type<tc>, window_params = [{transform_indices = @transform_0, window_bounds = array<i64: 8, 256>}, {pipeline_mode = #tpu.pipeline_mode<synchronous>, transform_indices = @transform_1, window_bounds = array<i64: 1, 256>}, {pipeline_mode = #tpu.pipeline_mode<synchronous>, transform_indices = @transform_2, window_bounds = array<i64: 1, 256>}, {pipeline_mode = #tpu.pipeline_mode<synchronous>, transform_indices = @transform_3, window_bounds = array<i64: 256, 128>}, {transform_indices = @transform_4, window_bounds = array<i64: 8, 128>}]} {
    %c0 = arith.constant 0 : index
    %c0_0 = arith.constant 0 : index
    %0 = vector.load %arg1[%c0, %c0_0] : memref<8x256xbf16, #tpu.memory_space<vmem>>, vector<8x256xbf16>
    %1 = arith.extf %0 : vector<8x256xbf16> to vector<8x256xf32>
    %c0_1 = arith.constant 0 : index
    %c0_2 = arith.constant 0 : index
    %2 = vector.load %arg2[%c0_1, %c0_2] : memref<1x256xf32, #tpu.memory_space<vmem>>, vector<1x256xf32>
    %c0_3 = arith.constant 0 : index
    %c0_4 = arith.constant 0 : index
    %3 = vector.load %arg3[%c0_3, %c0_4] : memref<1x256xf32, #tpu.memory_space<vmem>>, vector<1x256xf32>
    %cst = arith.constant dense<0.000000e+00> : vector<8xf32>
    %4 = vector.multi_reduction <add>, %1, %cst [1] : vector<8x256xf32> to vector<8xf32>
    %5 = vector.shape_cast %4 : vector<8xf32> to vector<8x1xf32>
    %cst_5 = arith.constant 2.560000e+02 : f32
    %6 = vector.broadcast %cst_5 : f32 to vector<8x1xf32>
    %7 = arith.divf %5, %6 : vector<8x1xf32>
    %8 = vector.broadcast %7 : vector<8x1xf32> to vector<8x256xf32>
    %9 = arith.subf %1, %8 : vector<8x256xf32>
    %10 = arith.mulf %9, %9 : vector<8x256xf32>
    %cst_6 = arith.constant dense<0.000000e+00> : vector<8xf32>
    %11 = vector.multi_reduction <add>, %10, %cst_6 [1] : vector<8x256xf32> to vector<8xf32>
    %12 = vector.shape_cast %11 : vector<8xf32> to vector<8x1xf32>
    %cst_7 = arith.constant 2.560000e+02 : f32
    %13 = vector.broadcast %cst_7 : f32 to vector<8x1xf32>
    %14 = arith.divf %12, %13 : vector<8x1xf32>
    %15 = vector.broadcast %7 : vector<8x1xf32> to vector<8x256xf32>
    %16 = arith.subf %1, %15 : vector<8x256xf32>
    %cst_8 = arith.constant 9.99999974E-6 : f32
    %17 = vector.broadcast %cst_8 : f32 to vector<8x1xf32>
    %18 = arith.addf %14, %17 : vector<8x1xf32>
    %19 = math.rsqrt %18 : vector<8x1xf32>
    %20 = vector.broadcast %19 : vector<8x1xf32> to vector<8x256xf32>
    %21 = arith.mulf %16, %20 : vector<8x256xf32>
    %22 = vector.broadcast %2 : vector<1x256xf32> to vector<8x256xf32>
    %23 = arith.mulf %21, %22 : vector<8x256xf32>
    %24 = vector.broadcast %3 : vector<1x256xf32> to vector<8x256xf32>
    %25 = arith.addf %23, %24 : vector<8x256xf32>
    %26 = arith.truncf %25 : vector<8x256xf32> to vector<8x256xbf16>
    %c0_9 = arith.constant 0 : index
    %c0_10 = arith.constant 0 : index
    %27 = vector.load %arg4[%c0_9, %c0_10] : memref<256x128xbf16, #tpu.memory_space<vmem>>, vector<256x128xbf16>
    %cst_11 = arith.constant dense<0.000000e+00> : vector<8x128xf32>
    %28 = tpu.matmul %26, %27, %cst_11 {dimension_numbers = #tpu.dot_dimension_numbers<[1], [0], [0], [1], [0, 0, 1, 1], [], []>} : vector<8x256xbf16>, vector<256x128xbf16>, vector<8x128xf32> -> vector<8x128xf32>
    %29 = arith.truncf %28 : vector<8x128xf32> to vector<8x128xbf16>
    %c0_12 = arith.constant 0 : index
    %c0_13 = arith.constant 0 : index
    %30 = vector.load %arg5[%c0_12, %c0_13] : memref<8x128xbf16, #tpu.memory_space<vmem>>, vector<8x128xbf16>
    tpu.vector_store %arg5[%c0_12, %c0_13], %29 {strides = array<i32>} : memref<8x128xbf16, #tpu.memory_space<vmem>>, vector<8x128xbf16>,
    return
  }
  func.func @transform_0(%arg0: i32) -> (i32, i32) {
    %c0_i32 = arith.constant 0 : i32
    %c0_i32_0 = arith.constant 0 : i32
    return %arg0, %c0_i32 : i32, i32
  }
  func.func @transform_1(%arg0: i32) -> (i32, i32) {
    %c0_i32 = arith.constant 0 : i32
    %c0_i32_0 = arith.constant 0 : i32
    %c0_i32_1 = arith.constant 0 : i32
    return %c0_i32, %c0_i32_0 : i32, i32
  }
  func.func @transform_2(%arg0: i32) -> (i32, i32) {
    %c0_i32 = arith.constant 0 : i32
    %c0_i32_0 = arith.constant 0 : i32
    %c0_i32_1 = arith.constant 0 : i32
    return %c0_i32, %c0_i32_0 : i32, i32
  }
  func.func @transform_3(%arg0: i32) -> (i32, i32) {
    %c0_i32 = arith.constant 0 : i32
    %c0_i32_0 = arith.constant 0 : i32
    %c0_i32_1 = arith.constant 0 : i32
    return %c0_i32, %c0_i32_0 : i32, i32
  }
  func.func @transform_4(%arg0: i32) -> (i32, i32) {
    %c0_i32 = arith.constant 0 : i32
    %c0_i32_0 = arith.constant 0 : i32
    return %arg0, %c0_i32 : i32, i32
  }
}

module attributes {stable_mosaic.version = 11 : i64} {
  func.func @_stack_kernel(%arg0: i32, %arg1: i32, %arg2: memref<8x16x256xbf16, #tpu.memory_space<vmem>>, %arg3: memref<1x8x128xbf16, #tpu.memory_space<vmem>>, %arg4: memref<1x1x256xf32, #tpu.memory_space<vmem>>, %arg5: memref<1x1x256xf32, #tpu.memory_space<vmem>>, %arg6: memref<1x256x768xbf16, #tpu.memory_space<vmem>>, %arg7: memref<1x1x768xf32, #tpu.memory_space<vmem>>, %arg8: memref<1x256x256xbf16, #tpu.memory_space<vmem>>, %arg9: memref<1x1x256xf32, #tpu.memory_space<vmem>>, %arg10: memref<1x1x256xf32, #tpu.memory_space<vmem>>, %arg11: memref<1x1x256xf32, #tpu.memory_space<vmem>>, %arg12: memref<1x256x1024xbf16, #tpu.memory_space<vmem>>, %arg13: memref<1x1x1024xf32, #tpu.memory_space<vmem>>, %arg14: memref<1x1024x256xbf16, #tpu.memory_space<vmem>>, %arg15: memref<1x1x256xf32, #tpu.memory_space<vmem>>, %arg16: memref<1x8x256xbf16, #tpu.memory_space<vmem>>, %arg17: memref<8x16x256xbf16, #tpu.memory_space<vmem>>) attributes {dimension_semantics = [#tpu.dimension_semantics<parallel>, #tpu.dimension_semantics<arbitrary>], iteration_bounds = array<i64: 1, 2>, scalar_prefetch = 0 : i64, scratch_operands = 1 : i64, tpu.core_type = #tpu.core_type<tc>, window_params = [{transform_indices = @transform_0, window_bounds = array<i64: 8, 16, 256>}, {transform_indices = @transform_1, window_bounds = array<i64: 1, 8, 128>}, {transform_indices = @transform_2, window_bounds = array<i64: 1, 1, 256>}, {transform_indices = @transform_3, window_bounds = array<i64: 1, 1, 256>}, {transform_indices = @transform_4, window_bounds = array<i64: 1, 256, 768>}, {transform_indices = @transform_5, window_bounds = array<i64: 1, 1, 768>}, {transform_indices = @transform_6, window_bounds = array<i64: 1, 256, 256>}, {transform_indices = @transform_7, window_bounds = array<i64: 1, 1, 256>}, {transform_indices = @transform_8, window_bounds = array<i64: 1, 1, 256>}, {transform_indices = @transform_9, window_bounds = array<i64: 1, 1, 256>}, {transform_indices = @transform_10, window_bounds = array<i64: 1, 256, 1024>}, {transform_indices = @transform_11, window_bounds = array<i64: 1, 1, 1024>}, {transform_indices = @transform_12, window_bounds = array<i64: 1, 1024, 256>}, {transform_indices = @transform_13, window_bounds = array<i64: 1, 1, 256>}, {transform_indices = @transform_14, window_bounds = array<i64: 1, 8, 256>}]} {
    %c0_i32 = arith.constant 0 : i32
    %0 = arith.cmpi eq, %arg1, %c0_i32 : i32
    %1 = arith.extui %0 : i1 to i32
    %c0_i32_0 = arith.constant 0 : i32
    %2 = arith.cmpi ne, %1, %c0_i32_0 : i32
    scf.if %2 {
      %c0_76 = arith.constant 0 : index
      %c0_77 = arith.constant 0 : index
      %c0_78 = arith.constant 0 : index
      %172 = vector.load %arg2[%c0_76, %c0_77, %c0_78] : memref<8x16x256xbf16, #tpu.memory_space<vmem>>, vector<8x16x256xbf16>
      %c0_79 = arith.constant 0 : index
      %c0_80 = arith.constant 0 : index
      %c0_81 = arith.constant 0 : index
      %173 = vector.load %arg17[%c0_79, %c0_80, %c0_81] : memref<8x16x256xbf16, #tpu.memory_space<vmem>>, vector<8x16x256xbf16>
      tpu.vector_store %arg17[%c0_79, %c0_80, %c0_81], %172 {strides = array<i32>} : memref<8x16x256xbf16, #tpu.memory_space<vmem>>, vector<8x16x256xbf16>,
    } else {
    }
    %c0 = arith.constant 0 : index
    %c0_1 = arith.constant 0 : index
    %c0_2 = arith.constant 0 : index
    %3 = vector.load %arg17[%c0, %c0_1, %c0_2] : memref<8x16x256xbf16, #tpu.memory_space<vmem>>, vector<8x16x256xbf16>
    %4 = arith.extf %3 : vector<8x16x256xbf16> to vector<8x16x256xf32>
    %5 = vector.shape_cast %4 : vector<8x16x256xf32> to vector<128x256xf32>
    %c0_3 = arith.constant 0 : index
    %c0_4 = arith.constant 0 : index
    %c0_5 = arith.constant 0 : index
    %6 = vector.load %arg4[%c0_3, %c0_4, %c0_5] : memref<1x1x256xf32, #tpu.memory_space<vmem>>, vector<1x1x256xf32>
    %7 = vector.shape_cast %6 : vector<1x1x256xf32> to vector<1x256xf32>
    %c0_6 = arith.constant 0 : index
    %c0_7 = arith.constant 0 : index
    %c0_8 = arith.constant 0 : index
    %8 = vector.load %arg5[%c0_6, %c0_7, %c0_8] : memref<1x1x256xf32, #tpu.memory_space<vmem>>, vector<1x1x256xf32>
    %9 = vector.shape_cast %8 : vector<1x1x256xf32> to vector<1x256xf32>
    %cst = arith.constant dense<0.000000e+00> : vector<128xf32>
    %10 = vector.multi_reduction <add>, %5, %cst [1] : vector<128x256xf32> to vector<128xf32>
    %11 = vector.shape_cast %10 : vector<128xf32> to vector<128x1xf32>
    %cst_9 = arith.constant 2.560000e+02 : f32
    %12 = vector.broadcast %cst_9 : f32 to vector<128x1xf32>
    %13 = arith.divf %11, %12 : vector<128x1xf32>
    %14 = vector.broadcast %13 : vector<128x1xf32> to vector<128x256xf32>
    %15 = arith.subf %5, %14 : vector<128x256xf32>
    %16 = arith.mulf %15, %15 : vector<128x256xf32>
    %cst_10 = arith.constant dense<0.000000e+00> : vector<128xf32>
    %17 = vector.multi_reduction <add>, %16, %cst_10 [1] : vector<128x256xf32> to vector<128xf32>
    %18 = vector.shape_cast %17 : vector<128xf32> to vector<128x1xf32>
    %cst_11 = arith.constant 2.560000e+02 : f32
    %19 = vector.broadcast %cst_11 : f32 to vector<128x1xf32>
    %20 = arith.divf %18, %19 : vector<128x1xf32>
    %21 = vector.broadcast %13 : vector<128x1xf32> to vector<128x256xf32>
    %22 = arith.subf %5, %21 : vector<128x256xf32>
    %cst_12 = arith.constant 9.99999974E-6 : f32
    %23 = vector.broadcast %cst_12 : f32 to vector<128x1xf32>
    %24 = arith.addf %20, %23 : vector<128x1xf32>
    %25 = math.rsqrt %24 : vector<128x1xf32>
    %26 = vector.broadcast %25 : vector<128x1xf32> to vector<128x256xf32>
    %27 = arith.mulf %22, %26 : vector<128x256xf32>
    %28 = vector.broadcast %7 : vector<1x256xf32> to vector<128x256xf32>
    %29 = arith.mulf %27, %28 : vector<128x256xf32>
    %30 = vector.broadcast %9 : vector<1x256xf32> to vector<128x256xf32>
    %31 = arith.addf %29, %30 : vector<128x256xf32>
    %32 = arith.truncf %31 : vector<128x256xf32> to vector<128x256xbf16>
    %c0_13 = arith.constant 0 : index
    %c0_14 = arith.constant 0 : index
    %c0_15 = arith.constant 0 : index
    %33 = vector.load %arg6[%c0_13, %c0_14, %c0_15] : memref<1x256x768xbf16, #tpu.memory_space<vmem>>, vector<1x256x768xbf16>
    %34 = vector.shape_cast %33 : vector<1x256x768xbf16> to vector<256x768xbf16>
    %cst_16 = arith.constant dense<0.000000e+00> : vector<128x768xf32>
    %35 = tpu.matmul %32, %34, %cst_16 {dimension_numbers = #tpu.dot_dimension_numbers<[1], [0], [0], [1], [0, 0, 1, 1], [], []>} : vector<128x256xbf16>, vector<256x768xbf16>, vector<128x768xf32> -> vector<128x768xf32>
    %c0_17 = arith.constant 0 : index
    %c0_18 = arith.constant 0 : index
    %c0_19 = arith.constant 0 : index
    %36 = vector.load %arg7[%c0_17, %c0_18, %c0_19] : memref<1x1x768xf32, #tpu.memory_space<vmem>>, vector<1x1x768xf32>
    %37 = vector.shape_cast %36 : vector<1x1x768xf32> to vector<1x768xf32>
    %38 = vector.broadcast %37 : vector<1x768xf32> to vector<128x768xf32>
    %39 = arith.addf %35, %38 : vector<128x768xf32>
    %40 = tpu.iota {dimensions = array<i32: 0>} : vector<16x16xi32>
    %41 = tpu.iota {dimensions = array<i32: 1>} : vector<16x16xi32>
    %42 = arith.cmpi sle, %41, %40 : vector<16x16xi32>
    %cst_20 = arith.constant 0.000000e+00 : f32
    %cst_21 = arith.constant -1.000000e+30 : f32
    %43 = vector.broadcast %cst_20 : f32 to vector<16x16xf32>
    %44 = vector.broadcast %cst_21 : f32 to vector<16x16xf32>
    %45 = arith.select %42, %43, %44 : vector<16x16xi1>, vector<16x16xf32>
    %46 = vector.extract_strided_slice %39 {offsets = [0, 0], sizes = [128, 128], strides = [1, 1]} : vector<128x768xf32> to vector<128x128xf32>
    %cst_22 = arith.constant 0.0883883461 : f32
    %47 = vector.broadcast %cst_22 : f32 to vector<128x128xf32>
    %48 = arith.mulf %46, %47 : vector<128x128xf32>
    %49 = arith.truncf %48 : vector<128x128xf32> to vector<128x128xbf16>
    %50 = vector.shape_cast %49 : vector<128x128xbf16> to vector<8x16x128xbf16>
    %51 = vector.extract_strided_slice %39 {offsets = [0, 256], sizes = [128, 128], strides = [1, 1]} : vector<128x768xf32> to vector<128x128xf32>
    %52 = arith.truncf %51 : vector<128x128xf32> to vector<128x128xbf16>
    %53 = vector.shape_cast %52 : vector<128x128xbf16> to vector<8x16x128xbf16>
    %54 = vector.extract_strided_slice %39 {offsets = [0, 512], sizes = [128, 128], strides = [1, 1]} : vector<128x768xf32> to vector<128x128xf32>
    %55 = arith.truncf %54 : vector<128x128xf32> to vector<128x128xbf16>
    %56 = vector.shape_cast %55 : vector<128x128xbf16> to vector<8x16x128xbf16>
    "tpu.trace_start"() <{level = 10 : i32, message = "bqe,bke->bqk"}> : () -> ()
    %cst_23 = arith.constant dense<0.000000e+00> : vector<8x16x16xf32>
    %57 = tpu.matmul %50, %53, %cst_23 {dimension_numbers = #tpu.dot_dimension_numbers<[2], [2], [1], [1], [0, 0, 0, 1, 1, 1], [0], [0]>} : vector<8x16x128xbf16>, vector<8x16x128xbf16>, vector<8x16x16xf32> -> vector<8x16x16xf32>
    "tpu.trace_stop"() : () -> ()
    %58 = vector.shape_cast %45 : vector<16x16xf32> to vector<1x16x16xf32>
    %59 = vector.broadcast %58 : vector<1x16x16xf32> to vector<8x16x16xf32>
    %60 = arith.addf %57, %59 : vector<8x16x16xf32>
    %cst_24 = arith.constant dense<0xFF800000> : vector<8x16xf32>
    %61 = vector.multi_reduction <maximumf>, %60, %cst_24 [2] : vector<8x16x16xf32> to vector<8x16xf32>
    %62 = vector.shape_cast %61 : vector<8x16xf32> to vector<8x16x1xf32>
    %63 = vector.broadcast %62 : vector<8x16x1xf32> to vector<8x16x16xf32>
    %64 = arith.subf %60, %63 : vector<8x16x16xf32>
    %65 = math.exp %64 : vector<8x16x16xf32>
    %cst_25 = arith.constant dense<0.000000e+00> : vector<8x16xf32>
    %66 = vector.multi_reduction <add>, %65, %cst_25 [2] : vector<8x16x16xf32> to vector<8x16xf32>
    %67 = vector.shape_cast %66 : vector<8x16xf32> to vector<8x16x1xf32>
    %68 = tpu.reciprocal %67 {approx = true} : vector<8x16x1xf32> -> vector<8x16x1xf32>
    %69 = vector.broadcast %68 : vector<8x16x1xf32> to vector<8x16x16xf32>
    %70 = arith.mulf %65, %69 : vector<8x16x16xf32>
    %71 = arith.truncf %70 : vector<8x16x16xf32> to vector<8x16x16xbf16>
    "tpu.trace_start"() <{level = 10 : i32, message = "bqk,bke->bqe"}> : () -> ()
    %cst_26 = arith.constant dense<0.000000e+00> : vector<8x16x128xf32>
    %72 = tpu.matmul %71, %56, %cst_26 {dimension_numbers = #tpu.dot_dimension_numbers<[2], [1], [1], [2], [0, 0, 0, 1, 1, 2], [0], [0]>} : vector<8x16x16xbf16>, vector<8x16x128xbf16>, vector<8x16x128xf32> -> vector<8x16x128xf32>
    "tpu.trace_stop"() : () -> ()
    %73 = vector.extract_strided_slice %39 {offsets = [0, 128], sizes = [128, 128], strides = [1, 1]} : vector<128x768xf32> to vector<128x128xf32>
    %cst_27 = arith.constant 0.0883883461 : f32
    %74 = vector.broadcast %cst_27 : f32 to vector<128x128xf32>
    %75 = arith.mulf %73, %74 : vector<128x128xf32>
    %76 = arith.truncf %75 : vector<128x128xf32> to vector<128x128xbf16>
    %77 = vector.shape_cast %76 : vector<128x128xbf16> to vector<8x16x128xbf16>
    %78 = vector.extract_strided_slice %39 {offsets = [0, 384], sizes = [128, 128], strides = [1, 1]} : vector<128x768xf32> to vector<128x128xf32>
    %79 = arith.truncf %78 : vector<128x128xf32> to vector<128x128xbf16>
    %80 = vector.shape_cast %79 : vector<128x128xbf16> to vector<8x16x128xbf16>
    %81 = vector.extract_strided_slice %39 {offsets = [0, 640], sizes = [128, 128], strides = [1, 1]} : vector<128x768xf32> to vector<128x128xf32>
    %82 = arith.truncf %81 : vector<128x128xf32> to vector<128x128xbf16>
    %83 = vector.shape_cast %82 : vector<128x128xbf16> to vector<8x16x128xbf16>
    "tpu.trace_start"() <{level = 10 : i32, message = "bqe,bke->bqk"}> : () -> ()
    %cst_28 = arith.constant dense<0.000000e+00> : vector<8x16x16xf32>
    %84 = tpu.matmul %77, %80, %cst_28 {dimension_numbers = #tpu.dot_dimension_numbers<[2], [2], [1], [1], [0, 0, 0, 1, 1, 1], [0], [0]>} : vector<8x16x128xbf16>, vector<8x16x128xbf16>, vector<8x16x16xf32> -> vector<8x16x16xf32>
    "tpu.trace_stop"() : () -> ()
    %85 = vector.shape_cast %45 : vector<16x16xf32> to vector<1x16x16xf32>
    %86 = vector.broadcast %85 : vector<1x16x16xf32> to vector<8x16x16xf32>
    %87 = arith.addf %84, %86 : vector<8x16x16xf32>
    %cst_29 = arith.constant dense<0xFF800000> : vector<8x16xf32>
    %88 = vector.multi_reduction <maximumf>, %87, %cst_29 [2] : vector<8x16x16xf32> to vector<8x16xf32>
    %89 = vector.shape_cast %88 : vector<8x16xf32> to vector<8x16x1xf32>
    %90 = vector.broadcast %89 : vector<8x16x1xf32> to vector<8x16x16xf32>
    %91 = arith.subf %87, %90 : vector<8x16x16xf32>
    %92 = math.exp %91 : vector<8x16x16xf32>
    %cst_30 = arith.constant dense<0.000000e+00> : vector<8x16xf32>
    %93 = vector.multi_reduction <add>, %92, %cst_30 [2] : vector<8x16x16xf32> to vector<8x16xf32>
    %94 = vector.shape_cast %93 : vector<8x16xf32> to vector<8x16x1xf32>
    %95 = tpu.reciprocal %94 {approx = true} : vector<8x16x1xf32> -> vector<8x16x1xf32>
    %96 = vector.broadcast %95 : vector<8x16x1xf32> to vector<8x16x16xf32>
    %97 = arith.mulf %92, %96 : vector<8x16x16xf32>
    %98 = arith.truncf %97 : vector<8x16x16xf32> to vector<8x16x16xbf16>
    "tpu.trace_start"() <{level = 10 : i32, message = "bqk,bke->bqe"}> : () -> ()
    %cst_31 = arith.constant dense<0.000000e+00> : vector<8x16x128xf32>
    %99 = tpu.matmul %98, %83, %cst_31 {dimension_numbers = #tpu.dot_dimension_numbers<[2], [1], [1], [2], [0, 0, 0, 1, 1, 2], [0], [0]>} : vector<8x16x16xbf16>, vector<8x16x128xbf16>, vector<8x16x128xf32> -> vector<8x16x128xf32>
    "tpu.trace_stop"() : () -> ()
    %100 = tpu.concatenate %72, %99 in 2 : vector<8x16x128xf32>, vector<8x16x128xf32> -> vector<8x16x256xf32>
    %101 = vector.shape_cast %100 : vector<8x16x256xf32> to vector<128x256xf32>
    %102 = arith.truncf %101 : vector<128x256xf32> to vector<128x256xbf16>
    %c0_32 = arith.constant 0 : index
    %c0_33 = arith.constant 0 : index
    %c0_34 = arith.constant 0 : index
    %103 = vector.load %arg8[%c0_32, %c0_33, %c0_34] : memref<1x256x256xbf16, #tpu.memory_space<vmem>>, vector<1x256x256xbf16>
    %104 = vector.shape_cast %103 : vector<1x256x256xbf16> to vector<256x256xbf16>
    %cst_35 = arith.constant dense<0.000000e+00> : vector<128x256xf32>
    %105 = tpu.matmul %102, %104, %cst_35 {dimension_numbers = #tpu.dot_dimension_numbers<[1], [0], [0], [1], [0, 0, 1, 1], [], []>} : vector<128x256xbf16>, vector<256x256xbf16>, vector<128x256xf32> -> vector<128x256xf32>
    %106 = arith.addf %5, %105 : vector<128x256xf32>
    %c0_36 = arith.constant 0 : index
    %c0_37 = arith.constant 0 : index
    %c0_38 = arith.constant 0 : index
    %107 = vector.load %arg9[%c0_36, %c0_37, %c0_38] : memref<1x1x256xf32, #tpu.memory_space<vmem>>, vector<1x1x256xf32>
    %108 = vector.shape_cast %107 : vector<1x1x256xf32> to vector<1x256xf32>
    %109 = vector.broadcast %108 : vector<1x256xf32> to vector<128x256xf32>
    %110 = arith.addf %106, %109 : vector<128x256xf32>
    %c0_39 = arith.constant 0 : index
    %c0_40 = arith.constant 0 : index
    %c0_41 = arith.constant 0 : index
    %111 = vector.load %arg10[%c0_39, %c0_40, %c0_41] : memref<1x1x256xf32, #tpu.memory_space<vmem>>, vector<1x1x256xf32>
    %112 = vector.shape_cast %111 : vector<1x1x256xf32> to vector<1x256xf32>
    %c0_42 = arith.constant 0 : index
    %c0_43 = arith.constant 0 : index
    %c0_44 = arith.constant 0 : index
    %113 = vector.load %arg11[%c0_42, %c0_43, %c0_44] : memref<1x1x256xf32, #tpu.memory_space<vmem>>, vector<1x1x256xf32>
    %114 = vector.shape_cast %113 : vector<1x1x256xf32> to vector<1x256xf32>
    %cst_45 = arith.constant dense<0.000000e+00> : vector<128xf32>
    %115 = vector.multi_reduction <add>, %110, %cst_45 [1] : vector<128x256xf32> to vector<128xf32>
    %116 = vector.shape_cast %115 : vector<128xf32> to vector<128x1xf32>
    %cst_46 = arith.constant 2.560000e+02 : f32
    %117 = vector.broadcast %cst_46 : f32 to vector<128x1xf32>
    %118 = arith.divf %116, %117 : vector<128x1xf32>
    %119 = vector.broadcast %118 : vector<128x1xf32> to vector<128x256xf32>
    %120 = arith.subf %110, %119 : vector<128x256xf32>
    %121 = arith.mulf %120, %120 : vector<128x256xf32>
    %cst_47 = arith.constant dense<0.000000e+00> : vector<128xf32>
    %122 = vector.multi_reduction <add>, %121, %cst_47 [1] : vector<128x256xf32> to vector<128xf32>
    %123 = vector.shape_cast %122 : vector<128xf32> to vector<128x1xf32>
    %cst_48 = arith.constant 2.560000e+02 : f32
    %124 = vector.broadcast %cst_48 : f32 to vector<128x1xf32>
    %125 = arith.divf %123, %124 : vector<128x1xf32>
    %126 = vector.broadcast %118 : vector<128x1xf32> to vector<128x256xf32>
    %127 = arith.subf %110, %126 : vector<128x256xf32>
    %cst_49 = arith.constant 9.99999974E-6 : f32
    %128 = vector.broadcast %cst_49 : f32 to vector<128x1xf32>
    %129 = arith.addf %125, %128 : vector<128x1xf32>
    %130 = math.rsqrt %129 : vector<128x1xf32>
    %131 = vector.broadcast %130 : vector<128x1xf32> to vector<128x256xf32>
    %132 = arith.mulf %127, %131 : vector<128x256xf32>
    %133 = vector.broadcast %112 : vector<1x256xf32> to vector<128x256xf32>
    %134 = arith.mulf %132, %133 : vector<128x256xf32>
    %135 = vector.broadcast %114 : vector<1x256xf32> to vector<128x256xf32>
    %136 = arith.addf %134, %135 : vector<128x256xf32>
    %137 = arith.truncf %136 : vector<128x256xf32> to vector<128x256xbf16>
    %c0_50 = arith.constant 0 : index
    %c0_51 = arith.constant 0 : index
    %c0_52 = arith.constant 0 : index
    %138 = vector.load %arg12[%c0_50, %c0_51, %c0_52] : memref<1x256x1024xbf16, #tpu.memory_space<vmem>>, vector<1x256x1024xbf16>
    %139 = vector.shape_cast %138 : vector<1x256x1024xbf16> to vector<256x1024xbf16>
    %cst_53 = arith.constant dense<0.000000e+00> : vector<128x1024xf32>
    %140 = tpu.matmul %137, %139, %cst_53 {dimension_numbers = #tpu.dot_dimension_numbers<[1], [0], [0], [1], [0, 0, 1, 1], [], []>} : vector<128x256xbf16>, vector<256x1024xbf16>, vector<128x1024xf32> -> vector<128x1024xf32>
    %c0_54 = arith.constant 0 : index
    %c0_55 = arith.constant 0 : index
    %c0_56 = arith.constant 0 : index
    %141 = vector.load %arg13[%c0_54, %c0_55, %c0_56] : memref<1x1x1024xf32, #tpu.memory_space<vmem>>, vector<1x1x1024xf32>
    %142 = vector.shape_cast %141 : vector<1x1x1024xf32> to vector<1x1024xf32>
    %143 = vector.broadcast %142 : vector<1x1024xf32> to vector<128x1024xf32>
    %144 = arith.addf %140, %143 : vector<128x1024xf32>
    %cst_57 = arith.constant 1.702000e+00 : f32
    %145 = vector.broadcast %cst_57 : f32 to vector<128x1024xf32>
    %146 = arith.mulf %145, %144 : vector<128x1024xf32>
    %147 = arith.negf %146 : vector<128x1024xf32>
    %148 = math.exp %147 : vector<128x1024xf32>
    %cst_58 = arith.constant 1.000000e+00 : f32
    %149 = vector.broadcast %cst_58 : f32 to vector<128x1024xf32>
    %150 = arith.addf %149, %148 : vector<128x1024xf32>
    %151 = arith.divf %149, %150 : vector<128x1024xf32>
    %152 = arith.mulf %144, %151 : vector<128x1024xf32>
    %153 = arith.truncf %152 : vector<128x1024xf32> to vector<128x1024xbf16>
    %c0_59 = arith.constant 0 : index
    %c0_60 = arith.constant 0 : index
    %c0_61 = arith.constant 0 : index
    %154 = vector.load %arg14[%c0_59, %c0_60, %c0_61] : memref<1x1024x256xbf16, #tpu.memory_space<vmem>>, vector<1x1024x256xbf16>
    %155 = vector.shape_cast %154 : vector<1x1024x256xbf16> to vector<1024x256xbf16>
    %cst_62 = arith.constant dense<0.000000e+00> : vector<128x256xf32>
    %156 = tpu.matmul %153, %155, %cst_62 {dimension_numbers = #tpu.dot_dimension_numbers<[1], [0], [0], [1], [0, 0, 1, 1], [], []>} : vector<128x1024xbf16>, vector<1024x256xbf16>, vector<128x256xf32> -> vector<128x256xf32>
    %c0_63 = arith.constant 0 : index
    %c0_64 = arith.constant 0 : index
    %c0_65 = arith.constant 0 : index
    %157 = vector.load %arg15[%c0_63, %c0_64, %c0_65] : memref<1x1x256xf32, #tpu.memory_space<vmem>>, vector<1x1x256xf32>
    %158 = vector.shape_cast %157 : vector<1x1x256xf32> to vector<1x256xf32>
    %159 = vector.broadcast %158 : vector<1x256xf32> to vector<128x256xf32>
    %160 = arith.addf %156, %159 : vector<128x256xf32>
    %161 = arith.addf %110, %160 : vector<128x256xf32>
    %162 = arith.truncf %161 : vector<128x256xf32> to vector<128x256xbf16>
    %163 = vector.shape_cast %162 : vector<128x256xbf16> to vector<8x16x256xbf16>
    %c0_66 = arith.constant 0 : index
    %c0_67 = arith.constant 0 : index
    %c0_68 = arith.constant 0 : index
    %164 = vector.load %arg17[%c0_66, %c0_67, %c0_68] : memref<8x16x256xbf16, #tpu.memory_space<vmem>>, vector<8x16x256xbf16>
    tpu.vector_store %arg17[%c0_66, %c0_67, %c0_68], %163 {strides = array<i32>} : memref<8x16x256xbf16, #tpu.memory_space<vmem>>, vector<8x16x256xbf16>,
    %c0_69 = arith.constant 0 : index
    %c0_70 = arith.constant 0 : index
    %c0_71 = arith.constant 0 : index
    %165 = vector.load %arg3[%c0_69, %c0_70, %c0_71] : memref<1x8x128xbf16, #tpu.memory_space<vmem>>, vector<1x8x128xbf16>
    %166 = vector.shape_cast %165 : vector<1x8x128xbf16> to vector<8x128xbf16>
    %cst_72 = arith.constant dense<0.000000e+00> : vector<8x256xf32>
    %167 = tpu.matmul %166, %162, %cst_72 {dimension_numbers = #tpu.dot_dimension_numbers<[1], [0], [0], [1], [0, 0, 1, 1], [], []>} : vector<8x128xbf16>, vector<128x256xbf16>, vector<8x256xf32> -> vector<8x256xf32>
    %168 = arith.truncf %167 : vector<8x256xf32> to vector<8x256xbf16>
    %c0_73 = arith.constant 0 : index
    %c0_74 = arith.constant 0 : index
    %c0_75 = arith.constant 0 : index
    %169 = vector.load %arg16[%c0_73, %c0_74, %c0_75] : memref<1x8x256xbf16, #tpu.memory_space<vmem>>, vector<1x8x256xbf16>
    %170 = vector.shape_cast %169 : vector<1x8x256xbf16> to vector<8x256xbf16>
    %171 = vector.shape_cast %168 : vector<8x256xbf16> to vector<1x8x256xbf16>
    tpu.vector_store %arg16[%c0_73, %c0_74, %c0_75], %171 {strides = array<i32>} : memref<1x8x256xbf16, #tpu.memory_space<vmem>>, vector<1x8x256xbf16>,
    return
  }
  func.func @transform_0(%arg0: i32, %arg1: i32) -> (i32, i32, i32) {
    %c0_i32 = arith.constant 0 : i32
    %c0_i32_0 = arith.constant 0 : i32
    %c0_i32_1 = arith.constant 0 : i32
    return %arg0, %c0_i32, %c0_i32_0 : i32, i32, i32
  }
  func.func @transform_1(%arg0: i32, %arg1: i32) -> (i32, i32, i32) {
    %c0_i32 = arith.constant 0 : i32
    %c0_i32_0 = arith.constant 0 : i32
    %c0_i32_1 = arith.constant 0 : i32
    return %arg0, %c0_i32, %c0_i32_0 : i32, i32, i32
  }
  func.func @transform_2(%arg0: i32, %arg1: i32) -> (i32, i32, i32) {
    %c0_i32 = arith.constant 0 : i32
    %c0_i32_0 = arith.constant 0 : i32
    %c0_i32_1 = arith.constant 0 : i32
    return %arg1, %c0_i32, %c0_i32_0 : i32, i32, i32
  }
  func.func @transform_3(%arg0: i32, %arg1: i32) -> (i32, i32, i32) {
    %c0_i32 = arith.constant 0 : i32
    %c0_i32_0 = arith.constant 0 : i32
    %c0_i32_1 = arith.constant 0 : i32
    return %arg1, %c0_i32, %c0_i32_0 : i32, i32, i32
  }
  func.func @transform_4(%arg0: i32, %arg1: i32) -> (i32, i32, i32) {
    %c0_i32 = arith.constant 0 : i32
    %c0_i32_0 = arith.constant 0 : i32
    %c0_i32_1 = arith.constant 0 : i32
    return %arg1, %c0_i32, %c0_i32_0 : i32, i32, i32
  }
  func.func @transform_5(%arg0: i32, %arg1: i32) -> (i32, i32, i32) {
    %c0_i32 = arith.constant 0 : i32
    %c0_i32_0 = arith.constant 0 : i32
    %c0_i32_1 = arith.constant 0 : i32
    return %arg1, %c0_i32, %c0_i32_0 : i32, i32, i32
  }
  func.func @transform_6(%arg0: i32, %arg1: i32) -> (i32, i32, i32) {
    %c0_i32 = arith.constant 0 : i32
    %c0_i32_0 = arith.constant 0 : i32
    %c0_i32_1 = arith.constant 0 : i32
    return %arg1, %c0_i32, %c0_i32_0 : i32, i32, i32
  }
  func.func @transform_7(%arg0: i32, %arg1: i32) -> (i32, i32, i32) {
    %c0_i32 = arith.constant 0 : i32
    %c0_i32_0 = arith.constant 0 : i32
    %c0_i32_1 = arith.constant 0 : i32
    return %arg1, %c0_i32, %c0_i32_0 : i32, i32, i32
  }
  func.func @transform_8(%arg0: i32, %arg1: i32) -> (i32, i32, i32) {
    %c0_i32 = arith.constant 0 : i32
    %c0_i32_0 = arith.constant 0 : i32
    %c0_i32_1 = arith.constant 0 : i32
    return %arg1, %c0_i32, %c0_i32_0 : i32, i32, i32
  }
  func.func @transform_9(%arg0: i32, %arg1: i32) -> (i32, i32, i32) {
    %c0_i32 = arith.constant 0 : i32
    %c0_i32_0 = arith.constant 0 : i32
    %c0_i32_1 = arith.constant 0 : i32
    return %arg1, %c0_i32, %c0_i32_0 : i32, i32, i32
  }
  func.func @transform_10(%arg0: i32, %arg1: i32) -> (i32, i32, i32) {
    %c0_i32 = arith.constant 0 : i32
    %c0_i32_0 = arith.constant 0 : i32
    %c0_i32_1 = arith.constant 0 : i32
    return %arg1, %c0_i32, %c0_i32_0 : i32, i32, i32
  }
  func.func @transform_11(%arg0: i32, %arg1: i32) -> (i32, i32, i32) {
    %c0_i32 = arith.constant 0 : i32
    %c0_i32_0 = arith.constant 0 : i32
    %c0_i32_1 = arith.constant 0 : i32
    return %arg1, %c0_i32, %c0_i32_0 : i32, i32, i32
  }
  func.func @transform_12(%arg0: i32, %arg1: i32) -> (i32, i32, i32) {
    %c0_i32 = arith.constant 0 : i32
    %c0_i32_0 = arith.constant 0 : i32
    %c0_i32_1 = arith.constant 0 : i32
    return %arg1, %c0_i32, %c0_i32_0 : i32, i32, i32
  }
  func.func @transform_13(%arg0: i32, %arg1: i32) -> (i32, i32, i32) {
    %c0_i32 = arith.constant 0 : i32
    %c0_i32_0 = arith.constant 0 : i32
    %c0_i32_1 = arith.constant 0 : i32
    return %arg1, %c0_i32, %c0_i32_0 : i32, i32, i32
  }
  func.func @transform_14(%arg0: i32, %arg1: i32) -> (i32, i32, i32) {
    %c0_i32 = arith.constant 0 : i32
    %c0_i32_0 = arith.constant 0 : i32
    return %arg1, %arg0, %c0_i32 : i32, i32, i32
  }
}

</mosaic_0001>

<llo_original>
// kernel: _forward_impl.3
$region0: #{_forward_impl.3}
  #allocation0 [shape = 'u32[]', space=smem, size = 0x4, offset = 0x4, fixed_abs, tag = 'smem constant byte address 0x4 - core index']
  #allocation1 [shape = 'u32[144,128]{1,0:T(1,128)}', space=vmem, size = 0x12000, scoped, tag = 'internal scratch']
  %s0 = inlined_call_operand.vmem [shape: bf16[8,256], index: 0, kind: input, shape index: {}]
  %s1 = inlined_call_operand.vmem [shape: f32[1,256], index: 1, kind: input, shape index: {}]
  %s2 = inlined_call_operand.vmem [shape: f32[1,256], index: 2, kind: input, shape index: {}]
  %s3 = inlined_call_operand.vmem [shape: bf16[256,128], index: 3, kind: input, shape index: {}]
  %s4 = inlined_call_operand.hbm [shape: bf16[8,128], index: 4, kind: output, shape index: {}]
  %s5 = sld [smem:[#allocation0]]
  $region26: #{_forward_impl.3} parent=0
    _
  %s7 = ssub.s32 1, %s5
  %s8 = scalar_select 0, %s7, %s5
  $region1: #{_forward_impl.3} parent=0
    #allocation2 [shape = 'u8[2048]{0}', space=vmem, size = 0x800, scoped, tag = 'output window, operand 0, single buffered']
    #allocation3 [shape = 's32[1]{0}', space=sflag, size = 0x4, scoped, tag = 'scoped memory for _forward_impl.3']
    %9 = vsyncpa [#allocation3], 0
    // Predicated region
    $region2: #{_forward_impl.3} parent=1 // pred_check
      _
    $region3: #{_forward_impl.3} parent=1 // pred_check_branch
      %11 = sbr.rel (0) target = $region5
    $region4: #{_forward_impl.3} parent=1 // pred_region
      _
    $region5: #{_forward_impl.3} parent=1 // pred_fallthru
      _
    // Predicated region
    $region6: #{_forward_impl.3} parent=1 // pred_check
      _
    $region7: #{_forward_impl.3} parent=1 // pred_check_branch
      %13 = sbr.rel (0) target = $region9
    $region8: #{_forward_impl.3} parent=1 // pred_region
      _
    $region9: #{_forward_impl.3} parent=1 // pred_fallthru
      _
    // Predicated region
    $region10: #{_forward_impl.3} parent=1 // pred_check
      _
    $region11: #{_forward_impl.3} parent=1 // pred_check_branch
      %15 = sbr.rel (0) target = $region13
    $region12: #{_forward_impl.3} parent=1 // pred_region
      _
    $region13: #{_forward_impl.3} parent=1 // pred_fallthru
      _
    // Predicated region
    $region14: #{_forward_impl.3} parent=1 // pred_check
      _
    $region15: #{_forward_impl.3} parent=1 // pred_check_branch
      %17 = sbr.rel (0) target = $region17
    $region16: #{_forward_impl.3} parent=1 // pred_region
      _
    $region17: #{_forward_impl.3} parent=1 // pred_fallthru
      _
    %v19 = vld [vmem:[%s0] sm:$0xff]
    %v20 = vunpack.c.l.bf16 %v19
    %v21 = vunpack.c.h.bf16 %v19
    %v22 = vld [vmem:[%s1] sm:$0x3]
    %v23 = vld [vmem:[%s2] sm:$0x3]
    %v24 = vadd.f32 %v20, %v21
    %25 = vadd.xlane.f32.xlu0 %v24
    %v26 = vpop.xlane.xlu0 %25
    %v27 = vrcp.pop 256.0
    %v28 = vmul.f32 %v26, %v27
    %v29 = vsub.f32 %v20, %v28
    %v30 = vsub.f32 %v21, %v28
    %v31 = vmul.f32 %v29, %v29
    %v32 = vmul.f32 %v30, %v30
    %v33 = vadd.f32 %v31, %v32
    %34 = vadd.xlane.f32.xlu0 %v33
    %v35 = vpop.xlane.xlu0 %34
    %v36 = vmul.f32 %v35, %v27
    %v37 = vadd.f32 %v36, 1e-05
    %v38 = vrsqrt.pop %v37
    %v39 = vmul.f32 %v29, %v38
    %v40 = vmul.f32 %v30, %v38
    %v42 = vlaneseq
    %v43 = vshrl.u32 %v42, 7
    %v44 = vsub.s32 0, %v43
    %v45 = vrot.slane %v22, %v44
    %v46 = vlaneseq
    %v47 = vshrl.u32 %v46, 7
    %v48 = vsub.s32 1, %v47
    %v49 = vrot.slane %v22, %v48
    %v52 = vmul.f32 %v39, %v45
    %v53 = vmul.f32 %v40, %v49
    %v55 = vlaneseq
    %v56 = vshrl.u32 %v55, 7
    %v57 = vsub.s32 0, %v56
    %v58 = vrot.slane %v23, %v57
    %v59 = vlaneseq
    %v60 = vshrl.u32 %v59, 7
    %v61 = vsub.s32 1, %v60
    %v62 = vrot.slane %v23, %v61
    %v65 = vadd.f32 %v52, %v58
    %v66 = vadd.f32 %v53, %v62
    %v67 = vpack.c.bf16 %v65, %v65
    %v68 = vpack.c.bf16 %v66, %v66
    %v69 = vld [vmem:[%s3] sm:$0xf]
    %v70 = vld [vmem:[%s3 + $0x4] sm:$0xf]
    %v71 = vld [vmem:[%s3 + $0x8] sm:$0xf]
    %v72 = vld [vmem:[%s3 + $0xc] sm:$0xf]
    %v73 = vld [vmem:[%s3 + $0x10] sm:$0xf]
    %v74 = vld [vmem:[%s3 + $0x14] sm:$0xf]
    %v75 = vld [vmem:[%s3 + $0x18] sm:$0xf]
    %v76 = vld [vmem:[%s3 + $0x1c] sm:$0xf]
    %v77 = vld [vmem:[%s3 + $0x20] sm:$0xf]
    %v78 = vld [vmem:[%s3 + $0x24] sm:$0xf]
    %v79 = vld [vmem:[%s3 + $0x28] sm:$0xf]
    %v80 = vld [vmem:[%s3 + $0x2c] sm:$0xf]
    %v81 = vld [vmem:[%s3 + $0x30] sm:$0xf]
    %v82 = vld [vmem:[%s3 + $0x34] sm:$0xf]
    %v83 = vld [vmem:[%s3 + $0x38] sm:$0xf]
    %v84 = vld [vmem:[%s3 + $0x3c] sm:$0xf]
    %v85 = vld [vmem:[%s3 + $0x40] sm:$0xf]
    %v86 = vld [vmem:[%s3 + $0x44] sm:$0xf]
    %v87 = vld [vmem:[%s3 + $0x48] sm:$0xf]
    %v88 = vld [vmem:[%s3 + $0x4c] sm:$0xf]
    %v89 = vld [vmem:[%s3 + $0x50] sm:$0xf]
    %v90 = vld [vmem:[%s3 + $0x54] sm:$0xf]
    %v91 = vld [vmem:[%s3 + $0x58] sm:$0xf]
    %v92 = vld [vmem:[%s3 + $0x5c] sm:$0xf]
    %v93 = vld [vmem:[%s3 + $0x60] sm:$0xf]
    %v94 = vld [vmem:[%s3 + $0x64] sm:$0xf]
    %v95 = vld [vmem:[%s3 + $0x68] sm:$0xf]
    %v96 = vld [vmem:[%s3 + $0x6c] sm:$0xf]
    %v97 = vld [vmem:[%s3 + $0x70] sm:$0xf]
    %v98 = vld [vmem:[%s3 + $0x74] sm:$0xf]
    %v99 = vld [vmem:[%s3 + $0x78] sm:$0xf]
    %v100 = vld [vmem:[%s3 + $0x7c] sm:$0xf]
    %v133 = vunpack.c.l.b16 %v69
    %v134 = vunpack.c.l.b16 %v70
    %v135 = vunpack.c.l.b16 %v71
    %v136 = vunpack.c.l.b16 %v72
    %v137 = vunpack.c.l.b16 %v73
    %v138 = vunpack.c.l.b16 %v74
    %v139 = vunpack.c.l.b16 %v75
    %v140 = vunpack.c.l.b16 %v76
    %v141 = vunpack.c.l.b16 %v77
    %v142 = vunpack.c.l.b16 %v78
    %v143 = vunpack.c.l.b16 %v79
    %v144 = vunpack.c.l.b16 %v80
    %v145 = vunpack.c.l.b16 %v81
    %v146 = vunpack.c.l.b16 %v82
    %v147 = vunpack.c.l.b16 %v83
    %v148 = vunpack.c.l.b16 %v84
    %v149 = vunpack.c.l.b16 %v85
    %v150 = vunpack.c.l.b16 %v86
    %v151 = vunpack.c.l.b16 %v87
    %v152 = vunpack.c.l.b16 %v88
    %v153 = vunpack.c.l.b16 %v89
    %v154 = vunpack.c.l.b16 %v90
    %v155 = vunpack.c.l.b16 %v91
    %v156 = vunpack.c.l.b16 %v92
    %v157 = vunpack.c.l.b16 %v93
    %v158 = vunpack.c.l.b16 %v94
    %v159 = vunpack.c.l.b16 %v95
    %v160 = vunpack.c.l.b16 %v96
    %v161 = vunpack.c.l.b16 %v97
    %v162 = vunpack.c.l.b16 %v98
    %v163 = vunpack.c.l.b16 %v99
    %v164 = vunpack.c.l.b16 %v100
    %v165 = vpack.c.b16 %v134, %v133
    %v166 = vpack.c.b16 %v136, %v135
    %v167 = vpack.c.b16 %v138, %v137
    %v168 = vpack.c.b16 %v140, %v139
    %v169 = vpack.c.b16 %v142, %v141
    %v170 = vpack.c.b16 %v144, %v143
    %v171 = vpack.c.b16 %v146, %v145
    %v172 = vpack.c.b16 %v148, %v147
    %v173 = vpack.c.b16 %v150, %v149
    %v174 = vpack.c.b16 %v152, %v151
    %v175 = vpack.c.b16 %v154, %v153
    %v176 = vpack.c.b16 %v156, %v155
    %v177 = vpack.c.b16 %v158, %v157
    %v178 = vpack.c.b16 %v160, %v159
    %v179 = vpack.c.b16 %v162, %v161
    %v180 = vpack.c.b16 %v164, %v163
    %197 = vmatprep.subr.bf16.mxu0 0
    %198 = vmatpush1.bf16.msra.mxu0 %v165
    %199 = vmatprep.subr.bf16.mxu0 0
    %200 = vmatpush1.bf16.msra.mxu0 %v166
    %201 = vmatprep.subr.bf16.mxu0 0
    %202 = vmatpush1.bf16.msra.mxu0 %v167
    %203 = vmatprep.subr.bf16.mxu0 0
    %204 = vmatpush1.bf16.msra.mxu0 %v168
    %205 = vmatprep.subr.bf16.mxu0 0
    %206 = vmatpush1.bf16.msra.mxu0 %v169
    %207 = vmatprep.subr.bf16.mxu0 0
    %208 = vmatpush1.bf16.msra.mxu0 %v170
    %209 = vmatprep.subr.bf16.mxu0 0
    %210 = vmatpush1.bf16.msra.mxu0 %v171
    %211 = vmatprep.subr.bf16.mxu0 0
    %212 = vmatpush1.bf16.msra.mxu0 %v172
    %213 = vmatprep.subr.bf16.mxu0 0
    %214 = vmatpush1.bf16.msra.mxu0 %v173
    %215 = vmatprep.subr.bf16.mxu0 0
    %216 = vmatpush1.bf16.msra.mxu0 %v174
    %217 = vmatprep.subr.bf16.mxu0 0
    %218 = vmatpush1.bf16.msra.mxu0 %v175
    %219 = vmatprep.subr.bf16.mxu0 0
    %220 = vmatpush1.bf16.msra.mxu0 %v176
    %221 = vmatprep.subr.bf16.mxu0 0
    %222 = vmatpush1.bf16.msra.mxu0 %v177
    %223 = vmatprep.subr.bf16.mxu0 0
    %224 = vmatpush1.bf16.msra.mxu0 %v178
    %225 = vmatprep.subr.bf16.mxu0 0
    %226 = vmatpush1.bf16.msra.mxu0 %v179
    %227 = vmatprep.subr.bf16.mxu0 0
    %228 = vmatpush1.bf16.msra.mxu0 %v180
    %229 = vmatprep.mubr.bf16.mxu0 %v68
    %230 = vmatmul.mubr.bf16.gmra.mrb[0].mxu0 %v67
    %v231 = vpop.f32.mrb[0].mxu0
    %v232 = vadd.f32 0.0, %v231
    %v233 = vpop.f32.mrb[0].mxu0
    %v234 = vpop.f32.mrb[0].mxu0
    %v235 = vpop.f32.mrb[0].mxu0
    %236 = vdwg.mxu0
    %v237 = vpack.c.bf16 %v232, %v232
    %238 = vst [vmem:[#allocation2] sm:$0xf] %v237
    // Predicated region
    $region18: #{_forward_impl.3} parent=1 // pred_check
      _
    $region19: #{_forward_impl.3} parent=1 // pred_check_branch
      %240 = sbr.rel (0) target = $region21
    $region20: #{_forward_impl.3} parent=1 // pred_region
      %s242 = ssub.s32 64, 64
      %243 = vsyncadd [#allocation3], %s242
      %s245 = sshll.u32 [#allocation2], 4
      %s246 = int_to_ptr.vmem [resolvable:$true] %s245
      %248 = dma.vmem_to_hbm [thread:$0]  %s246, 64, %s4, [#allocation3]
    $region21: #{_forward_impl.3} parent=1 // pred_fallthru
      _
    // Predicated region
    $region22: #{_forward_impl.3} parent=1 // pred_check
      _
    $region23: #{_forward_impl.3} parent=1 // pred_check_branch
      %250 = sbr.rel (0) target = $region25
    $region24: #{_forward_impl.3} parent=1 // pred_region
      %251 = dma.done [#allocation3], 64
    $region25: #{_forward_impl.3} parent=1 // pred_fallthru
      _
    %252 = vsyncpa [#allocation3], 1

// kernel: _forward_impl.2
$region0: #{_forward_impl.2}
  #allocation0 [shape = 'u32[]', space=smem, size = 0x4, offset = 0x4, fixed_abs, tag = 'smem constant byte address 0x4 - core index']
  #allocation1 [shape = 'u32[144,128]{1,0:T(1,128)}', space=vmem, size = 0x12000, scoped, tag = 'internal scratch']
  #allocation2 [shape = 'bf16[8,16,256]{2,1,0:T(16,128)(2,1)}', space=vmem, size = 0x10000, scoped, tag = 'scratch operand']
  %s0 = inlined_call_operand.vmem [shape: bf16[8,16,256], index: 0, kind: input, shape index: {}]
  %s1 = inlined_call_operand.vmem [shape: bf16[1,8,128], index: 1, kind: input, shape index: {}]
  %s2 = inlined_call_operand.vmem [shape: f32[2,1,256], index: 2, kind: input, shape index: {}]
  %s3 = inlined_call_operand.vmem [shape: f32[2,1,256], index: 3, kind: input, shape index: {}]
  %s4 = inlined_call_operand.vmem [shape: bf16[2,256,768], index: 4, kind: input, shape index: {}]
  %s5 = inlined_call_operand.vmem [shape: f32[2,1,768], index: 5, kind: input, shape index: {}]
  %s6 = inlined_call_operand.hbm [shape: bf16[2,256,256], index: 6, kind: input, shape index: {}]
  %s7 = inlined_call_operand.vmem [shape: f32[2,1,256], index: 7, kind: input, shape index: {}]
  %s8 = inlined_call_operand.vmem [shape: f32[2,1,256], index: 8, kind: input, shape index: {}]
  %s9 = inlined_call_operand.vmem [shape: f32[2,1,256], index: 9, kind: input, shape index: {}]
  %s10 = inlined_call_operand.hbm [shape: bf16[2,256,1024], index: 10, kind: input, shape index: {}]
  %s11 = inlined_call_operand.vmem [shape: f32[2,1,1024], index: 11, kind: input, shape index: {}]
  %s12 = inlined_call_operand.hbm [shape: bf16[2,1024,256], index: 12, kind: input, shape index: {}]
  %s13 = inlined_call_operand.vmem [shape: f32[2,1,256], index: 13, kind: input, shape index: {}]
  %s14 = inlined_call_operand.vmem [shape: bf16[2,8,256], index: 14, kind: output, shape index: {}]
  %s15 = sld [smem:[#allocation0]]
  $region105: #{_forward_impl.2} parent=0
    _
  %s17 = ssub.s32 1, %s15
  %s18 = scalar_select 0, %s17, %s15
  $region1: #{_forward_impl.2} parent=0
    #allocation3 [shape = 'u8[262144]{0}', space=vmem, size = 0x40000, scoped, tag = 'input window, operand 6']
    #allocation4 [shape = 's32[2]{0}', space=sflag, size = 0x8, scoped, tag = 'scoped memory for _forward_impl.2']
    #allocation5 [shape = 'u8[1048576]{0}', space=vmem, size = 0x100000, scoped, tag = 'input window, operand 10']
    #allocation6 [shape = 's32[2]{0}', space=sflag, size = 0x8, scoped, tag = 'scoped memory for _forward_impl.2']
    #allocation7 [shape = 'u8[1048576]{0}', space=vmem, size = 0x100000, scoped, tag = 'input window, operand 12']
    %19 = vsyncpa [#allocation4], 0
    %s20 = scalar_lea.sflag [#allocation4], 1
    %21 = vsyncpa %s20, 0
    %22 = vsyncpa [#allocation6], 0
    %s23 = scalar_lea.sflag [#allocation6], 1
    %24 = vsyncpa %s23, 0
    loop: start=0, step=1, limit=4
    $region2: #{_forward_impl.2} parent=1 // loop_pre_header
      _
    $region3: #{_forward_impl.2} parent=1 // loop_header
      %s26 = sphi 0, %s30
      %p27 = scmp.ge.s32.totalorder %s26, 4
      %s33 = sphi 0, %s45
      %s34 = sphi 0, %s41
      %s35 = sphi 0, %s33
      %s36 = sphi 0, %s34
      %s37 = sphi 0, %s35
      %s38 = sphi 0, %s36
      %s48 = sphi 0, %s50
      %s51 = sphi 0, %s48
      %s52 = sphi 0, %s51
      %s68 = sphi 0, %s52
      %s74 = sphi 0, %s76
      %s77 = sphi 0, %s74
      %s78 = sphi 0, %s77
      %s94 = sphi 0, %s78
      %s100 = sphi 0, %s102
      %s103 = sphi 0, %s100
      %s104 = sphi 0, %s103
      %s120 = sphi 0, %s104
      %s126 = sphi 0, %s128
      %s129 = sphi 0, %s126
      %s130 = sphi 0, %s129
      %s146 = sphi 0, %s130
      %s152 = sphi 0, %s154
      %s155 = sphi 0, %s152
      %s156 = sphi 0, %s155
      %s172 = sphi 0, %s156
      %s178 = sphi 0, %s180
      %s181 = sphi 0, %s178
      %s182 = sphi 0, %s181
      %s198 = sphi 0, %s182
      %s204 = sphi 0, %s206
      %s207 = sphi 0, %s204
      %s208 = sphi 0, %s207
      %s224 = sphi 0, %s208
      %s230 = sphi 0, %s232
      %s233 = sphi 0, %s230
      %s234 = sphi 0, %s233
      %s250 = sphi 0, %s234
      %s256 = sphi 0, %s258
      %s259 = sphi 0, %s256
      %s260 = sphi 0, %s259
      %s276 = sphi 0, %s260
      %s282 = sphi 0, %s284
      %s285 = sphi 0, %s282
      %s286 = sphi 0, %s285
      %s302 = sphi 0, %s286
      %s308 = sphi 0, %s310
      %s311 = sphi 0, %s308
      %s312 = sphi 0, %s311
      %s328 = sphi 0, %s312
      %s334 = sphi 0, %s336
      %s337 = sphi 0, %s334
      %s338 = sphi 0, %s337
      %s354 = sphi 0, %s338
      %s360 = sphi 0, %s362
      %s363 = sphi 0, %s360
      %s364 = sphi 0, %s363
      %s380 = sphi 0, %s364
      %s386 = sphi 0, %s388
      %s389 = sphi 0, %s386
      %s390 = sphi 0, %s389
      %s406 = sphi 0, %s390
      %s414 = sphi 0, %s416
      %s417 = sphi 0, %s414
      %s418 = sphi 0, %s417
      %s434 = sphi 0, %s418
    $region4: #{_forward_impl.2} parent=1 // loop_header_branch
      %29 = sbr.rel (%p27) target = $region8
    $region5: #{_forward_impl.2} parent=1 // loop_body
      %s31 = ssub.s32 %s26, 1
      %s32 = ssub.s32 %s26, 2
      %s39 = sadd.s32 1, %s34
      %p40 = scmp.ge.s32.totalorder %s39, 2
      %s41 = scalar_select %p40, 0, %s39
      %s42 = sadd.s32 1, %s33
      %s43 = scalar_select %p40, %s42, %s33
      %p44 = scmp.ge.s32.totalorder %s43, 1
      %s45 = scalar_select %p44, 0, %s43
      %s46 = ssub.s32 %s33, %s45
      %p47 = scmp.eq.s32.totalorder %s46, 0
      %s49 = sadd.s32 %s48, 1
      %s50 = scalar_select %p47, %s48, %s49
      %p53 = pneg %p47
      %p54 = scmp.eq.s32.totalorder %s26, 1
      %p55 = por %p53, %p54
      %p56 = scmp.ne.s32.totalorder %s48, %s51
      %p57 = scmp.eq.s32.totalorder %s26, 0
      %p58 = por %p56, %p57
      %p59 = scmp.ne.s32.totalorder %s48, %s51
      %p60 = scmp.eq.s32.totalorder %s31, 1
      %p61 = por %p59, %p60
      %p62 = scmp.ne.s32.totalorder %s51, %s52
      %p63 = scmp.eq.s32.totalorder %s31, 0
      %p64 = por %p62, %p63
      %p65 = scmp.ne.s32.totalorder %s51, %s52
      %p66 = scmp.eq.s32.totalorder %s32, 1
      %p67 = por %p65, %p66
      %p69 = scmp.ne.s32.totalorder %s52, %s68
      %p70 = scmp.eq.s32.totalorder %s32, 0
      %p71 = por %p69, %p70
      %s72 = ssub.s32 %s33, %s45
      %p73 = scmp.eq.s32.totalorder %s72, 0
      %s75 = sadd.s32 %s74, 1
      %s76 = scalar_select %p73, %s74, %s75
      %p79 = pneg %p73
      %p80 = scmp.eq.s32.totalorder %s26, 1
      %p81 = por %p79, %p80
      %p82 = scmp.ne.s32.totalorder %s74, %s77
      %p83 = scmp.eq.s32.totalorder %s26, 0
      %p84 = por %p82, %p83
      %p85 = scmp.ne.s32.totalorder %s74, %s77
      %p86 = scmp.eq.s32.totalorder %s31, 1
      %p87 = por %p85, %p86
      %p88 = scmp.ne.s32.totalorder %s77, %s78
      %p89 = scmp.eq.s32.totalorder %s31, 0
      %p90 = por %p88, %p89
      %p91 = scmp.ne.s32.totalorder %s77, %s78
      %p92 = scmp.eq.s32.totalorder %s32, 1
      %p93 = por %p91, %p92
      %p95 = scmp.ne.s32.totalorder %s78, %s94
      %p96 = scmp.eq.s32.totalorder %s32, 0
      %p97 = por %p95, %p96
      %s98 = ssub.s32 %s34, %s41
      %p99 = scmp.eq.s32.totalorder %s98, 0
      %s101 = sadd.s32 %s100, 1
      %s102 = scalar_select %p99, %s100, %s101
      %p105 = pneg %p99
      %p106 = scmp.eq.s32.totalorder %s26, 1
      %p107 = por %p105, %p106
      %p108 = scmp.ne.s32.totalorder %s100, %s103
      %p109 = scmp.eq.s32.totalorder %s26, 0
      %p110 = por %p108, %p109
      %p111 = scmp.ne.s32.totalorder %s100, %s103
      %p112 = scmp.eq.s32.totalorder %s31, 1
      %p113 = por %p111, %p112
      %p114 = scmp.ne.s32.totalorder %s103, %s104
      %p115 = scmp.eq.s32.totalorder %s31, 0
      %p116 = por %p114, %p115
      %p117 = scmp.ne.s32.totalorder %s103, %s104
      %p118 = scmp.eq.s32.totalorder %s32, 1
      %p119 = por %p117, %p118
      %p121 = scmp.ne.s32.totalorder %s104, %s120
      %p122 = scmp.eq.s32.totalorder %s32, 0
      %p123 = por %p121, %p122
      %s124 = ssub.s32 %s34, %s41
      %p125 = scmp.eq.s32.totalorder %s124, 0
      %s127 = sadd.s32 %s126, 1
      %s128 = scalar_select %p125, %s126, %s127
      %p131 = pneg %p125
      %p132 = scmp.eq.s32.totalorder %s26, 1
      %p133 = por %p131, %p132
      %p134 = scmp.ne.s32.totalorder %s126, %s129
      %p135 = scmp.eq.s32.totalorder %s26, 0
      %p136 = por %p134, %p135
      %p137 = scmp.ne.s32.totalorder %s126, %s129
      %p138 = scmp.eq.s32.totalorder %s31, 1
      %p139 = por %p137, %p138
      %p140 = scmp.ne.s32.totalorder %s129, %s130
      %p141 = scmp.eq.s32.totalorder %s31, 0
      %p142 = por %p140, %p141
      %p143 = scmp.ne.s32.totalorder %s129, %s130
      %p144 = scmp.eq.s32.totalorder %s32, 1
      %p145 = por %p143, %p144
      %p147 = scmp.ne.s32.totalorder %s130, %s146
      %p148 = scmp.eq.s32.totalorder %s32, 0
      %p149 = por %p147, %p148
      %s150 = ssub.s32 %s34, %s41
      %p151 = scmp.eq.s32.totalorder %s150, 0
      %s153 = sadd.s32 %s152, 1
      %s154 = scalar_select %p151, %s152, %s153
      %p157 = pneg %p151
      %p158 = scmp.eq.s32.totalorder %s26, 1
      %p159 = por %p157, %p158
      %p160 = scmp.ne.s32.totalorder %s152, %s155
      %p161 = scmp.eq.s32.totalorder %s26, 0
      %p162 = por %p160, %p161
      %p163 = scmp.ne.s32.totalorder %s152, %s155
      %p164 = scmp.eq.s32.totalorder %s31, 1
      %p165 = por %p163, %p164
      %p166 = scmp.ne.s32.totalorder %s155, %s156
      %p167 = scmp.eq.s32.totalorder %s31, 0
      %p168 = por %p166, %p167
      %p169 = scmp.ne.s32.totalorder %s155, %s156
      %p170 = scmp.eq.s32.totalorder %s32, 1
      %p171 = por %p169, %p170
      %p173 = scmp.ne.s32.totalorder %s156, %s172
      %p174 = scmp.eq.s32.totalorder %s32, 0
      %p175 = por %p173, %p174
      %s176 = ssub.s32 %s34, %s41
      %p177 = scmp.eq.s32.totalorder %s176, 0
      %s179 = sadd.s32 %s178, 1
      %s180 = scalar_select %p177, %s178, %s179
      %p183 = pneg %p177
      %p184 = scmp.eq.s32.totalorder %s26, 1
      %p185 = por %p183, %p184
      %p186 = scmp.ne.s32.totalorder %s178, %s181
      %p187 = scmp.eq.s32.totalorder %s26, 0
      %p188 = por %p186, %p187
      %p189 = scmp.ne.s32.totalorder %s178, %s181
      %p190 = scmp.eq.s32.totalorder %s31, 1
      %p191 = por %p189, %p190
      %p192 = scmp.ne.s32.totalorder %s181, %s182
      %p193 = scmp.eq.s32.totalorder %s31, 0
      %p194 = por %p192, %p193
      %p195 = scmp.ne.s32.totalorder %s181, %s182
      %p196 = scmp.eq.s32.totalorder %s32, 1
      %p197 = por %p195, %p196
      %p199 = scmp.ne.s32.totalorder %s182, %s198
      %p200 = scmp.eq.s32.totalorder %s32, 0
      %p201 = por %p199, %p200
      %s202 = ssub.s32 %s34, %s41
      %p203 = scmp.eq.s32.totalorder %s202, 0
      %s205 = sadd.s32 %s204, 1
      %s206 = scalar_select %p203, %s204, %s205
      %p209 = pneg %p203
      %p210 = scmp.eq.s32.totalorder %s26, 1
      %p211 = por %p209, %p210
      %p212 = scmp.ne.s32.totalorder %s204, %s207
      %p213 = scmp.eq.s32.totalorder %s26, 0
      %p214 = por %p212, %p213
      %p215 = scmp.ne.s32.totalorder %s204, %s207
      %p216 = scmp.eq.s32.totalorder %s31, 1
      %p217 = por %p215, %p216
      %p218 = scmp.ne.s32.totalorder %s207, %s208
      %p219 = scmp.eq.s32.totalorder %s31, 0
      %p220 = por %p218, %p219
      %p221 = scmp.ne.s32.totalorder %s207, %s208
      %p222 = scmp.eq.s32.totalorder %s32, 1
      %p223 = por %p221, %p222
      %p225 = scmp.ne.s32.totalorder %s208, %s224
      %p226 = scmp.eq.s32.totalorder %s32, 0
      %p227 = por %p225, %p226
      %s228 = ssub.s32 %s34, %s41
      %p229 = scmp.eq.s32.totalorder %s228, 0
      %s231 = sadd.s32 %s230, 1
      %s232 = scalar_select %p229, %s230, %s231
      %p235 = pneg %p229
      %p236 = scmp.eq.s32.totalorder %s26, 1
      %p237 = por %p235, %p236
      %p238 = scmp.ne.s32.totalorder %s230, %s233
      %p239 = scmp.eq.s32.totalorder %s26, 0
      %p240 = por %p238, %p239
      %p241 = scmp.ne.s32.totalorder %s230, %s233
      %p242 = scmp.eq.s32.totalorder %s31, 1
      %p243 = por %p241, %p242
      %p244 = scmp.ne.s32.totalorder %s233, %s234
      %p245 = scmp.eq.s32.totalorder %s31, 0
      %p246 = por %p244, %p245
      %p247 = scmp.ne.s32.totalorder %s233, %s234
      %p248 = scmp.eq.s32.totalorder %s32, 1
      %p249 = por %p247, %p248
      %p251 = scmp.ne.s32.totalorder %s234, %s250
      %p252 = scmp.eq.s32.totalorder %s32, 0
      %p253 = por %p251, %p252
      %s254 = ssub.s32 %s34, %s41
      %p255 = scmp.eq.s32.totalorder %s254, 0
      %s257 = sadd.s32 %s256, 1
      %s258 = scalar_select %p255, %s256, %s257
      %p261 = pneg %p255
      %p262 = scmp.eq.s32.totalorder %s26, 1
      %p263 = por %p261, %p262
      %p264 = scmp.ne.s32.totalorder %s256, %s259
      %p265 = scmp.eq.s32.totalorder %s26, 0
      %p266 = por %p264, %p265
      %p267 = scmp.ne.s32.totalorder %s256, %s259
      %p268 = scmp.eq.s32.totalorder %s31, 1
      %p269 = por %p267, %p268
      %p270 = scmp.ne.s32.totalorder %s259, %s260
      %p271 = scmp.eq.s32.totalorder %s31, 0
      %p272 = por %p270, %p271
      %p273 = scmp.ne.s32.totalorder %s259, %s260
      %p274 = scmp.eq.s32.totalorder %s32, 1
      %p275 = por %p273, %p274
      %p277 = scmp.ne.s32.totalorder %s260, %s276
      %p278 = scmp.eq.s32.totalorder %s32, 0
      %p279 = por %p277, %p278
      %s280 = ssub.s32 %s34, %s41
      %p281 = scmp.eq.s32.totalorder %s280, 0
      %s283 = sadd.s32 %s282, 1
      %s284 = scalar_select %p281, %s282, %s283
      %p287 = pneg %p281
      %p288 = scmp.eq.s32.totalorder %s26, 1
      %p289 = por %p287, %p288
      %p290 = scmp.ne.s32.totalorder %s282, %s285
      %p291 = scmp.eq.s32.totalorder %s26, 0
      %p292 = por %p290, %p291
      %p293 = scmp.ne.s32.totalorder %s282, %s285
      %p294 = scmp.eq.s32.totalorder %s31, 1
      %p295 = por %p293, %p294
      %p296 = scmp.ne.s32.totalorder %s285, %s286
      %p297 = scmp.eq.s32.totalorder %s31, 0
      %p298 = por %p296, %p297
      %p299 = scmp.ne.s32.totalorder %s285, %s286
      %p300 = scmp.eq.s32.totalorder %s32, 1
      %p301 = por %p299, %p300
      %p303 = scmp.ne.s32.totalorder %s286, %s302
      %p304 = scmp.eq.s32.totalorder %s32, 0
      %p305 = por %p303, %p304
      %s306 = ssub.s32 %s34, %s41
      %p307 = scmp.eq.s32.totalorder %s306, 0
      %s309 = sadd.s32 %s308, 1
      %s310 = scalar_select %p307, %s308, %s309
      %p313 = pneg %p307
      %p314 = scmp.eq.s32.totalorder %s26, 1
      %p315 = por %p313, %p314
      %p316 = scmp.ne.s32.totalorder %s308, %s311
      %p317 = scmp.eq.s32.totalorder %s26, 0
      %p318 = por %p316, %p317
      %p319 = scmp.ne.s32.totalorder %s308, %s311
      %p320 = scmp.eq.s32.totalorder %s31, 1
      %p321 = por %p319, %p320
      %p322 = scmp.ne.s32.totalorder %s311, %s312
      %p323 = scmp.eq.s32.totalorder %s31, 0
      %p324 = por %p322, %p323
      %p325 = scmp.ne.s32.totalorder %s311, %s312
      %p326 = scmp.eq.s32.totalorder %s32, 1
      %p327 = por %p325, %p326
      %p329 = scmp.ne.s32.totalorder %s312, %s328
      %p330 = scmp.eq.s32.totalorder %s32, 0
      %p331 = por %p329, %p330
      %s332 = ssub.s32 %s34, %s41
      %p333 = scmp.eq.s32.totalorder %s332, 0
      %s335 = sadd.s32 %s334, 1
      %s336 = scalar_select %p333, %s334, %s335
      %p339 = pneg %p333
      %p340 = scmp.eq.s32.totalorder %s26, 1
      %p341 = por %p339, %p340
      %p342 = scmp.ne.s32.totalorder %s334, %s337
      %p343 = scmp.eq.s32.totalorder %s26, 0
      %p344 = por %p342, %p343
      %p345 = scmp.ne.s32.totalorder %s334, %s337
      %p346 = scmp.eq.s32.totalorder %s31, 1
      %p347 = por %p345, %p346
      %p348 = scmp.ne.s32.totalorder %s337, %s338
      %p349 = scmp.eq.s32.totalorder %s31, 0
      %p350 = por %p348, %p349
      %p351 = scmp.ne.s32.totalorder %s337, %s338
      %p352 = scmp.eq.s32.totalorder %s32, 1
      %p353 = por %p351, %p352
      %p355 = scmp.ne.s32.totalorder %s338, %s354
      %p356 = scmp.eq.s32.totalorder %s32, 0
      %p357 = por %p355, %p356
      %s358 = ssub.s32 %s34, %s41
      %p359 = scmp.eq.s32.totalorder %s358, 0
      %s361 = sadd.s32 %s360, 1
      %s362 = scalar_select %p359, %s360, %s361
      %p365 = pneg %p359
      %p366 = scmp.eq.s32.totalorder %s26, 1
      %p367 = por %p365, %p366
      %p368 = scmp.ne.s32.totalorder %s360, %s363
      %p369 = scmp.eq.s32.totalorder %s26, 0
      %p370 = por %p368, %p369
      %p371 = scmp.ne.s32.totalorder %s360, %s363
      %p372 = scmp.eq.s32.totalorder %s31, 1
      %p373 = por %p371, %p372
      %p374 = scmp.ne.s32.totalorder %s363, %s364
      %p375 = scmp.eq.s32.totalorder %s31, 0
      %p376 = por %p374, %p375
      %p377 = scmp.ne.s32.totalorder %s363, %s364
      %p378 = scmp.eq.s32.totalorder %s32, 1
      %p379 = por %p377, %p378
      %p381 = scmp.ne.s32.totalorder %s364, %s380
      %p382 = scmp.eq.s32.totalorder %s32, 0
      %p383 = por %p381, %p382
      %s384 = ssub.s32 %s34, %s41
      %p385 = scmp.eq.s32.totalorder %s384, 0
      %s387 = sadd.s32 %s386, 1
      %s388 = scalar_select %p385, %s386, %s387
      %p391 = pneg %p385
      %p392 = scmp.eq.s32.totalorder %s26, 1
      %p393 = por %p391, %p392
      %p394 = scmp.ne.s32.totalorder %s386, %s389
      %p395 = scmp.eq.s32.totalorder %s26, 0
      %p396 = por %p394, %p395
      %p397 = scmp.ne.s32.totalorder %s386, %s389
      %p398 = scmp.eq.s32.totalorder %s31, 1
      %p399 = por %p397, %p398
      %p400 = scmp.ne.s32.totalorder %s389, %s390
      %p401 = scmp.eq.s32.totalorder %s31, 0
      %p402 = por %p400, %p401
      %p403 = scmp.ne.s32.totalorder %s389, %s390
      %p404 = scmp.eq.s32.totalorder %s32, 1
      %p405 = por %p403, %p404
      %p407 = scmp.ne.s32.totalorder %s390, %s406
      %p408 = scmp.eq.s32.totalorder %s32, 0
      %p409 = por %p407, %p408
      %s410 = ssub.s32 %s34, %s41
      %s411 = ssub.s32 %s33, %s45
      %s412 = sor.u32 %s410, %s411
      %p413 = scmp.eq.s32.totalorder %s412, 0
      %s415 = sadd.s32 %s414, 1
      %s416 = scalar_select %p413, %s414, %s415
      %p419 = pneg %p413
      %p420 = scmp.eq.s32.totalorder %s26, 1
      %p421 = por %p419, %p420
      %p422 = scmp.ne.s32.totalorder %s414, %s417
      %p423 = scmp.eq.s32.totalorder %s26, 0
      %p424 = por %p422, %p423
      %p425 = scmp.ne.s32.totalorder %s414, %s417
      %p426 = scmp.eq.s32.totalorder %s31, 1
      %p427 = por %p425, %p426
      %p428 = scmp.ne.s32.totalorder %s417, %s418
      %p429 = scmp.eq.s32.totalorder %s31, 0
      %p430 = por %p428, %p429
      %p431 = scmp.ne.s32.totalorder %s417, %s418
      %p432 = scmp.eq.s32.totalorder %s32, 1
      %p433 = por %p431, %p432
      %p435 = scmp.ne.s32.totalorder %s418, %s434
      %p436 = scmp.eq.s32.totalorder %s32, 0
      %p437 = por %p435, %p436
      %p438 = scmp.le.s32.totalorder 1, %s26
      %p439 = scmp.lt.s32.totalorder %s26, 3
      %p440 = pnand %p438, %p439
      %p441 = pneg %p440
      // Predicated region
      $region9: #{_forward_impl.2} parent=5 // pred_check
        _
      $region10: #{_forward_impl.2} parent=5 // pred_check_branch
        %443 = sbr.rel (%p440) target = $region12
      $region11: #{_forward_impl.2} parent=5 // pred_region
        %s444 = ssub.s32 %s26, 1
        // Predicated region
        $region13: #{_forward_impl.2} parent=11 // pred_check
          %p445 = pneg %p64
        $region14: #{_forward_impl.2} parent=11 // pred_check_branch
          %447 = sbr.rel (%p445) target = $region16
        $region15: #{_forward_impl.2} parent=11 // pred_region
          %s448 = smul.u32 8, %s35
          %p449 = scmp.lt.s32.totalorder %s448, 7
          %s450 = scalar_select %p449, %s448, 7
          %s451 = smul.addr %s450, 4
          %s452 = smul.addr %s451, 4
          %s453 = scalar_lea.vmem %s0, %s452
          %s454 = smul.u32 8, %s35
        $region16: #{_forward_impl.2} parent=11 // pred_fallthru
          _
        // Predicated region
        $region17: #{_forward_impl.2} parent=11 // pred_check
          %p455 = pneg %p90
        $region18: #{_forward_impl.2} parent=11 // pred_check_branch
          %457 = sbr.rel (%p455) target = $region20
        $region19: #{_forward_impl.2} parent=11 // pred_region
          %p458 = scmp.lt.s32.totalorder %s35, 0
          %s459 = scalar_select %p458, %s35, 0
          %s460 = smul.addr %s459, 4
          %s461 = scalar_lea.vmem %s1, %s460
        $region20: #{_forward_impl.2} parent=11 // pred_fallthru
          _
      $region12: #{_forward_impl.2} parent=5 // pred_fallthru
        _
      %p462 = scmp.lt.s32.totalorder %s26, 2
      // Predicated region
      $region21: #{_forward_impl.2} parent=5 // pred_check
        %p463 = pneg %p462
      $region22: #{_forward_impl.2} parent=5 // pred_check_branch
        %465 = sbr.rel (%p463) target = $region24
      $region23: #{_forward_impl.2} parent=5 // pred_region
        // Predicated region
        $region25: #{_forward_impl.2} parent=23 // pred_check
          %p466 = pneg %p110
        $region26: #{_forward_impl.2} parent=23 // pred_check_branch
          %468 = sbr.rel (%p466) target = $region28
        $region27: #{_forward_impl.2} parent=23 // pred_region
          %p469 = scmp.lt.s32.totalorder %s34, 1
          %s470 = scalar_select %p469, %s34, 1
          %s471 = smul.addr %s470, 2
          %s472 = scalar_lea.vmem %s2, %s471
        $region28: #{_forward_impl.2} parent=23 // pred_fallthru
          _
        // Predicated region
        $region29: #{_forward_impl.2} parent=23 // pred_check
          %p473 = pneg %p136
        $region30: #{_forward_impl.2} parent=23 // pred_check_branch
          %475 = sbr.rel (%p473) target = $region32
        $region31: #{_forward_impl.2} parent=23 // pred_region
          %p476 = scmp.lt.s32.totalorder %s34, 1
          %s477 = scalar_select %p476, %s34, 1
          %s478 = smul.addr %s477, 2
          %s479 = scalar_lea.vmem %s3, %s478
        $region32: #{_forward_impl.2} parent=23 // pred_fallthru
          _
        // Predicated region
        $region33: #{_forward_impl.2} parent=23 // pred_check
          %p480 = pneg %p162
        $region34: #{_forward_impl.2} parent=23 // pred_check_branch
          %482 = sbr.rel (%p480) target = $region36
        $region35: #{_forward_impl.2} parent=23 // pred_region
          %p483 = scmp.lt.s32.totalorder %s34, 1
          %s484 = scalar_select %p483, %s34, 1
          %s485 = smul.addr %s484, 192
          %s486 = smul.addr %s485, 4
          %s487 = scalar_lea.vmem %s4, %s486
        $region36: #{_forward_impl.2} parent=23 // pred_fallthru
          _
        // Predicated region
        $region37: #{_forward_impl.2} parent=23 // pred_check
          %p488 = pneg %p188
        $region38: #{_forward_impl.2} parent=23 // pred_check_branch
          %490 = sbr.rel (%p488) target = $region40
        $region39: #{_forward_impl.2} parent=23 // pred_region
          %p491 = scmp.lt.s32.totalorder %s34, 1
          %s492 = scalar_select %p491, %s34, 1
          %s493 = smul.addr %s492, 6
          %s494 = scalar_lea.vmem %s5, %s493
        $region40: #{_forward_impl.2} parent=23 // pred_fallthru
          _
        // Predicated region
        $region41: #{_forward_impl.2} parent=23 // pred_check
          %p495 = pneg %p214
        $region42: #{_forward_impl.2} parent=23 // pred_check_branch
          %497 = sbr.rel (%p495) target = $region44
        $region43: #{_forward_impl.2} parent=23 // pred_region
          %s498 = sand.u32 %s204, 1
          %s499 = scalar_lea.sflag [#allocation4], %s498
          %s500 = sand.u32 %s204, 1
          %s501 = smul.addr %s500, 256
          %s502 = scalar_lea.vmem [#allocation3], %s501
          %s504 = ssub.s32 4096, 4096
          %505 = vsyncadd %s499, %s504
          %s506 = smul.addr %s34, 64
          %s507 = smul.addr %s506, 64
          %s508 = scalar_lea.hbm %s6, %s507
          %s509 = sshll.u32 %s502, 4
          %s510 = int_to_ptr.vmem [resolvable:$true] %s509
          %515 = dma.hbm_to_vmem [thread:$0]  %s508, 4096, %s510, %s499, 128, 128, 8
        $region44: #{_forward_impl.2} parent=23 // pred_fallthru
          _
        // Predicated region
        $region45: #{_forward_impl.2} parent=23 // pred_check
          %p516 = pneg %p240
        $region46: #{_forward_impl.2} parent=23 // pred_check_branch
          %518 = sbr.rel (%p516) target = $region48
        $region47: #{_forward_impl.2} parent=23 // pred_region
          %p519 = scmp.lt.s32.totalorder %s34, 1
          %s520 = scalar_select %p519, %s34, 1
          %s521 = smul.addr %s520, 2
          %s522 = scalar_lea.vmem %s7, %s521
        $region48: #{_forward_impl.2} parent=23 // pred_fallthru
          _
        // Predicated region
        $region49: #{_forward_impl.2} parent=23 // pred_check
          %p523 = pneg %p266
        $region50: #{_forward_impl.2} parent=23 // pred_check_branch
          %525 = sbr.rel (%p523) target = $region52
        $region51: #{_forward_impl.2} parent=23 // pred_region
          %p526 = scmp.lt.s32.totalorder %s34, 1
          %s527 = scalar_select %p526, %s34, 1
          %s528 = smul.addr %s527, 2
          %s529 = scalar_lea.vmem %s8, %s528
        $region52: #{_forward_impl.2} parent=23 // pred_fallthru
          _
        // Predicated region
        $region53: #{_forward_impl.2} parent=23 // pred_check
          %p530 = pneg %p292
        $region54: #{_forward_impl.2} parent=23 // pred_check_branch
          %532 = sbr.rel (%p530) target = $region56
        $region55: #{_forward_impl.2} parent=23 // pred_region
          %p533 = scmp.lt.s32.totalorder %s34, 1
          %s534 = scalar_select %p533, %s34, 1
          %s535 = smul.addr %s534, 2
          %s536 = scalar_lea.vmem %s9, %s535
        $region56: #{_forward_impl.2} parent=23 // pred_fallthru
          _
        // Predicated region
        $region57: #{_forward_impl.2} parent=23 // pred_check
          %p537 = pneg %p318
        $region58: #{_forward_impl.2} parent=23 // pred_check_branch
          %539 = sbr.rel (%p537) target = $region60
        $region59: #{_forward_impl.2} parent=23 // pred_region
          %s540 = sand.u32 %s26, 1
          %s541 = scalar_lea.sflag [#allocation6], %s540
          %s542 = sand.u32 %s308, 1
          %s543 = smul.addr %s542, 1024
          %s544 = scalar_lea.vmem [#allocation5], %s543
          %s546 = ssub.s32 16384, 16384
          %547 = vsyncadd %s541, %s546
          %s548 = smul.addr %s34, 256
          %s549 = smul.addr %s548, 64
          %s550 = scalar_lea.hbm %s10, %s549
          %s551 = sshll.u32 %s544, 4
          %s552 = int_to_ptr.vmem [resolvable:$true] %s551
          %557 = dma.hbm_to_vmem [thread:$0]  %s550, 16384, %s552, %s541, 512, 512, 32
        $region60: #{_forward_impl.2} parent=23 // pred_fallthru
          _
        // Predicated region
        $region61: #{_forward_impl.2} parent=23 // pred_check
          %p558 = pneg %p344
        $region62: #{_forward_impl.2} parent=23 // pred_check_branch
          %560 = sbr.rel (%p558) target = $region64
        $region63: #{_forward_impl.2} parent=23 // pred_region
          %p561 = scmp.lt.s32.totalorder %s34, 1
          %s562 = scalar_select %p561, %s34, 1
          %s563 = smul.addr %s562, 8
          %s564 = scalar_lea.vmem %s11, %s563
        $region64: #{_forward_impl.2} parent=23 // pred_fallthru
          _
        // Predicated region
        $region65: #{_forward_impl.2} parent=23 // pred_check
          %p565 = pneg %p370
        $region66: #{_forward_impl.2} parent=23 // pred_check_branch
          %567 = sbr.rel (%p565) target = $region68
        $region67: #{_forward_impl.2} parent=23 // pred_region
          %s568 = sand.u32 %s26, 1
          %s569 = scalar_lea.sflag [#allocation6], %s568
          %s570 = sand.u32 %s360, 1
          %s571 = smul.addr %s570, 1024
          %s572 = scalar_lea.vmem [#allocation7], %s571
          %s574 = ssub.s32 16384, 16384
          %575 = vsyncadd %s569, %s574
          %s576 = smul.addr %s34, 256
          %s577 = smul.addr %s576, 64
          %s578 = scalar_lea.hbm %s12, %s577
          %s579 = sshll.u32 %s572, 4
          %s580 = int_to_ptr.vmem [resolvable:$true] %s579
          %585 = dma.hbm_to_vmem [thread:$0]  %s578, 16384, %s580, %s569, 128, 128, 8
        $region68: #{_forward_impl.2} parent=23 // pred_fallthru
          _
        // Predicated region
        $region69: #{_forward_impl.2} parent=23 // pred_check
          %p586 = pneg %p396
        $region70: #{_forward_impl.2} parent=23 // pred_check_branch
          %588 = sbr.rel (%p586) target = $region72
        $region71: #{_forward_impl.2} parent=23 // pred_region
          %p589 = scmp.lt.s32.totalorder %s34, 1
          %s590 = scalar_select %p589, %s34, 1
          %s591 = smul.addr %s590, 2
          %s592 = scalar_lea.vmem %s13, %s591
        $region72: #{_forward_impl.2} parent=23 // pred_fallthru
          _
      $region24: #{_forward_impl.2} parent=5 // pred_fallthru
        _
      %p593 = scmp.le.s32.totalorder 1, %s26
      %p594 = scmp.lt.s32.totalorder %s26, 3
      %p595 = pnand %p593, %p594
      %p596 = pneg %p595
      // Predicated region
      $region73: #{_forward_impl.2} parent=5 // pred_check
        _
      $region74: #{_forward_impl.2} parent=5 // pred_check_branch
        %598 = sbr.rel (%p595) target = $region76
      $region75: #{_forward_impl.2} parent=5 // pred_region
        %s599 = ssub.s32 %s26, 1
        %s600 = sand.u32 %s207, 1
        %s601 = scalar_lea.sflag [#allocation4], %s600
        %s602 = sand.u32 %s207, 1
        %s603 = smul.addr %s602, 256
        %s604 = scalar_lea.vmem [#allocation3], %s603
        // Predicated region
        $region77: #{_forward_impl.2} parent=75 // pred_check
          %p605 = pneg %p220
        $region78: #{_forward_impl.2} parent=75 // pred_check_branch
          %607 = sbr.rel (%p605) target = $region80
        $region79: #{_forward_impl.2} parent=75 // pred_region
          %608 = dma.done %s601, 4096
        $region80: #{_forward_impl.2} parent=75 // pred_fallthru
          _
        %s609 = sand.u32 %s31, 1
        %s610 = scalar_lea.sflag [#allocation6], %s609
        %s611 = sand.u32 %s311, 1
        %s612 = smul.addr %s611, 1024
        %s613 = scalar_lea.vmem [#allocation5], %s612
        // Predicated region
        $region81: #{_forward_impl.2} parent=75 // pred_check
          %p614 = pneg %p324
        $region82: #{_forward_impl.2} parent=75 // pred_check_branch
          %616 = sbr.rel (%p614) target = $region84
        $region83: #{_forward_impl.2} parent=75 // pred_region
          %617 = dma.done %s610, 16384
        $region84: #{_forward_impl.2} parent=75 // pred_fallthru
          _
        %s618 = sand.u32 %s31, 1
        %s619 = scalar_lea.sflag [#allocation6], %s618
        %s620 = sand.u32 %s363, 1
        %s621 = smul.addr %s620, 1024
        %s622 = scalar_lea.vmem [#allocation7], %s621
        // Predicated region
        $region85: #{_forward_impl.2} parent=75 // pred_check
          %p623 = pneg %p376
        $region86: #{_forward_impl.2} parent=75 // pred_check_branch
          %625 = sbr.rel (%p623) target = $region88
        $region87: #{_forward_impl.2} parent=75 // pred_region
          %626 = dma.done %s619, 16384
        $region88: #{_forward_impl.2} parent=75 // pred_fallthru
          _
        %s627 = smul.u32 8, %s35
        %p628 = scmp.lt.s32.totalorder %s627, 7
        %s629 = scalar_select %p628, %s627, 7
        %s630 = smul.addr %s629, 4
        %s631 = smul.addr %s630, 4
        %s632 = scalar_lea.vmem %s0, %s631
        %p633 = pneg %p64
        %p634 = pneg %p61
        %p635 = scmp.lt.s32.totalorder %s35, 0
        %s636 = scalar_select %p635, %s35, 0
        %s637 = smul.addr %s636, 4
        %s638 = scalar_lea.vmem %s1, %s637
        %p639 = pneg %p90
        %p640 = pneg %p87
        %p641 = scmp.lt.s32.totalorder %s36, 1
        %s642 = scalar_select %p641, %s36, 1
        %s643 = smul.addr %s642, 2
        %s644 = scalar_lea.vmem %s2, %s643
        %p645 = pneg %p116
        %p646 = pneg %p113
        %p647 = scmp.lt.s32.totalorder %s36, 1
        %s648 = scalar_select %p647, %s36, 1
        %s649 = smul.addr %s648, 2
        %s650 = scalar_lea.vmem %s3, %s649
        %p651 = pneg %p142
        %p652 = pneg %p139
        %p653 = scmp.lt.s32.totalorder %s36, 1
        %s654 = scalar_select %p653, %s36, 1
        %s655 = smul.addr %s654, 192
        %s656 = smul.addr %s655, 4
        %s657 = scalar_lea.vmem %s4, %s656
        %p658 = pneg %p168
        %p659 = pneg %p165
        %p660 = scmp.lt.s32.totalorder %s36, 1
        %s661 = scalar_select %p660, %s36, 1
        %s662 = smul.addr %s661, 6
        %s663 = scalar_lea.vmem %s5, %s662
        %p664 = pneg %p194
        %p665 = pneg %p191
        %s666 = sand.u32 %s207, 1
        %s667 = scalar_lea.sflag [#allocation4], %s666
        %s668 = sand.u32 %s207, 1
        %s669 = smul.addr %s668, 256
        %s670 = scalar_lea.vmem [#allocation3], %s669
        %p671 = pneg %p220
        %p672 = pneg %p217
        %p673 = scmp.lt.s32.totalorder %s36, 1
        %s674 = scalar_select %p673, %s36, 1
        %s675 = smul.addr %s674, 2
        %s676 = scalar_lea.vmem %s7, %s675
        %p677 = pneg %p246
        %p678 = pneg %p243
        %p679 = scmp.lt.s32.totalorder %s36, 1
        %s680 = scalar_select %p679, %s36, 1
        %s681 = smul.addr %s680, 2
        %s682 = scalar_lea.vmem %s8, %s681
        %p683 = pneg %p272
        %p684 = pneg %p269
        %p685 = scmp.lt.s32.totalorder %s36, 1
        %s686 = scalar_select %p685, %s36, 1
        %s687 = smul.addr %s686, 2
        %s688 = scalar_lea.vmem %s9, %s687
        %p689 = pneg %p298
        %p690 = pneg %p295
        %s691 = sand.u32 %s31, 1
        %s692 = scalar_lea.sflag [#allocation6], %s691
        %s693 = sand.u32 %s311, 1
        %s694 = smul.addr %s693, 1024
        %s695 = scalar_lea.vmem [#allocation5], %s694
        %p696 = pneg %p324
        %p697 = pneg %p321
        %p698 = scmp.lt.s32.totalorder %s36, 1
        %s699 = scalar_select %p698, %s36, 1
        %s700 = smul.addr %s699, 8
        %s701 = scalar_lea.vmem %s11, %s700
        %p702 = pneg %p350
        %p703 = pneg %p347
        %s704 = sand.u32 %s31, 1
        %s705 = scalar_lea.sflag [#allocation6], %s704
        %s706 = sand.u32 %s363, 1
        %s707 = smul.addr %s706, 1024
        %s708 = scalar_lea.vmem [#allocation7], %s707
        %p709 = pneg %p376
        %p710 = pneg %p373
        %p711 = scmp.lt.s32.totalorder %s36, 1
        %s712 = scalar_select %p711, %s36, 1
        %s713 = smul.addr %s712, 2
        %s714 = scalar_lea.vmem %s13, %s713
        %p715 = pneg %p402
        %p716 = pneg %p399
        %p717 = pneg %p430
        %p718 = pneg %p427
        %p719 = scmp.lt.s32.totalorder %s36, 1
        %s720 = scalar_select %p719, %s36, 1
        %p721 = scmp.lt.s32.totalorder %s35, 0
        %s722 = scalar_select %p721, %s35, 0
        %s723 = smul.addr %s722, 2
        %s724 = smul.addr %s720, 2
        %s725 = sadd.s32 %s723, %s724
        %s726 = smul.addr %s725, 4
        %s727 = scalar_lea.vmem %s14, %s726
        %s728 = smul.u32 8, %s35
        %p729 = scmp.lt.s32.totalorder %s728, 7
        %s730 = scalar_select %p729, %s728, 7
        %s731 = smul.addr %s730, 4
        %s732 = smul.addr %s731, 4
        %s733 = scalar_lea.vmem %s0, %s732
        %s734 = smul.u32 8, %s35
        %p735 = scmp.lt.s32.totalorder %s35, 0
        %s736 = scalar_select %p735, %s35, 0
        %s737 = smul.addr %s736, 4
        %s738 = scalar_lea.vmem %s1, %s737
        %p739 = scmp.lt.s32.totalorder %s36, 1
        %s740 = scalar_select %p739, %s36, 1
        %s741 = smul.addr %s740, 2
        %s742 = scalar_lea.vmem %s2, %s741
        %p743 = scmp.lt.s32.totalorder %s36, 1
        %s744 = scalar_select %p743, %s36, 1
        %s745 = smul.addr %s744, 2
        %s746 = scalar_lea.vmem %s3, %s745
        %p747 = scmp.lt.s32.totalorder %s36, 1
        %s748 = scalar_select %p747, %s36, 1
        %s749 = smul.addr %s748, 192
        %s750 = smul.addr %s749, 4
        %s751 = scalar_lea.vmem %s4, %s750
        %p752 = scmp.lt.s32.totalorder %s36, 1
        %s753 = scalar_select %p752, %s36, 1
        %s754 = smul.addr %s753, 6
        %s755 = scalar_lea.vmem %s5, %s754
        %p756 = scmp.lt.s32.totalorder %s36, 1
        %s757 = scalar_select %p756, %s36, 1
        %s758 = smul.addr %s757, 2
        %s759 = scalar_lea.vmem %s7, %s758
        %p760 = scmp.lt.s32.totalorder %s36, 1
        %s761 = scalar_select %p760, %s36, 1
        %s762 = smul.addr %s761, 2
        %s763 = scalar_lea.vmem %s8, %s762
        %p764 = scmp.lt.s32.totalorder %s36, 1
        %s765 = scalar_select %p764, %s36, 1
        %s766 = smul.addr %s765, 2
        %s767 = scalar_lea.vmem %s9, %s766
        %p768 = scmp.lt.s32.totalorder %s36, 1
        %s769 = scalar_select %p768, %s36, 1
        %s770 = smul.addr %s769, 8
        %s771 = scalar_lea.vmem %s11, %s770
        %p772 = scmp.lt.s32.totalorder %s36, 1
        %s773 = scalar_select %p772, %s36, 1
        %s774 = smul.addr %s773, 2
        %s775 = scalar_lea.vmem %s13, %s774
        %p776 = scmp.lt.s32.totalorder %s36, 1
        %s777 = scalar_select %p776, %s36, 1
        %p778 = scmp.lt.s32.totalorder %s35, 0
        %s779 = scalar_select %p778, %s35, 0
        %s780 = smul.addr %s779, 2
        %s781 = smul.addr %s777, 2
        %s782 = sadd.s32 %s780, %s781
        %s783 = smul.addr %s782, 4
        %s784 = scalar_lea.vmem %s14, %s783
        %p786 = scmp.eq.s32.totalorder %s36, 0
        // Predicated region
        $region89: #{_forward_impl.2} parent=75 // pred_check
          %p787 = pneg %p786
        $region90: #{_forward_impl.2} parent=75 // pred_check_branch
          %789 = sbr.rel (%p787) target = $region92
        $region91: #{_forward_impl.2} parent=75 // pred_region
          %v790 = vld [vmem:[%s733] sm:$0xff]
          %v791 = vld [vmem:[%s733 + $0x8] sm:$0xff]
          %v792 = vld [vmem:[%s733 + $0x10] sm:$0xff]
          %v793 = vld [vmem:[%s733 + $0x18] sm:$0xff]
          %v794 = vld [vmem:[%s733 + $0x20] sm:$0xff]
          %v795 = vld [vmem:[%s733 + $0x28] sm:$0xff]
          %v796 = vld [vmem:[%s733 + $0x30] sm:$0xff]
          %v797 = vld [vmem:[%s733 + $0x38] sm:$0xff]
          %v798 = vld [vmem:[%s733 + $0x40] sm:$0xff]
          %v799 = vld [vmem:[%s733 + $0x48] sm:$0xff]
          %v800 = vld [vmem:[%s733 + $0x50] sm:$0xff]
          %v801 = vld [vmem:[%s733 + $0x58] sm:$0xff]
          %v802 = vld [vmem:[%s733 + $0x60] sm:$0xff]
          %v803 = vld [vmem:[%s733 + $0x68] sm:$0xff]
          %v804 = vld [vmem:[%s733 + $0x70] sm:$0xff]
          %v805 = vld [vmem:[%s733 + $0x78] sm:$0xff]
          %v822 = vunpack.c.l.b16 %v790
          %v823 = vunpack.c.h.b16 %v790
          %v824 = vunpack.c.l.b16 %v791
          %v825 = vunpack.c.h.b16 %v791
          %v826 = vunpack.c.l.b16 %v792
          %v827 = vunpack.c.h.b16 %v792
          %v828 = vunpack.c.l.b16 %v793
          %v829 = vunpack.c.h.b16 %v793
          %v830 = vunpack.c.l.b16 %v794
          %v831 = vunpack.c.h.b16 %v794
          %v832 = vunpack.c.l.b16 %v795
          %v833 = vunpack.c.h.b16 %v795
          %v834 = vunpack.c.l.b16 %v796
          %v835 = vunpack.c.h.b16 %v796
          %v836 = vunpack.c.l.b16 %v797
          %v837 = vunpack.c.h.b16 %v797
          %v838 = vunpack.c.l.b16 %v798
          %v839 = vunpack.c.h.b16 %v798
          %v840 = vunpack.c.l.b16 %v799
          %v841 = vunpack.c.h.b16 %v799
          %v842 = vunpack.c.l.b16 %v800
          %v843 = vunpack.c.h.b16 %v800
          %v844 = vunpack.c.l.b16 %v801
          %v845 = vunpack.c.h.b16 %v801
          %v846 = vunpack.c.l.b16 %v802
          %v847 = vunpack.c.h.b16 %v802
          %v848 = vunpack.c.l.b16 %v803
          %v849 = vunpack.c.h.b16 %v803
          %v850 = vunpack.c.l.b16 %v804
          %v851 = vunpack.c.h.b16 %v804
          %v852 = vunpack.c.l.b16 %v805
          %v853 = vunpack.c.h.b16 %v805
          %v854 = vpack.c.b16 %v824, %v822
          %v855 = vpack.c.b16 %v825, %v823
          %v856 = vpack.c.b16 %v828, %v826
          %v857 = vpack.c.b16 %v829, %v827
          %v858 = vpack.c.b16 %v832, %v830
          %v859 = vpack.c.b16 %v833, %v831
          %v860 = vpack.c.b16 %v836, %v834
          %v861 = vpack.c.b16 %v837, %v835
          %v862 = vpack.c.b16 %v840, %v838
          %v863 = vpack.c.b16 %v841, %v839
          %v864 = vpack.c.b16 %v844, %v842
          %v865 = vpack.c.b16 %v845, %v843
          %v866 = vpack.c.b16 %v848, %v846
          %v867 = vpack.c.b16 %v849, %v847
          %v868 = vpack.c.b16 %v852, %v850
          %v869 = vpack.c.b16 %v853, %v851
          %886 = vst [vmem:[#allocation2] sm:$0xff] %v854
          %887 = vst [vmem:[#allocation2 + $0x8] sm:$0xff] %v855
          %888 = vst [vmem:[#allocation2 + $0x10] sm:$0xff] %v856
          %889 = vst [vmem:[#allocation2 + $0x18] sm:$0xff] %v857
          %890 = vst [vmem:[#allocation2 + $0x20] sm:$0xff] %v858
          %891 = vst [vmem:[#allocation2 + $0x28] sm:$0xff] %v859
          %892 = vst [vmem:[#allocation2 + $0x30] sm:$0xff] %v860
          %893 = vst [vmem:[#allocation2 + $0x38] sm:$0xff] %v861
          %894 = vst [vmem:[#allocation2 + $0x40] sm:$0xff] %v862
          %895 = vst [vmem:[#allocation2 + $0x48] sm:$0xff] %v863
          %896 = vst [vmem:[#allocation2 + $0x50] sm:$0xff] %v864
          %897 = vst [vmem:[#allocation2 + $0x58] sm:$0xff] %v865
          %898 = vst [vmem:[#allocation2 + $0x60] sm:$0xff] %v866
          %899 = vst [vmem:[#allocation2 + $0x68] sm:$0xff] %v867
          %900 = vst [vmem:[#allocation2 + $0x70] sm:$0xff] %v868
          %901 = vst [vmem:[#allocation2 + $0x78] sm:$0xff] %v869
        $region92: #{_forward_impl.2} parent=75 // pred_fallthru
          _
        %v902 = vld [vmem:[#allocation2] sm:$0xff]
        %v903 = vld [vmem:[#allocation2 + $0x8] sm:$0xff]
        %v904 = vld [vmem:[#allocation2 + $0x10] sm:$0xff]
        %v905 = vld [vmem:[#allocation2 + $0x18] sm:$0xff]
        %v906 = vld [vmem:[#allocation2 + $0x20] sm:$0xff]
        %v907 = vld [vmem:[#allocation2 + $0x28] sm:$0xff]
        %v908 = vld [vmem:[#allocation2 + $0x30] sm:$0xff]
        %v909 = vld [vmem:[#allocation2 + $0x38] sm:$0xff]
        %v910 = vld [vmem:[#allocation2 + $0x40] sm:$0xff]
        %v911 = vld [vmem:[#allocation2 + $0x48] sm:$0xff]
        %v912 = vld [vmem:[#allocation2 + $0x50] sm:$0xff]
        %v913 = vld [vmem:[#allocation2 + $0x58] sm:$0xff]
        %v914 = vld [vmem:[#allocation2 + $0x60] sm:$0xff]
        %v915 = vld [vmem:[#allocation2 + $0x68] sm:$0xff]
        %v916 = vld [vmem:[#allocation2 + $0x70] sm:$0xff]
        %v917 = vld [vmem:[#allocation2 + $0x78] sm:$0xff]
        %v918 = vunpack.c.l.bf16 %v902
        %v919 = vunpack.c.l.bf16 %v903
        %v920 = vunpack.c.h.bf16 %v902
        %v921 = vunpack.c.h.bf16 %v903
        %v922 = vunpack.c.l.bf16 %v904
        %v923 = vunpack.c.l.bf16 %v905
        %v924 = vunpack.c.h.bf16 %v904
        %v925 = vunpack.c.h.bf16 %v905
        %v926 = vunpack.c.l.bf16 %v906
        %v927 = vunpack.c.l.bf16 %v907
        %v928 = vunpack.c.h.bf16 %v906
        %v929 = vunpack.c.h.bf16 %v907
        %v930 = vunpack.c.l.bf16 %v908
        %v931 = vunpack.c.l.bf16 %v909
        %v932 = vunpack.c.h.bf16 %v908
        %v933 = vunpack.c.h.bf16 %v909
        %v934 = vunpack.c.l.bf16 %v910
        %v935 = vunpack.c.l.bf16 %v911
        %v936 = vunpack.c.h.bf16 %v910
        %v937 = vunpack.c.h.bf16 %v911
        %v938 = vunpack.c.l.bf16 %v912
        %v939 = vunpack.c.l.bf16 %v913
        %v940 = vunpack.c.h.bf16 %v912
        %v941 = vunpack.c.h.bf16 %v913
        %v942 = vunpack.c.l.bf16 %v914
        %v943 = vunpack.c.l.bf16 %v915
        %v944 = vunpack.c.h.bf16 %v914
        %v945 = vunpack.c.h.bf16 %v915
        %v946 = vunpack.c.l.bf16 %v916
        %v947 = vunpack.c.l.bf16 %v917
        %v948 = vunpack.c.h.bf16 %v916
        %v949 = vunpack.c.h.bf16 %v917
        %v950 = vld [vmem:[%s742] sm:$0x3]
        %v951 = vld [vmem:[%s746] sm:$0x3]
        %v952 = vadd.f32 %v918, %v919
        %953 = vadd.xlane.f32.xlu0 %v952
        %v954 = vpop.xlane.xlu0 %953
        %v955 = vadd.f32 %v920, %v921
        %956 = vadd.xlane.f32.xlu0 %v955
        %v957 = vpop.xlane.xlu0 %956
        %v958 = vadd.f32 %v922, %v923
        %959 = vadd.xlane.f32.xlu0 %v958
        %v960 = vpop.xlane.xlu0 %959
        %v961 = vadd.f32 %v924, %v925
        %962 = vadd.xlane.f32.xlu0 %v961
        %v963 = vpop.xlane.xlu0 %962
        %v964 = vadd.f32 %v926, %v927
        %965 = vadd.xlane.f32.xlu0 %v964
        %v966 = vpop.xlane.xlu0 %965
        %v967 = vadd.f32 %v928, %v929
        %968 = vadd.xlane.f32.xlu0 %v967
        %v969 = vpop.xlane.xlu0 %968
        %v970 = vadd.f32 %v930, %v931
        %971 = vadd.xlane.f32.xlu0 %v970
        %v972 = vpop.xlane.xlu0 %971
        %v973 = vadd.f32 %v932, %v933
        %974 = vadd.xlane.f32.xlu0 %v973
        %v975 = vpop.xlane.xlu0 %974
        %v976 = vadd.f32 %v934, %v935
        %977 = vadd.xlane.f32.xlu0 %v976
        %v978 = vpop.xlane.xlu0 %977
        %v979 = vadd.f32 %v936, %v937
        %980 = vadd.xlane.f32.xlu0 %v979
        %v981 = vpop.xlane.xlu0 %980
        %v982 = vadd.f32 %v938, %v939
        %983 = vadd.xlane.f32.xlu0 %v982
        %v984 = vpop.xlane.xlu0 %983
        %v985 = vadd.f32 %v940, %v941
        %986 = vadd.xlane.f32.xlu0 %v985
        %v987 = vpop.xlane.xlu0 %986
        %v988 = vadd.f32 %v942, %v943
        %989 = vadd.xlane.f32.xlu0 %v988
        %v990 = vpop.xlane.xlu0 %989
        %v991 = vadd.f32 %v944, %v945
        %992 = vadd.xlane.f32.xlu0 %v991
        %v993 = vpop.xlane.xlu0 %992
        %v994 = vadd.f32 %v946, %v947
        %995 = vadd.xlane.f32.xlu0 %v994
        %v996 = vpop.xlane.xlu0 %995
        %v997 = vadd.f32 %v948, %v949
        %998 = vadd.xlane.f32.xlu0 %v997
        %v999 = vpop.xlane.xlu0 %998
        %v1000 = vrcp.pop 256.0
        %v1001 = vmul.f32 %v954, %v1000
        %v1002 = vmul.f32 %v957, %v1000
        %v1003 = vmul.f32 %v960, %v1000
        %v1004 = vmul.f32 %v963, %v1000
        %v1005 = vmul.f32 %v966, %v1000
        %v1006 = vmul.f32 %v969, %v1000
        %v1007 = vmul.f32 %v972, %v1000
        %v1008 = vmul.f32 %v975, %v1000
        %v1009 = vmul.f32 %v978, %v1000
        %v1010 = vmul.f32 %v981, %v1000
        %v1011 = vmul.f32 %v984, %v1000
        %v1012 = vmul.f32 %v987, %v1000
        %v1013 = vmul.f32 %v990, %v1000
        %v1014 = vmul.f32 %v993, %v1000
        %v1015 = vmul.f32 %v996, %v1000
        %v1016 = vmul.f32 %v999, %v1000
        %v1017 = vsub.f32 %v918, %v1001
        %v1018 = vsub.f32 %v919, %v1001
        %v1019 = vsub.f32 %v920, %v1002
        %v1020 = vsub.f32 %v921, %v1002
        %v1021 = vsub.f32 %v922, %v1003
        %v1022 = vsub.f32 %v923, %v1003
        %v1023 = vsub.f32 %v924, %v1004
        %v1024 = vsub.f32 %v925, %v1004
        %v1025 = vsub.f32 %v926, %v1005
        %v1026 = vsub.f32 %v927, %v1005
        %v1027 = vsub.f32 %v928, %v1006
        %v1028 = vsub.f32 %v929, %v1006
        %v1029 = vsub.f32 %v930, %v1007
        %v1030 = vsub.f32 %v931, %v1007
        %v1031 = vsub.f32 %v932, %v1008
        %v1032 = vsub.f32 %v933, %v1008
        %v1033 = vsub.f32 %v934, %v1009
        %v1034 = vsub.f32 %v935, %v1009
        %v1035 = vsub.f32 %v936, %v1010
        %v1036 = vsub.f32 %v937, %v1010
        %v1037 = vsub.f32 %v938, %v1011
        %v1038 = vsub.f32 %v939, %v1011
        %v1039 = vsub.f32 %v940, %v1012
        %v1040 = vsub.f32 %v941, %v1012
        %v1041 = vsub.f32 %v942, %v1013
        %v1042 = vsub.f32 %v943, %v1013
        %v1043 = vsub.f32 %v944, %v1014
        %v1044 = vsub.f32 %v945, %v1014
        %v1045 = vsub.f32 %v946, %v1015
        %v1046 = vsub.f32 %v947, %v1015
        %v1047 = vsub.f32 %v948, %v1016
        %v1048 = vsub.f32 %v949, %v1016
        %v1049 = vmul.f32 %v1017, %v1017
        %v1050 = vmul.f32 %v1018, %v1018
        %v1051 = vmul.f32 %v1019, %v1019
        %v1052 = vmul.f32 %v1020, %v1020
        %v1053 = vmul.f32 %v1021, %v1021
        %v1054 = vmul.f32 %v1022, %v1022
        %v1055 = vmul.f32 %v1023, %v1023
        %v1056 = vmul.f32 %v1024, %v1024
        %v1057 = vmul.f32 %v1025, %v1025
        %v1058 = vmul.f32 %v1026, %v1026
        %v1059 = vmul.f32 %v1027, %v1027
        %v1060 = vmul.f32 %v1028, %v1028
        %v1061 = vmul.f32 %v1029, %v1029
        %v1062 = vmul.f32 %v1030, %v1030
        %v1063 = vmul.f32 %v1031, %v1031
        %v1064 = vmul.f32 %v1032, %v1032
        %v1065 = vmul.f32 %v1033, %v1033
        %v1066 = vmul.f32 %v1034, %v1034
        %v1067 = vmul.f32 %v1035, %v1035
        %v1068 = vmul.f32 %v1036, %v1036
        %v1069 = vmul.f32 %v1037, %v1037
        %v1070 = vmul.f32 %v1038, %v1038
        %v1071 = vmul.f32 %v1039, %v1039
        %v1072 = vmul.f32 %v1040, %v1040
        %v1073 = vmul.f32 %v1041, %v1041
        %v1074 = vmul.f32 %v1042, %v1042
        %v1075 = vmul.f32 %v1043, %v1043
        %v1076 = vmul.f32 %v1044, %v1044
        %v1077 = vmul.f32 %v1045, %v1045
        %v1078 = vmul.f32 %v1046, %v1046
        %v1079 = vmul.f32 %v1047, %v1047
        %v1080 = vmul.f32 %v1048, %v1048
        %v1081 = vadd.f32 %v1049, %v1050
        %1082 = vadd.xlane.f32.xlu0 %v1081
        %v1083 = vpop.xlane.xlu0 %1082
        %v1084 = vadd.f32 %v1051, %v1052
        %1085 = vadd.xlane.f32.xlu0 %v1084
        %v1086 = vpop.xlane.xlu0 %1085
        %v1087 = vadd.f32 %v1053, %v1054
        %1088 = vadd.xlane.f32.xlu0 %v1087
        %v1089 = vpop.xlane.xlu0 %1088
        %v1090 = vadd.f32 %v1055, %v1056
        %1091 = vadd.xlane.f32.xlu0 %v1090
        %v1092 = vpop.xlane.xlu0 %1091
        %v1093 = vadd.f32 %v1057, %v1058
        %1094 = vadd.xlane.f32.xlu0 %v1093
        %v1095 = vpop.xlane.xlu0 %1094
        %v1096 = vadd.f32 %v1059, %v1060
        %1097 = vadd.xlane.f32.xlu0 %v1096
        %v1098 = vpop.xlane.xlu0 %1097
        %v1099 = vadd.f32 %v1061, %v1062
        %1100 = vadd.xlane.f32.xlu0 %v1099
        %v1101 = vpop.xlane.xlu0 %1100
        %v1102 = vadd.f32 %v1063, %v1064
        %1103 = vadd.xlane.f32.xlu0 %v1102
        %v1104 = vpop.xlane.xlu0 %1103
        %v1105 = vadd.f32 %v1065, %v1066
        %1106 = vadd.xlane.f32.xlu0 %v1105
        %v1107 = vpop.xlane.xlu0 %1106
        %v1108 = vadd.f32 %v1067, %v1068
        %1109 = vadd.xlane.f32.xlu0 %v1108
        %v1110 = vpop.xlane.xlu0 %1109
        %v1111 = vadd.f32 %v1069, %v1070
        %1112 = vadd.xlane.f32.xlu0 %v1111
        %v1113 = vpop.xlane.xlu0 %1112
        %v1114 = vadd.f32 %v1071, %v1072
        %1115 = vadd.xlane.f32.xlu0 %v1114
        %v1116 = vpop.xlane.xlu0 %1115
        %v1117 = vadd.f32 %v1073, %v1074
        %1118 = vadd.xlane.f32.xlu0 %v1117
        %v1119 = vpop.xlane.xlu0 %1118
        %v1120 = vadd.f32 %v1075, %v1076
        %1121 = vadd.xlane.f32.xlu0 %v1120
        %v1122 = vpop.xlane.xlu0 %1121
        %v1123 = vadd.f32 %v1077, %v1078
        %1124 = vadd.xlane.f32.xlu0 %v1123
        %v1125 = vpop.xlane.xlu0 %1124
        %v1126 = vadd.f32 %v1079, %v1080
        %1127 = vadd.xlane.f32.xlu0 %v1126
        %v1128 = vpop.xlane.xlu0 %1127
        %v1129 = vmul.f32 %v1083, %v1000
        %v1130 = vmul.f32 %v1086, %v1000
        %v1131 = vmul.f32 %v1089, %v1000
        %v1132 = vmul.f32 %v1092, %v1000
        %v1133 = vmul.f32 %v1095, %v1000
        %v1134 = vmul.f32 %v1098, %v1000
        %v1135 = vmul.f32 %v1101, %v1000
        %v1136 = vmul.f32 %v1104, %v1000
        %v1137 = vmul.f32 %v1107, %v1000
        %v1138 = vmul.f32 %v1110, %v1000
        %v1139 = vmul.f32 %v1113, %v1000
        %v1140 = vmul.f32 %v1116, %v1000
        %v1141 = vmul.f32 %v1119, %v1000
        %v1142 = vmul.f32 %v1122, %v1000
        %v1143 = vmul.f32 %v1125, %v1000
        %v1144 = vmul.f32 %v1128, %v1000
        %v1145 = vadd.f32 %v1129, 1e-05
        %v1146 = vadd.f32 %v1130, 1e-05
        %v1147 = vadd.f32 %v1131, 1e-05
        %v1148 = vadd.f32 %v1132, 1e-05
        %v1149 = vadd.f32 %v1133, 1e-05
        %v1150 = vadd.f32 %v1134, 1e-05
        %v1151 = vadd.f32 %v1135, 1e-05
        %v1152 = vadd.f32 %v1136, 1e-05
        %v1153 = vadd.f32 %v1137, 1e-05
        %v1154 = vadd.f32 %v1138, 1e-05
        %v1155 = vadd.f32 %v1139, 1e-05
        %v1156 = vadd.f32 %v1140, 1e-05
        %v1157 = vadd.f32 %v1141, 1e-05
        %v1158 = vadd.f32 %v1142, 1e-05
        %v1159 = vadd.f32 %v1143, 1e-05
        %v1160 = vadd.f32 %v1144, 1e-05
        %v1161 = vrsqrt.pop %v1145
        %v1162 = vrsqrt.pop %v1146
        %v1163 = vrsqrt.pop %v1147
        %v1164 = vrsqrt.pop %v1148
        %v1165 = vrsqrt.pop %v1149
        %v1166 = vrsqrt.pop %v1150
        %v1167 = vrsqrt.pop %v1151
        %v1168 = vrsqrt.pop %v1152
        %v1169 = vrsqrt.pop %v1153
        %v1170 = vrsqrt.pop %v1154
        %v1171 = vrsqrt.pop %v1155
        %v1172 = vrsqrt.pop %v1156
        %v1173 = vrsqrt.pop %v1157
        %v1174 = vrsqrt.pop %v1158
        %v1175 = vrsqrt.pop %v1159
        %v1176 = vrsqrt.pop %v1160
        %v1177 = vmul.f32 %v1017, %v1161
        %v1178 = vmul.f32 %v1018, %v1161
        %v1179 = vmul.f32 %v1019, %v1162
        %v1180 = vmul.f32 %v1020, %v1162
        %v1181 = vmul.f32 %v1021, %v1163
        %v1182 = vmul.f32 %v1022, %v1163
        %v1183 = vmul.f32 %v1023, %v1164
        %v1184 = vmul.f32 %v1024, %v1164
        %v1185 = vmul.f32 %v1025, %v1165
        %v1186 = vmul.f32 %v1026, %v1165
        %v1187 = vmul.f32 %v1027, %v1166
        %v1188 = vmul.f32 %v1028, %v1166
        %v1189 = vmul.f32 %v1029, %v1167
        %v1190 = vmul.f32 %v1030, %v1167
        %v1191 = vmul.f32 %v1031, %v1168
        %v1192 = vmul.f32 %v1032, %v1168
        %v1193 = vmul.f32 %v1033, %v1169
        %v1194 = vmul.f32 %v1034, %v1169
        %v1195 = vmul.f32 %v1035, %v1170
        %v1196 = vmul.f32 %v1036, %v1170
        %v1197 = vmul.f32 %v1037, %v1171
        %v1198 = vmul.f32 %v1038, %v1171
        %v1199 = vmul.f32 %v1039, %v1172
        %v1200 = vmul.f32 %v1040, %v1172
        %v1201 = vmul.f32 %v1041, %v1173
        %v1202 = vmul.f32 %v1042, %v1173
        %v1203 = vmul.f32 %v1043, %v1174
        %v1204 = vmul.f32 %v1044, %v1174
        %v1205 = vmul.f32 %v1045, %v1175
        %v1206 = vmul.f32 %v1046, %v1175
        %v1207 = vmul.f32 %v1047, %v1176
        %v1208 = vmul.f32 %v1048, %v1176
        %v1210 = vlaneseq
        %v1211 = vshrl.u32 %v1210, 7
        %v1212 = vsub.s32 0, %v1211
        %v1213 = vrot.slane %v950, %v1212
        %v1214 = vlaneseq
        %v1215 = vshrl.u32 %v1214, 7
        %v1216 = vsub.s32 1, %v1215
        %v1217 = vrot.slane %v950, %v1216
        %v1220 = vmul.f32 %v1177, %v1213
        %v1221 = vmul.f32 %v1178, %v1217
        %v1222 = vmul.f32 %v1179, %v1213
        %v1223 = vmul.f32 %v1180, %v1217
        %v1224 = vmul.f32 %v1181, %v1213
        %v1225 = vmul.f32 %v1182, %v1217
        %v1226 = vmul.f32 %v1183, %v1213
        %v1227 = vmul.f32 %v1184, %v1217
        %v1228 = vmul.f32 %v1185, %v1213
        %v1229 = vmul.f32 %v1186, %v1217
        %v1230 = vmul.f32 %v1187, %v1213
        %v1231 = vmul.f32 %v1188, %v1217
        %v1232 = vmul.f32 %v1189, %v1213
        %v1233 = vmul.f32 %v1190, %v1217
        %v1234 = vmul.f32 %v1191, %v1213
        %v1235 = vmul.f32 %v1192, %v1217
        %v1236 = vmul.f32 %v1193, %v1213
        %v1237 = vmul.f32 %v1194, %v1217
        %v1238 = vmul.f32 %v1195, %v1213
        %v1239 = vmul.f32 %v1196, %v1217
        %v1240 = vmul.f32 %v1197, %v1213
        %v1241 = vmul.f32 %v1198, %v1217
        %v1242 = vmul.f32 %v1199, %v1213
        %v1243 = vmul.f32 %v1200, %v1217
        %v1244 = vmul.f32 %v1201, %v1213
        %v1245 = vmul.f32 %v1202, %v1217
        %v1246 = vmul.f32 %v1203, %v1213
        %v1247 = vmul.f32 %v1204, %v1217
        %v1248 = vmul.f32 %v1205, %v1213
        %v1249 = vmul.f32 %v1206, %v1217
        %v1250 = vmul.f32 %v1207, %v1213
        %v1251 = vmul.f32 %v1208, %v1217
        %v1253 = vlaneseq
        %v1254 = vshrl.u32 %v1253, 7
        %v1255 = vsub.s32 0, %v1254
        %v1256 = vrot.slane %v951, %v1255
        %v1257 = vlaneseq
        %v1258 = vshrl.u32 %v1257, 7
        %v1259 = vsub.s32 1, %v1258
        %v1260 = vrot.slane %v951, %v1259
        %v1263 = vadd.f32 %v1220, %v1256
        %v1264 = vadd.f32 %v1221, %v1260
        %v1265 = vadd.f32 %v1222, %v1256
        %v1266 = vadd.f32 %v1223, %v1260
        %v1267 = vadd.f32 %v1224, %v1256
        %v1268 = vadd.f32 %v1225, %v1260
        %v1269 = vadd.f32 %v1226, %v1256
        %v1270 = vadd.f32 %v1227, %v1260
        %v1271 = vadd.f32 %v1228, %v1256
        %v1272 = vadd.f32 %v1229, %v1260
        %v1273 = vadd.f32 %v1230, %v1256
        %v1274 = vadd.f32 %v1231, %v1260
        %v1275 = vadd.f32 %v1232, %v1256
        %v1276 = vadd.f32 %v1233, %v1260
        %v1277 = vadd.f32 %v1234, %v1256
        %v1278 = vadd.f32 %v1235, %v1260
        %v1279 = vadd.f32 %v1236, %v1256
        %v1280 = vadd.f32 %v1237, %v1260
        %v1281 = vadd.f32 %v1238, %v1256
        %v1282 = vadd.f32 %v1239, %v1260
        %v1283 = vadd.f32 %v1240, %v1256
        %v1284 = vadd.f32 %v1241, %v1260
        %v1285 = vadd.f32 %v1242, %v1256
        %v1286 = vadd.f32 %v1243, %v1260
        %v1287 = vadd.f32 %v1244, %v1256
        %v1288 = vadd.f32 %v1245, %v1260
        %v1289 = vadd.f32 %v1246, %v1256
        %v1290 = vadd.f32 %v1247, %v1260
        %v1291 = vadd.f32 %v1248, %v1256
        %v1292 = vadd.f32 %v1249, %v1260
        %v1293 = vadd.f32 %v1250, %v1256
        %v1294 = vadd.f32 %v1251, %v1260
        %v1295 = vpack.c.bf16 %v1265, %v1263
        %v1296 = vpack.c.bf16 %v1266, %v1264
        %v1297 = vpack.c.bf16 %v1269, %v1267
        %v1298 = vpack.c.bf16 %v1270, %v1268
        %v1299 = vpack.c.bf16 %v1273, %v1271
        %v1300 = vpack.c.bf16 %v1274, %v1272
        %v1301 = vpack.c.bf16 %v1277, %v1275
        %v1302 = vpack.c.bf16 %v1278, %v1276
        %v1303 = vpack.c.bf16 %v1281, %v1279
        %v1304 = vpack.c.bf16 %v1282, %v1280
        %v1305 = vpack.c.bf16 %v1285, %v1283
        %v1306 = vpack.c.bf16 %v1286, %v1284
        %v1307 = vpack.c.bf16 %v1289, %v1287
        %v1308 = vpack.c.bf16 %v1290, %v1288
        %v1309 = vpack.c.bf16 %v1293, %v1291
        %v1310 = vpack.c.bf16 %v1294, %v1292
        %v1311 = vld [vmem:[%s751] sm:$0xff]
        %v1312 = vld [vmem:[%s751 + $0x8] sm:$0xff]
        %v1313 = vld [vmem:[%s751 + $0x10] sm:$0xff]
        %v1314 = vld [vmem:[%s751 + $0x18] sm:$0xff]
        %v1315 = vld [vmem:[%s751 + $0x20] sm:$0xff]
        %v1316 = vld [vmem:[%s751 + $0x28] sm:$0xff]
        %v1317 = vld [vmem:[%s751 + $0x30] sm:$0xff]
        %v1318 = vld [vmem:[%s751 + $0x38] sm:$0xff]
        %v1319 = vld [vmem:[%s751 + $0x40] sm:$0xff]
        %v1320 = vld [vmem:[%s751 + $0x48] sm:$0xff]
        %v1321 = vld [vmem:[%s751 + $0x50] sm:$0xff]
        %v1322 = vld [vmem:[%s751 + $0x58] sm:$0xff]
        %v1323 = vld [vmem:[%s751 + $0x60] sm:$0xff]
        %v1324 = vld [vmem:[%s751 + $0x68] sm:$0xff]
        %v1325 = vld [vmem:[%s751 + $0x70] sm:$0xff]
        %v1326 = vld [vmem:[%s751 + $0x78] sm:$0xff]
        %v1327 = vld [vmem:[%s751 + $0x80] sm:$0xff]
        %v1328 = vld [vmem:[%s751 + $0x88] sm:$0xff]
        %v1329 = vld [vmem:[%s751 + $0x90] sm:$0xff]
        %v1330 = vld [vmem:[%s751 + $0x98] sm:$0xff]
        %v1331 = vld [vmem:[%s751 + $0xa0] sm:$0xff]
        %v1332 = vld [vmem:[%s751 + $0xa8] sm:$0xff]
        %v1333 = vld [vmem:[%s751 + $0xb0] sm:$0xff]
        %v1334 = vld [vmem:[%s751 + $0xb8] sm:$0xff]
        %v1335 = vld [vmem:[%s751 + $0xc0] sm:$0xff]
        %v1336 = vld [vmem:[%s751 + $0xc8] sm:$0xff]
        %v1337 = vld [vmem:[%s751 + $0xd0] sm:$0xff]
        %v1338 = vld [vmem:[%s751 + $0xd8] sm:$0xff]
        %v1339 = vld [vmem:[%s751 + $0xe0] sm:$0xff]
        %v1340 = vld [vmem:[%s751 + $0xe8] sm:$0xff]
        %v1341 = vld [vmem:[%s751 + $0xf0] sm:$0xff]
        %v1342 = vld [vmem:[%s751 + $0xf8] sm:$0xff]
        %v1343 = vld [vmem:[%s751 + $0x100] sm:$0xff]
        %v1344 = vld [vmem:[%s751 + $0x108] sm:$0xff]
        %v1345 = vld [vmem:[%s751 + $0x110] sm:$0xff]
        %v1346 = vld [vmem:[%s751 + $0x118] sm:$0xff]
        %v1347 = vld [vmem:[%s751 + $0x120] sm:$0xff]
        %v1348 = vld [vmem:[%s751 + $0x128] sm:$0xff]
        %v1349 = vld [vmem:[%s751 + $0x130] sm:$0xff]
        %v1350 = vld [vmem:[%s751 + $0x138] sm:$0xff]
        %v1351 = vld [vmem:[%s751 + $0x140] sm:$0xff]
        %v1352 = vld [vmem:[%s751 + $0x148] sm:$0xff]
        %v1353 = vld [vmem:[%s751 + $0x150] sm:$0xff]
        %v1354 = vld [vmem:[%s751 + $0x158] sm:$0xff]
        %v1355 = vld [vmem:[%s751 + $0x160] sm:$0xff]
        %v1356 = vld [vmem:[%s751 + $0x168] sm:$0xff]
        %v1357 = vld [vmem:[%s751 + $0x170] sm:$0xff]
        %v1358 = vld [vmem:[%s751 + $0x178] sm:$0xff]
        %v1359 = vld [vmem:[%s751 + $0x180] sm:$0xff]
        %v1360 = vld [vmem:[%s751 + $0x188] sm:$0xff]
        %v1361 = vld [vmem:[%s751 + $0x190] sm:$0xff]
        %v1362 = vld [vmem:[%s751 + $0x198] sm:$0xff]
        %v1363 = vld [vmem:[%s751 + $0x1a0] sm:$0xff]
        %v1364 = vld [vmem:[%s751 + $0x1a8] sm:$0xff]
        %v1365 = vld [vmem:[%s751 + $0x1b0] sm:$0xff]
        %v1366 = vld [vmem:[%s751 + $0x1b8] sm:$0xff]
        %v1367 = vld [vmem:[%s751 + $0x1c0] sm:$0xff]
        %v1368 = vld [vmem:[%s751 + $0x1c8] sm:$0xff]
        %v1369 = vld [vmem:[%s751 + $0x1d0] sm:$0xff]
        %v1370 = vld [vmem:[%s751 + $0x1d8] sm:$0xff]
        %v1371 = vld [vmem:[%s751 + $0x1e0] sm:$0xff]
        %v1372 = vld [vmem:[%s751 + $0x1e8] sm:$0xff]
        %v1373 = vld [vmem:[%s751 + $0x1f0] sm:$0xff]
        %v1374 = vld [vmem:[%s751 + $0x1f8] sm:$0xff]
        %v1375 = vld [vmem:[%s751 + $0x200] sm:$0xff]
        %v1376 = vld [vmem:[%s751 + $0x208] sm:$0xff]
        %v1377 = vld [vmem:[%s751 + $0x210] sm:$0xff]
        %v1378 = vld [vmem:[%s751 + $0x218] sm:$0xff]
        %v1379 = vld [vmem:[%s751 + $0x220] sm:$0xff]
        %v1380 = vld [vmem:[%s751 + $0x228] sm:$0xff]
        %v1381 = vld [vmem:[%s751 + $0x230] sm:$0xff]
        %v1382 = vld [vmem:[%s751 + $0x238] sm:$0xff]
        %v1383 = vld [vmem:[%s751 + $0x240] sm:$0xff]
        %v1384 = vld [vmem:[%s751 + $0x248] sm:$0xff]
        %v1385 = vld [vmem:[%s751 + $0x250] sm:$0xff]
        %v1386 = vld [vmem:[%s751 + $0x258] sm:$0xff]
        %v1387 = vld [vmem:[%s751 + $0x260] sm:$0xff]
        %v1388 = vld [vmem:[%s751 + $0x268] sm:$0xff]
        %v1389 = vld [vmem:[%s751 + $0x270] sm:$0xff]
        %v1390 = vld [vmem:[%s751 + $0x278] sm:$0xff]
        %v1391 = vld [vmem:[%s751 + $0x280] sm:$0xff]
        %v1392 = vld [vmem:[%s751 + $0x288] sm:$0xff]
        %v1393 = vld [vmem:[%s751 + $0x290] sm:$0xff]
        %v1394 = vld [vmem:[%s751 + $0x298] sm:$0xff]
        %v1395 = vld [vmem:[%s751 + $0x2a0] sm:$0xff]
        %v1396 = vld [vmem:[%s751 + $0x2a8] sm:$0xff]
        %v1397 = vld [vmem:[%s751 + $0x2b0] sm:$0xff]
        %v1398 = vld [vmem:[%s751 + $0x2b8] sm:$0xff]
        %v1399 = vld [vmem:[%s751 + $0x2c0] sm:$0xff]
        %v1400 = vld [vmem:[%s751 + $0x2c8] sm:$0xff]
        %v1401 = vld [vmem:[%s751 + $0x2d0] sm:$0xff]
        %v1402 = vld [vmem:[%s751 + $0x2d8] sm:$0xff]
        %v1403 = vld [vmem:[%s751 + $0x2e0] sm:$0xff]
        %v1404 = vld [vmem:[%s751 + $0x2e8] sm:$0xff]
        %v1405 = vld [vmem:[%s751 + $0x2f0] sm:$0xff]
        %v1406 = vld [vmem:[%s751 + $0x2f8] sm:$0xff]
        %v1407 = vld [vmem:[%s755] sm:$0x3f]
        %v1409 = vlaneseq
        %v1410 = vshrl.u32 %v1409, 7
        %v1411 = vsub.s32 0, %v1410
        %v1412 = vrot.slane %v1407, %v1411
        %v1413 = vlaneseq
        %v1414 = vshrl.u32 %v1413, 7
        %v1415 = vsub.s32 1, %v1414
        %v1416 = vrot.slane %v1407, %v1415
        %v1417 = vlaneseq
        %v1418 = vshrl.u32 %v1417, 7
        %v1419 = vsub.s32 2, %v1418
        %v1420 = vrot.slane %v1407, %v1419
        %v1421 = vlaneseq
        %v1422 = vshrl.u32 %v1421, 7
        %v1423 = vsub.s32 3, %v1422
        %v1424 = vrot.slane %v1407, %v1423
        %v1425 = vlaneseq
        %v1426 = vshrl.u32 %v1425, 7
        %v1427 = vsub.s32 4, %v1426
        %v1428 = vrot.slane %v1407, %v1427
        %v1429 = vlaneseq
        %v1430 = vshrl.u32 %v1429, 7
        %v1431 = vsub.s32 5, %v1430
        %v1432 = vrot.slane %v1407, %v1431
        %v1535 = vunpack.c.l.b16 %v1311
        %v1536 = vunpack.c.h.b16 %v1311
        %v1537 = vunpack.c.l.b16 %v1312
        %v1538 = vunpack.c.h.b16 %v1312
        %v1539 = vunpack.c.l.b16 %v1313
        %v1540 = vunpack.c.h.b16 %v1313
        %v1541 = vunpack.c.l.b16 %v1314
        %v1542 = vunpack.c.h.b16 %v1314
        %v1543 = vunpack.c.l.b16 %v1315
        %v1544 = vunpack.c.h.b16 %v1315
        %v1545 = vunpack.c.l.b16 %v1316
        %v1546 = vunpack.c.h.b16 %v1316
        %v1547 = vunpack.c.l.b16 %v1317
        %v1548 = vunpack.c.h.b16 %v1317
        %v1549 = vunpack.c.l.b16 %v1318
        %v1550 = vunpack.c.h.b16 %v1318
        %v1551 = vunpack.c.l.b16 %v1319
        %v1552 = vunpack.c.h.b16 %v1319
        %v1553 = vunpack.c.l.b16 %v1320
        %v1554 = vunpack.c.h.b16 %v1320
        %v1555 = vunpack.c.l.b16 %v1321
        %v1556 = vunpack.c.h.b16 %v1321
        %v1557 = vunpack.c.l.b16 %v1322
        %v1558 = vunpack.c.h.b16 %v1322
        %v1559 = vunpack.c.l.b16 %v1323
        %v1560 = vunpack.c.h.b16 %v1323
        %v1561 = vunpack.c.l.b16 %v1324
        %v1562 = vunpack.c.h.b16 %v1324
        %v1563 = vunpack.c.l.b16 %v1325
        %v1564 = vunpack.c.h.b16 %v1325
        %v1565 = vunpack.c.l.b16 %v1326
        %v1566 = vunpack.c.h.b16 %v1326
        %v1567 = vunpack.c.l.b16 %v1327
        %v1568 = vunpack.c.h.b16 %v1327
        %v1569 = vunpack.c.l.b16 %v1328
        %v1570 = vunpack.c.h.b16 %v1328
        %v1571 = vunpack.c.l.b16 %v1329
        %v1572 = vunpack.c.h.b16 %v1329
        %v1573 = vunpack.c.l.b16 %v1330
        %v1574 = vunpack.c.h.b16 %v1330
        %v1575 = vunpack.c.l.b16 %v1331
        %v1576 = vunpack.c.h.b16 %v1331
        %v1577 = vunpack.c.l.b16 %v1332
        %v1578 = vunpack.c.h.b16 %v1332
        %v1579 = vunpack.c.l.b16 %v1333
        %v1580 = vunpack.c.h.b16 %v1333
        %v1581 = vunpack.c.l.b16 %v1334
        %v1582 = vunpack.c.h.b16 %v1334
        %v1583 = vunpack.c.l.b16 %v1335
        %v1584 = vunpack.c.h.b16 %v1335
        %v1585 = vunpack.c.l.b16 %v1336
        %v1586 = vunpack.c.h.b16 %v1336
        %v1587 = vunpack.c.l.b16 %v1337
        %v1588 = vunpack.c.h.b16 %v1337
        %v1589 = vunpack.c.l.b16 %v1338
        %v1590 = vunpack.c.h.b16 %v1338
        %v1591 = vunpack.c.l.b16 %v1339
        %v1592 = vunpack.c.h.b16 %v1339
        %v1593 = vunpack.c.l.b16 %v1340
        %v1594 = vunpack.c.h.b16 %v1340
        %v1595 = vunpack.c.l.b16 %v1341
        %v1596 = vunpack.c.h.b16 %v1341
        %v1597 = vunpack.c.l.b16 %v1342
        %v1598 = vunpack.c.h.b16 %v1342
        %v1599 = vunpack.c.l.b16 %v1343
        %v1600 = vunpack.c.h.b16 %v1343
        %v1601 = vunpack.c.l.b16 %v1344
        %v1602 = vunpack.c.h.b16 %v1344
        %v1603 = vunpack.c.l.b16 %v1345
        %v1604 = vunpack.c.h.b16 %v1345
        %v1605 = vunpack.c.l.b16 %v1346
        %v1606 = vunpack.c.h.b16 %v1346
        %v1607 = vunpack.c.l.b16 %v1347
        %v1608 = vunpack.c.h.b16 %v1347
        %v1609 = vunpack.c.l.b16 %v1348
        %v1610 = vunpack.c.h.b16 %v1348
        %v1611 = vunpack.c.l.b16 %v1349
        %v1612 = vunpack.c.h.b16 %v1349
        %v1613 = vunpack.c.l.b16 %v1350
        %v1614 = vunpack.c.h.b16 %v1350
        %v1615 = vunpack.c.l.b16 %v1351
        %v1616 = vunpack.c.h.b16 %v1351
        %v1617 = vunpack.c.l.b16 %v1352
        %v1618 = vunpack.c.h.b16 %v1352
        %v1619 = vunpack.c.l.b16 %v1353
        %v1620 = vunpack.c.h.b16 %v1353
        %v1621 = vunpack.c.l.b16 %v1354
        %v1622 = vunpack.c.h.b16 %v1354
        %v1623 = vunpack.c.l.b16 %v1355
        %v1624 = vunpack.c.h.b16 %v1355
        %v1625 = vunpack.c.l.b16 %v1356
        %v1626 = vunpack.c.h.b16 %v1356
        %v1627 = vunpack.c.l.b16 %v1357
        %v1628 = vunpack.c.h.b16 %v1357
        %v1629 = vunpack.c.l.b16 %v1358
        %v1630 = vunpack.c.h.b16 %v1358
        %v1631 = vunpack.c.l.b16 %v1359
        %v1632 = vunpack.c.h.b16 %v1359
        %v1633 = vunpack.c.l.b16 %v1360
        %v1634 = vunpack.c.h.b16 %v1360
        %v1635 = vunpack.c.l.b16 %v1361
        %v1636 = vunpack.c.h.b16 %v1361
        %v1637 = vunpack.c.l.b16 %v1362
        %v1638 = vunpack.c.h.b16 %v1362
        %v1639 = vunpack.c.l.b16 %v1363
        %v1640 = vunpack.c.h.b16 %v1363
        %v1641 = vunpack.c.l.b16 %v1364
        %v1642 = vunpack.c.h.b16 %v1364
        %v1643 = vunpack.c.l.b16 %v1365
        %v1644 = vunpack.c.h.b16 %v1365
        %v1645 = vunpack.c.l.b16 %v1366
        %v1646 = vunpack.c.h.b16 %v1366
        %v1647 = vunpack.c.l.b16 %v1367
        %v1648 = vunpack.c.h.b16 %v1367
        %v1649 = vunpack.c.l.b16 %v1368
        %v1650 = vunpack.c.h.b16 %v1368
        %v1651 = vunpack.c.l.b16 %v1369
        %v1652 = vunpack.c.h.b16 %v1369
        %v1653 = vunpack.c.l.b16 %v1370
        %v1654 = vunpack.c.h.b16 %v1370
        %v1655 = vunpack.c.l.b16 %v1371
        %v1656 = vunpack.c.h.b16 %v1371
        %v1657 = vunpack.c.l.b16 %v1372
        %v1658 = vunpack.c.h.b16 %v1372
        %v1659 = vunpack.c.l.b16 %v1373
        %v1660 = vunpack.c.h.b16 %v1373
        %v1661 = vunpack.c.l.b16 %v1374
        %v1662 = vunpack.c.h.b16 %v1374
        %v1663 = vunpack.c.l.b16 %v1375
        %v1664 = vunpack.c.h.b16 %v1375
        %v1665 = vunpack.c.l.b16 %v1376
        %v1666 = vunpack.c.h.b16 %v1376
        %v1667 = vunpack.c.l.b16 %v1377
        %v1668 = vunpack.c.h.b16 %v1377
        %v1669 = vunpack.c.l.b16 %v1378
        %v1670 = vunpack.c.h.b16 %v1378
        %v1671 = vunpack.c.l.b16 %v1379
        %v1672 = vunpack.c.h.b16 %v1379
        %v1673 = vunpack.c.l.b16 %v1380
        %v1674 = vunpack.c.h.b16 %v1380
        %v1675 = vunpack.c.l.b16 %v1381
        %v1676 = vunpack.c.h.b16 %v1381
        %v1677 = vunpack.c.l.b16 %v1382
        %v1678 = vunpack.c.h.b16 %v1382
        %v1679 = vunpack.c.l.b16 %v1383
        %v1680 = vunpack.c.h.b16 %v1383
        %v1681 = vunpack.c.l.b16 %v1384
        %v1682 = vunpack.c.h.b16 %v1384
        %v1683 = vunpack.c.l.b16 %v1385
        %v1684 = vunpack.c.h.b16 %v1385
        %v1685 = vunpack.c.l.b16 %v1386
        %v1686 = vunpack.c.h.b16 %v1386
        %v1687 = vunpack.c.l.b16 %v1387
        %v1688 = vunpack.c.h.b16 %v1387
        %v1689 = vunpack.c.l.b16 %v1388
        %v1690 = vunpack.c.h.b16 %v1388
        %v1691 = vunpack.c.l.b16 %v1389
        %v1692 = vunpack.c.h.b16 %v1389
        %v1693 = vunpack.c.l.b16 %v1390
        %v1694 = vunpack.c.h.b16 %v1390
        %v1695 = vunpack.c.l.b16 %v1391
        %v1696 = vunpack.c.h.b16 %v1391
        %v1697 = vunpack.c.l.b16 %v1392
        %v1698 = vunpack.c.h.b16 %v1392
        %v1699 = vunpack.c.l.b16 %v1393
        %v1700 = vunpack.c.h.b16 %v1393
        %v1701 = vunpack.c.l.b16 %v1394
        %v1702 = vunpack.c.h.b16 %v1394
        %v1703 = vunpack.c.l.b16 %v1395
        %v1704 = vunpack.c.h.b16 %v1395
        %v1705 = vunpack.c.l.b16 %v1396
        %v1706 = vunpack.c.h.b16 %v1396
        %v1707 = vunpack.c.l.b16 %v1397
        %v1708 = vunpack.c.h.b16 %v1397
        %v1709 = vunpack.c.l.b16 %v1398
        %v1710 = vunpack.c.h.b16 %v1398
        %v1711 = vunpack.c.l.b16 %v1399
        %v1712 = vunpack.c.h.b16 %v1399
        %v1713 = vunpack.c.l.b16 %v1400
        %v1714 = vunpack.c.h.b16 %v1400
        %v1715 = vunpack.c.l.b16 %v1401
        %v1716 = vunpack.c.h.b16 %v1401
        %v1717 = vunpack.c.l.b16 %v1402
        %v1718 = vunpack.c.h.b16 %v1402
        %v1719 = vunpack.c.l.b16 %v1403
        %v1720 = vunpack.c.h.b16 %v1403
        %v1721 = vunpack.c.l.b16 %v1404
        %v1722 = vunpack.c.h.b16 %v1404
        %v1723 = vunpack.c.l.b16 %v1405
        %v1724 = vunpack.c.h.b16 %v1405
        %v1725 = vunpack.c.l.b16 %v1406
        %v1726 = vunpack.c.h.b16 %v1406
        %v1727 = vpack.c.b16 %v1541, %v1535
        %v1728 = vpack.c.b16 %v1542, %v1536
        %v1729 = vpack.c.b16 %v1543, %v1537
        %v1730 = vpack.c.b16 %v1544, %v1538
        %v1731 = vpack.c.b16 %v1545, %v1539
        %v1732 = vpack.c.b16 %v1546, %v1540
        %v1733 = vpack.c.b16 %v1553, %v1547
        %v1734 = vpack.c.b16 %v1554, %v1548
        %v1735 = vpack.c.b16 %v1555, %v1549
        %v1736 = vpack.c.b16 %v1556, %v1550
        %v1737 = vpack.c.b16 %v1557, %v1551
        %v1738 = vpack.c.b16 %v1558, %v1552
        %v1739 = vpack.c.b16 %v1565, %v1559
        %v1740 = vpack.c.b16 %v1566, %v1560
        %v1741 = vpack.c.b16 %v1567, %v1561
        %v1742 = vpack.c.b16 %v1568, %v1562
        %v1743 = vpack.c.b16 %v1569, %v1563
        %v1744 = vpack.c.b16 %v1570, %v1564
        %v1745 = vpack.c.b16 %v1577, %v1571
        %v1746 = vpack.c.b16 %v1578, %v1572
        %v1747 = vpack.c.b16 %v1579, %v1573
        %v1748 = vpack.c.b16 %v1580, %v1574
        %v1749 = vpack.c.b16 %v1581, %v1575
        %v1750 = vpack.c.b16 %v1582, %v1576
        %v1751 = vpack.c.b16 %v1589, %v1583
        %v1752 = vpack.c.b16 %v1590, %v1584
        %v1753 = vpack.c.b16 %v1591, %v1585
        %v1754 = vpack.c.b16 %v1592, %v1586
        %v1755 = vpack.c.b16 %v1593, %v1587
        %v1756 = vpack.c.b16 %v1594, %v1588
        %v1757 = vpack.c.b16 %v1601, %v1595
        %v1758 = vpack.c.b16 %v1602, %v1596
        %v1759 = vpack.c.b16 %v1603, %v1597
        %v1760 = vpack.c.b16 %v1604, %v1598
        %v1761 = vpack.c.b16 %v1605, %v1599
        %v1762 = vpack.c.b16 %v1606, %v1600
        %v1763 = vpack.c.b16 %v1613, %v1607
        %v1764 = vpack.c.b16 %v1614, %v1608
        %v1765 = vpack.c.b16 %v1615, %v1609
        %v1766 = vpack.c.b16 %v1616, %v1610
        %v1767 = vpack.c.b16 %v1617, %v1611
        %v1768 = vpack.c.b16 %v1618, %v1612
        %v1769 = vpack.c.b16 %v1625, %v1619
        %v1770 = vpack.c.b16 %v1626, %v1620
        %v1771 = vpack.c.b16 %v1627, %v1621
        %v1772 = vpack.c.b16 %v1628, %v1622
        %v1773 = vpack.c.b16 %v1629, %v1623
        %v1774 = vpack.c.b16 %v1630, %v1624
        %v1775 = vpack.c.b16 %v1637, %v1631
        %v1776 = vpack.c.b16 %v1638, %v1632
        %v1777 = vpack.c.b16 %v1639, %v1633
        %v1778 = vpack.c.b16 %v1640, %v1634
        %v1779 = vpack.c.b16 %v1641, %v1635
        %v1780 = vpack.c.b16 %v1642, %v1636
        %v1781 = vpack.c.b16 %v1649, %v1643
        %v1782 = vpack.c.b16 %v1650, %v1644
        %v1783 = vpack.c.b16 %v1651, %v1645
        %v1784 = vpack.c.b16 %v1652, %v1646
        %v1785 = vpack.c.b16 %v1653, %v1647
        %v1786 = vpack.c.b16 %v1654, %v1648
        %v1787 = vpack.c.b16 %v1661, %v1655
        %v1788 = vpack.c.b16 %v1662, %v1656
        %v1789 = vpack.c.b16 %v1663, %v1657
        %v1790 = vpack.c.b16 %v1664, %v1658
        %v1791 = vpack.c.b16 %v1665, %v1659
        %v1792 = vpack.c.b16 %v1666, %v1660
        %v1793 = vpack.c.b16 %v1673, %v1667
        %v1794 = vpack.c.b16 %v1674, %v1668
        %v1795 = vpack.c.b16 %v1675, %v1669
        %v1796 = vpack.c.b16 %v1676, %v1670
        %v1797 = vpack.c.b16 %v1677, %v1671
        %v1798 = vpack.c.b16 %v1678, %v1672
        %v1799 = vpack.c.b16 %v1685, %v1679
        %v1800 = vpack.c.b16 %v1686, %v1680
        %v1801 = vpack.c.b16 %v1687, %v1681
        %v1802 = vpack.c.b16 %v1688, %v1682
        %v1803 = vpack.c.b16 %v1689, %v1683
        %v1804 = vpack.c.b16 %v1690, %v1684
        %v1805 = vpack.c.b16 %v1697, %v1691
        %v1806 = vpack.c.b16 %v1698, %v1692
        %v1807 = vpack.c.b16 %v1699, %v1693
        %v1808 = vpack.c.b16 %v1700, %v1694
        %v1809 = vpack.c.b16 %v1701, %v1695
        %v1810 = vpack.c.b16 %v1702, %v1696
        %v1811 = vpack.c.b16 %v1709, %v1703
        %v1812 = vpack.c.b16 %v1710, %v1704
        %v1813 = vpack.c.b16 %v1711, %v1705
        %v1814 = vpack.c.b16 %v1712, %v1706
        %v1815 = vpack.c.b16 %v1713, %v1707
        %v1816 = vpack.c.b16 %v1714, %v1708
        %v1817 = vpack.c.b16 %v1721, %v1715
        %v1818 = vpack.c.b16 %v1722, %v1716
        %v1819 = vpack.c.b16 %v1723, %v1717
        %v1820 = vpack.c.b16 %v1724, %v1718
        %v1821 = vpack.c.b16 %v1725, %v1719
        %v1822 = vpack.c.b16 %v1726, %v1720
        %1919 = vmatprep.subr.bf16.mxu0 %v1728
        %1920 = vmatpush1.bf16.msra.mxu0 %v1727
        %1921 = vmatprep.subr.bf16.mxu0 %v1734
        %1922 = vmatpush1.bf16.msra.mxu0 %v1733
        %1923 = vmatprep.subr.bf16.mxu0 %v1740
        %1924 = vmatpush1.bf16.msra.mxu0 %v1739
        %1925 = vmatprep.subr.bf16.mxu0 %v1746
        %1926 = vmatpush1.bf16.msra.mxu0 %v1745
        %1927 = vmatprep.subr.bf16.mxu0 %v1752
        %1928 = vmatpush1.bf16.msra.mxu0 %v1751
        %1929 = vmatprep.subr.bf16.mxu0 %v1758
        %1930 = vmatpush1.bf16.msra.mxu0 %v1757
        %1931 = vmatprep.subr.bf16.mxu0 %v1764
        %1932 = vmatpush1.bf16.msra.mxu0 %v1763
        %1933 = vmatprep.subr.bf16.mxu0 %v1770
        %1934 = vmatpush1.bf16.msra.mxu0 %v1769
        %1935 = vmatprep.subr.bf16.mxu0 %v1776
        %1936 = vmatpush1.bf16.msra.mxu0 %v1775
        %1937 = vmatprep.subr.bf16.mxu0 %v1782
        %1938 = vmatpush1.bf16.msra.mxu0 %v1781
        %1939 = vmatprep.subr.bf16.mxu0 %v1788
        %1940 = vmatpush1.bf16.msra.mxu0 %v1787
        %1941 = vmatprep.subr.bf16.mxu0 %v1794
        %1942 = vmatpush1.bf16.msra.mxu0 %v1793
        %1943 = vmatprep.subr.bf16.mxu0 %v1800
        %1944 = vmatpush1.bf16.msra.mxu0 %v1799
        %1945 = vmatprep.subr.bf16.mxu0 %v1806
        %1946 = vmatpush1.bf16.msra.mxu0 %v1805
        %1947 = vmatprep.subr.bf16.mxu0 %v1812
        %1948 = vmatpush1.bf16.msra.mxu0 %v1811
        %1949 = vmatprep.subr.bf16.mxu0 %v1818
        %1950 = vmatpush1.bf16.msra.mxu0 %v1817
        %1951 = vmatprep.mubr.bf16.mxu0 %v1296
        %1952 = vmatmul.mubr.bf16.gmra.mrb[0].mxu0 %v1295
        %v1953 = vpop.f32.mrb[0].mxu0
        %v1954 = vadd.f32 %v1412, %v1953
        %v1955 = vpop.f32.mrb[0].mxu0
        %v1956 = vadd.f32 %v1416, %v1955
        %v1957 = vpop.f32.mrb[0].mxu0
        %v1958 = vadd.f32 %v1412, %v1957
        %v1959 = vpop.f32.mrb[0].mxu0
        %v1960 = vadd.f32 %v1416, %v1959
        %1961 = vmatprep.mubr.bf16.mxu0 %v1298
        %1962 = vmatmul.mubr.bf16.gmra.mrb[0].mxu0 %v1297
        %v1963 = vpop.f32.mrb[0].mxu0
        %v1964 = vadd.f32 %v1412, %v1963
        %v1965 = vpop.f32.mrb[0].mxu0
        %v1966 = vadd.f32 %v1416, %v1965
        %v1967 = vpop.f32.mrb[0].mxu0
        %v1968 = vadd.f32 %v1412, %v1967
        %v1969 = vpop.f32.mrb[0].mxu0
        %v1970 = vadd.f32 %v1416, %v1969
        %1971 = vmatprep.mubr.bf16.mxu0 %v1300
        %1972 = vmatmul.mubr.bf16.gmra.mrb[0].mxu0 %v1299
        %v1973 = vpop.f32.mrb[0].mxu0
        %v1974 = vadd.f32 %v1412, %v1973
        %v1975 = vpop.f32.mrb[0].mxu0
        %v1976 = vadd.f32 %v1416, %v1975
        %v1977 = vpop.f32.mrb[0].mxu0
        %v1978 = vadd.f32 %v1412, %v1977
        %v1979 = vpop.f32.mrb[0].mxu0
        %v1980 = vadd.f32 %v1416, %v1979
        %1981 = vmatprep.mubr.bf16.mxu0 %v1302
        %1982 = vmatmul.mubr.bf16.gmra.mrb[0].mxu0 %v1301
        %v1983 = vpop.f32.mrb[0].mxu0
        %v1984 = vadd.f32 %v1412, %v1983
        %v1985 = vpop.f32.mrb[0].mxu0
        %v1986 = vadd.f32 %v1416, %v1985
        %v1987 = vpop.f32.mrb[0].mxu0
        %v1988 = vadd.f32 %v1412, %v1987
        %v1989 = vpop.f32.mrb[0].mxu0
        %v1990 = vadd.f32 %v1416, %v1989
        %1991 = vmatprep.mubr.bf16.mxu0 %v1304
        %1992 = vmatmul.mubr.bf16.gmra.mrb[0].mxu0 %v1303
        %v1993 = vpop.f32.mrb[0].mxu0
        %v1994 = vadd.f32 %v1412, %v1993
        %v1995 = vpop.f32.mrb[0].mxu0
        %v1996 = vadd.f32 %v1416, %v1995
        %v1997 = vpop.f32.mrb[0].mxu0
        %v1998 = vadd.f32 %v1412, %v1997
        %v1999 = vpop.f32.mrb[0].mxu0
        %v2000 = vadd.f32 %v1416, %v1999
        %2001 = vmatprep.mubr.bf16.mxu0 %v1306
        %2002 = vmatmul.mubr.bf16.gmra.mrb[0].mxu0 %v1305
        %v2003 = vpop.f32.mrb[0].mxu0
        %v2004 = vadd.f32 %v1412, %v2003
        %v2005 = vpop.f32.mrb[0].mxu0
        %v2006 = vadd.f32 %v1416, %v2005
        %v2007 = vpop.f32.mrb[0].mxu0
        %v2008 = vadd.f32 %v1412, %v2007
        %v2009 = vpop.f32.mrb[0].mxu0
        %v2010 = vadd.f32 %v1416, %v2009
        %2011 = vmatprep.mubr.bf16.mxu0 %v1308
        %2012 = vmatmul.mubr.bf16.gmra.mrb[0].mxu0 %v1307
        %v2013 = vpop.f32.mrb[0].mxu0
        %v2014 = vadd.f32 %v1412, %v2013
        %v2015 = vpop.f32.mrb[0].mxu0
        %v2016 = vadd.f32 %v1416, %v2015
        %v2017 = vpop.f32.mrb[0].mxu0
        %v2018 = vadd.f32 %v1412, %v2017
        %v2019 = vpop.f32.mrb[0].mxu0
        %v2020 = vadd.f32 %v1416, %v2019
        %2021 = vmatprep.mubr.bf16.mxu0 %v1310
        %2022 = vmatmul.mubr.bf16.gmra.mrb[0].mxu0 %v1309
        %v2023 = vpop.f32.mrb[0].mxu0
        %v2024 = vadd.f32 %v1412, %v2023
        %v2025 = vpop.f32.mrb[0].mxu0
        %v2026 = vadd.f32 %v1416, %v2025
        %v2027 = vpop.f32.mrb[0].mxu0
        %v2028 = vadd.f32 %v1412, %v2027
        %v2029 = vpop.f32.mrb[0].mxu0
        %v2030 = vadd.f32 %v1416, %v2029
        %2031 = vdwg.mxu0
        %2032 = vmatprep.subr.bf16.mxu0 %v1730
        %2033 = vmatpush1.bf16.msra.mxu0 %v1729
        %2034 = vmatprep.subr.bf16.mxu0 %v1736
        %2035 = vmatpush1.bf16.msra.mxu0 %v1735
        %2036 = vmatprep.subr.bf16.mxu0 %v1742
        %2037 = vmatpush1.bf16.msra.mxu0 %v1741
        %2038 = vmatprep.subr.bf16.mxu0 %v1748
        %2039 = vmatpush1.bf16.msra.mxu0 %v1747
        %2040 = vmatprep.subr.bf16.mxu0 %v1754
        %2041 = vmatpush1.bf16.msra.mxu0 %v1753
        %2042 = vmatprep.subr.bf16.mxu0 %v1760
        %2043 = vmatpush1.bf16.msra.mxu0 %v1759
        %2044 = vmatprep.subr.bf16.mxu0 %v1766
        %2045 = vmatpush1.bf16.msra.mxu0 %v1765
        %2046 = vmatprep.subr.bf16.mxu0 %v1772
        %2047 = vmatpush1.bf16.msra.mxu0 %v1771
        %2048 = vmatprep.subr.bf16.mxu0 %v1778
        %2049 = vmatpush1.bf16.msra.mxu0 %v1777
        %2050 = vmatprep.subr.bf16.mxu0 %v1784
        %2051 = vmatpush1.bf16.msra.mxu0 %v1783
        %2052 = vmatprep.subr.bf16.mxu0 %v1790
        %2053 = vmatpush1.bf16.msra.mxu0 %v1789
        %2054 = vmatprep.subr.bf16.mxu0 %v1796
        %2055 = vmatpush1.bf16.msra.mxu0 %v1795
        %2056 = vmatprep.subr.bf16.mxu0 %v1802
        %2057 = vmatpush1.bf16.msra.mxu0 %v1801
        %2058 = vmatprep.subr.bf16.mxu0 %v1808
        %2059 = vmatpush1.bf16.msra.mxu0 %v1807
        %2060 = vmatprep.subr.bf16.mxu0 %v1814
        %2061 = vmatpush1.bf16.msra.mxu0 %v1813
        %2062 = vmatprep.subr.bf16.mxu0 %v1820
        %2063 = vmatpush1.bf16.msra.mxu0 %v1819
        %2064 = vmatprep.mubr.bf16.mxu0 %v1296
        %2065 = vmatmul.mubr.bf16.gmra.mrb[0].mxu0 %v1295
        %v2066 = vpop.f32.mrb[0].mxu0
        %v2067 = vadd.f32 %v1420, %v2066
        %v2068 = vpop.f32.mrb[0].mxu0
        %v2069 = vadd.f32 %v1424, %v2068
        %v2070 = vpop.f32.mrb[0].mxu0
        %v2071 = vadd.f32 %v1420, %v2070
        %v2072 = vpop.f32.mrb[0].mxu0
        %v2073 = vadd.f32 %v1424, %v2072
        %2074 = vmatprep.mubr.bf16.mxu0 %v1298
        %2075 = vmatmul.mubr.bf16.gmra.mrb[0].mxu0 %v1297
        %v2076 = vpop.f32.mrb[0].mxu0
        %v2077 = vadd.f32 %v1420, %v2076
        %v2078 = vpop.f32.mrb[0].mxu0
        %v2079 = vadd.f32 %v1424, %v2078
        %v2080 = vpop.f32.mrb[0].mxu0
        %v2081 = vadd.f32 %v1420, %v2080
        %v2082 = vpop.f32.mrb[0].mxu0
        %v2083 = vadd.f32 %v1424, %v2082
        %2084 = vmatprep.mubr.bf16.mxu0 %v1300
        %2085 = vmatmul.mubr.bf16.gmra.mrb[0].mxu0 %v1299
        %v2086 = vpop.f32.mrb[0].mxu0
        %v2087 = vadd.f32 %v1420, %v2086
        %v2088 = vpop.f32.mrb[0].mxu0
        %v2089 = vadd.f32 %v1424, %v2088
        %v2090 = vpop.f32.mrb[0].mxu0
        %v2091 = vadd.f32 %v1420, %v2090
        %v2092 = vpop.f32.mrb[0].mxu0
        %v2093 = vadd.f32 %v1424, %v2092
        %2094 = vmatprep.mubr.bf16.mxu0 %v1302
        %2095 = vmatmul.mubr.bf16.gmra.mrb[0].mxu0 %v1301
        %v2096 = vpop.f32.mrb[0].mxu0
        %v2097 = vadd.f32 %v1420, %v2096
        %v2098 = vpop.f32.mrb[0].mxu0
        %v2099 = vadd.f32 %v1424, %v2098
        %v2100 = vpop.f32.mrb[0].mxu0
        %v2101 = vadd.f32 %v1420, %v2100
        %v2102 = vpop.f32.mrb[0].mxu0
        %v2103 = vadd.f32 %v1424, %v2102
        %2104 = vmatprep.mubr.bf16.mxu0 %v1304
        %2105 = vmatmul.mubr.bf16.gmra.mrb[0].mxu0 %v1303
        %v2106 = vpop.f32.mrb[0].mxu0
        %v2107 = vadd.f32 %v1420, %v2106
        %v2108 = vpop.f32.mrb[0].mxu0
        %v2109 = vadd.f32 %v1424, %v2108
        %v2110 = vpop.f32.mrb[0].mxu0
        %v2111 = vadd.f32 %v1420, %v2110
        %v2112 = vpop.f32.mrb[0].mxu0
        %v2113 = vadd.f32 %v1424, %v2112
        %2114 = vmatprep.mubr.bf16.mxu0 %v1306
        %2115 = vmatmul.mubr.bf16.gmra.mrb[0].mxu0 %v1305
        %v2116 = vpop.f32.mrb[0].mxu0
        %v2117 = vadd.f32 %v1420, %v2116
        %v2118 = vpop.f32.mrb[0].mxu0
        %v2119 = vadd.f32 %v1424, %v2118
        %v2120 = vpop.f32.mrb[0].mxu0
        %v2121 = vadd.f32 %v1420, %v2120
        %v2122 = vpop.f32.mrb[0].mxu0
        %v2123 = vadd.f32 %v1424, %v2122
        %2124 = vmatprep.mubr.bf16.mxu0 %v1308
        %2125 = vmatmul.mubr.bf16.gmra.mrb[0].mxu0 %v1307
        %v2126 = vpop.f32.mrb[0].mxu0
        %v2127 = vadd.f32 %v1420, %v2126
        %v2128 = vpop.f32.mrb[0].mxu0
        %v2129 = vadd.f32 %v1424, %v2128
        %v2130 = vpop.f32.mrb[0].mxu0
        %v2131 = vadd.f32 %v1420, %v2130
        %v2132 = vpop.f32.mrb[0].mxu0
        %v2133 = vadd.f32 %v1424, %v2132
        %2134 = vmatprep.mubr.bf16.mxu0 %v1310
        %2135 = vmatmul.mubr.bf16.gmra.mrb[0].mxu0 %v1309
        %v2136 = vpop.f32.mrb[0].mxu0
        %v2137 = vadd.f32 %v1420, %v2136
        %v2138 = vpop.f32.mrb[0].mxu0
        %v2139 = vadd.f32 %v1424, %v2138
        %v2140 = vpop.f32.mrb[0].mxu0
        %v2141 = vadd.f32 %v1420, %v2140
        %v2142 = vpop.f32.mrb[0].mxu0
        %v2143 = vadd.f32 %v1424, %v2142
        %2144 = vdwg.mxu0
        %2145 = vmatprep.subr.bf16.mxu0 %v1732
        %2146 = vmatpush1.bf16.msra.mxu0 %v1731
        %2147 = vmatprep.subr.bf16.mxu0 %v1738
        %2148 = vmatpush1.bf16.msra.mxu0 %v1737
        %2149 = vmatprep.subr.bf16.mxu0 %v1744
        %2150 = vmatpush1.bf16.msra.mxu0 %v1743
        %2151 = vmatprep.subr.bf16.mxu0 %v1750
        %2152 = vmatpush1.bf16.msra.mxu0 %v1749
        %2153 = vmatprep.subr.bf16.mxu0 %v1756
        %2154 = vmatpush1.bf16.msra.mxu0 %v1755
        %2155 = vmatprep.subr.bf16.mxu0 %v1762
        %2156 = vmatpush1.bf16.msra.mxu0 %v1761
        %2157 = vmatprep.subr.bf16.mxu0 %v1768
        %2158 = vmatpush1.bf16.msra.mxu0 %v1767
        %2159 = vmatprep.subr.bf16.mxu0 %v1774
        %2160 = vmatpush1.bf16.msra.mxu0 %v1773
        %2161 = vmatprep.subr.bf16.mxu0 %v1780
        %2162 = vmatpush1.bf16.msra.mxu0 %v1779
        %2163 = vmatprep.subr.bf16.mxu0 %v1786
        %2164 = vmatpush1.bf16.msra.mxu0 %v1785
        %2165 = vmatprep.subr.bf16.mxu0 %v1792
        %2166 = vmatpush1.bf16.msra.mxu0 %v1791
        %2167 = vmatprep.subr.bf16.mxu0 %v1798
        %2168 = vmatpush1.bf16.msra.mxu0 %v1797
        %2169 = vmatprep.subr.bf16.mxu0 %v1804
        %2170 = vmatpush1.bf16.msra.mxu0 %v1803
        %2171 = vmatprep.subr.bf16.mxu0 %v1810
        %2172 = vmatpush1.bf16.msra.mxu0 %v1809
        %2173 = vmatprep.subr.bf16.mxu0 %v1816
        %2174 = vmatpush1.bf16.msra.mxu0 %v1815
        %2175 = vmatprep.subr.bf16.mxu0 %v1822
        %2176 = vmatpush1.bf16.msra.mxu0 %v1821
        %2177 = vmatprep.mubr.bf16.mxu0 %v1296
        %2178 = vmatmul.mubr.bf16.gmra.mrb[0].mxu0 %v1295
        %v2179 = vpop.f32.mrb[0].mxu0
        %v2180 = vadd.f32 %v1428, %v2179
        %v2181 = vpop.f32.mrb[0].mxu0
        %v2182 = vadd.f32 %v1432, %v2181
        %v2183 = vpop.f32.mrb[0].mxu0
        %v2184 = vadd.f32 %v1428, %v2183
        %v2185 = vpop.f32.mrb[0].mxu0
        %v2186 = vadd.f32 %v1432, %v2185
        %2187 = vmatprep.mubr.bf16.mxu0 %v1298
        %2188 = vmatmul.mubr.bf16.gmra.mrb[0].mxu0 %v1297
        %v2189 = vpop.f32.mrb[0].mxu0
        %v2190 = vadd.f32 %v1428, %v2189
        %v2191 = vpop.f32.mrb[0].mxu0
        %v2192 = vadd.f32 %v1432, %v2191
        %v2193 = vpop.f32.mrb[0].mxu0
        %v2194 = vadd.f32 %v1428, %v2193
        %v2195 = vpop.f32.mrb[0].mxu0
        %v2196 = vadd.f32 %v1432, %v2195
        %2197 = vmatprep.mubr.bf16.mxu0 %v1300
        %2198 = vmatmul.mubr.bf16.gmra.mrb[0].mxu0 %v1299
        %v2199 = vpop.f32.mrb[0].mxu0
        %v2200 = vadd.f32 %v1428, %v2199
        %v2201 = vpop.f32.mrb[0].mxu0
        %v2202 = vadd.f32 %v1432, %v2201
        %v2203 = vpop.f32.mrb[0].mxu0
        %v2204 = vadd.f32 %v1428, %v2203
        %v2205 = vpop.f32.mrb[0].mxu0
        %v2206 = vadd.f32 %v1432, %v2205
        %2207 = vmatprep.mubr.bf16.mxu0 %v1302
        %2208 = vmatmul.mubr.bf16.gmra.mrb[0].mxu0 %v1301
        %v2209 = vpop.f32.mrb[0].mxu0
        %v2210 = vadd.f32 %v1428, %v2209
        %v2211 = vpop.f32.mrb[0].mxu0
        %v2212 = vadd.f32 %v1432, %v2211
        %v2213 = vpop.f32.mrb[0].mxu0
        %v2214 = vadd.f32 %v1428, %v2213
        %v2215 = vpop.f32.mrb[0].mxu0
        %v2216 = vadd.f32 %v1432, %v2215
        %2217 = vmatprep.mubr.bf16.mxu0 %v1304
        %2218 = vmatmul.mubr.bf16.gmra.mrb[0].mxu0 %v1303
        %v2219 = vpop.f32.mrb[0].mxu0
        %v2220 = vadd.f32 %v1428, %v2219
        %v2221 = vpop.f32.mrb[0].mxu0
        %v2222 = vadd.f32 %v1432, %v2221
        %v2223 = vpop.f32.mrb[0].mxu0
        %v2224 = vadd.f32 %v1428, %v2223
        %v2225 = vpop.f32.mrb[0].mxu0
        %v2226 = vadd.f32 %v1432, %v2225
        %2227 = vmatprep.mubr.bf16.mxu0 %v1306
        %2228 = vmatmul.mubr.bf16.gmra.mrb[0].mxu0 %v1305
        %v2229 = vpop.f32.mrb[0].mxu0
        %v2230 = vadd.f32 %v1428, %v2229
        %v2231 = vpop.f32.mrb[0].mxu0
        %v2232 = vadd.f32 %v1432, %v2231
        %v2233 = vpop.f32.mrb[0].mxu0
        %v2234 = vadd.f32 %v1428, %v2233
        %v2235 = vpop.f32.mrb[0].mxu0
        %v2236 = vadd.f32 %v1432, %v2235
        %2237 = vmatprep.mubr.bf16.mxu0 %v1308
        %2238 = vmatmul.mubr.bf16.gmra.mrb[0].mxu0 %v1307
        %v2239 = vpop.f32.mrb[0].mxu0
        %v2240 = vadd.f32 %v1428, %v2239
        %v2241 = vpop.f32.mrb[0].mxu0
        %v2242 = vadd.f32 %v1432, %v2241
        %v2243 = vpop.f32.mrb[0].mxu0
        %v2244 = vadd.f32 %v1428, %v2243
        %v2245 = vpop.f32.mrb[0].mxu0
        %v2246 = vadd.f32 %v1432, %v2245
        %2247 = vmatprep.mubr.bf16.mxu0 %v1310
        %2248 = vmatmul.mubr.bf16.gmra.mrb[0].mxu0 %v1309
        %v2249 = vpop.f32.mrb[0].mxu0
        %v2250 = vadd.f32 %v1428, %v2249
        %v2251 = vpop.f32.mrb[0].mxu0
        %v2252 = vadd.f32 %v1432, %v2251
        %v2253 = vpop.f32.mrb[0].mxu0
        %v2254 = vadd.f32 %v1428, %v2253
        %v2255 = vpop.f32.mrb[0].mxu0
        %v2256 = vadd.f32 %v1432, %v2255
        %2257 = vdwg.mxu0
        %v2258 = vlaneseq
        %v2259 = vshrl.u32 %v2258, 7
        %v2260 = vadd.s32 %v2259, 8
        %v2261 = vlaneseq
        %v2262 = vand.u32 %v2261, 127
        %vm2263 = vcmp.le.s32.totalorder %v2262, %v2259
        %vm2264 = vcmp.le.s32.totalorder %v2262, %v2260
        %v2265 = vsel %vm2263, 0.0, -1e+30
        %v2266 = vsel %vm2264, 0.0, -1e+30
        %v2267 = vmul.f32 %v1954, 0.088388346
        %v2268 = vmul.f32 %v1958, 0.088388346
        %v2269 = vmul.f32 %v1964, 0.088388346
        %v2270 = vmul.f32 %v1968, 0.088388346
        %v2271 = vmul.f32 %v1974, 0.088388346
        %v2272 = vmul.f32 %v1978, 0.088388346
        %v2273 = vmul.f32 %v1984, 0.088388346
        %v2274 = vmul.f32 %v1988, 0.088388346
        %v2275 = vmul.f32 %v1994, 0.088388346
        %v2276 = vmul.f32 %v1998, 0.088388346
        %v2277 = vmul.f32 %v2004, 0.088388346
        %v2278 = vmul.f32 %v2008, 0.088388346
        %v2279 = vmul.f32 %v2014, 0.088388346
        %v2280 = vmul.f32 %v2018, 0.088388346
        %v2281 = vmul.f32 %v2024, 0.088388346
        %v2282 = vmul.f32 %v2028, 0.088388346
        %v2283 = vpack.c.bf16 %v2268, %v2267
        %v2284 = vpack.c.bf16 %v2270, %v2269
        %v2285 = vpack.c.bf16 %v2272, %v2271
        %v2286 = vpack.c.bf16 %v2274, %v2273
        %v2287 = vpack.c.bf16 %v2276, %v2275
        %v2288 = vpack.c.bf16 %v2278, %v2277
        %v2289 = vpack.c.bf16 %v2280, %v2279
        %v2290 = vpack.c.bf16 %v2282, %v2281
        %v2291 = vpack.c.bf16 %v2071, %v2067
        %v2292 = vpack.c.bf16 %v2081, %v2077
        %v2293 = vpack.c.bf16 %v2091, %v2087
        %v2294 = vpack.c.bf16 %v2101, %v2097
        %v2295 = vpack.c.bf16 %v2111, %v2107
        %v2296 = vpack.c.bf16 %v2121, %v2117
        %v2297 = vpack.c.bf16 %v2131, %v2127
        %v2298 = vpack.c.bf16 %v2141, %v2137
        %v2299 = vpack.c.bf16 %v2184, %v2180
        %v2300 = vpack.c.bf16 %v2194, %v2190
        %v2301 = vpack.c.bf16 %v2204, %v2200
        %v2302 = vpack.c.bf16 %v2214, %v2210
        %v2303 = vpack.c.bf16 %v2224, %v2220
        %v2304 = vpack.c.bf16 %v2234, %v2230
        %v2305 = vpack.c.bf16 %v2244, %v2240
        %v2306 = vpack.c.bf16 %v2254, %v2250
        %2307 = vmatprep.subr.bf16.mxu0 0
        %2308 = vmatpush1.bf16.xpose.msra.mxu0 %v2291
        %2309 = vmatprep.subr.bf16.mxu0 0
        %2310 = vmatpush1.bf16.xpose.msra.mxu0 0
        %2311 = vmatprep.subr.bf16.mxu0 0
        %2312 = vmatpush1.bf16.xpose.msra.mxu0 0
        %2313 = vmatprep.subr.bf16.mxu0 0
        %2314 = vmatpush1.bf16.xpose.msra.mxu0 0
        %2315 = vmatprep.subr.bf16.mxu0 0
        %2316 = vmatpush1.bf16.xpose.msra.mxu0 0
        %2317 = vmatprep.subr.bf16.mxu0 0
        %2318 = vmatpush1.bf16.xpose.msra.mxu0 0
        %2319 = vmatprep.subr.bf16.mxu0 0
        %2320 = vmatpush1.bf16.xpose.msra.mxu0 0
        %2321 = vmatprep.subr.bf16.mxu0 0
        %2322 = vmatpush1.bf16.xpose.msra.mxu0 0
        %2323 = vmatprep.subr.bf16.mxu0 0
        %2324 = vmatpush1.bf16.xpose.msra.mxu0 0
        %2325 = vmatprep.subr.bf16.mxu0 0
        %2326 = vmatpush1.bf16.xpose.msra.mxu0 0
        %2327 = vmatprep.subr.bf16.mxu0 0
        %2328 = vmatpush1.bf16.xpose.msra.mxu0 0
        %2329 = vmatprep.subr.bf16.mxu0 0
        %2330 = vmatpush1.bf16.xpose.msra.mxu0 0
        %2331 = vmatprep.subr.bf16.mxu0 0
        %2332 = vmatpush1.bf16.xpose.msra.mxu0 0
        %2333 = vmatprep.subr.bf16.mxu0 0
        %2334 = vmatpush1.bf16.xpose.msra.mxu0 0
        %2335 = vmatprep.subr.bf16.mxu0 0
        %2336 = vmatpush1.bf16.xpose.msra.mxu0 0
        %2337 = vmatprep.subr.bf16.mxu0 0
        %2338 = vmatpush1.bf16.xpose.msra.mxu0 0
        %2339 = vmatprep.mubr.bf16.mxu0 0
        %2340 = vmatmul.mubr.bf16.gmra.mrb[0].mxu0 %v2283
        %v2341 = vpop.f32.mrb[0].mxu0
        %v2342 = vadd.f32 %v2265, %v2341
        %v2343 = vpop.f32.mrb[0].mxu0
        %v2344 = vpop.f32.mrb[0].mxu0
        %v2345 = vadd.f32 %v2266, %v2344
        %v2346 = vpop.f32.mrb[0].mxu0
        %2347 = vdwg.mxu0
        %2348 = vmatprep.subr.bf16.mxu0 0
        %2349 = vmatpush1.bf16.xpose.msra.mxu0 %v2292
        %2350 = vmatprep.subr.bf16.mxu0 0
        %2351 = vmatpush1.bf16.xpose.msra.mxu0 0
        %2352 = vmatprep.subr.bf16.mxu0 0
        %2353 = vmatpush1.bf16.xpose.msra.mxu0 0
        %2354 = vmatprep.subr.bf16.mxu0 0
        %2355 = vmatpush1.bf16.xpose.msra.mxu0 0
        %2356 = vmatprep.subr.bf16.mxu0 0
        %2357 = vmatpush1.bf16.xpose.msra.mxu0 0
        %2358 = vmatprep.subr.bf16.mxu0 0
        %2359 = vmatpush1.bf16.xpose.msra.mxu0 0
        %2360 = vmatprep.subr.bf16.mxu0 0
        %2361 = vmatpush1.bf16.xpose.msra.mxu0 0
        %2362 = vmatprep.subr.bf16.mxu0 0
        %2363 = vmatpush1.bf16.xpose.msra.mxu0 0
        %2364 = vmatprep.subr.bf16.mxu0 0
        %2365 = vmatpush1.bf16.xpose.msra.mxu0 0
        %2366 = vmatprep.subr.bf16.mxu0 0
        %2367 = vmatpush1.bf16.xpose.msra.mxu0 0
        %2368 = vmatprep.subr.bf16.mxu0 0
        %2369 = vmatpush1.bf16.xpose.msra.mxu0 0
        %2370 = vmatprep.subr.bf16.mxu0 0
        %2371 = vmatpush1.bf16.xpose.msra.mxu0 0
        %2372 = vmatprep.subr.bf16.mxu0 0
        %2373 = vmatpush1.bf16.xpose.msra.mxu0 0
        %2374 = vmatprep.subr.bf16.mxu0 0
        %2375 = vmatpush1.bf16.xpose.msra.mxu0 0
        %2376 = vmatprep.subr.bf16.mxu0 0
        %2377 = vmatpush1.bf16.xpose.msra.mxu0 0
        %2378 = vmatprep.subr.bf16.mxu0 0
        %2379 = vmatpush1.bf16.xpose.msra.mxu0 0
        %2380 = vmatprep.mubr.bf16.mxu0 0
        %2381 = vmatmul.mubr.bf16.gmra.mrb[0].mxu0 %v2284
        %v2382 = vpop.f32.mrb[0].mxu0
        %v2383 = vadd.f32 %v2265, %v2382
        %v2384 = vpop.f32.mrb[0].mxu0
        %v2385 = vpop.f32.mrb[0].mxu0
        %v2386 = vadd.f32 %v2266, %v2385
        %v2387 = vpop.f32.mrb[0].mxu0
        %2388 = vdwg.mxu0
        %2389 = vmatprep.subr.bf16.mxu0 0
        %2390 = vmatpush1.bf16.xpose.msra.mxu0 %v2293
        %2391 = vmatprep.subr.bf16.mxu0 0
        %2392 = vmatpush1.bf16.xpose.msra.mxu0 0
        %2393 = vmatprep.subr.bf16.mxu0 0
        %2394 = vmatpush1.bf16.xpose.msra.mxu0 0
        %2395 = vmatprep.subr.bf16.mxu0 0
        %2396 = vmatpush1.bf16.xpose.msra.mxu0 0
        %2397 = vmatprep.subr.bf16.mxu0 0
        %2398 = vmatpush1.bf16.xpose.msra.mxu0 0
        %2399 = vmatprep.subr.bf16.mxu0 0
        %2400 = vmatpush1.bf16.xpose.msra.mxu0 0
        %2401 = vmatprep.subr.bf16.mxu0 0
        %2402 = vmatpush1.bf16.xpose.msra.mxu0 0
        %2403 = vmatprep.subr.bf16.mxu0 0
        %2404 = vmatpush1.bf16.xpose.msra.mxu0 0
        %2405 = vmatprep.subr.bf16.mxu0 0
        %2406 = vmatpush1.bf16.xpose.msra.mxu0 0
        %2407 = vmatprep.subr.bf16.mxu0 0
        %2408 = vmatpush1.bf16.xpose.msra.mxu0 0
        %2409 = vmatprep.subr.bf16.mxu0 0
        %2410 = vmatpush1.bf16.xpose.msra.mxu0 0
        %2411 = vmatprep.subr.bf16.mxu0 0
        %2412 = vmatpush1.bf16.xpose.msra.mxu0 0
        %2413 = vmatprep.subr.bf16.mxu0 0
        %2414 = vmatpush1.bf16.xpose.msra.mxu0 0
        %2415 = vmatprep.subr.bf16.mxu0 0
        %2416 = vmatpush1.bf16.xpose.msra.mxu0 0
        %2417 = vmatprep.subr.bf16.mxu0 0
        %2418 = vmatpush1.bf16.xpose.msra.mxu0 0
        %2419 = vmatprep.subr.bf16.mxu0 0
        %2420 = vmatpush1.bf16.xpose.msra.mxu0 0
        %2421 = vmatprep.mubr.bf16.mxu0 0
        %2422 = vmatmul.mubr.bf16.gmra.mrb[0].mxu0 %v2285
        %v2423 = vpop.f32.mrb[0].mxu0
        %v2424 = vadd.f32 %v2265, %v2423
        %v2425 = vpop.f32.mrb[0].mxu0
        %v2426 = vpop.f32.mrb[0].mxu0
        %v2427 = vadd.f32 %v2266, %v2426
        %v2428 = vpop.f32.mrb[0].mxu0
        %2429 = vdwg.mxu0
        %2430 = vmatprep.subr.bf16.mxu0 0
        %2431 = vmatpush1.bf16.xpose.msra.mxu0 %v2294
        %2432 = vmatprep.subr.bf16.mxu0 0
        %2433 = vmatpush1.bf16.xpose.msra.mxu0 0
        %2434 = vmatprep.subr.bf16.mxu0 0
        %2435 = vmatpush1.bf16.xpose.msra.mxu0 0
        %2436 = vmatprep.subr.bf16.mxu0 0
        %2437 = vmatpush1.bf16.xpose.msra.mxu0 0
        %2438 = vmatprep.subr.bf16.mxu0 0
        %2439 = vmatpush1.bf16.xpose.msra.mxu0 0
        %2440 = vmatprep.subr.bf16.mxu0 0
        %2441 = vmatpush1.bf16.xpose.msra.mxu0 0
        %2442 = vmatprep.subr.bf16.mxu0 0
        %2443 = vmatpush1.bf16.xpose.msra.mxu0 0
        %2444 = vmatprep.subr.bf16.mxu0 0
        %2445 = vmatpush1.bf16.xpose.msra.mxu0 0
        %2446 = vmatprep.subr.bf16.mxu0 0
        %2447 = vmatpush1.bf16.xpose.msra.mxu0 0
        %2448 = vmatprep.subr.bf16.mxu0 0
        %2449 = vmatpush1.bf16.xpose.msra.mxu0 0
        %2450 = vmatprep.subr.bf16.mxu0 0
        %2451 = vmatpush1.bf16.xpose.msra.mxu0 0
        %2452 = vmatprep.subr.bf16.mxu0 0
        %2453 = vmatpush1.bf16.xpose.msra.mxu0 0
        %2454 = vmatprep.subr.bf16.mxu0 0
        %2455 = vmatpush1.bf16.xpose.msra.mxu0 0
        %2456 = vmatprep.subr.bf16.mxu0 0
        %2457 = vmatpush1.bf16.xpose.msra.mxu0 0
        %2458 = vmatprep.subr.bf16.mxu0 0
        %2459 = vmatpush1.bf16.xpose.msra.mxu0 0
        %2460 = vmatprep.subr.bf16.mxu0 0
        %2461 = vmatpush1.bf16.xpose.msra.mxu0 0
        %2462 = vmatprep.mubr.bf16.mxu0 0
        %2463 = vmatmul.mubr.bf16.gmra.mrb[0].mxu0 %v2286
        %v2464 = vpop.f32.mrb[0].mxu0
        %v2465 = vadd.f32 %v2265, %v2464
        %v2466 = vpop.f32.mrb[0].mxu0
        %v2467 = vpop.f32.mrb[0].mxu0
        %v2468 = vadd.f32 %v2266, %v2467
        %v2469 = vpop.f32.mrb[0].mxu0
        %2470 = vdwg.mxu0
        %2471 = vmatprep.subr.bf16.mxu0 0
        %2472 = vmatpush1.bf16.xpose.msra.mxu0 %v2295
        %2473 = vmatprep.subr.bf16.mxu0 0
        %2474 = vmatpush1.bf16.xpose.msra.mxu0 0
        %2475 = vmatprep.subr.bf16.mxu0 0
        %2476 = vmatpush1.bf16.xpose.msra.mxu0 0
        %2477 = vmatprep.subr.bf16.mxu0 0
        %2478 = vmatpush1.bf16.xpose.msra.mxu0 0
        %2479 = vmatprep.subr.bf16.mxu0 0
        %2480 = vmatpush1.bf16.xpose.msra.mxu0 0
        %2481 = vmatprep.subr.bf16.mxu0 0
        %2482 = vmatpush1.bf16.xpose.msra.mxu0 0
        %2483 = vmatprep.subr.bf16.mxu0 0
        %2484 = vmatpush1.bf16.xpose.msra.mxu0 0
        %2485 = vmatprep.subr.bf16.mxu0 0
        %2486 = vmatpush1.bf16.xpose.msra.mxu0 0
        %2487 = vmatprep.subr.bf16.mxu0 0
        %2488 = vmatpush1.bf16.xpose.msra.mxu0 0
        %2489 = vmatprep.subr.bf16.mxu0 0
        %2490 = vmatpush1.bf16.xpose.msra.mxu0 0
        %2491 = vmatprep.subr.bf16.mxu0 0
        %2492 = vmatpush1.bf16.xpose.msra.mxu0 0
        %2493 = vmatprep.subr.bf16.mxu0 0
        %2494 = vmatpush1.bf16.xpose.msra.mxu0 0
        %2495 = vmatprep.subr.bf16.mxu0 0
        %2496 = vmatpush1.bf16.xpose.msra.mxu0 0
        %2497 = vmatprep.subr.bf16.mxu0 0
        %2498 = vmatpush1.bf16.xpose.msra.mxu0 0
        %2499 = vmatprep.subr.bf16.mxu0 0
        %2500 = vmatpush1.bf16.xpose.msra.mxu0 0
        %2501 = vmatprep.subr.bf16.mxu0 0
        %2502 = vmatpush1.bf16.xpose.msra.mxu0 0
        %2503 = vmatprep.mubr.bf16.mxu0 0
        %2504 = vmatmul.mubr.bf16.gmra.mrb[0].mxu0 %v2287
        %v2505 = vpop.f32.mrb[0].mxu0
        %v2506 = vadd.f32 %v2265, %v2505
        %v2507 = vpop.f32.mrb[0].mxu0
        %v2508 = vpop.f32.mrb[0].mxu0
        %v2509 = vadd.f32 %v2266, %v2508
        %v2510 = vpop.f32.mrb[0].mxu0
        %2511 = vdwg.mxu0
        %2512 = vmatprep.subr.bf16.mxu0 0
        %2513 = vmatpush1.bf16.xpose.msra.mxu0 %v2296
        %2514 = vmatprep.subr.bf16.mxu0 0
        %2515 = vmatpush1.bf16.xpose.msra.mxu0 0
        %2516 = vmatprep.subr.bf16.mxu0 0
        %2517 = vmatpush1.bf16.xpose.msra.mxu0 0
        %2518 = vmatprep.subr.bf16.mxu0 0
        %2519 = vmatpush1.bf16.xpose.msra.mxu0 0
        %2520 = vmatprep.subr.bf16.mxu0 0
        %2521 = vmatpush1.bf16.xpose.msra.mxu0 0
        %2522 = vmatprep.subr.bf16.mxu0 0
        %2523 = vmatpush1.bf16.xpose.msra.mxu0 0
        %2524 = vmatprep.subr.bf16.mxu0 0
        %2525 = vmatpush1.bf16.xpose.msra.mxu0 0
        %2526 = vmatprep.subr.bf16.mxu0 0
        %2527 = vmatpush1.bf16.xpose.msra.mxu0 0
        %2528 = vmatprep.subr.bf16.mxu0 0
        %2529 = vmatpush1.bf16.xpose.msra.mxu0 0
        %2530 = vmatprep.subr.bf16.mxu0 0
        %2531 = vmatpush1.bf16.xpose.msra.mxu0 0
        %2532 = vmatprep.subr.bf16.mxu0 0
        %2533 = vmatpush1.bf16.xpose.msra.mxu0 0
        %2534 = vmatprep.subr.bf16.mxu0 0
        %2535 = vmatpush1.bf16.xpose.msra.mxu0 0
        %2536 = vmatprep.subr.bf16.mxu0 0
        %2537 = vmatpush1.bf16.xpose.msra.mxu0 0
        %2538 = vmatprep.subr.bf16.mxu0 0
        %2539 = vmatpush1.bf16.xpose.msra.mxu0 0
        %2540 = vmatprep.subr.bf16.mxu0 0
        %2541 = vmatpush1.bf16.xpose.msra.mxu0 0
        %2542 = vmatprep.subr.bf16.mxu0 0
        %2543 = vmatpush1.bf16.xpose.msra.mxu0 0
        %2544 = vmatprep.mubr.bf16.mxu0 0
        %2545 = vmatmul.mubr.bf16.gmra.mrb[0].mxu0 %v2288
        %v2546 = vpop.f32.mrb[0].mxu0
        %v2547 = vadd.f32 %v2265, %v2546
        %v2548 = vpop.f32.mrb[0].mxu0
        %v2549 = vpop.f32.mrb[0].mxu0
        %v2550 = vadd.f32 %v2266, %v2549
        %v2551 = vpop.f32.mrb[0].mxu0
        %2552 = vdwg.mxu0
        %2553 = vmatprep.subr.bf16.mxu0 0
        %2554 = vmatpush1.bf16.xpose.msra.mxu0 %v2297
        %2555 = vmatprep.subr.bf16.mxu0 0
        %2556 = vmatpush1.bf16.xpose.msra.mxu0 0
        %2557 = vmatprep.subr.bf16.mxu0 0
        %2558 = vmatpush1.bf16.xpose.msra.mxu0 0
        %2559 = vmatprep.subr.bf16.mxu0 0
        %2560 = vmatpush1.bf16.xpose.msra.mxu0 0
        %2561 = vmatprep.subr.bf16.mxu0 0
        %2562 = vmatpush1.bf16.xpose.msra.mxu0 0
        %2563 = vmatprep.subr.bf16.mxu0 0
        %2564 = vmatpush1.bf16.xpose.msra.mxu0 0
        %2565 = vmatprep.subr.bf16.mxu0 0
        %2566 = vmatpush1.bf16.xpose.msra.mxu0 0
        %2567 = vmatprep.subr.bf16.mxu0 0
        %2568 = vmatpush1.bf16.xpose.msra.mxu0 0
        %2569 = vmatprep.subr.bf16.mxu0 0
        %2570 = vmatpush1.bf16.xpose.msra.mxu0 0
        %2571 = vmatprep.subr.bf16.mxu0 0
        %2572 = vmatpush1.bf16.xpose.msra.mxu0 0
        %2573 = vmatprep.subr.bf16.mxu0 0
        %2574 = vmatpush1.bf16.xpose.msra.mxu0 0
        %2575 = vmatprep.subr.bf16.mxu0 0
        %2576 = vmatpush1.bf16.xpose.msra.mxu0 0
        %2577 = vmatprep.subr.bf16.mxu0 0
        %2578 = vmatpush1.bf16.xpose.msra.mxu0 0
        %2579 = vmatprep.subr.bf16.mxu0 0
        %2580 = vmatpush1.bf16.xpose.msra.mxu0 0
        %2581 = vmatprep.subr.bf16.mxu0 0
        %2582 = vmatpush1.bf16.xpose.msra.mxu0 0
        %2583 = vmatprep.subr.bf16.mxu0 0
        %2584 = vmatpush1.bf16.xpose.msra.mxu0 0
        %2585 = vmatprep.mubr.bf16.mxu0 0
        %2586 = vmatmul.mubr.bf16.gmra.mrb[0].mxu0 %v2289
        %v2587 = vpop.f32.mrb[0].mxu0
        %v2588 = vadd.f32 %v2265, %v2587
        %v2589 = vpop.f32.mrb[0].mxu0
        %v2590 = vpop.f32.mrb[0].mxu0
        %v2591 = vadd.f32 %v2266, %v2590
        %v2592 = vpop.f32.mrb[0].mxu0
        %2593 = vdwg.mxu0
        %2594 = vmatprep.subr.bf16.mxu0 0
        %2595 = vmatpush1.bf16.xpose.msra.mxu0 %v2298
        %2596 = vmatprep.subr.bf16.mxu0 0
        %2597 = vmatpush1.bf16.xpose.msra.mxu0 0
        %2598 = vmatprep.subr.bf16.mxu0 0
        %2599 = vmatpush1.bf16.xpose.msra.mxu0 0
        %2600 = vmatprep.subr.bf16.mxu0 0
        %2601 = vmatpush1.bf16.xpose.msra.mxu0 0
        %2602 = vmatprep.subr.bf16.mxu0 0
        %2603 = vmatpush1.bf16.xpose.msra.mxu0 0
        %2604 = vmatprep.subr.bf16.mxu0 0
        %2605 = vmatpush1.bf16.xpose.msra.mxu0 0
        %2606 = vmatprep.subr.bf16.mxu0 0
        %2607 = vmatpush1.bf16.xpose.msra.mxu0 0
        %2608 = vmatprep.subr.bf16.mxu0 0
        %2609 = vmatpush1.bf16.xpose.msra.mxu0 0
        %2610 = vmatprep.subr.bf16.mxu0 0
        %2611 = vmatpush1.bf16.xpose.msra.mxu0 0
        %2612 = vmatprep.subr.bf16.mxu0 0
        %2613 = vmatpush1.bf16.xpose.msra.mxu0 0
        %2614 = vmatprep.subr.bf16.mxu0 0
        %2615 = vmatpush1.bf16.xpose.msra.mxu0 0
        %2616 = vmatprep.subr.bf16.mxu0 0
        %2617 = vmatpush1.bf16.xpose.msra.mxu0 0
        %2618 = vmatprep.subr.bf16.mxu0 0
        %2619 = vmatpush1.bf16.xpose.msra.mxu0 0
        %2620 = vmatprep.subr.bf16.mxu0 0
        %2621 = vmatpush1.bf16.xpose.msra.mxu0 0
        %2622 = vmatprep.subr.bf16.mxu0 0
        %2623 = vmatpush1.bf16.xpose.msra.mxu0 0
        %2624 = vmatprep.subr.bf16.mxu0 0
        %2625 = vmatpush1.bf16.xpose.msra.mxu0 0
        %2626 = vmatprep.mubr.bf16.mxu0 0
        %2627 = vmatmul.mubr.bf16.gmra.mrb[0].mxu0 %v2290
        %v2628 = vpop.f32.mrb[0].mxu0
        %v2629 = vadd.f32 %v2265, %v2628
        %v2630 = vpop.f32.mrb[0].mxu0
        %v2631 = vpop.f32.mrb[0].mxu0
        %v2632 = vadd.f32 %v2266, %v2631
        %v2633 = vpop.f32.mrb[0].mxu0
        %2634 = vdwg.mxu0
        %vm2635 = vcmask 130048
        %v2636 = vsel %vm2635, %v2342, -inf
        %2637 = vmax.xlane.f32.xlu0 %v2636
        %v2638 = vpop.xlane.xlu0 %2637
        %v2639 = vsel %vm2635, %v2345, -inf
        %2640 = vmax.xlane.f32.xlu0 %v2639
        %v2641 = vpop.xlane.xlu0 %2640
        %v2642 = vsel %vm2635, %v2383, -inf
        %2643 = vmax.xlane.f32.xlu0 %v2642
        %v2644 = vpop.xlane.xlu0 %2643
        %v2645 = vsel %vm2635, %v2386, -inf
        %2646 = vmax.xlane.f32.xlu0 %v2645
        %v2647 = vpop.xlane.xlu0 %2646
        %v2648 = vsel %vm2635, %v2424, -inf
        %2649 = vmax.xlane.f32.xlu0 %v2648
        %v2650 = vpop.xlane.xlu0 %2649
        %v2651 = vsel %vm2635, %v2427, -inf
        %2652 = vmax.xlane.f32.xlu0 %v2651
        %v2653 = vpop.xlane.xlu0 %2652
        %v2654 = vsel %vm2635, %v2465, -inf
        %2655 = vmax.xlane.f32.xlu0 %v2654
        %v2656 = vpop.xlane.xlu0 %2655
        %v2657 = vsel %vm2635, %v2468, -inf
        %2658 = vmax.xlane.f32.xlu0 %v2657
        %v2659 = vpop.xlane.xlu0 %2658
        %v2660 = vsel %vm2635, %v2506, -inf
        %2661 = vmax.xlane.f32.xlu0 %v2660
        %v2662 = vpop.xlane.xlu0 %2661
        %v2663 = vsel %vm2635, %v2509, -inf
        %2664 = vmax.xlane.f32.xlu0 %v2663
        %v2665 = vpop.xlane.xlu0 %2664
        %v2666 = vsel %vm2635, %v2547, -inf
        %2667 = vmax.xlane.f32.xlu0 %v2666
        %v2668 = vpop.xlane.xlu0 %2667
        %v2669 = vsel %vm2635, %v2550, -inf
        %2670 = vmax.xlane.f32.xlu0 %v2669
        %v2671 = vpop.xlane.xlu0 %2670
        %v2672 = vsel %vm2635, %v2588, -inf
        %2673 = vmax.xlane.f32.xlu0 %v2672
        %v2674 = vpop.xlane.xlu0 %2673
        %v2675 = vsel %vm2635, %v2591, -inf
        %2676 = vmax.xlane.f32.xlu0 %v2675
        %v2677 = vpop.xlane.xlu0 %2676
        %v2678 = vsel %vm2635, %v2629, -inf
        %2679 = vmax.xlane.f32.xlu0 %v2678
        %v2680 = vpop.xlane.xlu0 %2679
        %v2681 = vsel %vm2635, %v2632, -inf
        %2682 = vmax.xlane.f32.xlu0 %v2681
        %v2683 = vpop.xlane.xlu0 %2682
        %v2684 = vsub.f32 %v2342, %v2638
        %v2685 = vsub.f32 %v2345, %v2641
        %v2686 = vsub.f32 %v2383, %v2644
        %v2687 = vsub.f32 %v2386, %v2647
        %v2688 = vsub.f32 %v2424, %v2650
        %v2689 = vsub.f32 %v2427, %v2653
        %v2690 = vsub.f32 %v2465, %v2656
        %v2691 = vsub.f32 %v2468, %v2659
        %v2692 = vsub.f32 %v2506, %v2662
        %v2693 = vsub.f32 %v2509, %v2665
        %v2694 = vsub.f32 %v2547, %v2668
        %v2695 = vsub.f32 %v2550, %v2671
        %v2696 = vsub.f32 %v2588, %v2674
        %v2697 = vsub.f32 %v2591, %v2677
        %v2698 = vsub.f32 %v2629, %v2680
        %v2699 = vsub.f32 %v2632, %v2683
        %v2700 = vmul.f32 %v2684, 1.442695
        %v2701 = vpow.pop %v2700
        %v2702 = vmul.f32 %v2685, 1.442695
        %v2703 = vpow.pop %v2702
        %v2704 = vmul.f32 %v2686, 1.442695
        %v2705 = vpow.pop %v2704
        %v2706 = vmul.f32 %v2687, 1.442695
        %v2707 = vpow.pop %v2706
        %v2708 = vmul.f32 %v2688, 1.442695
        %v2709 = vpow.pop %v2708
        %v2710 = vmul.f32 %v2689, 1.442695
        %v2711 = vpow.pop %v2710
        %v2712 = vmul.f32 %v2690, 1.442695
        %v2713 = vpow.pop %v2712
        %v2714 = vmul.f32 %v2691, 1.442695
        %v2715 = vpow.pop %v2714
        %v2716 = vmul.f32 %v2692, 1.442695
        %v2717 = vpow.pop %v2716
        %v2718 = vmul.f32 %v2693, 1.442695
        %v2719 = vpow.pop %v2718
        %v2720 = vmul.f32 %v2694, 1.442695
        %v2721 = vpow.pop %v2720
        %v2722 = vmul.f32 %v2695, 1.442695
        %v2723 = vpow.pop %v2722
        %v2724 = vmul.f32 %v2696, 1.442695
        %v2725 = vpow.pop %v2724
        %v2726 = vmul.f32 %v2697, 1.442695
        %v2727 = vpow.pop %v2726
        %v2728 = vmul.f32 %v2698, 1.442695
        %v2729 = vpow.pop %v2728
        %v2730 = vmul.f32 %v2699, 1.442695
        %v2731 = vpow.pop %v2730
        %v2732 = vsel %vm2635, %v2701, 0.0
        %2733 = vadd.xlane.f32.xlu0 %v2732
        %v2734 = vpop.xlane.xlu0 %2733
        %v2735 = vsel %vm2635, %v2703, 0.0
        %2736 = vadd.xlane.f32.xlu0 %v2735
        %v2737 = vpop.xlane.xlu0 %2736
        %v2738 = vsel %vm2635, %v2705, 0.0
        %2739 = vadd.xlane.f32.xlu0 %v2738
        %v2740 = vpop.xlane.xlu0 %2739
        %v2741 = vsel %vm2635, %v2707, 0.0
        %2742 = vadd.xlane.f32.xlu0 %v2741
        %v2743 = vpop.xlane.xlu0 %2742
        %v2744 = vsel %vm2635, %v2709, 0.0
        %2745 = vadd.xlane.f32.xlu0 %v2744
        %v2746 = vpop.xlane.xlu0 %2745
        %v2747 = vsel %vm2635, %v2711, 0.0
        %2748 = vadd.xlane.f32.xlu0 %v2747
        %v2749 = vpop.xlane.xlu0 %2748
        %v2750 = vsel %vm2635, %v2713, 0.0
        %2751 = vadd.xlane.f32.xlu0 %v2750
        %v2752 = vpop.xlane.xlu0 %2751
        %v2753 = vsel %vm2635, %v2715, 0.0
        %2754 = vadd.xlane.f32.xlu0 %v2753
        %v2755 = vpop.xlane.xlu0 %2754
        %v2756 = vsel %vm2635, %v2717, 0.0
        %2757 = vadd.xlane.f32.xlu0 %v2756
        %v2758 = vpop.xlane.xlu0 %2757
        %v2759 = vsel %vm2635, %v2719, 0.0
        %2760 = vadd.xlane.f32.xlu0 %v2759
        %v2761 = vpop.xlane.xlu0 %2760
        %v2762 = vsel %vm2635, %v2721, 0.0
        %2763 = vadd.xlane.f32.xlu0 %v2762
        %v2764 = vpop.xlane.xlu0 %2763
        %v2765 = vsel %vm2635, %v2723, 0.0
        %2766 = vadd.xlane.f32.xlu0 %v2765
        %v2767 = vpop.xlane.xlu0 %2766
        %v2768 = vsel %vm2635, %v2725, 0.0
        %2769 = vadd.xlane.f32.xlu0 %v2768
        %v2770 = vpop.xlane.xlu0 %2769
        %v2771 = vsel %vm2635, %v2727, 0.0
        %2772 = vadd.xlane.f32.xlu0 %v2771
        %v2773 = vpop.xlane.xlu0 %2772
        %v2774 = vsel %vm2635, %v2729, 0.0
        %2775 = vadd.xlane.f32.xlu0 %v2774
        %v2776 = vpop.xlane.xlu0 %2775
        %v2777 = vsel %vm2635, %v2731, 0.0
        %2778 = vadd.xlane.f32.xlu0 %v2777
        %v2779 = vpop.xlane.xlu0 %2778
        %v2780 = vrcp.pop %v2734
        %v2781 = vrcp.pop %v2737
        %v2782 = vrcp.pop %v2740
        %v2783 = vrcp.pop %v2743
        %v2784 = vrcp.pop %v2746
        %v2785 = vrcp.pop %v2749
        %v2786 = vrcp.pop %v2752
        %v2787 = vrcp.pop %v2755
        %v2788 = vrcp.pop %v2758
        %v2789 = vrcp.pop %v2761
        %v2790 = vrcp.pop %v2764
        %v2791 = vrcp.pop %v2767
        %v2792 = vrcp.pop %v2770
        %v2793 = vrcp.pop %v2773
        %v2794 = vrcp.pop %v2776
        %v2795 = vrcp.pop %v2779
        %v2796 = vmul.f32 %v2701, %v2780
        %v2797 = vmul.f32 %v2703, %v2781
        %v2798 = vmul.f32 %v2705, %v2782
        %v2799 = vmul.f32 %v2707, %v2783
        %v2800 = vmul.f32 %v2709, %v2784
        %v2801 = vmul.f32 %v2711, %v2785
        %v2802 = vmul.f32 %v2713, %v2786
        %v2803 = vmul.f32 %v2715, %v2787
        %v2804 = vmul.f32 %v2717, %v2788
        %v2805 = vmul.f32 %v2719, %v2789
        %v2806 = vmul.f32 %v2721, %v2790
        %v2807 = vmul.f32 %v2723, %v2791
        %v2808 = vmul.f32 %v2725, %v2792
        %v2809 = vmul.f32 %v2727, %v2793
        %v2810 = vmul.f32 %v2729, %v2794
        %v2811 = vmul.f32 %v2731, %v2795
        %v2812 = vpack.c.bf16 %v2797, %v2796
        %v2813 = vpack.c.bf16 %v2799, %v2798
        %v2814 = vpack.c.bf16 %v2801, %v2800
        %v2815 = vpack.c.bf16 %v2803, %v2802
        %v2816 = vpack.c.bf16 %v2805, %v2804
        %v2817 = vpack.c.bf16 %v2807, %v2806
        %v2818 = vpack.c.bf16 %v2809, %v2808
        %v2819 = vpack.c.bf16 %v2811, %v2810
        %v2821 = vsel %vm2635, %v2812, 0
        %2823 = vmatprep.subr.bf16.mxu0 0
        %2824 = vmatpush1.bf16.msra.mxu0 %v2299
        %2825 = vmatprep.subr.bf16.mxu0 0
        %2826 = vmatpush1.bf16.msra.mxu0 0
        %2827 = vmatprep.subr.bf16.mxu0 0
        %2828 = vmatpush1.bf16.msra.mxu0 0
        %2829 = vmatprep.subr.bf16.mxu0 0
        %2830 = vmatpush1.bf16.msra.mxu0 0
        %2831 = vmatprep.subr.bf16.mxu0 0
        %2832 = vmatpush1.bf16.msra.mxu0 0
        %2833 = vmatprep.subr.bf16.mxu0 0
        %2834 = vmatpush1.bf16.msra.mxu0 0
        %2835 = vmatprep.subr.bf16.mxu0 0
        %2836 = vmatpush1.bf16.msra.mxu0 0
        %2837 = vmatprep.subr.bf16.mxu0 0
        %2838 = vmatpush1.bf16.msra.mxu0 0
        %2839 = vmatprep.subr.bf16.mxu0 0
        %2840 = vmatpush1.bf16.msra.mxu0 0
        %2841 = vmatprep.subr.bf16.mxu0 0
        %2842 = vmatpush1.bf16.msra.mxu0 0
        %2843 = vmatprep.subr.bf16.mxu0 0
        %2844 = vmatpush1.bf16.msra.mxu0 0
        %2845 = vmatprep.subr.bf16.mxu0 0
        %2846 = vmatpush1.bf16.msra.mxu0 0
        %2847 = vmatprep.subr.bf16.mxu0 0
        %2848 = vmatpush1.bf16.msra.mxu0 0
        %2849 = vmatprep.subr.bf16.mxu0 0
        %2850 = vmatpush1.bf16.msra.mxu0 0
        %2851 = vmatprep.subr.bf16.mxu0 0
        %2852 = vmatpush1.bf16.msra.mxu0 0
        %2853 = vmatprep.subr.bf16.mxu0 0
        %2854 = vmatpush1.bf16.msra.mxu0 0
        %2855 = vmatprep.mubr.bf16.mxu0 0
        %2856 = vmatmul.mubr.bf16.gmra.mrb[0].mxu0 %v2821
        %v2857 = vpop.f32.mrb[0].mxu0
        %v2858 = vadd.f32 0.0, %v2857
        %v2859 = vpop.f32.mrb[0].mxu0
        %v2860 = vpop.f32.mrb[0].mxu0
        %v2861 = vadd.f32 0.0, %v2860
        %v2862 = vpop.f32.mrb[0].mxu0
        %2863 = vdwg.mxu0
        %v2865 = vsel %vm2635, %v2813, 0
        %2867 = vmatprep.subr.bf16.mxu0 0
        %2868 = vmatpush1.bf16.msra.mxu0 %v2300
        %2869 = vmatprep.subr.bf16.mxu0 0
        %2870 = vmatpush1.bf16.msra.mxu0 0
        %2871 = vmatprep.subr.bf16.mxu0 0
        %2872 = vmatpush1.bf16.msra.mxu0 0
        %2873 = vmatprep.subr.bf16.mxu0 0
        %2874 = vmatpush1.bf16.msra.mxu0 0
        %2875 = vmatprep.subr.bf16.mxu0 0
        %2876 = vmatpush1.bf16.msra.mxu0 0
        %2877 = vmatprep.subr.bf16.mxu0 0
        %2878 = vmatpush1.bf16.msra.mxu0 0
        %2879 = vmatprep.subr.bf16.mxu0 0
        %2880 = vmatpush1.bf16.msra.mxu0 0
        %2881 = vmatprep.subr.bf16.mxu0 0
        %2882 = vmatpush1.bf16.msra.mxu0 0
        %2883 = vmatprep.subr.bf16.mxu0 0
        %2884 = vmatpush1.bf16.msra.mxu0 0
        %2885 = vmatprep.subr.bf16.mxu0 0
        %2886 = vmatpush1.bf16.msra.mxu0 0
        %2887 = vmatprep.subr.bf16.mxu0 0
        %2888 = vmatpush1.bf16.msra.mxu0 0
        %2889 = vmatprep.subr.bf16.mxu0 0
        %2890 = vmatpush1.bf16.msra.mxu0 0
        %2891 = vmatprep.subr.bf16.mxu0 0
        %2892 = vmatpush1.bf16.msra.mxu0 0
        %2893 = vmatprep.subr.bf16.mxu0 0
        %2894 = vmatpush1.bf16.msra.mxu0 0
        %2895 = vmatprep.subr.bf16.mxu0 0
        %2896 = vmatpush1.bf16.msra.mxu0 0
        %2897 = vmatprep.subr.bf16.mxu0 0
        %2898 = vmatpush1.bf16.msra.mxu0 0
        %2899 = vmatprep.mubr.bf16.mxu0 0
        %2900 = vmatmul.mubr.bf16.gmra.mrb[0].mxu0 %v2865
        %v2901 = vpop.f32.mrb[0].mxu0
        %v2902 = vadd.f32 0.0, %v2901
        %v2903 = vpop.f32.mrb[0].mxu0
        %v2904 = vpop.f32.mrb[0].mxu0
        %v2905 = vadd.f32 0.0, %v2904
        %v2906 = vpop.f32.mrb[0].mxu0
        %2907 = vdwg.mxu0
        %v2909 = vsel %vm2635, %v2814, 0
        %2911 = vmatprep.subr.bf16.mxu0 0
        %2912 = vmatpush1.bf16.msra.mxu0 %v2301
        %2913 = vmatprep.subr.bf16.mxu0 0
        %2914 = vmatpush1.bf16.msra.mxu0 0
        %2915 = vmatprep.subr.bf16.mxu0 0
        %2916 = vmatpush1.bf16.msra.mxu0 0
        %2917 = vmatprep.subr.bf16.mxu0 0
        %2918 = vmatpush1.bf16.msra.mxu0 0
        %2919 = vmatprep.subr.bf16.mxu0 0
        %2920 = vmatpush1.bf16.msra.mxu0 0
        %2921 = vmatprep.subr.bf16.mxu0 0
        %2922 = vmatpush1.bf16.msra.mxu0 0
        %2923 = vmatprep.subr.bf16.mxu0 0
        %2924 = vmatpush1.bf16.msra.mxu0 0
        %2925 = vmatprep.subr.bf16.mxu0 0
        %2926 = vmatpush1.bf16.msra.mxu0 0
        %2927 = vmatprep.subr.bf16.mxu0 0
        %2928 = vmatpush1.bf16.msra.mxu0 0
        %2929 = vmatprep.subr.bf16.mxu0 0
        %2930 = vmatpush1.bf16.msra.mxu0 0
        %2931 = vmatprep.subr.bf16.mxu0 0
        %2932 = vmatpush1.bf16.msra.mxu0 0
        %2933 = vmatprep.subr.bf16.mxu0 0
        %2934 = vmatpush1.bf16.msra.mxu0 0
        %2935 = vmatprep.subr.bf16.mxu0 0
        %2936 = vmatpush1.bf16.msra.mxu0 0
        %2937 = vmatprep.subr.bf16.mxu0 0
        %2938 = vmatpush1.bf16.msra.mxu0 0
        %2939 = vmatprep.subr.bf16.mxu0 0
        %2940 = vmatpush1.bf16.msra.mxu0 0
        %2941 = vmatprep.subr.bf16.mxu0 0
        %2942 = vmatpush1.bf16.msra.mxu0 0
        %2943 = vmatprep.mubr.bf16.mxu0 0
        %2944 = vmatmul.mubr.bf16.gmra.mrb[0].mxu0 %v2909
        %v2945 = vpop.f32.mrb[0].mxu0
        %v2946 = vadd.f32 0.0, %v2945
        %v2947 = vpop.f32.mrb[0].mxu0
        %v2948 = vpop.f32.mrb[0].mxu0
        %v2949 = vadd.f32 0.0, %v2948
        %v2950 = vpop.f32.mrb[0].mxu0
        %2951 = vdwg.mxu0
        %v2953 = vsel %vm2635, %v2815, 0
        %2955 = vmatprep.subr.bf16.mxu0 0
        %2956 = vmatpush1.bf16.msra.mxu0 %v2302
        %2957 = vmatprep.subr.bf16.mxu0 0
        %2958 = vmatpush1.bf16.msra.mxu0 0
        %2959 = vmatprep.subr.bf16.mxu0 0
        %2960 = vmatpush1.bf16.msra.mxu0 0
        %2961 = vmatprep.subr.bf16.mxu0 0
        %2962 = vmatpush1.bf16.msra.mxu0 0
        %2963 = vmatprep.subr.bf16.mxu0 0
        %2964 = vmatpush1.bf16.msra.mxu0 0
        %2965 = vmatprep.subr.bf16.mxu0 0
        %2966 = vmatpush1.bf16.msra.mxu0 0
        %2967 = vmatprep.subr.bf16.mxu0 0
        %2968 = vmatpush1.bf16.msra.mxu0 0
        %2969 = vmatprep.subr.bf16.mxu0 0
        %2970 = vmatpush1.bf16.msra.mxu0 0
        %2971 = vmatprep.subr.bf16.mxu0 0
        %2972 = vmatpush1.bf16.msra.mxu0 0
        %2973 = vmatprep.subr.bf16.mxu0 0
        %2974 = vmatpush1.bf16.msra.mxu0 0
        %2975 = vmatprep.subr.bf16.mxu0 0
        %2976 = vmatpush1.bf16.msra.mxu0 0
        %2977 = vmatprep.subr.bf16.mxu0 0
        %2978 = vmatpush1.bf16.msra.mxu0 0
        %2979 = vmatprep.subr.bf16.mxu0 0
        %2980 = vmatpush1.bf16.msra.mxu0 0
        %2981 = vmatprep.subr.bf16.mxu0 0
        %2982 = vmatpush1.bf16.msra.mxu0 0
        %2983 = vmatprep.subr.bf16.mxu0 0
        %2984 = vmatpush1.bf16.msra.mxu0 0
        %2985 = vmatprep.subr.bf16.mxu0 0
        %2986 = vmatpush1.bf16.msra.mxu0 0
        %2987 = vmatprep.mubr.bf16.mxu0 0
        %2988 = vmatmul.mubr.bf16.gmra.mrb[0].mxu0 %v2953
        %v2989 = vpop.f32.mrb[0].mxu0
        %v2990 = vadd.f32 0.0, %v2989
        %v2991 = vpop.f32.mrb[0].mxu0
        %v2992 = vpop.f32.mrb[0].mxu0
        %v2993 = vadd.f32 0.0, %v2992
        %v2994 = vpop.f32.mrb[0].mxu0
        %2995 = vdwg.mxu0
        %v2997 = vsel %vm2635, %v2816, 0
        %2999 = vmatprep.subr.bf16.mxu0 0
        %3000 = vmatpush1.bf16.msra.mxu0 %v2303
        %3001 = vmatprep.subr.bf16.mxu0 0
        %3002 = vmatpush1.bf16.msra.mxu0 0
        %3003 = vmatprep.subr.bf16.mxu0 0
        %3004 = vmatpush1.bf16.msra.mxu0 0
        %3005 = vmatprep.subr.bf16.mxu0 0
        %3006 = vmatpush1.bf16.msra.mxu0 0
        %3007 = vmatprep.subr.bf16.mxu0 0
        %3008 = vmatpush1.bf16.msra.mxu0 0
        %3009 = vmatprep.subr.bf16.mxu0 0
        %3010 = vmatpush1.bf16.msra.mxu0 0
        %3011 = vmatprep.subr.bf16.mxu0 0
        %3012 = vmatpush1.bf16.msra.mxu0 0
        %3013 = vmatprep.subr.bf16.mxu0 0
        %3014 = vmatpush1.bf16.msra.mxu0 0
        %3015 = vmatprep.subr.bf16.mxu0 0
        %3016 = vmatpush1.bf16.msra.mxu0 0
        %3017 = vmatprep.subr.bf16.mxu0 0
        %3018 = vmatpush1.bf16.msra.mxu0 0
        %3019 = vmatprep.subr.bf16.mxu0 0
        %3020 = vmatpush1.bf16.msra.mxu0 0
        %3021 = vmatprep.subr.bf16.mxu0 0
        %3022 = vmatpush1.bf16.msra.mxu0 0
        %3023 = vmatprep.subr.bf16.mxu0 0
        %3024 = vmatpush1.bf16.msra.mxu0 0
        %3025 = vmatprep.subr.bf16.mxu0 0
        %3026 = vmatpush1.bf16.msra.mxu0 0
        %3027 = vmatprep.subr.bf16.mxu0 0
        %3028 = vmatpush1.bf16.msra.mxu0 0
        %3029 = vmatprep.subr.bf16.mxu0 0
        %3030 = vmatpush1.bf16.msra.mxu0 0
        %3031 = vmatprep.mubr.bf16.mxu0 0
        %3032 = vmatmul.mubr.bf16.gmra.mrb[0].mxu0 %v2997
        %v3033 = vpop.f32.mrb[0].mxu0
        %v3034 = vadd.f32 0.0, %v3033
        %v3035 = vpop.f32.mrb[0].mxu0
        %v3036 = vpop.f32.mrb[0].mxu0
        %v3037 = vadd.f32 0.0, %v3036
        %v3038 = vpop.f32.mrb[0].mxu0
        %3039 = vdwg.mxu0
        %v3041 = vsel %vm2635, %v2817, 0
        %3043 = vmatprep.subr.bf16.mxu0 0
        %3044 = vmatpush1.bf16.msra.mxu0 %v2304
        %3045 = vmatprep.subr.bf16.mxu0 0
        %3046 = vmatpush1.bf16.msra.mxu0 0
        %3047 = vmatprep.subr.bf16.mxu0 0
        %3048 = vmatpush1.bf16.msra.mxu0 0
        %3049 = vmatprep.subr.bf16.mxu0 0
        %3050 = vmatpush1.bf16.msra.mxu0 0
        %3051 = vmatprep.subr.bf16.mxu0 0
        %3052 = vmatpush1.bf16.msra.mxu0 0
        %3053 = vmatprep.subr.bf16.mxu0 0
        %3054 = vmatpush1.bf16.msra.mxu0 0
        %3055 = vmatprep.subr.bf16.mxu0 0
        %3056 = vmatpush1.bf16.msra.mxu0 0
        %3057 = vmatprep.subr.bf16.mxu0 0
        %3058 = vmatpush1.bf16.msra.mxu0 0
        %3059 = vmatprep.subr.bf16.mxu0 0
        %3060 = vmatpush1.bf16.msra.mxu0 0
        %3061 = vmatprep.subr.bf16.mxu0 0
        %3062 = vmatpush1.bf16.msra.mxu0 0
        %3063 = vmatprep.subr.bf16.mxu0 0
        %3064 = vmatpush1.bf16.msra.mxu0 0
        %3065 = vmatprep.subr.bf16.mxu0 0
        %3066 = vmatpush1.bf16.msra.mxu0 0
        %3067 = vmatprep.subr.bf16.mxu0 0
        %3068 = vmatpush1.bf16.msra.mxu0 0
        %3069 = vmatprep.subr.bf16.mxu0 0
        %3070 = vmatpush1.bf16.msra.mxu0 0
        %3071 = vmatprep.subr.bf16.mxu0 0
        %3072 = vmatpush1.bf16.msra.mxu0 0
        %3073 = vmatprep.subr.bf16.mxu0 0
        %3074 = vmatpush1.bf16.msra.mxu0 0
        %3075 = vmatprep.mubr.bf16.mxu0 0
        %3076 = vmatmul.mubr.bf16.gmra.mrb[0].mxu0 %v3041
        %v3077 = vpop.f32.mrb[0].mxu0
        %v3078 = vadd.f32 0.0, %v3077
        %v3079 = vpop.f32.mrb[0].mxu0
        %v3080 = vpop.f32.mrb[0].mxu0
        %v3081 = vadd.f32 0.0, %v3080
        %v3082 = vpop.f32.mrb[0].mxu0
        %3083 = vdwg.mxu0
        %v3085 = vsel %vm2635, %v2818, 0
        %3087 = vmatprep.subr.bf16.mxu0 0
        %3088 = vmatpush1.bf16.msra.mxu0 %v2305
        %3089 = vmatprep.subr.bf16.mxu0 0
        %3090 = vmatpush1.bf16.msra.mxu0 0
        %3091 = vmatprep.subr.bf16.mxu0 0
        %3092 = vmatpush1.bf16.msra.mxu0 0
        %3093 = vmatprep.subr.bf16.mxu0 0
        %3094 = vmatpush1.bf16.msra.mxu0 0
        %3095 = vmatprep.subr.bf16.mxu0 0
        %3096 = vmatpush1.bf16.msra.mxu0 0
        %3097 = vmatprep.subr.bf16.mxu0 0
        %3098 = vmatpush1.bf16.msra.mxu0 0
        %3099 = vmatprep.subr.bf16.mxu0 0
        %3100 = vmatpush1.bf16.msra.mxu0 0
        %3101 = vmatprep.subr.bf16.mxu0 0
        %3102 = vmatpush1.bf16.msra.mxu0 0
        %3103 = vmatprep.subr.bf16.mxu0 0
        %3104 = vmatpush1.bf16.msra.mxu0 0
        %3105 = vmatprep.subr.bf16.mxu0 0
        %3106 = vmatpush1.bf16.msra.mxu0 0
        %3107 = vmatprep.subr.bf16.mxu0 0
        %3108 = vmatpush1.bf16.msra.mxu0 0
        %3109 = vmatprep.subr.bf16.mxu0 0
        %3110 = vmatpush1.bf16.msra.mxu0 0
        %3111 = vmatprep.subr.bf16.mxu0 0
        %3112 = vmatpush1.bf16.msra.mxu0 0
        %3113 = vmatprep.subr.bf16.mxu0 0
        %3114 = vmatpush1.bf16.msra.mxu0 0
        %3115 = vmatprep.subr.bf16.mxu0 0
        %3116 = vmatpush1.bf16.msra.mxu0 0
        %3117 = vmatprep.subr.bf16.mxu0 0
        %3118 = vmatpush1.bf16.msra.mxu0 0
        %3119 = vmatprep.mubr.bf16.mxu0 0
        %3120 = vmatmul.mubr.bf16.gmra.mrb[0].mxu0 %v3085
        %v3121 = vpop.f32.mrb[0].mxu0
        %v3122 = vadd.f32 0.0, %v3121
        %v3123 = vpop.f32.mrb[0].mxu0
        %v3124 = vpop.f32.mrb[0].mxu0
        %v3125 = vadd.f32 0.0, %v3124
        %v3126 = vpop.f32.mrb[0].mxu0
        %3127 = vdwg.mxu0
        %v3129 = vsel %vm2635, %v2819, 0
        %3131 = vmatprep.subr.bf16.mxu0 0
        %3132 = vmatpush1.bf16.msra.mxu0 %v2306
        %3133 = vmatprep.subr.bf16.mxu0 0
        %3134 = vmatpush1.bf16.msra.mxu0 0
        %3135 = vmatprep.subr.bf16.mxu0 0
        %3136 = vmatpush1.bf16.msra.mxu0 0
        %3137 = vmatprep.subr.bf16.mxu0 0
        %3138 = vmatpush1.bf16.msra.mxu0 0
        %3139 = vmatprep.subr.bf16.mxu0 0
        %3140 = vmatpush1.bf16.msra.mxu0 0
        %3141 = vmatprep.subr.bf16.mxu0 0
        %3142 = vmatpush1.bf16.msra.mxu0 0
        %3143 = vmatprep.subr.bf16.mxu0 0
        %3144 = vmatpush1.bf16.msra.mxu0 0
        %3145 = vmatprep.subr.bf16.mxu0 0
        %3146 = vmatpush1.bf16.msra.mxu0 0
        %3147 = vmatprep.subr.bf16.mxu0 0
        %3148 = vmatpush1.bf16.msra.mxu0 0
        %3149 = vmatprep.subr.bf16.mxu0 0
        %3150 = vmatpush1.bf16.msra.mxu0 0
        %3151 = vmatprep.subr.bf16.mxu0 0
        %3152 = vmatpush1.bf16.msra.mxu0 0
        %3153 = vmatprep.subr.bf16.mxu0 0
        %3154 = vmatpush1.bf16.msra.mxu0 0
        %3155 = vmatprep.subr.bf16.mxu0 0
        %3156 = vmatpush1.bf16.msra.mxu0 0
        %3157 = vmatprep.subr.bf16.mxu0 0
        %3158 = vmatpush1.bf16.msra.mxu0 0
        %3159 = vmatprep.subr.bf16.mxu0 0
        %3160 = vmatpush1.bf16.msra.mxu0 0
        %3161 = vmatprep.subr.bf16.mxu0 0
        %3162 = vmatpush1.bf16.msra.mxu0 0
        %3163 = vmatprep.mubr.bf16.mxu0 0
        %3164 = vmatmul.mubr.bf16.gmra.mrb[0].mxu0 %v3129
        %v3165 = vpop.f32.mrb[0].mxu0
        %v3166 = vadd.f32 0.0, %v3165
        %v3167 = vpop.f32.mrb[0].mxu0
        %v3168 = vpop.f32.mrb[0].mxu0
        %v3169 = vadd.f32 0.0, %v3168
        %v3170 = vpop.f32.mrb[0].mxu0
        %3171 = vdwg.mxu0
        %v3172 = vmul.f32 %v1956, 0.088388346
        %v3173 = vmul.f32 %v1960, 0.088388346
        %v3174 = vmul.f32 %v1966, 0.088388346
        %v3175 = vmul.f32 %v1970, 0.088388346
        %v3176 = vmul.f32 %v1976, 0.088388346
        %v3177 = vmul.f32 %v1980, 0.088388346
        %v3178 = vmul.f32 %v1986, 0.088388346
        %v3179 = vmul.f32 %v1990, 0.088388346
        %v3180 = vmul.f32 %v1996, 0.088388346
        %v3181 = vmul.f32 %v2000, 0.088388346
        %v3182 = vmul.f32 %v2006, 0.088388346
        %v3183 = vmul.f32 %v2010, 0.088388346
        %v3184 = vmul.f32 %v2016, 0.088388346
        %v3185 = vmul.f32 %v2020, 0.088388346
        %v3186 = vmul.f32 %v2026, 0.088388346
        %v3187 = vmul.f32 %v2030, 0.088388346
        %v3188 = vpack.c.bf16 %v3173, %v3172
        %v3189 = vpack.c.bf16 %v3175, %v3174
        %v3190 = vpack.c.bf16 %v3177, %v3176
        %v3191 = vpack.c.bf16 %v3179, %v3178
        %v3192 = vpack.c.bf16 %v3181, %v3180
        %v3193 = vpack.c.bf16 %v3183, %v3182
        %v3194 = vpack.c.bf16 %v3185, %v3184
        %v3195 = vpack.c.bf16 %v3187, %v3186
        %v3196 = vpack.c.bf16 %v2073, %v2069
        %v3197 = vpack.c.bf16 %v2083, %v2079
        %v3198 = vpack.c.bf16 %v2093, %v2089
        %v3199 = vpack.c.bf16 %v2103, %v2099
        %v3200 = vpack.c.bf16 %v2113, %v2109
        %v3201 = vpack.c.bf16 %v2123, %v2119
        %v3202 = vpack.c.bf16 %v2133, %v2129
        %v3203 = vpack.c.bf16 %v2143, %v2139
        %v3204 = vpack.c.bf16 %v2186, %v2182
        %v3205 = vpack.c.bf16 %v2196, %v2192
        %v3206 = vpack.c.bf16 %v2206, %v2202
        %v3207 = vpack.c.bf16 %v2216, %v2212
        %v3208 = vpack.c.bf16 %v2226, %v2222
        %v3209 = vpack.c.bf16 %v2236, %v2232
        %v3210 = vpack.c.bf16 %v2246, %v2242
        %v3211 = vpack.c.bf16 %v2256, %v2252
        %3212 = vmatprep.subr.bf16.mxu0 0
        %3213 = vmatpush1.bf16.xpose.msra.mxu0 %v3196
        %3214 = vmatprep.subr.bf16.mxu0 0
        %3215 = vmatpush1.bf16.xpose.msra.mxu0 0
        %3216 = vmatprep.subr.bf16.mxu0 0
        %3217 = vmatpush1.bf16.xpose.msra.mxu0 0
        %3218 = vmatprep.subr.bf16.mxu0 0
        %3219 = vmatpush1.bf16.xpose.msra.mxu0 0
        %3220 = vmatprep.subr.bf16.mxu0 0
        %3221 = vmatpush1.bf16.xpose.msra.mxu0 0
        %3222 = vmatprep.subr.bf16.mxu0 0
        %3223 = vmatpush1.bf16.xpose.msra.mxu0 0
        %3224 = vmatprep.subr.bf16.mxu0 0
        %3225 = vmatpush1.bf16.xpose.msra.mxu0 0
        %3226 = vmatprep.subr.bf16.mxu0 0
        %3227 = vmatpush1.bf16.xpose.msra.mxu0 0
        %3228 = vmatprep.subr.bf16.mxu0 0
        %3229 = vmatpush1.bf16.xpose.msra.mxu0 0
        %3230 = vmatprep.subr.bf16.mxu0 0
        %3231 = vmatpush1.bf16.xpose.msra.mxu0 0
        %3232 = vmatprep.subr.bf16.mxu0 0
        %3233 = vmatpush1.bf16.xpose.msra.mxu0 0
        %3234 = vmatprep.subr.bf16.mxu0 0
        %3235 = vmatpush1.bf16.xpose.msra.mxu0 0
        %3236 = vmatprep.subr.bf16.mxu0 0
        %3237 = vmatpush1.bf16.xpose.msra.mxu0 0
        %3238 = vmatprep.subr.bf16.mxu0 0
        %3239 = vmatpush1.bf16.xpose.msra.mxu0 0
        %3240 = vmatprep.subr.bf16.mxu0 0
        %3241 = vmatpush1.bf16.xpose.msra.mxu0 0
        %3242 = vmatprep.subr.bf16.mxu0 0
        %3243 = vmatpush1.bf16.xpose.msra.mxu0 0
        %3244 = vmatprep.mubr.bf16.mxu0 0
        %3245 = vmatmul.mubr.bf16.gmra.mrb[0].mxu0 %v3188
        %v3246 = vpop.f32.mrb[0].mxu0
        %v3247 = vadd.f32 %v2265, %v3246
        %v3248 = vpop.f32.mrb[0].mxu0
        %v3249 = vpop.f32.mrb[0].mxu0
        %v3250 = vadd.f32 %v2266, %v3249
        %v3251 = vpop.f32.mrb[0].mxu0
        %3252 = vdwg.mxu0
        %3253 = vmatprep.subr.bf16.mxu0 0
        %3254 = vmatpush1.bf16.xpose.msra.mxu0 %v3197
        %3255 = vmatprep.subr.bf16.mxu0 0
        %3256 = vmatpush1.bf16.xpose.msra.mxu0 0
        %3257 = vmatprep.subr.bf16.mxu0 0
        %3258 = vmatpush1.bf16.xpose.msra.mxu0 0
        %3259 = vmatprep.subr.bf16.mxu0 0
        %3260 = vmatpush1.bf16.xpose.msra.mxu0 0
        %3261 = vmatprep.subr.bf16.mxu0 0
        %3262 = vmatpush1.bf16.xpose.msra.mxu0 0
        %3263 = vmatprep.subr.bf16.mxu0 0
        %3264 = vmatpush1.bf16.xpose.msra.mxu0 0
        %3265 = vmatprep.subr.bf16.mxu0 0
        %3266 = vmatpush1.bf16.xpose.msra.mxu0 0
        %3267 = vmatprep.subr.bf16.mxu0 0
        %3268 = vmatpush1.bf16.xpose.msra.mxu0 0
        %3269 = vmatprep.subr.bf16.mxu0 0
        %3270 = vmatpush1.bf16.xpose.msra.mxu0 0
        %3271 = vmatprep.subr.bf16.mxu0 0
        %3272 = vmatpush1.bf16.xpose.msra.mxu0 0
        %3273 = vmatprep.subr.bf16.mxu0 0
        %3274 = vmatpush1.bf16.xpose.msra.mxu0 0
        %3275 = vmatprep.subr.bf16.mxu0 0
        %3276 = vmatpush1.bf16.xpose.msra.mxu0 0
        %3277 = vmatprep.subr.bf16.mxu0 0
        %3278 = vmatpush1.bf16.xpose.msra.mxu0 0
        %3279 = vmatprep.subr.bf16.mxu0 0
        %3280 = vmatpush1.bf16.xpose.msra.mxu0 0
        %3281 = vmatprep.subr.bf16.mxu0 0
        %3282 = vmatpush1.bf16.xpose.msra.mxu0 0
        %3283 = vmatprep.subr.bf16.mxu0 0
        %3284 = vmatpush1.bf16.xpose.msra.mxu0 0
        %3285 = vmatprep.mubr.bf16.mxu0 0
        %3286 = vmatmul.mubr.bf16.gmra.mrb[0].mxu0 %v3189
        %v3287 = vpop.f32.mrb[0].mxu0
        %v3288 = vadd.f32 %v2265, %v3287
        %v3289 = vpop.f32.mrb[0].mxu0
        %v3290 = vpop.f32.mrb[0].mxu0
        %v3291 = vadd.f32 %v2266, %v3290
        %v3292 = vpop.f32.mrb[0].mxu0
        %3293 = vdwg.mxu0
        %3294 = vmatprep.subr.bf16.mxu0 0
        %3295 = vmatpush1.bf16.xpose.msra.mxu0 %v3198
        %3296 = vmatprep.subr.bf16.mxu0 0
        %3297 = vmatpush1.bf16.xpose.msra.mxu0 0
        %3298 = vmatprep.subr.bf16.mxu0 0
        %3299 = vmatpush1.bf16.xpose.msra.mxu0 0
        %3300 = vmatprep.subr.bf16.mxu0 0
        %3301 = vmatpush1.bf16.xpose.msra.mxu0 0
        %3302 = vmatprep.subr.bf16.mxu0 0
        %3303 = vmatpush1.bf16.xpose.msra.mxu0 0
        %3304 = vmatprep.subr.bf16.mxu0 0
        %3305 = vmatpush1.bf16.xpose.msra.mxu0 0
        %3306 = vmatprep.subr.bf16.mxu0 0
        %3307 = vmatpush1.bf16.xpose.msra.mxu0 0
        %3308 = vmatprep.subr.bf16.mxu0 0
        %3309 = vmatpush1.bf16.xpose.msra.mxu0 0
        %3310 = vmatprep.subr.bf16.mxu0 0
        %3311 = vmatpush1.bf16.xpose.msra.mxu0 0
        %3312 = vmatprep.subr.bf16.mxu0 0
        %3313 = vmatpush1.bf16.xpose.msra.mxu0 0
        %3314 = vmatprep.subr.bf16.mxu0 0
        %3315 = vmatpush1.bf16.xpose.msra.mxu0 0
        %3316 = vmatprep.subr.bf16.mxu0 0
        %3317 = vmatpush1.bf16.xpose.msra.mxu0 0
        %3318 = vmatprep.subr.bf16.mxu0 0
        %3319 = vmatpush1.bf16.xpose.msra.mxu0 0
        %3320 = vmatprep.subr.bf16.mxu0 0
        %3321 = vmatpush1.bf16.xpose.msra.mxu0 0
        %3322 = vmatprep.subr.bf16.mxu0 0
        %3323 = vmatpush1.bf16.xpose.msra.mxu0 0
        %3324 = vmatprep.subr.bf16.mxu0 0
        %3325 = vmatpush1.bf16.xpose.msra.mxu0 0
        %3326 = vmatprep.mubr.bf16.mxu0 0
        %3327 = vmatmul.mubr.bf16.gmra.mrb[0].mxu0 %v3190
        %v3328 = vpop.f32.mrb[0].mxu0
        %v3329 = vadd.f32 %v2265, %v3328
        %v3330 = vpop.f32.mrb[0].mxu0
        %v3331 = vpop.f32.mrb[0].mxu0
        %v3332 = vadd.f32 %v2266, %v3331
        %v3333 = vpop.f32.mrb[0].mxu0
        %3334 = vdwg.mxu0
        %3335 = vmatprep.subr.bf16.mxu0 0
        %3336 = vmatpush1.bf16.xpose.msra.mxu0 %v3199
        %3337 = vmatprep.subr.bf16.mxu0 0
        %3338 = vmatpush1.bf16.xpose.msra.mxu0 0
        %3339 = vmatprep.subr.bf16.mxu0 0
        %3340 = vmatpush1.bf16.xpose.msra.mxu0 0
        %3341 = vmatprep.subr.bf16.mxu0 0
        %3342 = vmatpush1.bf16.xpose.msra.mxu0 0
        %3343 = vmatprep.subr.bf16.mxu0 0
        %3344 = vmatpush1.bf16.xpose.msra.mxu0 0
        %3345 = vmatprep.subr.bf16.mxu0 0
        %3346 = vmatpush1.bf16.xpose.msra.mxu0 0
        %3347 = vmatprep.subr.bf16.mxu0 0
        %3348 = vmatpush1.bf16.xpose.msra.mxu0 0
        %3349 = vmatprep.subr.bf16.mxu0 0
        %3350 = vmatpush1.bf16.xpose.msra.mxu0 0
        %3351 = vmatprep.subr.bf16.mxu0 0
        %3352 = vmatpush1.bf16.xpose.msra.mxu0 0
        %3353 = vmatprep.subr.bf16.mxu0 0
        %3354 = vmatpush1.bf16.xpose.msra.mxu0 0
        %3355 = vmatprep.subr.bf16.mxu0 0
        %3356 = vmatpush1.bf16.xpose.msra.mxu0 0
        %3357 = vmatprep.subr.bf16.mxu0 0
        %3358 = vmatpush1.bf16.xpose.msra.mxu0 0
        %3359 = vmatprep.subr.bf16.mxu0 0
        %3360 = vmatpush1.bf16.xpose.msra.mxu0 0
        %3361 = vmatprep.subr.bf16.mxu0 0
        %3362 = vmatpush1.bf16.xpose.msra.mxu0 0
        %3363 = vmatprep.subr.bf16.mxu0 0
        %3364 = vmatpush1.bf16.xpose.msra.mxu0 0
        %3365 = vmatprep.subr.bf16.mxu0 0
        %3366 = vmatpush1.bf16.xpose.msra.mxu0 0
        %3367 = vmatprep.mubr.bf16.mxu0 0
        %3368 = vmatmul.mubr.bf16.gmra.mrb[0].mxu0 %v3191
        %v3369 = vpop.f32.mrb[0].mxu0
        %v3370 = vadd.f32 %v2265, %v3369
        %v3371 = vpop.f32.mrb[0].mxu0
        %v3372 = vpop.f32.mrb[0].mxu0
        %v3373 = vadd.f32 %v2266, %v3372
        %v3374 = vpop.f32.mrb[0].mxu0
        %3375 = vdwg.mxu0
        %3376 = vmatprep.subr.bf16.mxu0 0
        %3377 = vmatpush1.bf16.xpose.msra.mxu0 %v3200
        %3378 = vmatprep.subr.bf16.mxu0 0
        %3379 = vmatpush1.bf16.xpose.msra.mxu0 0
        %3380 = vmatprep.subr.bf16.mxu0 0
        %3381 = vmatpush1.bf16.xpose.msra.mxu0 0
        %3382 = vmatprep.subr.bf16.mxu0 0
        %3383 = vmatpush1.bf16.xpose.msra.mxu0 0
        %3384 = vmatprep.subr.bf16.mxu0 0
        %3385 = vmatpush1.bf16.xpose.msra.mxu0 0
        %3386 = vmatprep.subr.bf16.mxu0 0
        %3387 = vmatpush1.bf16.xpose.msra.mxu0 0
        %3388 = vmatprep.subr.bf16.mxu0 0
        %3389 = vmatpush1.bf16.xpose.msra.mxu0 0
        %3390 = vmatprep.subr.bf16.mxu0 0
        %3391 = vmatpush1.bf16.xpose.msra.mxu0 0
        %3392 = vmatprep.subr.bf16.mxu0 0
        %3393 = vmatpush1.bf16.xpose.msra.mxu0 0
        %3394 = vmatprep.subr.bf16.mxu0 0
        %3395 = vmatpush1.bf16.xpose.msra.mxu0 0
        %3396 = vmatprep.subr.bf16.mxu0 0
        %3397 = vmatpush1.bf16.xpose.msra.mxu0 0
        %3398 = vmatprep.subr.bf16.mxu0 0
        %3399 = vmatpush1.bf16.xpose.msra.mxu0 0
        %3400 = vmatprep.subr.bf16.mxu0 0
        %3401 = vmatpush1.bf16.xpose.msra.mxu0 0
        %3402 = vmatprep.subr.bf16.mxu0 0
        %3403 = vmatpush1.bf16.xpose.msra.mxu0 0
        %3404 = vmatprep.subr.bf16.mxu0 0
        %3405 = vmatpush1.bf16.xpose.msra.mxu0 0
        %3406 = vmatprep.subr.bf16.mxu0 0
        %3407 = vmatpush1.bf16.xpose.msra.mxu0 0
        %3408 = vmatprep.mubr.bf16.mxu0 0
        %3409 = vmatmul.mubr.bf16.gmra.mrb[0].mxu0 %v3192
        %v3410 = vpop.f32.mrb[0].mxu0
        %v3411 = vadd.f32 %v2265, %v3410
        %v3412 = vpop.f32.mrb[0].mxu0
        %v3413 = vpop.f32.mrb[0].mxu0
        %v3414 = vadd.f32 %v2266, %v3413
        %v3415 = vpop.f32.mrb[0].mxu0
        %3416 = vdwg.mxu0
        %3417 = vmatprep.subr.bf16.mxu0 0
        %3418 = vmatpush1.bf16.xpose.msra.mxu0 %v3201
        %3419 = vmatprep.subr.bf16.mxu0 0
        %3420 = vmatpush1.bf16.xpose.msra.mxu0 0
        %3421 = vmatprep.subr.bf16.mxu0 0
        %3422 = vmatpush1.bf16.xpose.msra.mxu0 0
        %3423 = vmatprep.subr.bf16.mxu0 0
        %3424 = vmatpush1.bf16.xpose.msra.mxu0 0
        %3425 = vmatprep.subr.bf16.mxu0 0
        %3426 = vmatpush1.bf16.xpose.msra.mxu0 0
        %3427 = vmatprep.subr.bf16.mxu0 0
        %3428 = vmatpush1.bf16.xpose.msra.mxu0 0
        %3429 = vmatprep.subr.bf16.mxu0 0
        %3430 = vmatpush1.bf16.xpose.msra.mxu0 0
        %3431 = vmatprep.subr.bf16.mxu0 0
        %3432 = vmatpush1.bf16.xpose.msra.mxu0 0
        %3433 = vmatprep.subr.bf16.mxu0 0
        %3434 = vmatpush1.bf16.xpose.msra.mxu0 0
        %3435 = vmatprep.subr.bf16.mxu0 0
        %3436 = vmatpush1.bf16.xpose.msra.mxu0 0
        %3437 = vmatprep.subr.bf16.mxu0 0
        %3438 = vmatpush1.bf16.xpose.msra.mxu0 0
        %3439 = vmatprep.subr.bf16.mxu0 0
        %3440 = vmatpush1.bf16.xpose.msra.mxu0 0
        %3441 = vmatprep.subr.bf16.mxu0 0
        %3442 = vmatpush1.bf16.xpose.msra.mxu0 0
        %3443 = vmatprep.subr.bf16.mxu0 0
        %3444 = vmatpush1.bf16.xpose.msra.mxu0 0
        %3445 = vmatprep.subr.bf16.mxu0 0
        %3446 = vmatpush1.bf16.xpose.msra.mxu0 0
        %3447 = vmatprep.subr.bf16.mxu0 0
        %3448 = vmatpush1.bf16.xpose.msra.mxu0 0
        %3449 = vmatprep.mubr.bf16.mxu0 0
        %3450 = vmatmul.mubr.bf16.gmra.mrb[0].mxu0 %v3193
        %v3451 = vpop.f32.mrb[0].mxu0
        %v3452 = vadd.f32 %v2265, %v3451
        %v3453 = vpop.f32.mrb[0].mxu0
        %v3454 = vpop.f32.mrb[0].mxu0
        %v3455 = vadd.f32 %v2266, %v3454
        %v3456 = vpop.f32.mrb[0].mxu0
        %3457 = vdwg.mxu0
        %3458 = vmatprep.subr.bf16.mxu0 0
        %3459 = vmatpush1.bf16.xpose.msra.mxu0 %v3202
        %3460 = vmatprep.subr.bf16.mxu0 0
        %3461 = vmatpush1.bf16.xpose.msra.mxu0 0
        %3462 = vmatprep.subr.bf16.mxu0 0
        %3463 = vmatpush1.bf16.xpose.msra.mxu0 0
        %3464 = vmatprep.subr.bf16.mxu0 0
        %3465 = vmatpush1.bf16.xpose.msra.mxu0 0
        %3466 = vmatprep.subr.bf16.mxu0 0
        %3467 = vmatpush1.bf16.xpose.msra.mxu0 0
        %3468 = vmatprep.subr.bf16.mxu0 0
        %3469 = vmatpush1.bf16.xpose.msra.mxu0 0
        %3470 = vmatprep.subr.bf16.mxu0 0
        %3471 = vmatpush1.bf16.xpose.msra.mxu0 0
        %3472 = vmatprep.subr.bf16.mxu0 0
        %3473 = vmatpush1.bf16.xpose.msra.mxu0 0
        %3474 = vmatprep.subr.bf16.mxu0 0
        %3475 = vmatpush1.bf16.xpose.msra.mxu0 0
        %3476 = vmatprep.subr.bf16.mxu0 0
        %3477 = vmatpush1.bf16.xpose.msra.mxu0 0
        %3478 = vmatprep.subr.bf16.mxu0 0
        %3479 = vmatpush1.bf16.xpose.msra.mxu0 0
        %3480 = vmatprep.subr.bf16.mxu0 0
        %3481 = vmatpush1.bf16.xpose.msra.mxu0 0
        %3482 = vmatprep.subr.bf16.mxu0 0
        %3483 = vmatpush1.bf16.xpose.msra.mxu0 0
        %3484 = vmatprep.subr.bf16.mxu0 0
        %3485 = vmatpush1.bf16.xpose.msra.mxu0 0
        %3486 = vmatprep.subr.bf16.mxu0 0
        %3487 = vmatpush1.bf16.xpose.msra.mxu0 0
        %3488 = vmatprep.subr.bf16.mxu0 0
        %3489 = vmatpush1.bf16.xpose.msra.mxu0 0
        %3490 = vmatprep.mubr.bf16.mxu0 0
        %3491 = vmatmul.mubr.bf16.gmra.mrb[0].mxu0 %v3194
        %v3492 = vpop.f32.mrb[0].mxu0
        %v3493 = vadd.f32 %v2265, %v3492
        %v3494 = vpop.f32.mrb[0].mxu0
        %v3495 = vpop.f32.mrb[0].mxu0
        %v3496 = vadd.f32 %v2266, %v3495
        %v3497 = vpop.f32.mrb[0].mxu0
        %3498 = vdwg.mxu0
        %3499 = vmatprep.subr.bf16.mxu0 0
        %3500 = vmatpush1.bf16.xpose.msra.mxu0 %v3203
        %3501 = vmatprep.subr.bf16.mxu0 0
        %3502 = vmatpush1.bf16.xpose.msra.mxu0 0
        %3503 = vmatprep.subr.bf16.mxu0 0
        %3504 = vmatpush1.bf16.xpose.msra.mxu0 0
        %3505 = vmatprep.subr.bf16.mxu0 0
        %3506 = vmatpush1.bf16.xpose.msra.mxu0 0
        %3507 = vmatprep.subr.bf16.mxu0 0
        %3508 = vmatpush1.bf16.xpose.msra.mxu0 0
        %3509 = vmatprep.subr.bf16.mxu0 0
        %3510 = vmatpush1.bf16.xpose.msra.mxu0 0
        %3511 = vmatprep.subr.bf16.mxu0 0
        %3512 = vmatpush1.bf16.xpose.msra.mxu0 0
        %3513 = vmatprep.subr.bf16.mxu0 0
        %3514 = vmatpush1.bf16.xpose.msra.mxu0 0
        %3515 = vmatprep.subr.bf16.mxu0 0
        %3516 = vmatpush1.bf16.xpose.msra.mxu0 0
        %3517 = vmatprep.subr.bf16.mxu0 0
        %3518 = vmatpush1.bf16.xpose.msra.mxu0 0
        %3519 = vmatprep.subr.bf16.mxu0 0
        %3520 = vmatpush1.bf16.xpose.msra.mxu0 0
        %3521 = vmatprep.subr.bf16.mxu0 0
        %3522 = vmatpush1.bf16.xpose.msra.mxu0 0
        %3523 = vmatprep.subr.bf16.mxu0 0
        %3524 = vmatpush1.bf16.xpose.msra.mxu0 0
        %3525 = vmatprep.subr.bf16.mxu0 0
        %3526 = vmatpush1.bf16.xpose.msra.mxu0 0
        %3527 = vmatprep.subr.bf16.mxu0 0
        %3528 = vmatpush1.bf16.xpose.msra.mxu0 0
        %3529 = vmatprep.subr.bf16.mxu0 0
        %3530 = vmatpush1.bf16.xpose.msra.mxu0 0
        %3531 = vmatprep.mubr.bf16.mxu0 0
        %3532 = vmatmul.mubr.bf16.gmra.mrb[0].mxu0 %v3195
        %v3533 = vpop.f32.mrb[0].mxu0
        %v3534 = vadd.f32 %v2265, %v3533
        %v3535 = vpop.f32.mrb[0].mxu0
        %v3536 = vpop.f32.mrb[0].mxu0
        %v3537 = vadd.f32 %v2266, %v3536
        %v3538 = vpop.f32.mrb[0].mxu0
        %3539 = vdwg.mxu0
        %v3540 = vsel %vm2635, %v3247, -inf
        %3541 = vmax.xlane.f32.xlu0 %v3540
        %v3542 = vpop.xlane.xlu0 %3541
        %v3543 = vsel %vm2635, %v3250, -inf
        %3544 = vmax.xlane.f32.xlu0 %v3543
        %v3545 = vpop.xlane.xlu0 %3544
        %v3546 = vsel %vm2635, %v3288, -inf
        %3547 = vmax.xlane.f32.xlu0 %v3546
        %v3548 = vpop.xlane.xlu0 %3547
        %v3549 = vsel %vm2635, %v3291, -inf
        %3550 = vmax.xlane.f32.xlu0 %v3549
        %v3551 = vpop.xlane.xlu0 %3550
        %v3552 = vsel %vm2635, %v3329, -inf
        %3553 = vmax.xlane.f32.xlu0 %v3552
        %v3554 = vpop.xlane.xlu0 %3553
        %v3555 = vsel %vm2635, %v3332, -inf
        %3556 = vmax.xlane.f32.xlu0 %v3555
        %v3557 = vpop.xlane.xlu0 %3556
        %v3558 = vsel %vm2635, %v3370, -inf
        %3559 = vmax.xlane.f32.xlu0 %v3558
        %v3560 = vpop.xlane.xlu0 %3559
        %v3561 = vsel %vm2635, %v3373, -inf
        %3562 = vmax.xlane.f32.xlu0 %v3561
        %v3563 = vpop.xlane.xlu0 %3562
        %v3564 = vsel %vm2635, %v3411, -inf
        %3565 = vmax.xlane.f32.xlu0 %v3564
        %v3566 = vpop.xlane.xlu0 %3565
        %v3567 = vsel %vm2635, %v3414, -inf
        %3568 = vmax.xlane.f32.xlu0 %v3567
        %v3569 = vpop.xlane.xlu0 %3568
        %v3570 = vsel %vm2635, %v3452, -inf
        %3571 = vmax.xlane.f32.xlu0 %v3570
        %v3572 = vpop.xlane.xlu0 %3571
        %v3573 = vsel %vm2635, %v3455, -inf
        %3574 = vmax.xlane.f32.xlu0 %v3573
        %v3575 = vpop.xlane.xlu0 %3574
        %v3576 = vsel %vm2635, %v3493, -inf
        %3577 = vmax.xlane.f32.xlu0 %v3576
        %v3578 = vpop.xlane.xlu0 %3577
        %v3579 = vsel %vm2635, %v3496, -inf
        %3580 = vmax.xlane.f32.xlu0 %v3579
        %v3581 = vpop.xlane.xlu0 %3580
        %v3582 = vsel %vm2635, %v3534, -inf
        %3583 = vmax.xlane.f32.xlu0 %v3582
        %v3584 = vpop.xlane.xlu0 %3583
        %v3585 = vsel %vm2635, %v3537, -inf
        %3586 = vmax.xlane.f32.xlu0 %v3585
        %v3587 = vpop.xlane.xlu0 %3586
        %v3588 = vsub.f32 %v3247, %v3542
        %v3589 = vsub.f32 %v3250, %v3545
        %v3590 = vsub.f32 %v3288, %v3548
        %v3591 = vsub.f32 %v3291, %v3551
        %v3592 = vsub.f32 %v3329, %v3554
        %v3593 = vsub.f32 %v3332, %v3557
        %v3594 = vsub.f32 %v3370, %v3560
        %v3595 = vsub.f32 %v3373, %v3563
        %v3596 = vsub.f32 %v3411, %v3566
        %v3597 = vsub.f32 %v3414, %v3569
        %v3598 = vsub.f32 %v3452, %v3572
        %v3599 = vsub.f32 %v3455, %v3575
        %v3600 = vsub.f32 %v3493, %v3578
        %v3601 = vsub.f32 %v3496, %v3581
        %v3602 = vsub.f32 %v3534, %v3584
        %v3603 = vsub.f32 %v3537, %v3587
        %v3604 = vmul.f32 %v3588, 1.442695
        %v3605 = vpow.pop %v3604
        %v3606 = vmul.f32 %v3589, 1.442695
        %v3607 = vpow.pop %v3606
        %v3608 = vmul.f32 %v3590, 1.442695
        %v3609 = vpow.pop %v3608
        %v3610 = vmul.f32 %v3591, 1.442695
        %v3611 = vpow.pop %v3610
        %v3612 = vmul.f32 %v3592, 1.442695
        %v3613 = vpow.pop %v3612
        %v3614 = vmul.f32 %v3593, 1.442695
        %v3615 = vpow.pop %v3614
        %v3616 = vmul.f32 %v3594, 1.442695
        %v3617 = vpow.pop %v3616
        %v3618 = vmul.f32 %v3595, 1.442695
        %v3619 = vpow.pop %v3618
        %v3620 = vmul.f32 %v3596, 1.442695
        %v3621 = vpow.pop %v3620
        %v3622 = vmul.f32 %v3597, 1.442695
        %v3623 = vpow.pop %v3622
        %v3624 = vmul.f32 %v3598, 1.442695
        %v3625 = vpow.pop %v3624
        %v3626 = vmul.f32 %v3599, 1.442695
        %v3627 = vpow.pop %v3626
        %v3628 = vmul.f32 %v3600, 1.442695
        %v3629 = vpow.pop %v3628
        %v3630 = vmul.f32 %v3601, 1.442695
        %v3631 = vpow.pop %v3630
        %v3632 = vmul.f32 %v3602, 1.442695
        %v3633 = vpow.pop %v3632
        %v3634 = vmul.f32 %v3603, 1.442695
        %v3635 = vpow.pop %v3634
        %v3636 = vsel %vm2635, %v3605, 0.0
        %3637 = vadd.xlane.f32.xlu0 %v3636
        %v3638 = vpop.xlane.xlu0 %3637
        %v3639 = vsel %vm2635, %v3607, 0.0
        %3640 = vadd.xlane.f32.xlu0 %v3639
        %v3641 = vpop.xlane.xlu0 %3640
        %v3642 = vsel %vm2635, %v3609, 0.0
        %3643 = vadd.xlane.f32.xlu0 %v3642
        %v3644 = vpop.xlane.xlu0 %3643
        %v3645 = vsel %vm2635, %v3611, 0.0
        %3646 = vadd.xlane.f32.xlu0 %v3645
        %v3647 = vpop.xlane.xlu0 %3646
        %v3648 = vsel %vm2635, %v3613, 0.0
        %3649 = vadd.xlane.f32.xlu0 %v3648
        %v3650 = vpop.xlane.xlu0 %3649
        %v3651 = vsel %vm2635, %v3615, 0.0
        %3652 = vadd.xlane.f32.xlu0 %v3651
        %v3653 = vpop.xlane.xlu0 %3652
        %v3654 = vsel %vm2635, %v3617, 0.0
        %3655 = vadd.xlane.f32.xlu0 %v3654
        %v3656 = vpop.xlane.xlu0 %3655
        %v3657 = vsel %vm2635, %v3619, 0.0
        %3658 = vadd.xlane.f32.xlu0 %v3657
        %v3659 = vpop.xlane.xlu0 %3658
        %v3660 = vsel %vm2635, %v3621, 0.0
        %3661 = vadd.xlane.f32.xlu0 %v3660
        %v3662 = vpop.xlane.xlu0 %3661
        %v3663 = vsel %vm2635, %v3623, 0.0
        %3664 = vadd.xlane.f32.xlu0 %v3663
        %v3665 = vpop.xlane.xlu0 %3664
        %v3666 = vsel %vm2635, %v3625, 0.0
        %3667 = vadd.xlane.f32.xlu0 %v3666
        %v3668 = vpop.xlane.xlu0 %3667
        %v3669 = vsel %vm2635, %v3627, 0.0
        %3670 = vadd.xlane.f32.xlu0 %v3669
        %v3671 = vpop.xlane.xlu0 %3670
        %v3672 = vsel %vm2635, %v3629, 0.0
        %3673 = vadd.xlane.f32.xlu0 %v3672
        %v3674 = vpop.xlane.xlu0 %3673
        %v3675 = vsel %vm2635, %v3631, 0.0
        %3676 = vadd.xlane.f32.xlu0 %v3675
        %v3677 = vpop.xlane.xlu0 %3676
        %v3678 = vsel %vm2635, %v3633, 0.0
        %3679 = vadd.xlane.f32.xlu0 %v3678
        %v3680 = vpop.xlane.xlu0 %3679
        %v3681 = vsel %vm2635, %v3635, 0.0
        %3682 = vadd.xlane.f32.xlu0 %v3681
        %v3683 = vpop.xlane.xlu0 %3682
        %v3684 = vrcp.pop %v3638
        %v3685 = vrcp.pop %v3641
        %v3686 = vrcp.pop %v3644
        %v3687 = vrcp.pop %v3647
        %v3688 = vrcp.pop %v3650
        %v3689 = vrcp.pop %v3653
        %v3690 = vrcp.pop %v3656
        %v3691 = vrcp.pop %v3659
        %v3692 = vrcp.pop %v3662
        %v3693 = vrcp.pop %v3665
        %v3694 = vrcp.pop %v3668
        %v3695 = vrcp.pop %v3671
        %v3696 = vrcp.pop %v3674
        %v3697 = vrcp.pop %v3677
        %v3698 = vrcp.pop %v3680
        %v3699 = vrcp.pop %v3683
        %v3700 = vmul.f32 %v3605, %v3684
        %v3701 = vmul.f32 %v3607, %v3685
        %v3702 = vmul.f32 %v3609, %v3686
        %v3703 = vmul.f32 %v3611, %v3687
        %v3704 = vmul.f32 %v3613, %v3688
        %v3705 = vmul.f32 %v3615, %v3689
        %v3706 = vmul.f32 %v3617, %v3690
        %v3707 = vmul.f32 %v3619, %v3691
        %v3708 = vmul.f32 %v3621, %v3692
        %v3709 = vmul.f32 %v3623, %v3693
        %v3710 = vmul.f32 %v3625, %v3694
        %v3711 = vmul.f32 %v3627, %v3695
        %v3712 = vmul.f32 %v3629, %v3696
        %v3713 = vmul.f32 %v3631, %v3697
        %v3714 = vmul.f32 %v3633, %v3698
        %v3715 = vmul.f32 %v3635, %v3699
        %v3716 = vpack.c.bf16 %v3701, %v3700
        %v3717 = vpack.c.bf16 %v3703, %v3702
        %v3718 = vpack.c.bf16 %v3705, %v3704
        %v3719 = vpack.c.bf16 %v3707, %v3706
        %v3720 = vpack.c.bf16 %v3709, %v3708
        %v3721 = vpack.c.bf16 %v3711, %v3710
        %v3722 = vpack.c.bf16 %v3713, %v3712
        %v3723 = vpack.c.bf16 %v3715, %v3714
        %v3725 = vsel %vm2635, %v3716, 0
        %3727 = vmatprep.subr.bf16.mxu0 0
        %3728 = vmatpush1.bf16.msra.mxu0 %v3204
        %3729 = vmatprep.subr.bf16.mxu0 0
        %3730 = vmatpush1.bf16.msra.mxu0 0
        %3731 = vmatprep.subr.bf16.mxu0 0
        %3732 = vmatpush1.bf16.msra.mxu0 0
        %3733 = vmatprep.subr.bf16.mxu0 0
        %3734 = vmatpush1.bf16.msra.mxu0 0
        %3735 = vmatprep.subr.bf16.mxu0 0
        %3736 = vmatpush1.bf16.msra.mxu0 0
        %3737 = vmatprep.subr.bf16.mxu0 0
        %3738 = vmatpush1.bf16.msra.mxu0 0
        %3739 = vmatprep.subr.bf16.mxu0 0
        %3740 = vmatpush1.bf16.msra.mxu0 0
        %3741 = vmatprep.subr.bf16.mxu0 0
        %3742 = vmatpush1.bf16.msra.mxu0 0
        %3743 = vmatprep.subr.bf16.mxu0 0
        %3744 = vmatpush1.bf16.msra.mxu0 0
        %3745 = vmatprep.subr.bf16.mxu0 0
        %3746 = vmatpush1.bf16.msra.mxu0 0
        %3747 = vmatprep.subr.bf16.mxu0 0
        %3748 = vmatpush1.bf16.msra.mxu0 0
        %3749 = vmatprep.subr.bf16.mxu0 0
        %3750 = vmatpush1.bf16.msra.mxu0 0
        %3751 = vmatprep.subr.bf16.mxu0 0
        %3752 = vmatpush1.bf16.msra.mxu0 0
        %3753 = vmatprep.subr.bf16.mxu0 0
        %3754 = vmatpush1.bf16.msra.mxu0 0
        %3755 = vmatprep.subr.bf16.mxu0 0
        %3756 = vmatpush1.bf16.msra.mxu0 0
        %3757 = vmatprep.subr.bf16.mxu0 0
        %3758 = vmatpush1.bf16.msra.mxu0 0
        %3759 = vmatprep.mubr.bf16.mxu0 0
        %3760 = vmatmul.mubr.bf16.gmra.mrb[0].mxu0 %v3725
        %v3761 = vpop.f32.mrb[0].mxu0
        %v3762 = vadd.f32 0.0, %v3761
        %v3763 = vpop.f32.mrb[0].mxu0
        %v3764 = vpop.f32.mrb[0].mxu0
        %v3765 = vadd.f32 0.0, %v3764
        %v3766 = vpop.f32.mrb[0].mxu0
        %3767 = vdwg.mxu0
        %v3769 = vsel %vm2635, %v3717, 0
        %3771 = vmatprep.subr.bf16.mxu0 0
        %3772 = vmatpush1.bf16.msra.mxu0 %v3205
        %3773 = vmatprep.subr.bf16.mxu0 0
        %3774 = vmatpush1.bf16.msra.mxu0 0
        %3775 = vmatprep.subr.bf16.mxu0 0
        %3776 = vmatpush1.bf16.msra.mxu0 0
        %3777 = vmatprep.subr.bf16.mxu0 0
        %3778 = vmatpush1.bf16.msra.mxu0 0
        %3779 = vmatprep.subr.bf16.mxu0 0
        %3780 = vmatpush1.bf16.msra.mxu0 0
        %3781 = vmatprep.subr.bf16.mxu0 0
        %3782 = vmatpush1.bf16.msra.mxu0 0
        %3783 = vmatprep.subr.bf16.mxu0 0
        %3784 = vmatpush1.bf16.msra.mxu0 0
        %3785 = vmatprep.subr.bf16.mxu0 0
        %3786 = vmatpush1.bf16.msra.mxu0 0
        %3787 = vmatprep.subr.bf16.mxu0 0
        %3788 = vmatpush1.bf16.msra.mxu0 0
        %3789 = vmatprep.subr.bf16.mxu0 0
        %3790 = vmatpush1.bf16.msra.mxu0 0
        %3791 = vmatprep.subr.bf16.mxu0 0
        %3792 = vmatpush1.bf16.msra.mxu0 0
        %3793 = vmatprep.subr.bf16.mxu0 0
        %3794 = vmatpush1.bf16.msra.mxu0 0
        %3795 = vmatprep.subr.bf16.mxu0 0
        %3796 = vmatpush1.bf16.msra.mxu0 0
        %3797 = vmatprep.subr.bf16.mxu0 0
        %3798 = vmatpush1.bf16.msra.mxu0 0
        %3799 = vmatprep.subr.bf16.mxu0 0
        %3800 = vmatpush1.bf16.msra.mxu0 0
        %3801 = vmatprep.subr.bf16.mxu0 0
        %3802 = vmatpush1.bf16.msra.mxu0 0
        %3803 = vmatprep.mubr.bf16.mxu0 0
        %3804 = vmatmul.mubr.bf16.gmra.mrb[0].mxu0 %v3769
        %v3805 = vpop.f32.mrb[0].mxu0
        %v3806 = vadd.f32 0.0, %v3805
        %v3807 = vpop.f32.mrb[0].mxu0
        %v3808 = vpop.f32.mrb[0].mxu0
        %v3809 = vadd.f32 0.0, %v3808
        %v3810 = vpop.f32.mrb[0].mxu0
        %3811 = vdwg.mxu0
        %v3813 = vsel %vm2635, %v3718, 0
        %3815 = vmatprep.subr.bf16.mxu0 0
        %3816 = vmatpush1.bf16.msra.mxu0 %v3206
        %3817 = vmatprep.subr.bf16.mxu0 0
        %3818 = vmatpush1.bf16.msra.mxu0 0
        %3819 = vmatprep.subr.bf16.mxu0 0
        %3820 = vmatpush1.bf16.msra.mxu0 0
        %3821 = vmatprep.subr.bf16.mxu0 0
        %3822 = vmatpush1.bf16.msra.mxu0 0
        %3823 = vmatprep.subr.bf16.mxu0 0
        %3824 = vmatpush1.bf16.msra.mxu0 0
        %3825 = vmatprep.subr.bf16.mxu0 0
        %3826 = vmatpush1.bf16.msra.mxu0 0
        %3827 = vmatprep.subr.bf16.mxu0 0
        %3828 = vmatpush1.bf16.msra.mxu0 0
        %3829 = vmatprep.subr.bf16.mxu0 0
        %3830 = vmatpush1.bf16.msra.mxu0 0
        %3831 = vmatprep.subr.bf16.mxu0 0
        %3832 = vmatpush1.bf16.msra.mxu0 0
        %3833 = vmatprep.subr.bf16.mxu0 0
        %3834 = vmatpush1.bf16.msra.mxu0 0
        %3835 = vmatprep.subr.bf16.mxu0 0
        %3836 = vmatpush1.bf16.msra.mxu0 0
        %3837 = vmatprep.subr.bf16.mxu0 0
        %3838 = vmatpush1.bf16.msra.mxu0 0
        %3839 = vmatprep.subr.bf16.mxu0 0
        %3840 = vmatpush1.bf16.msra.mxu0 0
        %3841 = vmatprep.subr.bf16.mxu0 0
        %3842 = vmatpush1.bf16.msra.mxu0 0
        %3843 = vmatprep.subr.bf16.mxu0 0
        %3844 = vmatpush1.bf16.msra.mxu0 0
        %3845 = vmatprep.subr.bf16.mxu0 0
        %3846 = vmatpush1.bf16.msra.mxu0 0
        %3847 = vmatprep.mubr.bf16.mxu0 0
        %3848 = vmatmul.mubr.bf16.gmra.mrb[0].mxu0 %v3813
        %v3849 = vpop.f32.mrb[0].mxu0
        %v3850 = vadd.f32 0.0, %v3849
        %v3851 = vpop.f32.mrb[0].mxu0
        %v3852 = vpop.f32.mrb[0].mxu0
        %v3853 = vadd.f32 0.0, %v3852
        %v3854 = vpop.f32.mrb[0].mxu0
        %3855 = vdwg.mxu0
        %v3857 = vsel %vm2635, %v3719, 0
        %3859 = vmatprep.subr.bf16.mxu0 0
        %3860 = vmatpush1.bf16.msra.mxu0 %v3207
        %3861 = vmatprep.subr.bf16.mxu0 0
        %3862 = vmatpush1.bf16.msra.mxu0 0
        %3863 = vmatprep.subr.bf16.mxu0 0
        %3864 = vmatpush1.bf16.msra.mxu0 0
        %3865 = vmatprep.subr.bf16.mxu0 0
        %3866 = vmatpush1.bf16.msra.mxu0 0
        %3867 = vmatprep.subr.bf16.mxu0 0
        %3868 = vmatpush1.bf16.msra.mxu0 0
        %3869 = vmatprep.subr.bf16.mxu0 0
        %3870 = vmatpush1.bf16.msra.mxu0 0
        %3871 = vmatprep.subr.bf16.mxu0 0
        %3872 = vmatpush1.bf16.msra.mxu0 0
        %3873 = vmatprep.subr.bf16.mxu0 0
        %3874 = vmatpush1.bf16.msra.mxu0 0
        %3875 = vmatprep.subr.bf16.mxu0 0
        %3876 = vmatpush1.bf16.msra.mxu0 0
        %3877 = vmatprep.subr.bf16.mxu0 0
        %3878 = vmatpush1.bf16.msra.mxu0 0
        %3879 = vmatprep.subr.bf16.mxu0 0
        %3880 = vmatpush1.bf16.msra.mxu0 0
        %3881 = vmatprep.subr.bf16.mxu0 0
        %3882 = vmatpush1.bf16.msra.mxu0 0
        %3883 = vmatprep.subr.bf16.mxu0 0
        %3884 = vmatpush1.bf16.msra.mxu0 0
        %3885 = vmatprep.subr.bf16.mxu0 0
        %3886 = vmatpush1.bf16.msra.mxu0 0
        %3887 = vmatprep.subr.bf16.mxu0 0
        %3888 = vmatpush1.bf16.msra.mxu0 0
        %3889 = vmatprep.subr.bf16.mxu0 0
        %3890 = vmatpush1.bf16.msra.mxu0 0
        %3891 = vmatprep.mubr.bf16.mxu0 0
        %3892 = vmatmul.mubr.bf16.gmra.mrb[0].mxu0 %v3857
        %v3893 = vpop.f32.mrb[0].mxu0
        %v3894 = vadd.f32 0.0, %v3893
        %v3895 = vpop.f32.mrb[0].mxu0
        %v3896 = vpop.f32.mrb[0].mxu0
        %v3897 = vadd.f32 0.0, %v3896
        %v3898 = vpop.f32.mrb[0].mxu0
        %3899 = vdwg.mxu0
        %v3901 = vsel %vm2635, %v3720, 0
        %3903 = vmatprep.subr.bf16.mxu0 0
        %3904 = vmatpush1.bf16.msra.mxu0 %v3208
        %3905 = vmatprep.subr.bf16.mxu0 0
        %3906 = vmatpush1.bf16.msra.mxu0 0
        %3907 = vmatprep.subr.bf16.mxu0 0
        %3908 = vmatpush1.bf16.msra.mxu0 0
        %3909 = vmatprep.subr.bf16.mxu0 0
        %3910 = vmatpush1.bf16.msra.mxu0 0
        %3911 = vmatprep.subr.bf16.mxu0 0
        %3912 = vmatpush1.bf16.msra.mxu0 0
        %3913 = vmatprep.subr.bf16.mxu0 0
        %3914 = vmatpush1.bf16.msra.mxu0 0
        %3915 = vmatprep.subr.bf16.mxu0 0
        %3916 = vmatpush1.bf16.msra.mxu0 0
        %3917 = vmatprep.subr.bf16.mxu0 0
        %3918 = vmatpush1.bf16.msra.mxu0 0
        %3919 = vmatprep.subr.bf16.mxu0 0
        %3920 = vmatpush1.bf16.msra.mxu0 0
        %3921 = vmatprep.subr.bf16.mxu0 0
        %3922 = vmatpush1.bf16.msra.mxu0 0
        %3923 = vmatprep.subr.bf16.mxu0 0
        %3924 = vmatpush1.bf16.msra.mxu0 0
        %3925 = vmatprep.subr.bf16.mxu0 0
        %3926 = vmatpush1.bf16.msra.mxu0 0
        %3927 = vmatprep.subr.bf16.mxu0 0
        %3928 = vmatpush1.bf16.msra.mxu0 0
        %3929 = vmatprep.subr.bf16.mxu0 0
        %3930 = vmatpush1.bf16.msra.mxu0 0
        %3931 = vmatprep.subr.bf16.mxu0 0
        %3932 = vmatpush1.bf16.msra.mxu0 0
        %3933 = vmatprep.subr.bf16.mxu0 0
        %3934 = vmatpush1.bf16.msra.mxu0 0
        %3935 = vmatprep.mubr.bf16.mxu0 0
        %3936 = vmatmul.mubr.bf16.gmra.mrb[0].mxu0 %v3901
        %v3937 = vpop.f32.mrb[0].mxu0
        %v3938 = vadd.f32 0.0, %v3937
        %v3939 = vpop.f32.mrb[0].mxu0
        %v3940 = vpop.f32.mrb[0].mxu0
        %v3941 = vadd.f32 0.0, %v3940
        %v3942 = vpop.f32.mrb[0].mxu0
        %3943 = vdwg.mxu0
        %v3945 = vsel %vm2635, %v3721, 0
        %3947 = vmatprep.subr.bf16.mxu0 0
        %3948 = vmatpush1.bf16.msra.mxu0 %v3209
        %3949 = vmatprep.subr.bf16.mxu0 0
        %3950 = vmatpush1.bf16.msra.mxu0 0
        %3951 = vmatprep.subr.bf16.mxu0 0
        %3952 = vmatpush1.bf16.msra.mxu0 0
        %3953 = vmatprep.subr.bf16.mxu0 0
        %3954 = vmatpush1.bf16.msra.mxu0 0
        %3955 = vmatprep.subr.bf16.mxu0 0
        %3956 = vmatpush1.bf16.msra.mxu0 0
        %3957 = vmatprep.subr.bf16.mxu0 0
        %3958 = vmatpush1.bf16.msra.mxu0 0
        %3959 = vmatprep.subr.bf16.mxu0 0
        %3960 = vmatpush1.bf16.msra.mxu0 0
        %3961 = vmatprep.subr.bf16.mxu0 0
        %3962 = vmatpush1.bf16.msra.mxu0 0
        %3963 = vmatprep.subr.bf16.mxu0 0
        %3964 = vmatpush1.bf16.msra.mxu0 0
        %3965 = vmatprep.subr.bf16.mxu0 0
        %3966 = vmatpush1.bf16.msra.mxu0 0
        %3967 = vmatprep.subr.bf16.mxu0 0
        %3968 = vmatpush1.bf16.msra.mxu0 0
        %3969 = vmatprep.subr.bf16.mxu0 0
        %3970 = vmatpush1.bf16.msra.mxu0 0
        %3971 = vmatprep.subr.bf16.mxu0 0
        %3972 = vmatpush1.bf16.msra.mxu0 0
        %3973 = vmatprep.subr.bf16.mxu0 0
        %3974 = vmatpush1.bf16.msra.mxu0 0
        %3975 = vmatprep.subr.bf16.mxu0 0
        %3976 = vmatpush1.bf16.msra.mxu0 0
        %3977 = vmatprep.subr.bf16.mxu0 0
        %3978 = vmatpush1.bf16.msra.mxu0 0
        %3979 = vmatprep.mubr.bf16.mxu0 0
        %3980 = vmatmul.mubr.bf16.gmra.mrb[0].mxu0 %v3945
        %v3981 = vpop.f32.mrb[0].mxu0
        %v3982 = vadd.f32 0.0, %v3981
        %v3983 = vpop.f32.mrb[0].mxu0
        %v3984 = vpop.f32.mrb[0].mxu0
        %v3985 = vadd.f32 0.0, %v3984
        %v3986 = vpop.f32.mrb[0].mxu0
        %3987 = vdwg.mxu0
        %v3989 = vsel %vm2635, %v3722, 0
        %3991 = vmatprep.subr.bf16.mxu0 0
        %3992 = vmatpush1.bf16.msra.mxu0 %v3210
        %3993 = vmatprep.subr.bf16.mxu0 0
        %3994 = vmatpush1.bf16.msra.mxu0 0
        %3995 = vmatprep.subr.bf16.mxu0 0
        %3996 = vmatpush1.bf16.msra.mxu0 0
        %3997 = vmatprep.subr.bf16.mxu0 0
        %3998 = vmatpush1.bf16.msra.mxu0 0
        %3999 = vmatprep.subr.bf16.mxu0 0
        %4000 = vmatpush1.bf16.msra.mxu0 0
        %4001 = vmatprep.subr.bf16.mxu0 0
        %4002 = vmatpush1.bf16.msra.mxu0 0
        %4003 = vmatprep.subr.bf16.mxu0 0
        %4004 = vmatpush1.bf16.msra.mxu0 0
        %4005 = vmatprep.subr.bf16.mxu0 0
        %4006 = vmatpush1.bf16.msra.mxu0 0
        %4007 = vmatprep.subr.bf16.mxu0 0
        %4008 = vmatpush1.bf16.msra.mxu0 0
        %4009 = vmatprep.subr.bf16.mxu0 0
        %4010 = vmatpush1.bf16.msra.mxu0 0
        %4011 = vmatprep.subr.bf16.mxu0 0
        %4012 = vmatpush1.bf16.msra.mxu0 0
        %4013 = vmatprep.subr.bf16.mxu0 0
        %4014 = vmatpush1.bf16.msra.mxu0 0
        %4015 = vmatprep.subr.bf16.mxu0 0
        %4016 = vmatpush1.bf16.msra.mxu0 0
        %4017 = vmatprep.subr.bf16.mxu0 0
        %4018 = vmatpush1.bf16.msra.mxu0 0
        %4019 = vmatprep.subr.bf16.mxu0 0
        %4020 = vmatpush1.bf16.msra.mxu0 0
        %4021 = vmatprep.subr.bf16.mxu0 0
        %4022 = vmatpush1.bf16.msra.mxu0 0
        %4023 = vmatprep.mubr.bf16.mxu0 0
        %4024 = vmatmul.mubr.bf16.gmra.mrb[0].mxu0 %v3989
        %v4025 = vpop.f32.mrb[0].mxu0
        %v4026 = vadd.f32 0.0, %v4025
        %v4027 = vpop.f32.mrb[0].mxu0
        %v4028 = vpop.f32.mrb[0].mxu0
        %v4029 = vadd.f32 0.0, %v4028
        %v4030 = vpop.f32.mrb[0].mxu0
        %4031 = vdwg.mxu0
        %v4033 = vsel %vm2635, %v3723, 0
        %4035 = vmatprep.subr.bf16.mxu0 0
        %4036 = vmatpush1.bf16.msra.mxu0 %v3211
        %4037 = vmatprep.subr.bf16.mxu0 0
        %4038 = vmatpush1.bf16.msra.mxu0 0
        %4039 = vmatprep.subr.bf16.mxu0 0
        %4040 = vmatpush1.bf16.msra.mxu0 0
        %4041 = vmatprep.subr.bf16.mxu0 0
        %4042 = vmatpush1.bf16.msra.mxu0 0
        %4043 = vmatprep.subr.bf16.mxu0 0
        %4044 = vmatpush1.bf16.msra.mxu0 0
        %4045 = vmatprep.subr.bf16.mxu0 0
        %4046 = vmatpush1.bf16.msra.mxu0 0
        %4047 = vmatprep.subr.bf16.mxu0 0
        %4048 = vmatpush1.bf16.msra.mxu0 0
        %4049 = vmatprep.subr.bf16.mxu0 0
        %4050 = vmatpush1.bf16.msra.mxu0 0
        %4051 = vmatprep.subr.bf16.mxu0 0
        %4052 = vmatpush1.bf16.msra.mxu0 0
        %4053 = vmatprep.subr.bf16.mxu0 0
        %4054 = vmatpush1.bf16.msra.mxu0 0
        %4055 = vmatprep.subr.bf16.mxu0 0
        %4056 = vmatpush1.bf16.msra.mxu0 0
        %4057 = vmatprep.subr.bf16.mxu0 0
        %4058 = vmatpush1.bf16.msra.mxu0 0
        %4059 = vmatprep.subr.bf16.mxu0 0
        %4060 = vmatpush1.bf16.msra.mxu0 0
        %4061 = vmatprep.subr.bf16.mxu0 0
        %4062 = vmatpush1.bf16.msra.mxu0 0
        %4063 = vmatprep.subr.bf16.mxu0 0
        %4064 = vmatpush1.bf16.msra.mxu0 0
        %4065 = vmatprep.subr.bf16.mxu0 0
        %4066 = vmatpush1.bf16.msra.mxu0 0
        %4067 = vmatprep.mubr.bf16.mxu0 0
        %4068 = vmatmul.mubr.bf16.gmra.mrb[0].mxu0 %v4033
        %v4069 = vpop.f32.mrb[0].mxu0
        %v4070 = vadd.f32 0.0, %v4069
        %v4071 = vpop.f32.mrb[0].mxu0
        %v4072 = vpop.f32.mrb[0].mxu0
        %v4073 = vadd.f32 0.0, %v4072
        %v4074 = vpop.f32.mrb[0].mxu0
        %4075 = vdwg.mxu0
        %v4076 = vpack.c.bf16 %v2861, %v2858
        %v4077 = vpack.c.bf16 %v3765, %v3762
        %v4078 = vpack.c.bf16 %v2905, %v2902
        %v4079 = vpack.c.bf16 %v3809, %v3806
        %v4080 = vpack.c.bf16 %v2949, %v2946
        %v4081 = vpack.c.bf16 %v3853, %v3850
        %v4082 = vpack.c.bf16 %v2993, %v2990
        %v4083 = vpack.c.bf16 %v3897, %v3894
        %v4084 = vpack.c.bf16 %v3037, %v3034
        %v4085 = vpack.c.bf16 %v3941, %v3938
        %v4086 = vpack.c.bf16 %v3081, %v3078
        %v4087 = vpack.c.bf16 %v3985, %v3982
        %v4088 = vpack.c.bf16 %v3125, %v3122
        %v4089 = vpack.c.bf16 %v4029, %v4026
        %v4090 = vpack.c.bf16 %v3169, %v3166
        %v4091 = vpack.c.bf16 %v4073, %v4070
        %v4092 = vld [vmem:[%s604] sm:$0xff]
        %v4093 = vld [vmem:[%s604 + $0x8] sm:$0xff]
        %v4094 = vld [vmem:[%s604 + $0x10] sm:$0xff]
        %v4095 = vld [vmem:[%s604 + $0x18] sm:$0xff]
        %v4096 = vld [vmem:[%s604 + $0x20] sm:$0xff]
        %v4097 = vld [vmem:[%s604 + $0x28] sm:$0xff]
        %v4098 = vld [vmem:[%s604 + $0x30] sm:$0xff]
        %v4099 = vld [vmem:[%s604 + $0x38] sm:$0xff]
        %v4100 = vld [vmem:[%s604 + $0x40] sm:$0xff]
        %v4101 = vld [vmem:[%s604 + $0x48] sm:$0xff]
        %v4102 = vld [vmem:[%s604 + $0x50] sm:$0xff]
        %v4103 = vld [vmem:[%s604 + $0x58] sm:$0xff]
        %v4104 = vld [vmem:[%s604 + $0x60] sm:$0xff]
        %v4105 = vld [vmem:[%s604 + $0x68] sm:$0xff]
        %v4106 = vld [vmem:[%s604 + $0x70] sm:$0xff]
        %v4107 = vld [vmem:[%s604 + $0x78] sm:$0xff]
        %v4108 = vld [vmem:[%s604 + $0x80] sm:$0xff]
        %v4109 = vld [vmem:[%s604 + $0x88] sm:$0xff]
        %v4110 = vld [vmem:[%s604 + $0x90] sm:$0xff]
        %v4111 = vld [vmem:[%s604 + $0x98] sm:$0xff]
        %v4112 = vld [vmem:[%s604 + $0xa0] sm:$0xff]
        %v4113 = vld [vmem:[%s604 + $0xa8] sm:$0xff]
        %v4114 = vld [vmem:[%s604 + $0xb0] sm:$0xff]
        %v4115 = vld [vmem:[%s604 + $0xb8] sm:$0xff]
        %v4116 = vld [vmem:[%s604 + $0xc0] sm:$0xff]
        %v4117 = vld [vmem:[%s604 + $0xc8] sm:$0xff]
        %v4118 = vld [vmem:[%s604 + $0xd0] sm:$0xff]
        %v4119 = vld [vmem:[%s604 + $0xd8] sm:$0xff]
        %v4120 = vld [vmem:[%s604 + $0xe0] sm:$0xff]
        %v4121 = vld [vmem:[%s604 + $0xe8] sm:$0xff]
        %v4122 = vld [vmem:[%s604 + $0xf0] sm:$0xff]
        %v4123 = vld [vmem:[%s604 + $0xf8] sm:$0xff]
        %v4156 = vunpack.c.l.b16 %v4092
        %v4157 = vunpack.c.h.b16 %v4092
        %v4158 = vunpack.c.l.b16 %v4093
        %v4159 = vunpack.c.h.b16 %v4093
        %v4160 = vunpack.c.l.b16 %v4094
        %v4161 = vunpack.c.h.b16 %v4094
        %v4162 = vunpack.c.l.b16 %v4095
        %v4163 = vunpack.c.h.b16 %v4095
        %v4164 = vunpack.c.l.b16 %v4096
        %v4165 = vunpack.c.h.b16 %v4096
        %v4166 = vunpack.c.l.b16 %v4097
        %v4167 = vunpack.c.h.b16 %v4097
        %v4168 = vunpack.c.l.b16 %v4098
        %v4169 = vunpack.c.h.b16 %v4098
        %v4170 = vunpack.c.l.b16 %v4099
        %v4171 = vunpack.c.h.b16 %v4099
        %v4172 = vunpack.c.l.b16 %v4100
        %v4173 = vunpack.c.h.b16 %v4100
        %v4174 = vunpack.c.l.b16 %v4101
        %v4175 = vunpack.c.h.b16 %v4101
        %v4176 = vunpack.c.l.b16 %v4102
        %v4177 = vunpack.c.h.b16 %v4102
        %v4178 = vunpack.c.l.b16 %v4103
        %v4179 = vunpack.c.h.b16 %v4103
        %v4180 = vunpack.c.l.b16 %v4104
        %v4181 = vunpack.c.h.b16 %v4104
        %v4182 = vunpack.c.l.b16 %v4105
        %v4183 = vunpack.c.h.b16 %v4105
        %v4184 = vunpack.c.l.b16 %v4106
        %v4185 = vunpack.c.h.b16 %v4106
        %v4186 = vunpack.c.l.b16 %v4107
        %v4187 = vunpack.c.h.b16 %v4107
        %v4188 = vunpack.c.l.b16 %v4108
        %v4189 = vunpack.c.h.b16 %v4108
        %v4190 = vunpack.c.l.b16 %v4109
        %v4191 = vunpack.c.h.b16 %v4109
        %v4192 = vunpack.c.l.b16 %v4110
        %v4193 = vunpack.c.h.b16 %v4110
        %v4194 = vunpack.c.l.b16 %v4111
        %v4195 = vunpack.c.h.b16 %v4111
        %v4196 = vunpack.c.l.b16 %v4112
        %v4197 = vunpack.c.h.b16 %v4112
        %v4198 = vunpack.c.l.b16 %v4113
        %v4199 = vunpack.c.h.b16 %v4113
        %v4200 = vunpack.c.l.b16 %v4114
        %v4201 = vunpack.c.h.b16 %v4114
        %v4202 = vunpack.c.l.b16 %v4115
        %v4203 = vunpack.c.h.b16 %v4115
        %v4204 = vunpack.c.l.b16 %v4116
        %v4205 = vunpack.c.h.b16 %v4116
        %v4206 = vunpack.c.l.b16 %v4117
        %v4207 = vunpack.c.h.b16 %v4117
        %v4208 = vunpack.c.l.b16 %v4118
        %v4209 = vunpack.c.h.b16 %v4118
        %v4210 = vunpack.c.l.b16 %v4119
        %v4211 = vunpack.c.h.b16 %v4119
        %v4212 = vunpack.c.l.b16 %v4120
        %v4213 = vunpack.c.h.b16 %v4120
        %v4214 = vunpack.c.l.b16 %v4121
        %v4215 = vunpack.c.h.b16 %v4121
        %v4216 = vunpack.c.l.b16 %v4122
        %v4217 = vunpack.c.h.b16 %v4122
        %v4218 = vunpack.c.l.b16 %v4123
        %v4219 = vunpack.c.h.b16 %v4123
        %v4220 = vpack.c.b16 %v4158, %v4156
        %v4221 = vpack.c.b16 %v4159, %v4157
        %v4222 = vpack.c.b16 %v4162, %v4160
        %v4223 = vpack.c.b16 %v4163, %v4161
        %v4224 = vpack.c.b16 %v4166, %v4164
        %v4225 = vpack.c.b16 %v4167, %v4165
        %v4226 = vpack.c.b16 %v4170, %v4168
        %v4227 = vpack.c.b16 %v4171, %v4169
        %v4228 = vpack.c.b16 %v4174, %v4172
        %v4229 = vpack.c.b16 %v4175, %v4173
        %v4230 = vpack.c.b16 %v4178, %v4176
        %v4231 = vpack.c.b16 %v4179, %v4177
        %v4232 = vpack.c.b16 %v4182, %v4180
        %v4233 = vpack.c.b16 %v4183, %v4181
        %v4234 = vpack.c.b16 %v4186, %v4184
        %v4235 = vpack.c.b16 %v4187, %v4185
        %v4236 = vpack.c.b16 %v4190, %v4188
        %v4237 = vpack.c.b16 %v4191, %v4189
        %v4238 = vpack.c.b16 %v4194, %v4192
        %v4239 = vpack.c.b16 %v4195, %v4193
        %v4240 = vpack.c.b16 %v4198, %v4196
        %v4241 = vpack.c.b16 %v4199, %v4197
        %v4242 = vpack.c.b16 %v4202, %v4200
        %v4243 = vpack.c.b16 %v4203, %v4201
        %v4244 = vpack.c.b16 %v4206, %v4204
        %v4245 = vpack.c.b16 %v4207, %v4205
        %v4246 = vpack.c.b16 %v4210, %v4208
        %v4247 = vpack.c.b16 %v4211, %v4209
        %v4248 = vpack.c.b16 %v4214, %v4212
        %v4249 = vpack.c.b16 %v4215, %v4213
        %v4250 = vpack.c.b16 %v4218, %v4216
        %v4251 = vpack.c.b16 %v4219, %v4217
        %4284 = vmatprep.subr.bf16.mxu0 %v4221
        %4285 = vmatpush1.bf16.msra.mxu0 %v4220
        %4286 = vmatprep.subr.bf16.mxu0 %v4223
        %4287 = vmatpush1.bf16.msra.mxu0 %v4222
        %4288 = vmatprep.subr.bf16.mxu0 %v4225
        %4289 = vmatpush1.bf16.msra.mxu0 %v4224
        %4290 = vmatprep.subr.bf16.mxu0 %v4227
        %4291 = vmatpush1.bf16.msra.mxu0 %v4226
        %4292 = vmatprep.subr.bf16.mxu0 %v4229
        %4293 = vmatpush1.bf16.msra.mxu0 %v4228
        %4294 = vmatprep.subr.bf16.mxu0 %v4231
        %4295 = vmatpush1.bf16.msra.mxu0 %v4230
        %4296 = vmatprep.subr.bf16.mxu0 %v4233
        %4297 = vmatpush1.bf16.msra.mxu0 %v4232
        %4298 = vmatprep.subr.bf16.mxu0 %v4235
        %4299 = vmatpush1.bf16.msra.mxu0 %v4234
        %4300 = vmatprep.subr.bf16.mxu0 %v4237
        %4301 = vmatpush1.bf16.msra.mxu0 %v4236
        %4302 = vmatprep.subr.bf16.mxu0 %v4239
        %4303 = vmatpush1.bf16.msra.mxu0 %v4238
        %4304 = vmatprep.subr.bf16.mxu0 %v4241
        %4305 = vmatpush1.bf16.msra.mxu0 %v4240
        %4306 = vmatprep.subr.bf16.mxu0 %v4243
        %4307 = vmatpush1.bf16.msra.mxu0 %v4242
        %4308 = vmatprep.subr.bf16.mxu0 %v4245
        %4309 = vmatpush1.bf16.msra.mxu0 %v4244
        %4310 = vmatprep.subr.bf16.mxu0 %v4247
        %4311 = vmatpush1.bf16.msra.mxu0 %v4246
        %4312 = vmatprep.subr.bf16.mxu0 %v4249
        %4313 = vmatpush1.bf16.msra.mxu0 %v4248
        %4314 = vmatprep.subr.bf16.mxu0 %v4251
        %4315 = vmatpush1.bf16.msra.mxu0 %v4250
        %4316 = vmatprep.mubr.bf16.mxu0 %v4077
        %4317 = vmatmul.mubr.bf16.gmra.mrb[0].mxu0 %v4076
        %v4318 = vpop.f32.mrb[0].mxu0
        %v4319 = vadd.f32 0.0, %v4318
        %v4320 = vpop.f32.mrb[0].mxu0
        %v4321 = vadd.f32 0.0, %v4320
        %v4322 = vpop.f32.mrb[0].mxu0
        %v4323 = vadd.f32 0.0, %v4322
        %v4324 = vpop.f32.mrb[0].mxu0
        %v4325 = vadd.f32 0.0, %v4324
        %4326 = vmatprep.mubr.bf16.mxu0 %v4079
        %4327 = vmatmul.mubr.bf16.gmra.mrb[0].mxu0 %v4078
        %v4328 = vpop.f32.mrb[0].mxu0
        %v4329 = vadd.f32 0.0, %v4328
        %v4330 = vpop.f32.mrb[0].mxu0
        %v4331 = vadd.f32 0.0, %v4330
        %v4332 = vpop.f32.mrb[0].mxu0
        %v4333 = vadd.f32 0.0, %v4332
        %v4334 = vpop.f32.mrb[0].mxu0
        %v4335 = vadd.f32 0.0, %v4334
        %4336 = vmatprep.mubr.bf16.mxu0 %v4081
        %4337 = vmatmul.mubr.bf16.gmra.mrb[0].mxu0 %v4080
        %v4338 = vpop.f32.mrb[0].mxu0
        %v4339 = vadd.f32 0.0, %v4338
        %v4340 = vpop.f32.mrb[0].mxu0
        %v4341 = vadd.f32 0.0, %v4340
        %v4342 = vpop.f32.mrb[0].mxu0
        %v4343 = vadd.f32 0.0, %v4342
        %v4344 = vpop.f32.mrb[0].mxu0
        %v4345 = vadd.f32 0.0, %v4344
        %4346 = vmatprep.mubr.bf16.mxu0 %v4083
        %4347 = vmatmul.mubr.bf16.gmra.mrb[0].mxu0 %v4082
        %v4348 = vpop.f32.mrb[0].mxu0
        %v4349 = vadd.f32 0.0, %v4348
        %v4350 = vpop.f32.mrb[0].mxu0
        %v4351 = vadd.f32 0.0, %v4350
        %v4352 = vpop.f32.mrb[0].mxu0
        %v4353 = vadd.f32 0.0, %v4352
        %v4354 = vpop.f32.mrb[0].mxu0
        %v4355 = vadd.f32 0.0, %v4354
        %4356 = vmatprep.mubr.bf16.mxu0 %v4085
        %4357 = vmatmul.mubr.bf16.gmra.mrb[0].mxu0 %v4084
        %v4358 = vpop.f32.mrb[0].mxu0
        %v4359 = vadd.f32 0.0, %v4358
        %v4360 = vpop.f32.mrb[0].mxu0
        %v4361 = vadd.f32 0.0, %v4360
        %v4362 = vpop.f32.mrb[0].mxu0
        %v4363 = vadd.f32 0.0, %v4362
        %v4364 = vpop.f32.mrb[0].mxu0
        %v4365 = vadd.f32 0.0, %v4364
        %4366 = vmatprep.mubr.bf16.mxu0 %v4087
        %4367 = vmatmul.mubr.bf16.gmra.mrb[0].mxu0 %v4086
        %v4368 = vpop.f32.mrb[0].mxu0
        %v4369 = vadd.f32 0.0, %v4368
        %v4370 = vpop.f32.mrb[0].mxu0
        %v4371 = vadd.f32 0.0, %v4370
        %v4372 = vpop.f32.mrb[0].mxu0
        %v4373 = vadd.f32 0.0, %v4372
        %v4374 = vpop.f32.mrb[0].mxu0
        %v4375 = vadd.f32 0.0, %v4374
        %4376 = vmatprep.mubr.bf16.mxu0 %v4089
        %4377 = vmatmul.mubr.bf16.gmra.mrb[0].mxu0 %v4088
        %v4378 = vpop.f32.mrb[0].mxu0
        %v4379 = vadd.f32 0.0, %v4378
        %v4380 = vpop.f32.mrb[0].mxu0
        %v4381 = vadd.f32 0.0, %v4380
        %v4382 = vpop.f32.mrb[0].mxu0
        %v4383 = vadd.f32 0.0, %v4382
        %v4384 = vpop.f32.mrb[0].mxu0
        %v4385 = vadd.f32 0.0, %v4384
        %4386 = vmatprep.mubr.bf16.mxu0 %v4091
        %4387 = vmatmul.mubr.bf16.gmra.mrb[0].mxu0 %v4090
        %v4388 = vpop.f32.mrb[0].mxu0
        %v4389 = vadd.f32 0.0, %v4388
        %v4390 = vpop.f32.mrb[0].mxu0
        %v4391 = vadd.f32 0.0, %v4390
        %v4392 = vpop.f32.mrb[0].mxu0
        %v4393 = vadd.f32 0.0, %v4392
        %v4394 = vpop.f32.mrb[0].mxu0
        %v4395 = vadd.f32 0.0, %v4394
        %4396 = vdwg.mxu0
        %v4397 = vadd.f32 %v918, %v4319
        %v4398 = vadd.f32 %v919, %v4321
        %v4399 = vadd.f32 %v920, %v4323
        %v4400 = vadd.f32 %v921, %v4325
        %v4401 = vadd.f32 %v922, %v4329
        %v4402 = vadd.f32 %v923, %v4331
        %v4403 = vadd.f32 %v924, %v4333
        %v4404 = vadd.f32 %v925, %v4335
        %v4405 = vadd.f32 %v926, %v4339
        %v4406 = vadd.f32 %v927, %v4341
        %v4407 = vadd.f32 %v928, %v4343
        %v4408 = vadd.f32 %v929, %v4345
        %v4409 = vadd.f32 %v930, %v4349
        %v4410 = vadd.f32 %v931, %v4351
        %v4411 = vadd.f32 %v932, %v4353
        %v4412 = vadd.f32 %v933, %v4355
        %v4413 = vadd.f32 %v934, %v4359
        %v4414 = vadd.f32 %v935, %v4361
        %v4415 = vadd.f32 %v936, %v4363
        %v4416 = vadd.f32 %v937, %v4365
        %v4417 = vadd.f32 %v938, %v4369
        %v4418 = vadd.f32 %v939, %v4371
        %v4419 = vadd.f32 %v940, %v4373
        %v4420 = vadd.f32 %v941, %v4375
        %v4421 = vadd.f32 %v942, %v4379
        %v4422 = vadd.f32 %v943, %v4381
        %v4423 = vadd.f32 %v944, %v4383
        %v4424 = vadd.f32 %v945, %v4385
        %v4425 = vadd.f32 %v946, %v4389
        %v4426 = vadd.f32 %v947, %v4391
        %v4427 = vadd.f32 %v948, %v4393
        %v4428 = vadd.f32 %v949, %v4395
        %v4429 = vld [vmem:[%s759] sm:$0x3]
        %v4431 = vlaneseq
        %v4432 = vshrl.u32 %v4431, 7
        %v4433 = vsub.s32 0, %v4432
        %v4434 = vrot.slane %v4429, %v4433
        %v4435 = vlaneseq
        %v4436 = vshrl.u32 %v4435, 7
        %v4437 = vsub.s32 1, %v4436
        %v4438 = vrot.slane %v4429, %v4437
        %v4441 = vadd.f32 %v4397, %v4434
        %v4442 = vadd.f32 %v4398, %v4438
        %v4443 = vadd.f32 %v4399, %v4434
        %v4444 = vadd.f32 %v4400, %v4438
        %v4445 = vadd.f32 %v4401, %v4434
        %v4446 = vadd.f32 %v4402, %v4438
        %v4447 = vadd.f32 %v4403, %v4434
        %v4448 = vadd.f32 %v4404, %v4438
        %v4449 = vadd.f32 %v4405, %v4434
        %v4450 = vadd.f32 %v4406, %v4438
        %v4451 = vadd.f32 %v4407, %v4434
        %v4452 = vadd.f32 %v4408, %v4438
        %v4453 = vadd.f32 %v4409, %v4434
        %v4454 = vadd.f32 %v4410, %v4438
        %v4455 = vadd.f32 %v4411, %v4434
        %v4456 = vadd.f32 %v4412, %v4438
        %v4457 = vadd.f32 %v4413, %v4434
        %v4458 = vadd.f32 %v4414, %v4438
        %v4459 = vadd.f32 %v4415, %v4434
        %v4460 = vadd.f32 %v4416, %v4438
        %v4461 = vadd.f32 %v4417, %v4434
        %v4462 = vadd.f32 %v4418, %v4438
        %v4463 = vadd.f32 %v4419, %v4434
        %v4464 = vadd.f32 %v4420, %v4438
        %v4465 = vadd.f32 %v4421, %v4434
        %v4466 = vadd.f32 %v4422, %v4438
        %v4467 = vadd.f32 %v4423, %v4434
        %v4468 = vadd.f32 %v4424, %v4438
        %v4469 = vadd.f32 %v4425, %v4434
        %v4470 = vadd.f32 %v4426, %v4438
        %v4471 = vadd.f32 %v4427, %v4434
        %v4472 = vadd.f32 %v4428, %v4438
        %v4473 = vld [vmem:[%s763] sm:$0x3]
        %v4474 = vld [vmem:[%s767] sm:$0x3]
        %v4475 = vadd.f32 %v4441, %v4442
        %4476 = vadd.xlane.f32.xlu0 %v4475
        %v4477 = vpop.xlane.xlu0 %4476
        %v4478 = vadd.f32 %v4443, %v4444
        %4479 = vadd.xlane.f32.xlu0 %v4478
        %v4480 = vpop.xlane.xlu0 %4479
        %v4481 = vadd.f32 %v4445, %v4446
        %4482 = vadd.xlane.f32.xlu0 %v4481
        %v4483 = vpop.xlane.xlu0 %4482
        %v4484 = vadd.f32 %v4447, %v4448
        %4485 = vadd.xlane.f32.xlu0 %v4484
        %v4486 = vpop.xlane.xlu0 %4485
        %v4487 = vadd.f32 %v4449, %v4450
        %4488 = vadd.xlane.f32.xlu0 %v4487
        %v4489 = vpop.xlane.xlu0 %4488
        %v4490 = vadd.f32 %v4451, %v4452
        %4491 = vadd.xlane.f32.xlu0 %v4490
        %v4492 = vpop.xlane.xlu0 %4491
        %v4493 = vadd.f32 %v4453, %v4454
        %4494 = vadd.xlane.f32.xlu0 %v4493
        %v4495 = vpop.xlane.xlu0 %4494
        %v4496 = vadd.f32 %v4455, %v4456
        %4497 = vadd.xlane.f32.xlu0 %v4496
        %v4498 = vpop.xlane.xlu0 %4497
        %v4499 = vadd.f32 %v4457, %v4458
        %4500 = vadd.xlane.f32.xlu0 %v4499
        %v4501 = vpop.xlane.xlu0 %4500
        %v4502 = vadd.f32 %v4459, %v4460
        %4503 = vadd.xlane.f32.xlu0 %v4502
        %v4504 = vpop.xlane.xlu0 %4503
        %v4505 = vadd.f32 %v4461, %v4462
        %4506 = vadd.xlane.f32.xlu0 %v4505
        %v4507 = vpop.xlane.xlu0 %4506
        %v4508 = vadd.f32 %v4463, %v4464
        %4509 = vadd.xlane.f32.xlu0 %v4508
        %v4510 = vpop.xlane.xlu0 %4509
        %v4511 = vadd.f32 %v4465, %v4466
        %4512 = vadd.xlane.f32.xlu0 %v4511
        %v4513 = vpop.xlane.xlu0 %4512
        %v4514 = vadd.f32 %v4467, %v4468
        %4515 = vadd.xlane.f32.xlu0 %v4514
        %v4516 = vpop.xlane.xlu0 %4515
        %v4517 = vadd.f32 %v4469, %v4470
        %4518 = vadd.xlane.f32.xlu0 %v4517
        %v4519 = vpop.xlane.xlu0 %4518
        %v4520 = vadd.f32 %v4471, %v4472
        %4521 = vadd.xlane.f32.xlu0 %v4520
        %v4522 = vpop.xlane.xlu0 %4521
        %v4523 = vmul.f32 %v4477, %v1000
        %v4524 = vmul.f32 %v4480, %v1000
        %v4525 = vmul.f32 %v4483, %v1000
        %v4526 = vmul.f32 %v4486, %v1000
        %v4527 = vmul.f32 %v4489, %v1000
        %v4528 = vmul.f32 %v4492, %v1000
        %v4529 = vmul.f32 %v4495, %v1000
        %v4530 = vmul.f32 %v4498, %v1000
        %v4531 = vmul.f32 %v4501, %v1000
        %v4532 = vmul.f32 %v4504, %v1000
        %v4533 = vmul.f32 %v4507, %v1000
        %v4534 = vmul.f32 %v4510, %v1000
        %v4535 = vmul.f32 %v4513, %v1000
        %v4536 = vmul.f32 %v4516, %v1000
        %v4537 = vmul.f32 %v4519, %v1000
        %v4538 = vmul.f32 %v4522, %v1000
        %v4539 = vsub.f32 %v4441, %v4523
        %v4540 = vsub.f32 %v4442, %v4523
        %v4541 = vsub.f32 %v4443, %v4524
        %v4542 = vsub.f32 %v4444, %v4524
        %v4543 = vsub.f32 %v4445, %v4525
        %v4544 = vsub.f32 %v4446, %v4525
        %v4545 = vsub.f32 %v4447, %v4526
        %v4546 = vsub.f32 %v4448, %v4526
        %v4547 = vsub.f32 %v4449, %v4527
        %v4548 = vsub.f32 %v4450, %v4527
        %v4549 = vsub.f32 %v4451, %v4528
        %v4550 = vsub.f32 %v4452, %v4528
        %v4551 = vsub.f32 %v4453, %v4529
        %v4552 = vsub.f32 %v4454, %v4529
        %v4553 = vsub.f32 %v4455, %v4530
        %v4554 = vsub.f32 %v4456, %v4530
        %v4555 = vsub.f32 %v4457, %v4531
        %v4556 = vsub.f32 %v4458, %v4531
        %v4557 = vsub.f32 %v4459, %v4532
        %v4558 = vsub.f32 %v4460, %v4532
        %v4559 = vsub.f32 %v4461, %v4533
        %v4560 = vsub.f32 %v4462, %v4533
        %v4561 = vsub.f32 %v4463, %v4534
        %v4562 = vsub.f32 %v4464, %v4534
        %v4563 = vsub.f32 %v4465, %v4535
        %v4564 = vsub.f32 %v4466, %v4535
        %v4565 = vsub.f32 %v4467, %v4536
        %v4566 = vsub.f32 %v4468, %v4536
        %v4567 = vsub.f32 %v4469, %v4537
        %v4568 = vsub.f32 %v4470, %v4537
        %v4569 = vsub.f32 %v4471, %v4538
        %v4570 = vsub.f32 %v4472, %v4538
        %v4571 = vmul.f32 %v4539, %v4539
        %v4572 = vmul.f32 %v4540, %v4540
        %v4573 = vmul.f32 %v4541, %v4541
        %v4574 = vmul.f32 %v4542, %v4542
        %v4575 = vmul.f32 %v4543, %v4543
        %v4576 = vmul.f32 %v4544, %v4544
        %v4577 = vmul.f32 %v4545, %v4545
        %v4578 = vmul.f32 %v4546, %v4546
        %v4579 = vmul.f32 %v4547, %v4547
        %v4580 = vmul.f32 %v4548, %v4548
        %v4581 = vmul.f32 %v4549, %v4549
        %v4582 = vmul.f32 %v4550, %v4550
        %v4583 = vmul.f32 %v4551, %v4551
        %v4584 = vmul.f32 %v4552, %v4552
        %v4585 = vmul.f32 %v4553, %v4553
        %v4586 = vmul.f32 %v4554, %v4554
        %v4587 = vmul.f32 %v4555, %v4555
        %v4588 = vmul.f32 %v4556, %v4556
        %v4589 = vmul.f32 %v4557, %v4557
        %v4590 = vmul.f32 %v4558, %v4558
        %v4591 = vmul.f32 %v4559, %v4559
        %v4592 = vmul.f32 %v4560, %v4560
        %v4593 = vmul.f32 %v4561, %v4561
        %v4594 = vmul.f32 %v4562, %v4562
        %v4595 = vmul.f32 %v4563, %v4563
        %v4596 = vmul.f32 %v4564, %v4564
        %v4597 = vmul.f32 %v4565, %v4565
        %v4598 = vmul.f32 %v4566, %v4566
        %v4599 = vmul.f32 %v4567, %v4567
        %v4600 = vmul.f32 %v4568, %v4568
        %v4601 = vmul.f32 %v4569, %v4569
        %v4602 = vmul.f32 %v4570, %v4570
        %v4603 = vadd.f32 %v4571, %v4572
        %4604 = vadd.xlane.f32.xlu0 %v4603
        %v4605 = vpop.xlane.xlu0 %4604
        %v4606 = vadd.f32 %v4573, %v4574
        %4607 = vadd.xlane.f32.xlu0 %v4606
        %v4608 = vpop.xlane.xlu0 %4607
        %v4609 = vadd.f32 %v4575, %v4576
        %4610 = vadd.xlane.f32.xlu0 %v4609
        %v4611 = vpop.xlane.xlu0 %4610
        %v4612 = vadd.f32 %v4577, %v4578
        %4613 = vadd.xlane.f32.xlu0 %v4612
        %v4614 = vpop.xlane.xlu0 %4613
        %v4615 = vadd.f32 %v4579, %v4580
        %4616 = vadd.xlane.f32.xlu0 %v4615
        %v4617 = vpop.xlane.xlu0 %4616
        %v4618 = vadd.f32 %v4581, %v4582
        %4619 = vadd.xlane.f32.xlu0 %v4618
        %v4620 = vpop.xlane.xlu0 %4619
        %v4621 = vadd.f32 %v4583, %v4584
        %4622 = vadd.xlane.f32.xlu0 %v4621
        %v4623 = vpop.xlane.xlu0 %4622
        %v4624 = vadd.f32 %v4585, %v4586
        %4625 = vadd.xlane.f32.xlu0 %v4624
        %v4626 = vpop.xlane.xlu0 %4625
        %v4627 = vadd.f32 %v4587, %v4588
        %4628 = vadd.xlane.f32.xlu0 %v4627
        %v4629 = vpop.xlane.xlu0 %4628
        %v4630 = vadd.f32 %v4589, %v4590
        %4631 = vadd.xlane.f32.xlu0 %v4630
        %v4632 = vpop.xlane.xlu0 %4631
        %v4633 = vadd.f32 %v4591, %v4592
        %4634 = vadd.xlane.f32.xlu0 %v4633
        %v4635 = vpop.xlane.xlu0 %4634
        %v4636 = vadd.f32 %v4593, %v4594
        %4637 = vadd.xlane.f32.xlu0 %v4636
        %v4638 = vpop.xlane.xlu0 %4637
        %v4639 = vadd.f32 %v4595, %v4596
        %4640 = vadd.xlane.f32.xlu0 %v4639
        %v4641 = vpop.xlane.xlu0 %4640
        %v4642 = vadd.f32 %v4597, %v4598
        %4643 = vadd.xlane.f32.xlu0 %v4642
        %v4644 = vpop.xlane.xlu0 %4643
        %v4645 = vadd.f32 %v4599, %v4600
        %4646 = vadd.xlane.f32.xlu0 %v4645
        %v4647 = vpop.xlane.xlu0 %4646
        %v4648 = vadd.f32 %v4601, %v4602
        %4649 = vadd.xlane.f32.xlu0 %v4648
        %v4650 = vpop.xlane.xlu0 %4649
        %v4651 = vmul.f32 %v4605, %v1000
        %v4652 = vmul.f32 %v4608, %v1000
        %v4653 = vmul.f32 %v4611, %v1000
        %v4654 = vmul.f32 %v4614, %v1000
        %v4655 = vmul.f32 %v4617, %v1000
        %v4656 = vmul.f32 %v4620, %v1000
        %v4657 = vmul.f32 %v4623, %v1000
        %v4658 = vmul.f32 %v4626, %v1000
        %v4659 = vmul.f32 %v4629, %v1000
        %v4660 = vmul.f32 %v4632, %v1000
        %v4661 = vmul.f32 %v4635, %v1000
        %v4662 = vmul.f32 %v4638, %v1000
        %v4663 = vmul.f32 %v4641, %v1000
        %v4664 = vmul.f32 %v4644, %v1000
        %v4665 = vmul.f32 %v4647, %v1000
        %v4666 = vmul.f32 %v4650, %v1000
        %v4667 = vadd.f32 %v4651, 1e-05
        %v4668 = vadd.f32 %v4652, 1e-05
        %v4669 = vadd.f32 %v4653, 1e-05
        %v4670 = vadd.f32 %v4654, 1e-05
        %v4671 = vadd.f32 %v4655, 1e-05
        %v4672 = vadd.f32 %v4656, 1e-05
        %v4673 = vadd.f32 %v4657, 1e-05
        %v4674 = vadd.f32 %v4658, 1e-05
        %v4675 = vadd.f32 %v4659, 1e-05
        %v4676 = vadd.f32 %v4660, 1e-05
        %v4677 = vadd.f32 %v4661, 1e-05
        %v4678 = vadd.f32 %v4662, 1e-05
        %v4679 = vadd.f32 %v4663, 1e-05
        %v4680 = vadd.f32 %v4664, 1e-05
        %v4681 = vadd.f32 %v4665, 1e-05
        %v4682 = vadd.f32 %v4666, 1e-05
        %v4683 = vrsqrt.pop %v4667
        %v4684 = vrsqrt.pop %v4668
        %v4685 = vrsqrt.pop %v4669
        %v4686 = vrsqrt.pop %v4670
        %v4687 = vrsqrt.pop %v4671
        %v4688 = vrsqrt.pop %v4672
        %v4689 = vrsqrt.pop %v4673
        %v4690 = vrsqrt.pop %v4674
        %v4691 = vrsqrt.pop %v4675
        %v4692 = vrsqrt.pop %v4676
        %v4693 = vrsqrt.pop %v4677
        %v4694 = vrsqrt.pop %v4678
        %v4695 = vrsqrt.pop %v4679
        %v4696 = vrsqrt.pop %v4680
        %v4697 = vrsqrt.pop %v4681
        %v4698 = vrsqrt.pop %v4682
        %v4699 = vmul.f32 %v4539, %v4683
        %v4700 = vmul.f32 %v4540, %v4683
        %v4701 = vmul.f32 %v4541, %v4684
        %v4702 = vmul.f32 %v4542, %v4684
        %v4703 = vmul.f32 %v4543, %v4685
        %v4704 = vmul.f32 %v4544, %v4685
        %v4705 = vmul.f32 %v4545, %v4686
        %v4706 = vmul.f32 %v4546, %v4686
        %v4707 = vmul.f32 %v4547, %v4687
        %v4708 = vmul.f32 %v4548, %v4687
        %v4709 = vmul.f32 %v4549, %v4688
        %v4710 = vmul.f32 %v4550, %v4688
        %v4711 = vmul.f32 %v4551, %v4689
        %v4712 = vmul.f32 %v4552, %v4689
        %v4713 = vmul.f32 %v4553, %v4690
        %v4714 = vmul.f32 %v4554, %v4690
        %v4715 = vmul.f32 %v4555, %v4691
        %v4716 = vmul.f32 %v4556, %v4691
        %v4717 = vmul.f32 %v4557, %v4692
        %v4718 = vmul.f32 %v4558, %v4692
        %v4719 = vmul.f32 %v4559, %v4693
        %v4720 = vmul.f32 %v4560, %v4693
        %v4721 = vmul.f32 %v4561, %v4694
        %v4722 = vmul.f32 %v4562, %v4694
        %v4723 = vmul.f32 %v4563, %v4695
        %v4724 = vmul.f32 %v4564, %v4695
        %v4725 = vmul.f32 %v4565, %v4696
        %v4726 = vmul.f32 %v4566, %v4696
        %v4727 = vmul.f32 %v4567, %v4697
        %v4728 = vmul.f32 %v4568, %v4697
        %v4729 = vmul.f32 %v4569, %v4698
        %v4730 = vmul.f32 %v4570, %v4698
        %v4732 = vlaneseq
        %v4733 = vshrl.u32 %v4732, 7
        %v4734 = vsub.s32 0, %v4733
        %v4735 = vrot.slane %v4473, %v4734
        %v4736 = vlaneseq
        %v4737 = vshrl.u32 %v4736, 7
        %v4738 = vsub.s32 1, %v4737
        %v4739 = vrot.slane %v4473, %v4738
        %v4742 = vmul.f32 %v4699, %v4735
        %v4743 = vmul.f32 %v4700, %v4739
        %v4744 = vmul.f32 %v4701, %v4735
        %v4745 = vmul.f32 %v4702, %v4739
        %v4746 = vmul.f32 %v4703, %v4735
        %v4747 = vmul.f32 %v4704, %v4739
        %v4748 = vmul.f32 %v4705, %v4735
        %v4749 = vmul.f32 %v4706, %v4739
        %v4750 = vmul.f32 %v4707, %v4735
        %v4751 = vmul.f32 %v4708, %v4739
        %v4752 = vmul.f32 %v4709, %v4735
        %v4753 = vmul.f32 %v4710, %v4739
        %v4754 = vmul.f32 %v4711, %v4735
        %v4755 = vmul.f32 %v4712, %v4739
        %v4756 = vmul.f32 %v4713, %v4735
        %v4757 = vmul.f32 %v4714, %v4739
        %v4758 = vmul.f32 %v4715, %v4735
        %v4759 = vmul.f32 %v4716, %v4739
        %v4760 = vmul.f32 %v4717, %v4735
        %v4761 = vmul.f32 %v4718, %v4739
        %v4762 = vmul.f32 %v4719, %v4735
        %v4763 = vmul.f32 %v4720, %v4739
        %v4764 = vmul.f32 %v4721, %v4735
        %v4765 = vmul.f32 %v4722, %v4739
        %v4766 = vmul.f32 %v4723, %v4735
        %v4767 = vmul.f32 %v4724, %v4739
        %v4768 = vmul.f32 %v4725, %v4735
        %v4769 = vmul.f32 %v4726, %v4739
        %v4770 = vmul.f32 %v4727, %v4735
        %v4771 = vmul.f32 %v4728, %v4739
        %v4772 = vmul.f32 %v4729, %v4735
        %v4773 = vmul.f32 %v4730, %v4739
        %v4775 = vlaneseq
        %v4776 = vshrl.u32 %v4775, 7
        %v4777 = vsub.s32 0, %v4776
        %v4778 = vrot.slane %v4474, %v4777
        %v4779 = vlaneseq
        %v4780 = vshrl.u32 %v4779, 7
        %v4781 = vsub.s32 1, %v4780
        %v4782 = vrot.slane %v4474, %v4781
        %v4785 = vadd.f32 %v4742, %v4778
        %v4786 = vadd.f32 %v4743, %v4782
        %v4787 = vadd.f32 %v4744, %v4778
        %v4788 = vadd.f32 %v4745, %v4782
        %v4789 = vadd.f32 %v4746, %v4778
        %v4790 = vadd.f32 %v4747, %v4782
        %v4791 = vadd.f32 %v4748, %v4778
        %v4792 = vadd.f32 %v4749, %v4782
        %v4793 = vadd.f32 %v4750, %v4778
        %v4794 = vadd.f32 %v4751, %v4782
        %v4795 = vadd.f32 %v4752, %v4778
        %v4796 = vadd.f32 %v4753, %v4782
        %v4797 = vadd.f32 %v4754, %v4778
        %v4798 = vadd.f32 %v4755, %v4782
        %v4799 = vadd.f32 %v4756, %v4778
        %v4800 = vadd.f32 %v4757, %v4782
        %v4801 = vadd.f32 %v4758, %v4778
        %v4802 = vadd.f32 %v4759, %v4782
        %v4803 = vadd.f32 %v4760, %v4778
        %v4804 = vadd.f32 %v4761, %v4782
        %v4805 = vadd.f32 %v4762, %v4778
        %v4806 = vadd.f32 %v4763, %v4782
        %v4807 = vadd.f32 %v4764, %v4778
        %v4808 = vadd.f32 %v4765, %v4782
        %v4809 = vadd.f32 %v4766, %v4778
        %v4810 = vadd.f32 %v4767, %v4782
        %v4811 = vadd.f32 %v4768, %v4778
        %v4812 = vadd.f32 %v4769, %v4782
        %v4813 = vadd.f32 %v4770, %v4778
        %v4814 = vadd.f32 %v4771, %v4782
        %v4815 = vadd.f32 %v4772, %v4778
        %v4816 = vadd.f32 %v4773, %v4782
        %v4817 = vpack.c.bf16 %v4787, %v4785
        %v4818 = vpack.c.bf16 %v4788, %v4786
        %v4819 = vpack.c.bf16 %v4791, %v4789
        %v4820 = vpack.c.bf16 %v4792, %v4790
        %v4821 = vpack.c.bf16 %v4795, %v4793
        %v4822 = vpack.c.bf16 %v4796, %v4794
        %v4823 = vpack.c.bf16 %v4799, %v4797
        %v4824 = vpack.c.bf16 %v4800, %v4798
        %v4825 = vpack.c.bf16 %v4803, %v4801
        %v4826 = vpack.c.bf16 %v4804, %v4802
        %v4827 = vpack.c.bf16 %v4807, %v4805
        %v4828 = vpack.c.bf16 %v4808, %v4806
        %v4829 = vpack.c.bf16 %v4811, %v4809
        %v4830 = vpack.c.bf16 %v4812, %v4810
        %v4831 = vpack.c.bf16 %v4815, %v4813
        %v4832 = vpack.c.bf16 %v4816, %v4814
        %v4833 = vld [vmem:[%s613] sm:$0xff]
        %v4834 = vld [vmem:[%s613 + $0x8] sm:$0xff]
        %v4835 = vld [vmem:[%s613 + $0x10] sm:$0xff]
        %v4836 = vld [vmem:[%s613 + $0x18] sm:$0xff]
        %v4837 = vld [vmem:[%s613 + $0x20] sm:$0xff]
        %v4838 = vld [vmem:[%s613 + $0x28] sm:$0xff]
        %v4839 = vld [vmem:[%s613 + $0x30] sm:$0xff]
        %v4840 = vld [vmem:[%s613 + $0x38] sm:$0xff]
        %v4841 = vld [vmem:[%s613 + $0x40] sm:$0xff]
        %v4842 = vld [vmem:[%s613 + $0x48] sm:$0xff]
        %v4843 = vld [vmem:[%s613 + $0x50] sm:$0xff]
        %v4844 = vld [vmem:[%s613 + $0x58] sm:$0xff]
        %v4845 = vld [vmem:[%s613 + $0x60] sm:$0xff]
        %v4846 = vld [vmem:[%s613 + $0x68] sm:$0xff]
        %v4847 = vld [vmem:[%s613 + $0x70] sm:$0xff]
        %v4848 = vld [vmem:[%s613 + $0x78] sm:$0xff]
        %v4849 = vld [vmem:[%s613 + $0x80] sm:$0xff]
        %v4850 = vld [vmem:[%s613 + $0x88] sm:$0xff]
        %v4851 = vld [vmem:[%s613 + $0x90] sm:$0xff]
        %v4852 = vld [vmem:[%s613 + $0x98] sm:$0xff]
        %v4853 = vld [vmem:[%s613 + $0xa0] sm:$0xff]
        %v4854 = vld [vmem:[%s613 + $0xa8] sm:$0xff]
        %v4855 = vld [vmem:[%s613 + $0xb0] sm:$0xff]
        %v4856 = vld [vmem:[%s613 + $0xb8] sm:$0xff]
        %v4857 = vld [vmem:[%s613 + $0xc0] sm:$0xff]
        %v4858 = vld [vmem:[%s613 + $0xc8] sm:$0xff]
        %v4859 = vld [vmem:[%s613 + $0xd0] sm:$0xff]
        %v4860 = vld [vmem:[%s613 + $0xd8] sm:$0xff]
        %v4861 = vld [vmem:[%s613 + $0xe0] sm:$0xff]
        %v4862 = vld [vmem:[%s613 + $0xe8] sm:$0xff]
        %v4863 = vld [vmem:[%s613 + $0xf0] sm:$0xff]
        %v4864 = vld [vmem:[%s613 + $0xf8] sm:$0xff]
        %v4865 = vld [vmem:[%s613 + $0x100] sm:$0xff]
        %v4866 = vld [vmem:[%s613 + $0x108] sm:$0xff]
        %v4867 = vld [vmem:[%s613 + $0x110] sm:$0xff]
        %v4868 = vld [vmem:[%s613 + $0x118] sm:$0xff]
        %v4869 = vld [vmem:[%s613 + $0x120] sm:$0xff]
        %v4870 = vld [vmem:[%s613 + $0x128] sm:$0xff]
        %v4871 = vld [vmem:[%s613 + $0x130] sm:$0xff]
        %v4872 = vld [vmem:[%s613 + $0x138] sm:$0xff]
        %v4873 = vld [vmem:[%s613 + $0x140] sm:$0xff]
        %v4874 = vld [vmem:[%s613 + $0x148] sm:$0xff]
        %v4875 = vld [vmem:[%s613 + $0x150] sm:$0xff]
        %v4876 = vld [vmem:[%s613 + $0x158] sm:$0xff]
        %v4877 = vld [vmem:[%s613 + $0x160] sm:$0xff]
        %v4878 = vld [vmem:[%s613 + $0x168] sm:$0xff]
        %v4879 = vld [vmem:[%s613 + $0x170] sm:$0xff]
        %v4880 = vld [vmem:[%s613 + $0x178] sm:$0xff]
        %v4881 = vld [vmem:[%s613 + $0x180] sm:$0xff]
        %v4882 = vld [vmem:[%s613 + $0x188] sm:$0xff]
        %v4883 = vld [vmem:[%s613 + $0x190] sm:$0xff]
        %v4884 = vld [vmem:[%s613 + $0x198] sm:$0xff]
        %v4885 = vld [vmem:[%s613 + $0x1a0] sm:$0xff]
        %v4886 = vld [vmem:[%s613 + $0x1a8] sm:$0xff]
        %v4887 = vld [vmem:[%s613 + $0x1b0] sm:$0xff]
        %v4888 = vld [vmem:[%s613 + $0x1b8] sm:$0xff]
        %v4889 = vld [vmem:[%s613 + $0x1c0] sm:$0xff]
        %v4890 = vld [vmem:[%s613 + $0x1c8] sm:$0xff]
        %v4891 = vld [vmem:[%s613 + $0x1d0] sm:$0xff]
        %v4892 = vld [vmem:[%s613 + $0x1d8] sm:$0xff]
        %v4893 = vld [vmem:[%s613 + $0x1e0] sm:$0xff]
        %v4894 = vld [vmem:[%s613 + $0x1e8] sm:$0xff]
        %v4895 = vld [vmem:[%s613 + $0x1f0] sm:$0xff]
        %v4896 = vld [vmem:[%s613 + $0x1f8] sm:$0xff]
        %v4897 = vld [vmem:[%s613 + $0x200] sm:$0xff]
        %v4898 = vld [vmem:[%s613 + $0x208] sm:$0xff]
        %v4899 = vld [vmem:[%s613 + $0x210] sm:$0xff]
        %v4900 = vld [vmem:[%s613 + $0x218] sm:$0xff]
        %v4901 = vld [vmem:[%s613 + $0x220] sm:$0xff]
        %v4902 = vld [vmem:[%s613 + $0x228] sm:$0xff]
        %v4903 = vld [vmem:[%s613 + $0x230] sm:$0xff]
        %v4904 = vld [vmem:[%s613 + $0x238] sm:$0xff]
        %v4905 = vld [vmem:[%s613 + $0x240] sm:$0xff]
        %v4906 = vld [vmem:[%s613 + $0x248] sm:$0xff]
        %v4907 = vld [vmem:[%s613 + $0x250] sm:$0xff]
        %v4908 = vld [vmem:[%s613 + $0x258] sm:$0xff]
        %v4909 = vld [vmem:[%s613 + $0x260] sm:$0xff]
        %v4910 = vld [vmem:[%s613 + $0x268] sm:$0xff]
        %v4911 = vld [vmem:[%s613 + $0x270] sm:$0xff]
        %v4912 = vld [vmem:[%s613 + $0x278] sm:$0xff]
        %v4913 = vld [vmem:[%s613 + $0x280] sm:$0xff]
        %v4914 = vld [vmem:[%s613 + $0x288] sm:$0xff]
        %v4915 = vld [vmem:[%s613 + $0x290] sm:$0xff]
        %v4916 = vld [vmem:[%s613 + $0x298] sm:$0xff]
        %v4917 = vld [vmem:[%s613 + $0x2a0] sm:$0xff]
        %v4918 = vld [vmem:[%s613 + $0x2a8] sm:$0xff]
        %v4919 = vld [vmem:[%s613 + $0x2b0] sm:$0xff]
        %v4920 = vld [vmem:[%s613 + $0x2b8] sm:$0xff]
        %v4921 = vld [vmem:[%s613 + $0x2c0] sm:$0xff]
        %v4922 = vld [vmem:[%s613 + $0x2c8] sm:$0xff]
        %v4923 = vld [vmem:[%s613 + $0x2d0] sm:$0xff]
        %v4924 = vld [vmem:[%s613 + $0x2d8] sm:$0xff]
        %v4925 = vld [vmem:[%s613 + $0x2e0] sm:$0xff]
        %v4926 = vld [vmem:[%s613 + $0x2e8] sm:$0xff]
        %v4927 = vld [vmem:[%s613 + $0x2f0] sm:$0xff]
        %v4928 = vld [vmem:[%s613 + $0x2f8] sm:$0xff]
        %v4929 = vld [vmem:[%s613 + $0x300] sm:$0xff]
        %v4930 = vld [vmem:[%s613 + $0x308] sm:$0xff]
        %v4931 = vld [vmem:[%s613 + $0x310] sm:$0xff]
        %v4932 = vld [vmem:[%s613 + $0x318] sm:$0xff]
        %v4933 = vld [vmem:[%s613 + $0x320] sm:$0xff]
        %v4934 = vld [vmem:[%s613 + $0x328] sm:$0xff]
        %v4935 = vld [vmem:[%s613 + $0x330] sm:$0xff]
        %v4936 = vld [vmem:[%s613 + $0x338] sm:$0xff]
        %v4937 = vld [vmem:[%s613 + $0x340] sm:$0xff]
        %v4938 = vld [vmem:[%s613 + $0x348] sm:$0xff]
        %v4939 = vld [vmem:[%s613 + $0x350] sm:$0xff]
        %v4940 = vld [vmem:[%s613 + $0x358] sm:$0xff]
        %v4941 = vld [vmem:[%s613 + $0x360] sm:$0xff]
        %v4942 = vld [vmem:[%s613 + $0x368] sm:$0xff]
        %v4943 = vld [vmem:[%s613 + $0x370] sm:$0xff]
        %v4944 = vld [vmem:[%s613 + $0x378] sm:$0xff]
        %v4945 = vld [vmem:[%s613 + $0x380] sm:$0xff]
        %v4946 = vld [vmem:[%s613 + $0x388] sm:$0xff]
        %v4947 = vld [vmem:[%s613 + $0x390] sm:$0xff]
        %v4948 = vld [vmem:[%s613 + $0x398] sm:$0xff]
        %v4949 = vld [vmem:[%s613 + $0x3a0] sm:$0xff]
        %v4950 = vld [vmem:[%s613 + $0x3a8] sm:$0xff]
        %v4951 = vld [vmem:[%s613 + $0x3b0] sm:$0xff]
        %v4952 = vld [vmem:[%s613 + $0x3b8] sm:$0xff]
        %v4953 = vld [vmem:[%s613 + $0x3c0] sm:$0xff]
        %v4954 = vld [vmem:[%s613 + $0x3c8] sm:$0xff]
        %v4955 = vld [vmem:[%s613 + $0x3d0] sm:$0xff]
        %v4956 = vld [vmem:[%s613 + $0x3d8] sm:$0xff]
        %v4957 = vld [vmem:[%s613 + $0x3e0] sm:$0xff]
        %v4958 = vld [vmem:[%s613 + $0x3e8] sm:$0xff]
        %v4959 = vld [vmem:[%s613 + $0x3f0] sm:$0xff]
        %v4960 = vld [vmem:[%s613 + $0x3f8] sm:$0xff]
        %v4961 = vld [vmem:[%s771] sm:$0xff]
        %v4963 = vlaneseq
        %v4964 = vshrl.u32 %v4963, 7
        %v4965 = vsub.s32 0, %v4964
        %v4966 = vrot.slane %v4961, %v4965
        %v4967 = vlaneseq
        %v4968 = vshrl.u32 %v4967, 7
        %v4969 = vsub.s32 1, %v4968
        %v4970 = vrot.slane %v4961, %v4969
        %v4971 = vlaneseq
        %v4972 = vshrl.u32 %v4971, 7
        %v4973 = vsub.s32 2, %v4972
        %v4974 = vrot.slane %v4961, %v4973
        %v4975 = vlaneseq
        %v4976 = vshrl.u32 %v4975, 7
        %v4977 = vsub.s32 3, %v4976
        %v4978 = vrot.slane %v4961, %v4977
        %v4979 = vlaneseq
        %v4980 = vshrl.u32 %v4979, 7
        %v4981 = vsub.s32 4, %v4980
        %v4982 = vrot.slane %v4961, %v4981
        %v4983 = vlaneseq
        %v4984 = vshrl.u32 %v4983, 7
        %v4985 = vsub.s32 5, %v4984
        %v4986 = vrot.slane %v4961, %v4985
        %v4987 = vlaneseq
        %v4988 = vshrl.u32 %v4987, 7
        %v4989 = vsub.s32 6, %v4988
        %v4990 = vrot.slane %v4961, %v4989
        %v4991 = vlaneseq
        %v4992 = vshrl.u32 %v4991, 7
        %v4993 = vsub.s32 7, %v4992
        %v4994 = vrot.slane %v4961, %v4993
        %v5131 = vunpack.c.l.b16 %v4833
        %v5132 = vunpack.c.h.b16 %v4833
        %v5133 = vunpack.c.l.b16 %v4834
        %v5134 = vunpack.c.h.b16 %v4834
        %v5135 = vunpack.c.l.b16 %v4835
        %v5136 = vunpack.c.h.b16 %v4835
        %v5137 = vunpack.c.l.b16 %v4836
        %v5138 = vunpack.c.h.b16 %v4836
        %v5139 = vunpack.c.l.b16 %v4837
        %v5140 = vunpack.c.h.b16 %v4837
        %v5141 = vunpack.c.l.b16 %v4838
        %v5142 = vunpack.c.h.b16 %v4838
        %v5143 = vunpack.c.l.b16 %v4839
        %v5144 = vunpack.c.h.b16 %v4839
        %v5145 = vunpack.c.l.b16 %v4840
        %v5146 = vunpack.c.h.b16 %v4840
        %v5147 = vunpack.c.l.b16 %v4841
        %v5148 = vunpack.c.h.b16 %v4841
        %v5149 = vunpack.c.l.b16 %v4842
        %v5150 = vunpack.c.h.b16 %v4842
        %v5151 = vunpack.c.l.b16 %v4843
        %v5152 = vunpack.c.h.b16 %v4843
        %v5153 = vunpack.c.l.b16 %v4844
        %v5154 = vunpack.c.h.b16 %v4844
        %v5155 = vunpack.c.l.b16 %v4845
        %v5156 = vunpack.c.h.b16 %v4845
        %v5157 = vunpack.c.l.b16 %v4846
        %v5158 = vunpack.c.h.b16 %v4846
        %v5159 = vunpack.c.l.b16 %v4847
        %v5160 = vunpack.c.h.b16 %v4847
        %v5161 = vunpack.c.l.b16 %v4848
        %v5162 = vunpack.c.h.b16 %v4848
        %v5163 = vunpack.c.l.b16 %v4849
        %v5164 = vunpack.c.h.b16 %v4849
        %v5165 = vunpack.c.l.b16 %v4850
        %v5166 = vunpack.c.h.b16 %v4850
        %v5167 = vunpack.c.l.b16 %v4851
        %v5168 = vunpack.c.h.b16 %v4851
        %v5169 = vunpack.c.l.b16 %v4852
        %v5170 = vunpack.c.h.b16 %v4852
        %v5171 = vunpack.c.l.b16 %v4853
        %v5172 = vunpack.c.h.b16 %v4853
        %v5173 = vunpack.c.l.b16 %v4854
        %v5174 = vunpack.c.h.b16 %v4854
        %v5175 = vunpack.c.l.b16 %v4855
        %v5176 = vunpack.c.h.b16 %v4855
        %v5177 = vunpack.c.l.b16 %v4856
        %v5178 = vunpack.c.h.b16 %v4856
        %v5179 = vunpack.c.l.b16 %v4857
        %v5180 = vunpack.c.h.b16 %v4857
        %v5181 = vunpack.c.l.b16 %v4858
        %v5182 = vunpack.c.h.b16 %v4858
        %v5183 = vunpack.c.l.b16 %v4859
        %v5184 = vunpack.c.h.b16 %v4859
        %v5185 = vunpack.c.l.b16 %v4860
        %v5186 = vunpack.c.h.b16 %v4860
        %v5187 = vunpack.c.l.b16 %v4861
        %v5188 = vunpack.c.h.b16 %v4861
        %v5189 = vunpack.c.l.b16 %v4862
        %v5190 = vunpack.c.h.b16 %v4862
        %v5191 = vunpack.c.l.b16 %v4863
        %v5192 = vunpack.c.h.b16 %v4863
        %v5193 = vunpack.c.l.b16 %v4864
        %v5194 = vunpack.c.h.b16 %v4864
        %v5195 = vunpack.c.l.b16 %v4865
        %v5196 = vunpack.c.h.b16 %v4865
        %v5197 = vunpack.c.l.b16 %v4866
        %v5198 = vunpack.c.h.b16 %v4866
        %v5199 = vunpack.c.l.b16 %v4867
        %v5200 = vunpack.c.h.b16 %v4867
        %v5201 = vunpack.c.l.b16 %v4868
        %v5202 = vunpack.c.h.b16 %v4868
        %v5203 = vunpack.c.l.b16 %v4869
        %v5204 = vunpack.c.h.b16 %v4869
        %v5205 = vunpack.c.l.b16 %v4870
        %v5206 = vunpack.c.h.b16 %v4870
        %v5207 = vunpack.c.l.b16 %v4871
        %v5208 = vunpack.c.h.b16 %v4871
        %v5209 = vunpack.c.l.b16 %v4872
        %v5210 = vunpack.c.h.b16 %v4872
        %v5211 = vunpack.c.l.b16 %v4873
        %v5212 = vunpack.c.h.b16 %v4873
        %v5213 = vunpack.c.l.b16 %v4874
        %v5214 = vunpack.c.h.b16 %v4874
        %v5215 = vunpack.c.l.b16 %v4875
        %v5216 = vunpack.c.h.b16 %v4875
        %v5217 = vunpack.c.l.b16 %v4876
        %v5218 = vunpack.c.h.b16 %v4876
        %v5219 = vunpack.c.l.b16 %v4877
        %v5220 = vunpack.c.h.b16 %v4877
        %v5221 = vunpack.c.l.b16 %v4878
        %v5222 = vunpack.c.h.b16 %v4878
        %v5223 = vunpack.c.l.b16 %v4879
        %v5224 = vunpack.c.h.b16 %v4879
        %v5225 = vunpack.c.l.b16 %v4880
        %v5226 = vunpack.c.h.b16 %v4880
        %v5227 = vunpack.c.l.b16 %v4881
        %v5228 = vunpack.c.h.b16 %v4881
        %v5229 = vunpack.c.l.b16 %v4882
        %v5230 = vunpack.c.h.b16 %v4882
        %v5231 = vunpack.c.l.b16 %v4883
        %v5232 = vunpack.c.h.b16 %v4883
        %v5233 = vunpack.c.l.b16 %v4884
        %v5234 = vunpack.c.h.b16 %v4884
        %v5235 = vunpack.c.l.b16 %v4885
        %v5236 = vunpack.c.h.b16 %v4885
        %v5237 = vunpack.c.l.b16 %v4886
        %v5238 = vunpack.c.h.b16 %v4886
        %v5239 = vunpack.c.l.b16 %v4887
        %v5240 = vunpack.c.h.b16 %v4887
        %v5241 = vunpack.c.l.b16 %v4888
        %v5242 = vunpack.c.h.b16 %v4888
        %v5243 = vunpack.c.l.b16 %v4889
        %v5244 = vunpack.c.h.b16 %v4889
        %v5245 = vunpack.c.l.b16 %v4890
        %v5246 = vunpack.c.h.b16 %v4890
        %v5247 = vunpack.c.l.b16 %v4891
        %v5248 = vunpack.c.h.b16 %v4891
        %v5249 = vunpack.c.l.b16 %v4892
        %v5250 = vunpack.c.h.b16 %v4892
        %v5251 = vunpack.c.l.b16 %v4893
        %v5252 = vunpack.c.h.b16 %v4893
        %v5253 = vunpack.c.l.b16 %v4894
        %v5254 = vunpack.c.h.b16 %v4894
        %v5255 = vunpack.c.l.b16 %v4895
        %v5256 = vunpack.c.h.b16 %v4895
        %v5257 = vunpack.c.l.b16 %v4896
        %v5258 = vunpack.c.h.b16 %v4896
        %v5259 = vunpack.c.l.b16 %v4897
        %v5260 = vunpack.c.h.b16 %v4897
        %v5261 = vunpack.c.l.b16 %v4898
        %v5262 = vunpack.c.h.b16 %v4898
        %v5263 = vunpack.c.l.b16 %v4899
        %v5264 = vunpack.c.h.b16 %v4899
        %v5265 = vunpack.c.l.b16 %v4900
        %v5266 = vunpack.c.h.b16 %v4900
        %v5267 = vunpack.c.l.b16 %v4901
        %v5268 = vunpack.c.h.b16 %v4901
        %v5269 = vunpack.c.l.b16 %v4902
        %v5270 = vunpack.c.h.b16 %v4902
        %v5271 = vunpack.c.l.b16 %v4903
        %v5272 = vunpack.c.h.b16 %v4903
        %v5273 = vunpack.c.l.b16 %v4904
        %v5274 = vunpack.c.h.b16 %v4904
        %v5275 = vunpack.c.l.b16 %v4905
        %v5276 = vunpack.c.h.b16 %v4905
        %v5277 = vunpack.c.l.b16 %v4906
        %v5278 = vunpack.c.h.b16 %v4906
        %v5279 = vunpack.c.l.b16 %v4907
        %v5280 = vunpack.c.h.b16 %v4907
        %v5281 = vunpack.c.l.b16 %v4908
        %v5282 = vunpack.c.h.b16 %v4908
        %v5283 = vunpack.c.l.b16 %v4909
        %v5284 = vunpack.c.h.b16 %v4909
        %v5285 = vunpack.c.l.b16 %v4910
        %v5286 = vunpack.c.h.b16 %v4910
        %v5287 = vunpack.c.l.b16 %v4911
        %v5288 = vunpack.c.h.b16 %v4911
        %v5289 = vunpack.c.l.b16 %v4912
        %v5290 = vunpack.c.h.b16 %v4912
        %v5291 = vunpack.c.l.b16 %v4913
        %v5292 = vunpack.c.h.b16 %v4913
        %v5293 = vunpack.c.l.b16 %v4914
        %v5294 = vunpack.c.h.b16 %v4914
        %v5295 = vunpack.c.l.b16 %v4915
        %v5296 = vunpack.c.h.b16 %v4915
        %v5297 = vunpack.c.l.b16 %v4916
        %v5298 = vunpack.c.h.b16 %v4916
        %v5299 = vunpack.c.l.b16 %v4917
        %v5300 = vunpack.c.h.b16 %v4917
        %v5301 = vunpack.c.l.b16 %v4918
        %v5302 = vunpack.c.h.b16 %v4918
        %v5303 = vunpack.c.l.b16 %v4919
        %v5304 = vunpack.c.h.b16 %v4919
        %v5305 = vunpack.c.l.b16 %v4920
        %v5306 = vunpack.c.h.b16 %v4920
        %v5307 = vunpack.c.l.b16 %v4921
        %v5308 = vunpack.c.h.b16 %v4921
        %v5309 = vunpack.c.l.b16 %v4922
        %v5310 = vunpack.c.h.b16 %v4922
        %v5311 = vunpack.c.l.b16 %v4923
        %v5312 = vunpack.c.h.b16 %v4923
        %v5313 = vunpack.c.l.b16 %v4924
        %v5314 = vunpack.c.h.b16 %v4924
        %v5315 = vunpack.c.l.b16 %v4925
        %v5316 = vunpack.c.h.b16 %v4925
        %v5317 = vunpack.c.l.b16 %v4926
        %v5318 = vunpack.c.h.b16 %v4926
        %v5319 = vunpack.c.l.b16 %v4927
        %v5320 = vunpack.c.h.b16 %v4927
        %v5321 = vunpack.c.l.b16 %v4928
        %v5322 = vunpack.c.h.b16 %v4928
        %v5323 = vunpack.c.l.b16 %v4929
        %v5324 = vunpack.c.h.b16 %v4929
        %v5325 = vunpack.c.l.b16 %v4930
        %v5326 = vunpack.c.h.b16 %v4930
        %v5327 = vunpack.c.l.b16 %v4931
        %v5328 = vunpack.c.h.b16 %v4931
        %v5329 = vunpack.c.l.b16 %v4932
        %v5330 = vunpack.c.h.b16 %v4932
        %v5331 = vunpack.c.l.b16 %v4933
        %v5332 = vunpack.c.h.b16 %v4933
        %v5333 = vunpack.c.l.b16 %v4934
        %v5334 = vunpack.c.h.b16 %v4934
        %v5335 = vunpack.c.l.b16 %v4935
        %v5336 = vunpack.c.h.b16 %v4935
        %v5337 = vunpack.c.l.b16 %v4936
        %v5338 = vunpack.c.h.b16 %v4936
        %v5339 = vunpack.c.l.b16 %v4937
        %v5340 = vunpack.c.h.b16 %v4937
        %v5341 = vunpack.c.l.b16 %v4938
        %v5342 = vunpack.c.h.b16 %v4938
        %v5343 = vunpack.c.l.b16 %v4939
        %v5344 = vunpack.c.h.b16 %v4939
        %v5345 = vunpack.c.l.b16 %v4940
        %v5346 = vunpack.c.h.b16 %v4940
        %v5347 = vunpack.c.l.b16 %v4941
        %v5348 = vunpack.c.h.b16 %v4941
        %v5349 = vunpack.c.l.b16 %v4942
        %v5350 = vunpack.c.h.b16 %v4942
        %v5351 = vunpack.c.l.b16 %v4943
        %v5352 = vunpack.c.h.b16 %v4943
        %v5353 = vunpack.c.l.b16 %v4944
        %v5354 = vunpack.c.h.b16 %v4944
        %v5355 = vunpack.c.l.b16 %v4945
        %v5356 = vunpack.c.h.b16 %v4945
        %v5357 = vunpack.c.l.b16 %v4946
        %v5358 = vunpack.c.h.b16 %v4946
        %v5359 = vunpack.c.l.b16 %v4947
        %v5360 = vunpack.c.h.b16 %v4947
        %v5361 = vunpack.c.l.b16 %v4948
        %v5362 = vunpack.c.h.b16 %v4948
        %v5363 = vunpack.c.l.b16 %v4949
        %v5364 = vunpack.c.h.b16 %v4949
        %v5365 = vunpack.c.l.b16 %v4950
        %v5366 = vunpack.c.h.b16 %v4950
        %v5367 = vunpack.c.l.b16 %v4951
        %v5368 = vunpack.c.h.b16 %v4951
        %v5369 = vunpack.c.l.b16 %v4952
        %v5370 = vunpack.c.h.b16 %v4952
        %v5371 = vunpack.c.l.b16 %v4953
        %v5372 = vunpack.c.h.b16 %v4953
        %v5373 = vunpack.c.l.b16 %v4954
        %v5374 = vunpack.c.h.b16 %v4954
        %v5375 = vunpack.c.l.b16 %v4955
        %v5376 = vunpack.c.h.b16 %v4955
        %v5377 = vunpack.c.l.b16 %v4956
        %v5378 = vunpack.c.h.b16 %v4956
        %v5379 = vunpack.c.l.b16 %v4957
        %v5380 = vunpack.c.h.b16 %v4957
        %v5381 = vunpack.c.l.b16 %v4958
        %v5382 = vunpack.c.h.b16 %v4958
        %v5383 = vunpack.c.l.b16 %v4959
        %v5384 = vunpack.c.h.b16 %v4959
        %v5385 = vunpack.c.l.b16 %v4960
        %v5386 = vunpack.c.h.b16 %v4960
        %v5387 = vpack.c.b16 %v5139, %v5131
        %v5388 = vpack.c.b16 %v5140, %v5132
        %v5389 = vpack.c.b16 %v5141, %v5133
        %v5390 = vpack.c.b16 %v5142, %v5134
        %v5391 = vpack.c.b16 %v5143, %v5135
        %v5392 = vpack.c.b16 %v5144, %v5136
        %v5393 = vpack.c.b16 %v5145, %v5137
        %v5394 = vpack.c.b16 %v5146, %v5138
        %v5395 = vpack.c.b16 %v5155, %v5147
        %v5396 = vpack.c.b16 %v5156, %v5148
        %v5397 = vpack.c.b16 %v5157, %v5149
        %v5398 = vpack.c.b16 %v5158, %v5150
        %v5399 = vpack.c.b16 %v5159, %v5151
        %v5400 = vpack.c.b16 %v5160, %v5152
        %v5401 = vpack.c.b16 %v5161, %v5153
        %v5402 = vpack.c.b16 %v5162, %v5154
        %v5403 = vpack.c.b16 %v5171, %v5163
        %v5404 = vpack.c.b16 %v5172, %v5164
        %v5405 = vpack.c.b16 %v5173, %v5165
        %v5406 = vpack.c.b16 %v5174, %v5166
        %v5407 = vpack.c.b16 %v5175, %v5167
        %v5408 = vpack.c.b16 %v5176, %v5168
        %v5409 = vpack.c.b16 %v5177, %v5169
        %v5410 = vpack.c.b16 %v5178, %v5170
        %v5411 = vpack.c.b16 %v5187, %v5179
        %v5412 = vpack.c.b16 %v5188, %v5180
        %v5413 = vpack.c.b16 %v5189, %v5181
        %v5414 = vpack.c.b16 %v5190, %v5182
        %v5415 = vpack.c.b16 %v5191, %v5183
        %v5416 = vpack.c.b16 %v5192, %v5184
        %v5417 = vpack.c.b16 %v5193, %v5185
        %v5418 = vpack.c.b16 %v5194, %v5186
        %v5419 = vpack.c.b16 %v5203, %v5195
        %v5420 = vpack.c.b16 %v5204, %v5196
        %v5421 = vpack.c.b16 %v5205, %v5197
        %v5422 = vpack.c.b16 %v5206, %v5198
        %v5423 = vpack.c.b16 %v5207, %v5199
        %v5424 = vpack.c.b16 %v5208, %v5200
        %v5425 = vpack.c.b16 %v5209, %v5201
        %v5426 = vpack.c.b16 %v5210, %v5202
        %v5427 = vpack.c.b16 %v5219, %v5211
        %v5428 = vpack.c.b16 %v5220, %v5212
        %v5429 = vpack.c.b16 %v5221, %v5213
        %v5430 = vpack.c.b16 %v5222, %v5214
        %v5431 = vpack.c.b16 %v5223, %v5215
        %v5432 = vpack.c.b16 %v5224, %v5216
        %v5433 = vpack.c.b16 %v5225, %v5217
        %v5434 = vpack.c.b16 %v5226, %v5218
        %v5435 = vpack.c.b16 %v5235, %v5227
        %v5436 = vpack.c.b16 %v5236, %v5228
        %v5437 = vpack.c.b16 %v5237, %v5229
        %v5438 = vpack.c.b16 %v5238, %v5230
        %v5439 = vpack.c.b16 %v5239, %v5231
        %v5440 = vpack.c.b16 %v5240, %v5232
        %v5441 = vpack.c.b16 %v5241, %v5233
        %v5442 = vpack.c.b16 %v5242, %v5234
        %v5443 = vpack.c.b16 %v5251, %v5243
        %v5444 = vpack.c.b16 %v5252, %v5244
        %v5445 = vpack.c.b16 %v5253, %v5245
        %v5446 = vpack.c.b16 %v5254, %v5246
        %v5447 = vpack.c.b16 %v5255, %v5247
        %v5448 = vpack.c.b16 %v5256, %v5248
        %v5449 = vpack.c.b16 %v5257, %v5249
        %v5450 = vpack.c.b16 %v5258, %v5250
        %v5451 = vpack.c.b16 %v5267, %v5259
        %v5452 = vpack.c.b16 %v5268, %v5260
        %v5453 = vpack.c.b16 %v5269, %v5261
        %v5454 = vpack.c.b16 %v5270, %v5262
        %v5455 = vpack.c.b16 %v5271, %v5263
        %v5456 = vpack.c.b16 %v5272, %v5264
        %v5457 = vpack.c.b16 %v5273, %v5265
        %v5458 = vpack.c.b16 %v5274, %v5266
        %v5459 = vpack.c.b16 %v5283, %v5275
        %v5460 = vpack.c.b16 %v5284, %v5276
        %v5461 = vpack.c.b16 %v5285, %v5277
        %v5462 = vpack.c.b16 %v5286, %v5278
        %v5463 = vpack.c.b16 %v5287, %v5279
        %v5464 = vpack.c.b16 %v5288, %v5280
        %v5465 = vpack.c.b16 %v5289, %v5281
        %v5466 = vpack.c.b16 %v5290, %v5282
        %v5467 = vpack.c.b16 %v5299, %v5291
        %v5468 = vpack.c.b16 %v5300, %v5292
        %v5469 = vpack.c.b16 %v5301, %v5293
        %v5470 = vpack.c.b16 %v5302, %v5294
        %v5471 = vpack.c.b16 %v5303, %v5295
        %v5472 = vpack.c.b16 %v5304, %v5296
        %v5473 = vpack.c.b16 %v5305, %v5297
        %v5474 = vpack.c.b16 %v5306, %v5298
        %v5475 = vpack.c.b16 %v5315, %v5307
        %v5476 = vpack.c.b16 %v5316, %v5308
        %v5477 = vpack.c.b16 %v5317, %v5309
        %v5478 = vpack.c.b16 %v5318, %v5310
        %v5479 = vpack.c.b16 %v5319, %v5311
        %v5480 = vpack.c.b16 %v5320, %v5312
        %v5481 = vpack.c.b16 %v5321, %v5313
        %v5482 = vpack.c.b16 %v5322, %v5314
        %v5483 = vpack.c.b16 %v5331, %v5323
        %v5484 = vpack.c.b16 %v5332, %v5324
        %v5485 = vpack.c.b16 %v5333, %v5325
        %v5486 = vpack.c.b16 %v5334, %v5326
        %v5487 = vpack.c.b16 %v5335, %v5327
        %v5488 = vpack.c.b16 %v5336, %v5328
        %v5489 = vpack.c.b16 %v5337, %v5329
        %v5490 = vpack.c.b16 %v5338, %v5330
        %v5491 = vpack.c.b16 %v5347, %v5339
        %v5492 = vpack.c.b16 %v5348, %v5340
        %v5493 = vpack.c.b16 %v5349, %v5341
        %v5494 = vpack.c.b16 %v5350, %v5342
        %v5495 = vpack.c.b16 %v5351, %v5343
        %v5496 = vpack.c.b16 %v5352, %v5344
        %v5497 = vpack.c.b16 %v5353, %v5345
        %v5498 = vpack.c.b16 %v5354, %v5346
        %v5499 = vpack.c.b16 %v5363, %v5355
        %v5500 = vpack.c.b16 %v5364, %v5356
        %v5501 = vpack.c.b16 %v5365, %v5357
        %v5502 = vpack.c.b16 %v5366, %v5358
        %v5503 = vpack.c.b16 %v5367, %v5359
        %v5504 = vpack.c.b16 %v5368, %v5360
        %v5505 = vpack.c.b16 %v5369, %v5361
        %v5506 = vpack.c.b16 %v5370, %v5362
        %v5507 = vpack.c.b16 %v5379, %v5371
        %v5508 = vpack.c.b16 %v5380, %v5372
        %v5509 = vpack.c.b16 %v5381, %v5373
        %v5510 = vpack.c.b16 %v5382, %v5374
        %v5511 = vpack.c.b16 %v5383, %v5375
        %v5512 = vpack.c.b16 %v5384, %v5376
        %v5513 = vpack.c.b16 %v5385, %v5377
        %v5514 = vpack.c.b16 %v5386, %v5378
        %5643 = vmatprep.subr.bf16.mxu0 %v5388
        %5644 = vmatpush1.bf16.msra.mxu0 %v5387
        %5645 = vmatprep.subr.bf16.mxu0 %v5396
        %5646 = vmatpush1.bf16.msra.mxu0 %v5395
        %5647 = vmatprep.subr.bf16.mxu0 %v5404
        %5648 = vmatpush1.bf16.msra.mxu0 %v5403
        %5649 = vmatprep.subr.bf16.mxu0 %v5412
        %5650 = vmatpush1.bf16.msra.mxu0 %v5411
        %5651 = vmatprep.subr.bf16.mxu0 %v5420
        %5652 = vmatpush1.bf16.msra.mxu0 %v5419
        %5653 = vmatprep.subr.bf16.mxu0 %v5428
        %5654 = vmatpush1.bf16.msra.mxu0 %v5427
        %5655 = vmatprep.subr.bf16.mxu0 %v5436
        %5656 = vmatpush1.bf16.msra.mxu0 %v5435
        %5657 = vmatprep.subr.bf16.mxu0 %v5444
        %5658 = vmatpush1.bf16.msra.mxu0 %v5443
        %5659 = vmatprep.subr.bf16.mxu0 %v5452
        %5660 = vmatpush1.bf16.msra.mxu0 %v5451
        %5661 = vmatprep.subr.bf16.mxu0 %v5460
        %5662 = vmatpush1.bf16.msra.mxu0 %v5459
        %5663 = vmatprep.subr.bf16.mxu0 %v5468
        %5664 = vmatpush1.bf16.msra.mxu0 %v5467
        %5665 = vmatprep.subr.bf16.mxu0 %v5476
        %5666 = vmatpush1.bf16.msra.mxu0 %v5475
        %5667 = vmatprep.subr.bf16.mxu0 %v5484
        %5668 = vmatpush1.bf16.msra.mxu0 %v5483
        %5669 = vmatprep.subr.bf16.mxu0 %v5492
        %5670 = vmatpush1.bf16.msra.mxu0 %v5491
        %5671 = vmatprep.subr.bf16.mxu0 %v5500
        %5672 = vmatpush1.bf16.msra.mxu0 %v5499
        %5673 = vmatprep.subr.bf16.mxu0 %v5508
        %5674 = vmatpush1.bf16.msra.mxu0 %v5507
        %5675 = vmatprep.mubr.bf16.mxu0 %v4818
        %5676 = vmatmul.mubr.bf16.gmra.mrb[0].mxu0 %v4817
        %v5677 = vpop.f32.mrb[0].mxu0
        %v5678 = vadd.f32 %v4966, %v5677
        %v5679 = vpop.f32.mrb[0].mxu0
        %v5680 = vadd.f32 %v4970, %v5679
        %v5681 = vpop.f32.mrb[0].mxu0
        %v5682 = vadd.f32 %v4966, %v5681
        %v5683 = vpop.f32.mrb[0].mxu0
        %v5684 = vadd.f32 %v4970, %v5683
        %5685 = vmatprep.mubr.bf16.mxu0 %v4820
        %5686 = vmatmul.mubr.bf16.gmra.mrb[0].mxu0 %v4819
        %v5687 = vpop.f32.mrb[0].mxu0
        %v5688 = vadd.f32 %v4966, %v5687
        %v5689 = vpop.f32.mrb[0].mxu0
        %v5690 = vadd.f32 %v4970, %v5689
        %v5691 = vpop.f32.mrb[0].mxu0
        %v5692 = vadd.f32 %v4966, %v5691
        %v5693 = vpop.f32.mrb[0].mxu0
        %v5694 = vadd.f32 %v4970, %v5693
        %5695 = vmatprep.mubr.bf16.mxu0 %v4822
        %5696 = vmatmul.mubr.bf16.gmra.mrb[0].mxu0 %v4821
        %v5697 = vpop.f32.mrb[0].mxu0
        %v5698 = vadd.f32 %v4966, %v5697
        %v5699 = vpop.f32.mrb[0].mxu0
        %v5700 = vadd.f32 %v4970, %v5699
        %v5701 = vpop.f32.mrb[0].mxu0
        %v5702 = vadd.f32 %v4966, %v5701
        %v5703 = vpop.f32.mrb[0].mxu0
        %v5704 = vadd.f32 %v4970, %v5703
        %5705 = vmatprep.mubr.bf16.mxu0 %v4824
        %5706 = vmatmul.mubr.bf16.gmra.mrb[0].mxu0 %v4823
        %v5707 = vpop.f32.mrb[0].mxu0
        %v5708 = vadd.f32 %v4966, %v5707
        %v5709 = vpop.f32.mrb[0].mxu0
        %v5710 = vadd.f32 %v4970, %v5709
        %v5711 = vpop.f32.mrb[0].mxu0
        %v5712 = vadd.f32 %v4966, %v5711
        %v5713 = vpop.f32.mrb[0].mxu0
        %v5714 = vadd.f32 %v4970, %v5713
        %5715 = vmatprep.mubr.bf16.mxu0 %v4826
        %5716 = vmatmul.mubr.bf16.gmra.mrb[0].mxu0 %v4825
        %v5717 = vpop.f32.mrb[0].mxu0
        %v5718 = vadd.f32 %v4966, %v5717
        %v5719 = vpop.f32.mrb[0].mxu0
        %v5720 = vadd.f32 %v4970, %v5719
        %v5721 = vpop.f32.mrb[0].mxu0
        %v5722 = vadd.f32 %v4966, %v5721
        %v5723 = vpop.f32.mrb[0].mxu0
        %v5724 = vadd.f32 %v4970, %v5723
        %5725 = vmatprep.mubr.bf16.mxu0 %v4828
        %5726 = vmatmul.mubr.bf16.gmra.mrb[0].mxu0 %v4827
        %v5727 = vpop.f32.mrb[0].mxu0
        %v5728 = vadd.f32 %v4966, %v5727
        %v5729 = vpop.f32.mrb[0].mxu0
        %v5730 = vadd.f32 %v4970, %v5729
        %v5731 = vpop.f32.mrb[0].mxu0
        %v5732 = vadd.f32 %v4966, %v5731
        %v5733 = vpop.f32.mrb[0].mxu0
        %v5734 = vadd.f32 %v4970, %v5733
        %5735 = vmatprep.mubr.bf16.mxu0 %v4830
        %5736 = vmatmul.mubr.bf16.gmra.mrb[0].mxu0 %v4829
        %v5737 = vpop.f32.mrb[0].mxu0
        %v5738 = vadd.f32 %v4966, %v5737
        %v5739 = vpop.f32.mrb[0].mxu0
        %v5740 = vadd.f32 %v4970, %v5739
        %v5741 = vpop.f32.mrb[0].mxu0
        %v5742 = vadd.f32 %v4966, %v5741
        %v5743 = vpop.f32.mrb[0].mxu0
        %v5744 = vadd.f32 %v4970, %v5743
        %5745 = vmatprep.mubr.bf16.mxu0 %v4832
        %5746 = vmatmul.mubr.bf16.gmra.mrb[0].mxu0 %v4831
        %v5747 = vpop.f32.mrb[0].mxu0
        %v5748 = vadd.f32 %v4966, %v5747
        %v5749 = vpop.f32.mrb[0].mxu0
        %v5750 = vadd.f32 %v4970, %v5749
        %v5751 = vpop.f32.mrb[0].mxu0
        %v5752 = vadd.f32 %v4966, %v5751
        %v5753 = vpop.f32.mrb[0].mxu0
        %v5754 = vadd.f32 %v4970, %v5753
        %5755 = vdwg.mxu0
        %5756 = vmatprep.subr.bf16.mxu0 %v5390
        %5757 = vmatpush1.bf16.msra.mxu0 %v5389
        %5758 = vmatprep.subr.bf16.mxu0 %v5398
        %5759 = vmatpush1.bf16.msra.mxu0 %v5397
        %5760 = vmatprep.subr.bf16.mxu0 %v5406
        %5761 = vmatpush1.bf16.msra.mxu0 %v5405
        %5762 = vmatprep.subr.bf16.mxu0 %v5414
        %5763 = vmatpush1.bf16.msra.mxu0 %v5413
        %5764 = vmatprep.subr.bf16.mxu0 %v5422
        %5765 = vmatpush1.bf16.msra.mxu0 %v5421
        %5766 = vmatprep.subr.bf16.mxu0 %v5430
        %5767 = vmatpush1.bf16.msra.mxu0 %v5429
        %5768 = vmatprep.subr.bf16.mxu0 %v5438
        %5769 = vmatpush1.bf16.msra.mxu0 %v5437
        %5770 = vmatprep.subr.bf16.mxu0 %v5446
        %5771 = vmatpush1.bf16.msra.mxu0 %v5445
        %5772 = vmatprep.subr.bf16.mxu0 %v5454
        %5773 = vmatpush1.bf16.msra.mxu0 %v5453
        %5774 = vmatprep.subr.bf16.mxu0 %v5462
        %5775 = vmatpush1.bf16.msra.mxu0 %v5461
        %5776 = vmatprep.subr.bf16.mxu0 %v5470
        %5777 = vmatpush1.bf16.msra.mxu0 %v5469
        %5778 = vmatprep.subr.bf16.mxu0 %v5478
        %5779 = vmatpush1.bf16.msra.mxu0 %v5477
        %5780 = vmatprep.subr.bf16.mxu0 %v5486
        %5781 = vmatpush1.bf16.msra.mxu0 %v5485
        %5782 = vmatprep.subr.bf16.mxu0 %v5494
        %5783 = vmatpush1.bf16.msra.mxu0 %v5493
        %5784 = vmatprep.subr.bf16.mxu0 %v5502
        %5785 = vmatpush1.bf16.msra.mxu0 %v5501
        %5786 = vmatprep.subr.bf16.mxu0 %v5510
        %5787 = vmatpush1.bf16.msra.mxu0 %v5509
        %5788 = vmatprep.mubr.bf16.mxu0 %v4818
        %5789 = vmatmul.mubr.bf16.gmra.mrb[0].mxu0 %v4817
        %v5790 = vpop.f32.mrb[0].mxu0
        %v5791 = vadd.f32 %v4974, %v5790
        %v5792 = vpop.f32.mrb[0].mxu0
        %v5793 = vadd.f32 %v4978, %v5792
        %v5794 = vpop.f32.mrb[0].mxu0
        %v5795 = vadd.f32 %v4974, %v5794
        %v5796 = vpop.f32.mrb[0].mxu0
        %v5797 = vadd.f32 %v4978, %v5796
        %5798 = vmatprep.mubr.bf16.mxu0 %v4820
        %5799 = vmatmul.mubr.bf16.gmra.mrb[0].mxu0 %v4819
        %v5800 = vpop.f32.mrb[0].mxu0
        %v5801 = vadd.f32 %v4974, %v5800
        %v5802 = vpop.f32.mrb[0].mxu0
        %v5803 = vadd.f32 %v4978, %v5802
        %v5804 = vpop.f32.mrb[0].mxu0
        %v5805 = vadd.f32 %v4974, %v5804
        %v5806 = vpop.f32.mrb[0].mxu0
        %v5807 = vadd.f32 %v4978, %v5806
        %5808 = vmatprep.mubr.bf16.mxu0 %v4822
        %5809 = vmatmul.mubr.bf16.gmra.mrb[0].mxu0 %v4821
        %v5810 = vpop.f32.mrb[0].mxu0
        %v5811 = vadd.f32 %v4974, %v5810
        %v5812 = vpop.f32.mrb[0].mxu0
        %v5813 = vadd.f32 %v4978, %v5812
        %v5814 = vpop.f32.mrb[0].mxu0
        %v5815 = vadd.f32 %v4974, %v5814
        %v5816 = vpop.f32.mrb[0].mxu0
        %v5817 = vadd.f32 %v4978, %v5816
        %5818 = vmatprep.mubr.bf16.mxu0 %v4824
        %5819 = vmatmul.mubr.bf16.gmra.mrb[0].mxu0 %v4823
        %v5820 = vpop.f32.mrb[0].mxu0
        %v5821 = vadd.f32 %v4974, %v5820
        %v5822 = vpop.f32.mrb[0].mxu0
        %v5823 = vadd.f32 %v4978, %v5822
        %v5824 = vpop.f32.mrb[0].mxu0
        %v5825 = vadd.f32 %v4974, %v5824
        %v5826 = vpop.f32.mrb[0].mxu0
        %v5827 = vadd.f32 %v4978, %v5826
        %5828 = vmatprep.mubr.bf16.mxu0 %v4826
        %5829 = vmatmul.mubr.bf16.gmra.mrb[0].mxu0 %v4825
        %v5830 = vpop.f32.mrb[0].mxu0
        %v5831 = vadd.f32 %v4974, %v5830
        %v5832 = vpop.f32.mrb[0].mxu0
        %v5833 = vadd.f32 %v4978, %v5832
        %v5834 = vpop.f32.mrb[0].mxu0
        %v5835 = vadd.f32 %v4974, %v5834
        %v5836 = vpop.f32.mrb[0].mxu0
        %v5837 = vadd.f32 %v4978, %v5836
        %5838 = vmatprep.mubr.bf16.mxu0 %v4828
        %5839 = vmatmul.mubr.bf16.gmra.mrb[0].mxu0 %v4827
        %v5840 = vpop.f32.mrb[0].mxu0
        %v5841 = vadd.f32 %v4974, %v5840
        %v5842 = vpop.f32.mrb[0].mxu0
        %v5843 = vadd.f32 %v4978, %v5842
        %v5844 = vpop.f32.mrb[0].mxu0
        %v5845 = vadd.f32 %v4974, %v5844
        %v5846 = vpop.f32.mrb[0].mxu0
        %v5847 = vadd.f32 %v4978, %v5846
        %5848 = vmatprep.mubr.bf16.mxu0 %v4830
        %5849 = vmatmul.mubr.bf16.gmra.mrb[0].mxu0 %v4829
        %v5850 = vpop.f32.mrb[0].mxu0
        %v5851 = vadd.f32 %v4974, %v5850
        %v5852 = vpop.f32.mrb[0].mxu0
        %v5853 = vadd.f32 %v4978, %v5852
        %v5854 = vpop.f32.mrb[0].mxu0
        %v5855 = vadd.f32 %v4974, %v5854
        %v5856 = vpop.f32.mrb[0].mxu0
        %v5857 = vadd.f32 %v4978, %v5856
        %5858 = vmatprep.mubr.bf16.mxu0 %v4832
        %5859 = vmatmul.mubr.bf16.gmra.mrb[0].mxu0 %v4831
        %v5860 = vpop.f32.mrb[0].mxu0
        %v5861 = vadd.f32 %v4974, %v5860
        %v5862 = vpop.f32.mrb[0].mxu0
        %v5863 = vadd.f32 %v4978, %v5862
        %v5864 = vpop.f32.mrb[0].mxu0
        %v5865 = vadd.f32 %v4974, %v5864
        %v5866 = vpop.f32.mrb[0].mxu0
        %v5867 = vadd.f32 %v4978, %v5866
        %5868 = vdwg.mxu0
        %5869 = vmatprep.subr.bf16.mxu0 %v5392
        %5870 = vmatpush1.bf16.msra.mxu0 %v5391
        %5871 = vmatprep.subr.bf16.mxu0 %v5400
        %5872 = vmatpush1.bf16.msra.mxu0 %v5399
        %5873 = vmatprep.subr.bf16.mxu0 %v5408
        %5874 = vmatpush1.bf16.msra.mxu0 %v5407
        %5875 = vmatprep.subr.bf16.mxu0 %v5416
        %5876 = vmatpush1.bf16.msra.mxu0 %v5415
        %5877 = vmatprep.subr.bf16.mxu0 %v5424
        %5878 = vmatpush1.bf16.msra.mxu0 %v5423
        %5879 = vmatprep.subr.bf16.mxu0 %v5432
        %5880 = vmatpush1.bf16.msra.mxu0 %v5431
        %5881 = vmatprep.subr.bf16.mxu0 %v5440
        %5882 = vmatpush1.bf16.msra.mxu0 %v5439
        %5883 = vmatprep.subr.bf16.mxu0 %v5448
        %5884 = vmatpush1.bf16.msra.mxu0 %v5447
        %5885 = vmatprep.subr.bf16.mxu0 %v5456
        %5886 = vmatpush1.bf16.msra.mxu0 %v5455
        %5887 = vmatprep.subr.bf16.mxu0 %v5464
        %5888 = vmatpush1.bf16.msra.mxu0 %v5463
        %5889 = vmatprep.subr.bf16.mxu0 %v5472
        %5890 = vmatpush1.bf16.msra.mxu0 %v5471
        %5891 = vmatprep.subr.bf16.mxu0 %v5480
        %5892 = vmatpush1.bf16.msra.mxu0 %v5479
        %5893 = vmatprep.subr.bf16.mxu0 %v5488
        %5894 = vmatpush1.bf16.msra.mxu0 %v5487
        %5895 = vmatprep.subr.bf16.mxu0 %v5496
        %5896 = vmatpush1.bf16.msra.mxu0 %v5495
        %5897 = vmatprep.subr.bf16.mxu0 %v5504
        %5898 = vmatpush1.bf16.msra.mxu0 %v5503
        %5899 = vmatprep.subr.bf16.mxu0 %v5512
        %5900 = vmatpush1.bf16.msra.mxu0 %v5511
        %5901 = vmatprep.mubr.bf16.mxu0 %v4818
        %5902 = vmatmul.mubr.bf16.gmra.mrb[0].mxu0 %v4817
        %v5903 = vpop.f32.mrb[0].mxu0
        %v5904 = vadd.f32 %v4982, %v5903
        %v5905 = vpop.f32.mrb[0].mxu0
        %v5906 = vadd.f32 %v4986, %v5905
        %v5907 = vpop.f32.mrb[0].mxu0
        %v5908 = vadd.f32 %v4982, %v5907
        %v5909 = vpop.f32.mrb[0].mxu0
        %v5910 = vadd.f32 %v4986, %v5909
        %5911 = vmatprep.mubr.bf16.mxu0 %v4820
        %5912 = vmatmul.mubr.bf16.gmra.mrb[0].mxu0 %v4819
        %v5913 = vpop.f32.mrb[0].mxu0
        %v5914 = vadd.f32 %v4982, %v5913
        %v5915 = vpop.f32.mrb[0].mxu0
        %v5916 = vadd.f32 %v4986, %v5915
        %v5917 = vpop.f32.mrb[0].mxu0
        %v5918 = vadd.f32 %v4982, %v5917
        %v5919 = vpop.f32.mrb[0].mxu0
        %v5920 = vadd.f32 %v4986, %v5919
        %5921 = vmatprep.mubr.bf16.mxu0 %v4822
        %5922 = vmatmul.mubr.bf16.gmra.mrb[0].mxu0 %v4821
        %v5923 = vpop.f32.mrb[0].mxu0
        %v5924 = vadd.f32 %v4982, %v5923
        %v5925 = vpop.f32.mrb[0].mxu0
        %v5926 = vadd.f32 %v4986, %v5925
        %v5927 = vpop.f32.mrb[0].mxu0
        %v5928 = vadd.f32 %v4982, %v5927
        %v5929 = vpop.f32.mrb[0].mxu0
        %v5930 = vadd.f32 %v4986, %v5929
        %5931 = vmatprep.mubr.bf16.mxu0 %v4824
        %5932 = vmatmul.mubr.bf16.gmra.mrb[0].mxu0 %v4823
        %v5933 = vpop.f32.mrb[0].mxu0
        %v5934 = vadd.f32 %v4982, %v5933
        %v5935 = vpop.f32.mrb[0].mxu0
        %v5936 = vadd.f32 %v4986, %v5935
        %v5937 = vpop.f32.mrb[0].mxu0
        %v5938 = vadd.f32 %v4982, %v5937
        %v5939 = vpop.f32.mrb[0].mxu0
        %v5940 = vadd.f32 %v4986, %v5939
        %5941 = vmatprep.mubr.bf16.mxu0 %v4826
        %5942 = vmatmul.mubr.bf16.gmra.mrb[0].mxu0 %v4825
        %v5943 = vpop.f32.mrb[0].mxu0
        %v5944 = vadd.f32 %v4982, %v5943
        %v5945 = vpop.f32.mrb[0].mxu0
        %v5946 = vadd.f32 %v4986, %v5945
        %v5947 = vpop.f32.mrb[0].mxu0
        %v5948 = vadd.f32 %v4982, %v5947
        %v5949 = vpop.f32.mrb[0].mxu0
        %v5950 = vadd.f32 %v4986, %v5949
        %5951 = vmatprep.mubr.bf16.mxu0 %v4828
        %5952 = vmatmul.mubr.bf16.gmra.mrb[0].mxu0 %v4827
        %v5953 = vpop.f32.mrb[0].mxu0
        %v5954 = vadd.f32 %v4982, %v5953
        %v5955 = vpop.f32.mrb[0].mxu0
        %v5956 = vadd.f32 %v4986, %v5955
        %v5957 = vpop.f32.mrb[0].mxu0
        %v5958 = vadd.f32 %v4982, %v5957
        %v5959 = vpop.f32.mrb[0].mxu0
        %v5960 = vadd.f32 %v4986, %v5959
        %5961 = vmatprep.mubr.bf16.mxu0 %v4830
        %5962 = vmatmul.mubr.bf16.gmra.mrb[0].mxu0 %v4829
        %v5963 = vpop.f32.mrb[0].mxu0
        %v5964 = vadd.f32 %v4982, %v5963
        %v5965 = vpop.f32.mrb[0].mxu0
        %v5966 = vadd.f32 %v4986, %v5965
        %v5967 = vpop.f32.mrb[0].mxu0
        %v5968 = vadd.f32 %v4982, %v5967
        %v5969 = vpop.f32.mrb[0].mxu0
        %v5970 = vadd.f32 %v4986, %v5969
        %5971 = vmatprep.mubr.bf16.mxu0 %v4832
        %5972 = vmatmul.mubr.bf16.gmra.mrb[0].mxu0 %v4831
        %v5973 = vpop.f32.mrb[0].mxu0
        %v5974 = vadd.f32 %v4982, %v5973
        %v5975 = vpop.f32.mrb[0].mxu0
        %v5976 = vadd.f32 %v4986, %v5975
        %v5977 = vpop.f32.mrb[0].mxu0
        %v5978 = vadd.f32 %v4982, %v5977
        %v5979 = vpop.f32.mrb[0].mxu0
        %v5980 = vadd.f32 %v4986, %v5979
        %5981 = vdwg.mxu0
        %5982 = vmatprep.subr.bf16.mxu0 %v5394
        %5983 = vmatpush1.bf16.msra.mxu0 %v5393
        %5984 = vmatprep.subr.bf16.mxu0 %v5402
        %5985 = vmatpush1.bf16.msra.mxu0 %v5401
        %5986 = vmatprep.subr.bf16.mxu0 %v5410
        %5987 = vmatpush1.bf16.msra.mxu0 %v5409
        %5988 = vmatprep.subr.bf16.mxu0 %v5418
        %5989 = vmatpush1.bf16.msra.mxu0 %v5417
        %5990 = vmatprep.subr.bf16.mxu0 %v5426
        %5991 = vmatpush1.bf16.msra.mxu0 %v5425
        %5992 = vmatprep.subr.bf16.mxu0 %v5434
        %5993 = vmatpush1.bf16.msra.mxu0 %v5433
        %5994 = vmatprep.subr.bf16.mxu0 %v5442
        %5995 = vmatpush1.bf16.msra.mxu0 %v5441
        %5996 = vmatprep.subr.bf16.mxu0 %v5450
        %5997 = vmatpush1.bf16.msra.mxu0 %v5449
        %5998 = vmatprep.subr.bf16.mxu0 %v5458
        %5999 = vmatpush1.bf16.msra.mxu0 %v5457
        %6000 = vmatprep.subr.bf16.mxu0 %v5466
        %6001 = vmatpush1.bf16.msra.mxu0 %v5465
        %6002 = vmatprep.subr.bf16.mxu0 %v5474
        %6003 = vmatpush1.bf16.msra.mxu0 %v5473
        %6004 = vmatprep.subr.bf16.mxu0 %v5482
        %6005 = vmatpush1.bf16.msra.mxu0 %v5481
        %6006 = vmatprep.subr.bf16.mxu0 %v5490
        %6007 = vmatpush1.bf16.msra.mxu0 %v5489
        %6008 = vmatprep.subr.bf16.mxu0 %v5498
        %6009 = vmatpush1.bf16.msra.mxu0 %v5497
        %6010 = vmatprep.subr.bf16.mxu0 %v5506
        %6011 = vmatpush1.bf16.msra.mxu0 %v5505
        %6012 = vmatprep.subr.bf16.mxu0 %v5514
        %6013 = vmatpush1.bf16.msra.mxu0 %v5513
        %6014 = vmatprep.mubr.bf16.mxu0 %v4818
        %6015 = vmatmul.mubr.bf16.gmra.mrb[0].mxu0 %v4817
        %v6016 = vpop.f32.mrb[0].mxu0
        %v6017 = vadd.f32 %v4990, %v6016
        %v6018 = vpop.f32.mrb[0].mxu0
        %v6019 = vadd.f32 %v4994, %v6018
        %v6020 = vpop.f32.mrb[0].mxu0
        %v6021 = vadd.f32 %v4990, %v6020
        %v6022 = vpop.f32.mrb[0].mxu0
        %v6023 = vadd.f32 %v4994, %v6022
        %6024 = vmatprep.mubr.bf16.mxu0 %v4820
        %6025 = vmatmul.mubr.bf16.gmra.mrb[0].mxu0 %v4819
        %v6026 = vpop.f32.mrb[0].mxu0
        %v6027 = vadd.f32 %v4990, %v6026
        %v6028 = vpop.f32.mrb[0].mxu0
        %v6029 = vadd.f32 %v4994, %v6028
        %v6030 = vpop.f32.mrb[0].mxu0
        %v6031 = vadd.f32 %v4990, %v6030
        %v6032 = vpop.f32.mrb[0].mxu0
        %v6033 = vadd.f32 %v4994, %v6032
        %6034 = vmatprep.mubr.bf16.mxu0 %v4822
        %6035 = vmatmul.mubr.bf16.gmra.mrb[0].mxu0 %v4821
        %v6036 = vpop.f32.mrb[0].mxu0
        %v6037 = vadd.f32 %v4990, %v6036
        %v6038 = vpop.f32.mrb[0].mxu0
        %v6039 = vadd.f32 %v4994, %v6038
        %v6040 = vpop.f32.mrb[0].mxu0
        %v6041 = vadd.f32 %v4990, %v6040
        %v6042 = vpop.f32.mrb[0].mxu0
        %v6043 = vadd.f32 %v4994, %v6042
        %6044 = vmatprep.mubr.bf16.mxu0 %v4824
        %6045 = vmatmul.mubr.bf16.gmra.mrb[0].mxu0 %v4823
        %v6046 = vpop.f32.mrb[0].mxu0
        %v6047 = vadd.f32 %v4990, %v6046
        %v6048 = vpop.f32.mrb[0].mxu0
        %v6049 = vadd.f32 %v4994, %v6048
        %v6050 = vpop.f32.mrb[0].mxu0
        %v6051 = vadd.f32 %v4990, %v6050
        %v6052 = vpop.f32.mrb[0].mxu0
        %v6053 = vadd.f32 %v4994, %v6052
        %6054 = vmatprep.mubr.bf16.mxu0 %v4826
        %6055 = vmatmul.mubr.bf16.gmra.mrb[0].mxu0 %v4825
        %v6056 = vpop.f32.mrb[0].mxu0
        %v6057 = vadd.f32 %v4990, %v6056
        %v6058 = vpop.f32.mrb[0].mxu0
        %v6059 = vadd.f32 %v4994, %v6058
        %v6060 = vpop.f32.mrb[0].mxu0
        %v6061 = vadd.f32 %v4990, %v6060
        %v6062 = vpop.f32.mrb[0].mxu0
        %v6063 = vadd.f32 %v4994, %v6062
        %6064 = vmatprep.mubr.bf16.mxu0 %v4828
        %6065 = vmatmul.mubr.bf16.gmra.mrb[0].mxu0 %v4827
        %v6066 = vpop.f32.mrb[0].mxu0
        %v6067 = vadd.f32 %v4990, %v6066
        %v6068 = vpop.f32.mrb[0].mxu0
        %v6069 = vadd.f32 %v4994, %v6068
        %v6070 = vpop.f32.mrb[0].mxu0
        %v6071 = vadd.f32 %v4990, %v6070
        %v6072 = vpop.f32.mrb[0].mxu0
        %v6073 = vadd.f32 %v4994, %v6072
        %6074 = vmatprep.mubr.bf16.mxu0 %v4830
        %6075 = vmatmul.mubr.bf16.gmra.mrb[0].mxu0 %v4829
        %v6076 = vpop.f32.mrb[0].mxu0
        %v6077 = vadd.f32 %v4990, %v6076
        %v6078 = vpop.f32.mrb[0].mxu0
        %v6079 = vadd.f32 %v4994, %v6078
        %v6080 = vpop.f32.mrb[0].mxu0
        %v6081 = vadd.f32 %v4990, %v6080
        %v6082 = vpop.f32.mrb[0].mxu0
        %v6083 = vadd.f32 %v4994, %v6082
        %6084 = vmatprep.mubr.bf16.mxu0 %v4832
        %6085 = vmatmul.mubr.bf16.gmra.mrb[0].mxu0 %v4831
        %v6086 = vpop.f32.mrb[0].mxu0
        %v6087 = vadd.f32 %v4990, %v6086
        %v6088 = vpop.f32.mrb[0].mxu0
        %v6089 = vadd.f32 %v4994, %v6088
        %v6090 = vpop.f32.mrb[0].mxu0
        %v6091 = vadd.f32 %v4990, %v6090
        %v6092 = vpop.f32.mrb[0].mxu0
        %v6093 = vadd.f32 %v4994, %v6092
        %6094 = vdwg.mxu0
        %v6095 = vmul.f32 %v5678, 1.702
        %v6096 = vmul.f32 %v5680, 1.702
        %v6097 = vmul.f32 %v5791, 1.702
        %v6098 = vmul.f32 %v5793, 1.702
        %v6099 = vmul.f32 %v5904, 1.702
        %v6100 = vmul.f32 %v5906, 1.702
        %v6101 = vmul.f32 %v6017, 1.702
        %v6102 = vmul.f32 %v6019, 1.702
        %v6103 = vmul.f32 %v5682, 1.702
        %v6104 = vmul.f32 %v5684, 1.702
        %v6105 = vmul.f32 %v5795, 1.702
        %v6106 = vmul.f32 %v5797, 1.702
        %v6107 = vmul.f32 %v5908, 1.702
        %v6108 = vmul.f32 %v5910, 1.702
        %v6109 = vmul.f32 %v6021, 1.702
        %v6110 = vmul.f32 %v6023, 1.702
        %v6111 = vmul.f32 %v5688, 1.702
        %v6112 = vmul.f32 %v5690, 1.702
        %v6113 = vmul.f32 %v5801, 1.702
        %v6114 = vmul.f32 %v5803, 1.702
        %v6115 = vmul.f32 %v5914, 1.702
        %v6116 = vmul.f32 %v5916, 1.702
        %v6117 = vmul.f32 %v6027, 1.702
        %v6118 = vmul.f32 %v6029, 1.702
        %v6119 = vmul.f32 %v5692, 1.702
        %v6120 = vmul.f32 %v5694, 1.702
        %v6121 = vmul.f32 %v5805, 1.702
        %v6122 = vmul.f32 %v5807, 1.702
        %v6123 = vmul.f32 %v5918, 1.702
        %v6124 = vmul.f32 %v5920, 1.702
        %v6125 = vmul.f32 %v6031, 1.702
        %v6126 = vmul.f32 %v6033, 1.702
        %v6127 = vmul.f32 %v5698, 1.702
        %v6128 = vmul.f32 %v5700, 1.702
        %v6129 = vmul.f32 %v5811, 1.702
        %v6130 = vmul.f32 %v5813, 1.702
        %v6131 = vmul.f32 %v5924, 1.702
        %v6132 = vmul.f32 %v5926, 1.702
        %v6133 = vmul.f32 %v6037, 1.702
        %v6134 = vmul.f32 %v6039, 1.702
        %v6135 = vmul.f32 %v5702, 1.702
        %v6136 = vmul.f32 %v5704, 1.702
        %v6137 = vmul.f32 %v5815, 1.702
        %v6138 = vmul.f32 %v5817, 1.702
        %v6139 = vmul.f32 %v5928, 1.702
        %v6140 = vmul.f32 %v5930, 1.702
        %v6141 = vmul.f32 %v6041, 1.702
        %v6142 = vmul.f32 %v6043, 1.702
        %v6143 = vmul.f32 %v5708, 1.702
        %v6144 = vmul.f32 %v5710, 1.702
        %v6145 = vmul.f32 %v5821, 1.702
        %v6146 = vmul.f32 %v5823, 1.702
        %v6147 = vmul.f32 %v5934, 1.702
        %v6148 = vmul.f32 %v5936, 1.702
        %v6149 = vmul.f32 %v6047, 1.702
        %v6150 = vmul.f32 %v6049, 1.702
        %v6151 = vmul.f32 %v5712, 1.702
        %v6152 = vmul.f32 %v5714, 1.702
        %v6153 = vmul.f32 %v5825, 1.702
        %v6154 = vmul.f32 %v5827, 1.702
        %v6155 = vmul.f32 %v5938, 1.702
        %v6156 = vmul.f32 %v5940, 1.702
        %v6157 = vmul.f32 %v6051, 1.702
        %v6158 = vmul.f32 %v6053, 1.702
        %v6159 = vmul.f32 %v5718, 1.702
        %v6160 = vmul.f32 %v5720, 1.702
        %v6161 = vmul.f32 %v5831, 1.702
        %v6162 = vmul.f32 %v5833, 1.702
        %v6163 = vmul.f32 %v5944, 1.702
        %v6164 = vmul.f32 %v5946, 1.702
        %v6165 = vmul.f32 %v6057, 1.702
        %v6166 = vmul.f32 %v6059, 1.702
        %v6167 = vmul.f32 %v5722, 1.702
        %v6168 = vmul.f32 %v5724, 1.702
        %v6169 = vmul.f32 %v5835, 1.702
        %v6170 = vmul.f32 %v5837, 1.702
        %v6171 = vmul.f32 %v5948, 1.702
        %v6172 = vmul.f32 %v5950, 1.702
        %v6173 = vmul.f32 %v6061, 1.702
        %v6174 = vmul.f32 %v6063, 1.702
        %v6175 = vmul.f32 %v5728, 1.702
        %v6176 = vmul.f32 %v5730, 1.702
        %v6177 = vmul.f32 %v5841, 1.702
        %v6178 = vmul.f32 %v5843, 1.702
        %v6179 = vmul.f32 %v5954, 1.702
        %v6180 = vmul.f32 %v5956, 1.702
        %v6181 = vmul.f32 %v6067, 1.702
        %v6182 = vmul.f32 %v6069, 1.702
        %v6183 = vmul.f32 %v5732, 1.702
        %v6184 = vmul.f32 %v5734, 1.702
        %v6185 = vmul.f32 %v5845, 1.702
        %v6186 = vmul.f32 %v5847, 1.702
        %v6187 = vmul.f32 %v5958, 1.702
        %v6188 = vmul.f32 %v5960, 1.702
        %v6189 = vmul.f32 %v6071, 1.702
        %v6190 = vmul.f32 %v6073, 1.702
        %v6191 = vmul.f32 %v5738, 1.702
        %v6192 = vmul.f32 %v5740, 1.702
        %v6193 = vmul.f32 %v5851, 1.702
        %v6194 = vmul.f32 %v5853, 1.702
        %v6195 = vmul.f32 %v5964, 1.702
        %v6196 = vmul.f32 %v5966, 1.702
        %v6197 = vmul.f32 %v6077, 1.702
        %v6198 = vmul.f32 %v6079, 1.702
        %v6199 = vmul.f32 %v5742, 1.702
        %v6200 = vmul.f32 %v5744, 1.702
        %v6201 = vmul.f32 %v5855, 1.702
        %v6202 = vmul.f32 %v5857, 1.702
        %v6203 = vmul.f32 %v5968, 1.702
        %v6204 = vmul.f32 %v5970, 1.702
        %v6205 = vmul.f32 %v6081, 1.702
        %v6206 = vmul.f32 %v6083, 1.702
        %v6207 = vmul.f32 %v5748, 1.702
        %v6208 = vmul.f32 %v5750, 1.702
        %v6209 = vmul.f32 %v5861, 1.702
        %v6210 = vmul.f32 %v5863, 1.702
        %v6211 = vmul.f32 %v5974, 1.702
        %v6212 = vmul.f32 %v5976, 1.702
        %v6213 = vmul.f32 %v6087, 1.702
        %v6214 = vmul.f32 %v6089, 1.702
        %v6215 = vmul.f32 %v5752, 1.702
        %v6216 = vmul.f32 %v5754, 1.702
        %v6217 = vmul.f32 %v5865, 1.702
        %v6218 = vmul.f32 %v5867, 1.702
        %v6219 = vmul.f32 %v5978, 1.702
        %v6220 = vmul.f32 %v5980, 1.702
        %v6221 = vmul.f32 %v6091, 1.702
        %v6222 = vmul.f32 %v6093, 1.702
        %v6223 = vxor.u32 %v6095, 2147483648
        %v6224 = vxor.u32 %v6096, 2147483648
        %v6225 = vxor.u32 %v6097, 2147483648
        %v6226 = vxor.u32 %v6098, 2147483648
        %v6227 = vxor.u32 %v6099, 2147483648
        %v6228 = vxor.u32 %v6100, 2147483648
        %v6229 = vxor.u32 %v6101, 2147483648
        %v6230 = vxor.u32 %v6102, 2147483648
        %v6231 = vxor.u32 %v6103, 2147483648
        %v6232 = vxor.u32 %v6104, 2147483648
        %v6233 = vxor.u32 %v6105, 2147483648
        %v6234 = vxor.u32 %v6106, 2147483648
        %v6235 = vxor.u32 %v6107, 2147483648
        %v6236 = vxor.u32 %v6108, 2147483648
        %v6237 = vxor.u32 %v6109, 2147483648
        %v6238 = vxor.u32 %v6110, 2147483648
        %v6239 = vxor.u32 %v6111, 2147483648
        %v6240 = vxor.u32 %v6112, 2147483648
        %v6241 = vxor.u32 %v6113, 2147483648
        %v6242 = vxor.u32 %v6114, 2147483648
        %v6243 = vxor.u32 %v6115, 2147483648
        %v6244 = vxor.u32 %v6116, 2147483648
        %v6245 = vxor.u32 %v6117, 2147483648
        %v6246 = vxor.u32 %v6118, 2147483648
        %v6247 = vxor.u32 %v6119, 2147483648
        %v6248 = vxor.u32 %v6120, 2147483648
        %v6249 = vxor.u32 %v6121, 2147483648
        %v6250 = vxor.u32 %v6122, 2147483648
        %v6251 = vxor.u32 %v6123, 2147483648
        %v6252 = vxor.u32 %v6124, 2147483648
        %v6253 = vxor.u32 %v6125, 2147483648
        %v6254 = vxor.u32 %v6126, 2147483648
        %v6255 = vxor.u32 %v6127, 2147483648
        %v6256 = vxor.u32 %v6128, 2147483648
        %v6257 = vxor.u32 %v6129, 2147483648
        %v6258 = vxor.u32 %v6130, 2147483648
        %v6259 = vxor.u32 %v6131, 2147483648
        %v6260 = vxor.u32 %v6132, 2147483648
        %v6261 = vxor.u32 %v6133, 2147483648
        %v6262 = vxor.u32 %v6134, 2147483648
        %v6263 = vxor.u32 %v6135, 2147483648
        %v6264 = vxor.u32 %v6136, 2147483648
        %v6265 = vxor.u32 %v6137, 2147483648
        %v6266 = vxor.u32 %v6138, 2147483648
        %v6267 = vxor.u32 %v6139, 2147483648
        %v6268 = vxor.u32 %v6140, 2147483648
        %v6269 = vxor.u32 %v6141, 2147483648
        %v6270 = vxor.u32 %v6142, 2147483648
        %v6271 = vxor.u32 %v6143, 2147483648
        %v6272 = vxor.u32 %v6144, 2147483648
        %v6273 = vxor.u32 %v6145, 2147483648
        %v6274 = vxor.u32 %v6146, 2147483648
        %v6275 = vxor.u32 %v6147, 2147483648
        %v6276 = vxor.u32 %v6148, 2147483648
        %v6277 = vxor.u32 %v6149, 2147483648
        %v6278 = vxor.u32 %v6150, 2147483648
        %v6279 = vxor.u32 %v6151, 2147483648
        %v6280 = vxor.u32 %v6152, 2147483648
        %v6281 = vxor.u32 %v6153, 2147483648
        %v6282 = vxor.u32 %v6154, 2147483648
        %v6283 = vxor.u32 %v6155, 2147483648
        %v6284 = vxor.u32 %v6156, 2147483648
        %v6285 = vxor.u32 %v6157, 2147483648
        %v6286 = vxor.u32 %v6158, 2147483648
        %v6287 = vxor.u32 %v6159, 2147483648
        %v6288 = vxor.u32 %v6160, 2147483648
        %v6289 = vxor.u32 %v6161, 2147483648
        %v6290 = vxor.u32 %v6162, 2147483648
        %v6291 = vxor.u32 %v6163, 2147483648
        %v6292 = vxor.u32 %v6164, 2147483648
        %v6293 = vxor.u32 %v6165, 2147483648
        %v6294 = vxor.u32 %v6166, 2147483648
        %v6295 = vxor.u32 %v6167, 2147483648
        %v6296 = vxor.u32 %v6168, 2147483648
        %v6297 = vxor.u32 %v6169, 2147483648
        %v6298 = vxor.u32 %v6170, 2147483648
        %v6299 = vxor.u32 %v6171, 2147483648
        %v6300 = vxor.u32 %v6172, 2147483648
        %v6301 = vxor.u32 %v6173, 2147483648
        %v6302 = vxor.u32 %v6174, 2147483648
        %v6303 = vxor.u32 %v6175, 2147483648
        %v6304 = vxor.u32 %v6176, 2147483648
        %v6305 = vxor.u32 %v6177, 2147483648
        %v6306 = vxor.u32 %v6178, 2147483648
        %v6307 = vxor.u32 %v6179, 2147483648
        %v6308 = vxor.u32 %v6180, 2147483648
        %v6309 = vxor.u32 %v6181, 2147483648
        %v6310 = vxor.u32 %v6182, 2147483648
        %v6311 = vxor.u32 %v6183, 2147483648
        %v6312 = vxor.u32 %v6184, 2147483648
        %v6313 = vxor.u32 %v6185, 2147483648
        %v6314 = vxor.u32 %v6186, 2147483648
        %v6315 = vxor.u32 %v6187, 2147483648
        %v6316 = vxor.u32 %v6188, 2147483648
        %v6317 = vxor.u32 %v6189, 2147483648
        %v6318 = vxor.u32 %v6190, 2147483648
        %v6319 = vxor.u32 %v6191, 2147483648
        %v6320 = vxor.u32 %v6192, 2147483648
        %v6321 = vxor.u32 %v6193, 2147483648
        %v6322 = vxor.u32 %v6194, 2147483648
        %v6323 = vxor.u32 %v6195, 2147483648
        %v6324 = vxor.u32 %v6196, 2147483648
        %v6325 = vxor.u32 %v6197, 2147483648
        %v6326 = vxor.u32 %v6198, 2147483648
        %v6327 = vxor.u32 %v6199, 2147483648
        %v6328 = vxor.u32 %v6200, 2147483648
        %v6329 = vxor.u32 %v6201, 2147483648
        %v6330 = vxor.u32 %v6202, 2147483648
        %v6331 = vxor.u32 %v6203, 2147483648
        %v6332 = vxor.u32 %v6204, 2147483648
        %v6333 = vxor.u32 %v6205, 2147483648
        %v6334 = vxor.u32 %v6206, 2147483648
        %v6335 = vxor.u32 %v6207, 2147483648
        %v6336 = vxor.u32 %v6208, 2147483648
        %v6337 = vxor.u32 %v6209, 2147483648
        %v6338 = vxor.u32 %v6210, 2147483648
        %v6339 = vxor.u32 %v6211, 2147483648
        %v6340 = vxor.u32 %v6212, 2147483648
        %v6341 = vxor.u32 %v6213, 2147483648
        %v6342 = vxor.u32 %v6214, 2147483648
        %v6343 = vxor.u32 %v6215, 2147483648
        %v6344 = vxor.u32 %v6216, 2147483648
        %v6345 = vxor.u32 %v6217, 2147483648
        %v6346 = vxor.u32 %v6218, 2147483648
        %v6347 = vxor.u32 %v6219, 2147483648
        %v6348 = vxor.u32 %v6220, 2147483648
        %v6349 = vxor.u32 %v6221, 2147483648
        %v6350 = vxor.u32 %v6222, 2147483648
        %v6351 = vmul.f32 %v6223, 1.442695
        %v6352 = vpow.pop %v6351
        %v6353 = vmul.f32 %v6224, 1.442695
        %v6354 = vpow.pop %v6353
        %v6355 = vmul.f32 %v6225, 1.442695
        %v6356 = vpow.pop %v6355
        %v6357 = vmul.f32 %v6226, 1.442695
        %v6358 = vpow.pop %v6357
        %v6359 = vmul.f32 %v6227, 1.442695
        %v6360 = vpow.pop %v6359
        %v6361 = vmul.f32 %v6228, 1.442695
        %v6362 = vpow.pop %v6361
        %v6363 = vmul.f32 %v6229, 1.442695
        %v6364 = vpow.pop %v6363
        %v6365 = vmul.f32 %v6230, 1.442695
        %v6366 = vpow.pop %v6365
        %v6367 = vmul.f32 %v6231, 1.442695
        %v6368 = vpow.pop %v6367
        %v6369 = vmul.f32 %v6232, 1.442695
        %v6370 = vpow.pop %v6369
        %v6371 = vmul.f32 %v6233, 1.442695
        %v6372 = vpow.pop %v6371
        %v6373 = vmul.f32 %v6234, 1.442695
        %v6374 = vpow.pop %v6373
        %v6375 = vmul.f32 %v6235, 1.442695
        %v6376 = vpow.pop %v6375
        %v6377 = vmul.f32 %v6236, 1.442695
        %v6378 = vpow.pop %v6377
        %v6379 = vmul.f32 %v6237, 1.442695
        %v6380 = vpow.pop %v6379
        %v6381 = vmul.f32 %v6238, 1.442695
        %v6382 = vpow.pop %v6381
        %v6383 = vmul.f32 %v6239, 1.442695
        %v6384 = vpow.pop %v6383
        %v6385 = vmul.f32 %v6240, 1.442695
        %v6386 = vpow.pop %v6385
        %v6387 = vmul.f32 %v6241, 1.442695
        %v6388 = vpow.pop %v6387
        %v6389 = vmul.f32 %v6242, 1.442695
        %v6390 = vpow.pop %v6389
        %v6391 = vmul.f32 %v6243, 1.442695
        %v6392 = vpow.pop %v6391
        %v6393 = vmul.f32 %v6244, 1.442695
        %v6394 = vpow.pop %v6393
        %v6395 = vmul.f32 %v6245, 1.442695
        %v6396 = vpow.pop %v6395
        %v6397 = vmul.f32 %v6246, 1.442695
        %v6398 = vpow.pop %v6397
        %v6399 = vmul.f32 %v6247, 1.442695
        %v6400 = vpow.pop %v6399
        %v6401 = vmul.f32 %v6248, 1.442695
        %v6402 = vpow.pop %v6401
        %v6403 = vmul.f32 %v6249, 1.442695
        %v6404 = vpow.pop %v6403
        %v6405 = vmul.f32 %v6250, 1.442695
        %v6406 = vpow.pop %v6405
        %v6407 = vmul.f32 %v6251, 1.442695
        %v6408 = vpow.pop %v6407
        %v6409 = vmul.f32 %v6252, 1.442695
        %v6410 = vpow.pop %v6409
        %v6411 = vmul.f32 %v6253, 1.442695
        %v6412 = vpow.pop %v6411
        %v6413 = vmul.f32 %v6254, 1.442695
        %v6414 = vpow.pop %v6413
        %v6415 = vmul.f32 %v6255, 1.442695
        %v6416 = vpow.pop %v6415
        %v6417 = vmul.f32 %v6256, 1.442695
        %v6418 = vpow.pop %v6417
        %v6419 = vmul.f32 %v6257, 1.442695
        %v6420 = vpow.pop %v6419
        %v6421 = vmul.f32 %v6258, 1.442695
        %v6422 = vpow.pop %v6421
        %v6423 = vmul.f32 %v6259, 1.442695
        %v6424 = vpow.pop %v6423
        %v6425 = vmul.f32 %v6260, 1.442695
        %v6426 = vpow.pop %v6425
        %v6427 = vmul.f32 %v6261, 1.442695
        %v6428 = vpow.pop %v6427
        %v6429 = vmul.f32 %v6262, 1.442695
        %v6430 = vpow.pop %v6429
        %v6431 = vmul.f32 %v6263, 1.442695
        %v6432 = vpow.pop %v6431
        %v6433 = vmul.f32 %v6264, 1.442695
        %v6434 = vpow.pop %v6433
        %v6435 = vmul.f32 %v6265, 1.442695
        %v6436 = vpow.pop %v6435
        %v6437 = vmul.f32 %v6266, 1.442695
        %v6438 = vpow.pop %v6437
        %v6439 = vmul.f32 %v6267, 1.442695
        %v6440 = vpow.pop %v6439
        %v6441 = vmul.f32 %v6268, 1.442695
        %v6442 = vpow.pop %v6441
        %v6443 = vmul.f32 %v6269, 1.442695
        %v6444 = vpow.pop %v6443
        %v6445 = vmul.f32 %v6270, 1.442695
        %v6446 = vpow.pop %v6445
        %v6447 = vmul.f32 %v6271, 1.442695
        %v6448 = vpow.pop %v6447
        %v6449 = vmul.f32 %v6272, 1.442695
        %v6450 = vpow.pop %v6449
        %v6451 = vmul.f32 %v6273, 1.442695
        %v6452 = vpow.pop %v6451
        %v6453 = vmul.f32 %v6274, 1.442695
        %v6454 = vpow.pop %v6453
        %v6455 = vmul.f32 %v6275, 1.442695
        %v6456 = vpow.pop %v6455
        %v6457 = vmul.f32 %v6276, 1.442695
        %v6458 = vpow.pop %v6457
        %v6459 = vmul.f32 %v6277, 1.442695
        %v6460 = vpow.pop %v6459
        %v6461 = vmul.f32 %v6278, 1.442695
        %v6462 = vpow.pop %v6461
        %v6463 = vmul.f32 %v6279, 1.442695
        %v6464 = vpow.pop %v6463
        %v6465 = vmul.f32 %v6280, 1.442695
        %v6466 = vpow.pop %v6465
        %v6467 = vmul.f32 %v6281, 1.442695
        %v6468 = vpow.pop %v6467
        %v6469 = vmul.f32 %v6282, 1.442695
        %v6470 = vpow.pop %v6469
        %v6471 = vmul.f32 %v6283, 1.442695
        %v6472 = vpow.pop %v6471
        %v6473 = vmul.f32 %v6284, 1.442695
        %v6474 = vpow.pop %v6473
        %v6475 = vmul.f32 %v6285, 1.442695
        %v6476 = vpow.pop %v6475
        %v6477 = vmul.f32 %v6286, 1.442695
        %v6478 = vpow.pop %v6477
        %v6479 = vmul.f32 %v6287, 1.442695
        %v6480 = vpow.pop %v6479
        %v6481 = vmul.f32 %v6288, 1.442695
        %v6482 = vpow.pop %v6481
        %v6483 = vmul.f32 %v6289, 1.442695
        %v6484 = vpow.pop %v6483
        %v6485 = vmul.f32 %v6290, 1.442695
        %v6486 = vpow.pop %v6485
        %v6487 = vmul.f32 %v6291, 1.442695
        %v6488 = vpow.pop %v6487
        %v6489 = vmul.f32 %v6292, 1.442695
        %v6490 = vpow.pop %v6489
        %v6491 = vmul.f32 %v6293, 1.442695
        %v6492 = vpow.pop %v6491
        %v6493 = vmul.f32 %v6294, 1.442695
        %v6494 = vpow.pop %v6493
        %v6495 = vmul.f32 %v6295, 1.442695
        %v6496 = vpow.pop %v6495
        %v6497 = vmul.f32 %v6296, 1.442695
        %v6498 = vpow.pop %v6497
        %v6499 = vmul.f32 %v6297, 1.442695
        %v6500 = vpow.pop %v6499
        %v6501 = vmul.f32 %v6298, 1.442695
        %v6502 = vpow.pop %v6501
        %v6503 = vmul.f32 %v6299, 1.442695
        %v6504 = vpow.pop %v6503
        %v6505 = vmul.f32 %v6300, 1.442695
        %v6506 = vpow.pop %v6505
        %v6507 = vmul.f32 %v6301, 1.442695
        %v6508 = vpow.pop %v6507
        %v6509 = vmul.f32 %v6302, 1.442695
        %v6510 = vpow.pop %v6509
        %v6511 = vmul.f32 %v6303, 1.442695
        %v6512 = vpow.pop %v6511
        %v6513 = vmul.f32 %v6304, 1.442695
        %v6514 = vpow.pop %v6513
        %v6515 = vmul.f32 %v6305, 1.442695
        %v6516 = vpow.pop %v6515
        %v6517 = vmul.f32 %v6306, 1.442695
        %v6518 = vpow.pop %v6517
        %v6519 = vmul.f32 %v6307, 1.442695
        %v6520 = vpow.pop %v6519
        %v6521 = vmul.f32 %v6308, 1.442695
        %v6522 = vpow.pop %v6521
        %v6523 = vmul.f32 %v6309, 1.442695
        %v6524 = vpow.pop %v6523
        %v6525 = vmul.f32 %v6310, 1.442695
        %v6526 = vpow.pop %v6525
        %v6527 = vmul.f32 %v6311, 1.442695
        %v6528 = vpow.pop %v6527
        %v6529 = vmul.f32 %v6312, 1.442695
        %v6530 = vpow.pop %v6529
        %v6531 = vmul.f32 %v6313, 1.442695
        %v6532 = vpow.pop %v6531
        %v6533 = vmul.f32 %v6314, 1.442695
        %v6534 = vpow.pop %v6533
        %v6535 = vmul.f32 %v6315, 1.442695
        %v6536 = vpow.pop %v6535
        %v6537 = vmul.f32 %v6316, 1.442695
        %v6538 = vpow.pop %v6537
        %v6539 = vmul.f32 %v6317, 1.442695
        %v6540 = vpow.pop %v6539
        %v6541 = vmul.f32 %v6318, 1.442695
        %v6542 = vpow.pop %v6541
        %v6543 = vmul.f32 %v6319, 1.442695
        %v6544 = vpow.pop %v6543
        %v6545 = vmul.f32 %v6320, 1.442695
        %v6546 = vpow.pop %v6545
        %v6547 = vmul.f32 %v6321, 1.442695
        %v6548 = vpow.pop %v6547
        %v6549 = vmul.f32 %v6322, 1.442695
        %v6550 = vpow.pop %v6549
        %v6551 = vmul.f32 %v6323, 1.442695
        %v6552 = vpow.pop %v6551
        %v6553 = vmul.f32 %v6324, 1.442695
        %v6554 = vpow.pop %v6553
        %v6555 = vmul.f32 %v6325, 1.442695
        %v6556 = vpow.pop %v6555
        %v6557 = vmul.f32 %v6326, 1.442695
        %v6558 = vpow.pop %v6557
        %v6559 = vmul.f32 %v6327, 1.442695
        %v6560 = vpow.pop %v6559
        %v6561 = vmul.f32 %v6328, 1.442695
        %v6562 = vpow.pop %v6561
        %v6563 = vmul.f32 %v6329, 1.442695
        %v6564 = vpow.pop %v6563
        %v6565 = vmul.f32 %v6330, 1.442695
        %v6566 = vpow.pop %v6565
        %v6567 = vmul.f32 %v6331, 1.442695
        %v6568 = vpow.pop %v6567
        %v6569 = vmul.f32 %v6332, 1.442695
        %v6570 = vpow.pop %v6569
        %v6571 = vmul.f32 %v6333, 1.442695
        %v6572 = vpow.pop %v6571
        %v6573 = vmul.f32 %v6334, 1.442695
        %v6574 = vpow.pop %v6573
        %v6575 = vmul.f32 %v6335, 1.442695
        %v6576 = vpow.pop %v6575
        %v6577 = vmul.f32 %v6336, 1.442695
        %v6578 = vpow.pop %v6577
        %v6579 = vmul.f32 %v6337, 1.442695
        %v6580 = vpow.pop %v6579
        %v6581 = vmul.f32 %v6338, 1.442695
        %v6582 = vpow.pop %v6581
        %v6583 = vmul.f32 %v6339, 1.442695
        %v6584 = vpow.pop %v6583
        %v6585 = vmul.f32 %v6340, 1.442695
        %v6586 = vpow.pop %v6585
        %v6587 = vmul.f32 %v6341, 1.442695
        %v6588 = vpow.pop %v6587
        %v6589 = vmul.f32 %v6342, 1.442695
        %v6590 = vpow.pop %v6589
        %v6591 = vmul.f32 %v6343, 1.442695
        %v6592 = vpow.pop %v6591
        %v6593 = vmul.f32 %v6344, 1.442695
        %v6594 = vpow.pop %v6593
        %v6595 = vmul.f32 %v6345, 1.442695
        %v6596 = vpow.pop %v6595
        %v6597 = vmul.f32 %v6346, 1.442695
        %v6598 = vpow.pop %v6597
        %v6599 = vmul.f32 %v6347, 1.442695
        %v6600 = vpow.pop %v6599
        %v6601 = vmul.f32 %v6348, 1.442695
        %v6602 = vpow.pop %v6601
        %v6603 = vmul.f32 %v6349, 1.442695
        %v6604 = vpow.pop %v6603
        %v6605 = vmul.f32 %v6350, 1.442695
        %v6606 = vpow.pop %v6605
        %v6607 = vadd.f32 %v6352, 1.0
        %v6608 = vadd.f32 %v6354, 1.0
        %v6609 = vadd.f32 %v6356, 1.0
        %v6610 = vadd.f32 %v6358, 1.0
        %v6611 = vadd.f32 %v6360, 1.0
        %v6612 = vadd.f32 %v6362, 1.0
        %v6613 = vadd.f32 %v6364, 1.0
        %v6614 = vadd.f32 %v6366, 1.0
        %v6615 = vadd.f32 %v6368, 1.0
        %v6616 = vadd.f32 %v6370, 1.0
        %v6617 = vadd.f32 %v6372, 1.0
        %v6618 = vadd.f32 %v6374, 1.0
        %v6619 = vadd.f32 %v6376, 1.0
        %v6620 = vadd.f32 %v6378, 1.0
        %v6621 = vadd.f32 %v6380, 1.0
        %v6622 = vadd.f32 %v6382, 1.0
        %v6623 = vadd.f32 %v6384, 1.0
        %v6624 = vadd.f32 %v6386, 1.0
        %v6625 = vadd.f32 %v6388, 1.0
        %v6626 = vadd.f32 %v6390, 1.0
        %v6627 = vadd.f32 %v6392, 1.0
        %v6628 = vadd.f32 %v6394, 1.0
        %v6629 = vadd.f32 %v6396, 1.0
        %v6630 = vadd.f32 %v6398, 1.0
        %v6631 = vadd.f32 %v6400, 1.0
        %v6632 = vadd.f32 %v6402, 1.0
        %v6633 = vadd.f32 %v6404, 1.0
        %v6634 = vadd.f32 %v6406, 1.0
        %v6635 = vadd.f32 %v6408, 1.0
        %v6636 = vadd.f32 %v6410, 1.0
        %v6637 = vadd.f32 %v6412, 1.0
        %v6638 = vadd.f32 %v6414, 1.0
        %v6639 = vadd.f32 %v6416, 1.0
        %v6640 = vadd.f32 %v6418, 1.0
        %v6641 = vadd.f32 %v6420, 1.0
        %v6642 = vadd.f32 %v6422, 1.0
        %v6643 = vadd.f32 %v6424, 1.0
        %v6644 = vadd.f32 %v6426, 1.0
        %v6645 = vadd.f32 %v6428, 1.0
        %v6646 = vadd.f32 %v6430, 1.0
        %v6647 = vadd.f32 %v6432, 1.0
        %v6648 = vadd.f32 %v6434, 1.0
        %v6649 = vadd.f32 %v6436, 1.0
        %v6650 = vadd.f32 %v6438, 1.0
        %v6651 = vadd.f32 %v6440, 1.0
        %v6652 = vadd.f32 %v6442, 1.0
        %v6653 = vadd.f32 %v6444, 1.0
        %v6654 = vadd.f32 %v6446, 1.0
        %v6655 = vadd.f32 %v6448, 1.0
        %v6656 = vadd.f32 %v6450, 1.0
        %v6657 = vadd.f32 %v6452, 1.0
        %v6658 = vadd.f32 %v6454, 1.0
        %v6659 = vadd.f32 %v6456, 1.0
        %v6660 = vadd.f32 %v6458, 1.0
        %v6661 = vadd.f32 %v6460, 1.0
        %v6662 = vadd.f32 %v6462, 1.0
        %v6663 = vadd.f32 %v6464, 1.0
        %v6664 = vadd.f32 %v6466, 1.0
        %v6665 = vadd.f32 %v6468, 1.0
        %v6666 = vadd.f32 %v6470, 1.0
        %v6667 = vadd.f32 %v6472, 1.0
        %v6668 = vadd.f32 %v6474, 1.0
        %v6669 = vadd.f32 %v6476, 1.0
        %v6670 = vadd.f32 %v6478, 1.0
        %v6671 = vadd.f32 %v6480, 1.0
        %v6672 = vadd.f32 %v6482, 1.0
        %v6673 = vadd.f32 %v6484, 1.0
        %v6674 = vadd.f32 %v6486, 1.0
        %v6675 = vadd.f32 %v6488, 1.0
        %v6676 = vadd.f32 %v6490, 1.0
        %v6677 = vadd.f32 %v6492, 1.0
        %v6678 = vadd.f32 %v6494, 1.0
        %v6679 = vadd.f32 %v6496, 1.0
        %v6680 = vadd.f32 %v6498, 1.0
        %v6681 = vadd.f32 %v6500, 1.0
        %v6682 = vadd.f32 %v6502, 1.0
        %v6683 = vadd.f32 %v6504, 1.0
        %v6684 = vadd.f32 %v6506, 1.0
        %v6685 = vadd.f32 %v6508, 1.0
        %v6686 = vadd.f32 %v6510, 1.0
        %v6687 = vadd.f32 %v6512, 1.0
        %v6688 = vadd.f32 %v6514, 1.0
        %v6689 = vadd.f32 %v6516, 1.0
        %v6690 = vadd.f32 %v6518, 1.0
        %v6691 = vadd.f32 %v6520, 1.0
        %v6692 = vadd.f32 %v6522, 1.0
        %v6693 = vadd.f32 %v6524, 1.0
        %v6694 = vadd.f32 %v6526, 1.0
        %v6695 = vadd.f32 %v6528, 1.0
        %v6696 = vadd.f32 %v6530, 1.0
        %v6697 = vadd.f32 %v6532, 1.0
        %v6698 = vadd.f32 %v6534, 1.0
        %v6699 = vadd.f32 %v6536, 1.0
        %v6700 = vadd.f32 %v6538, 1.0
        %v6701 = vadd.f32 %v6540, 1.0
        %v6702 = vadd.f32 %v6542, 1.0
        %v6703 = vadd.f32 %v6544, 1.0
        %v6704 = vadd.f32 %v6546, 1.0
        %v6705 = vadd.f32 %v6548, 1.0
        %v6706 = vadd.f32 %v6550, 1.0
        %v6707 = vadd.f32 %v6552, 1.0
        %v6708 = vadd.f32 %v6554, 1.0
        %v6709 = vadd.f32 %v6556, 1.0
        %v6710 = vadd.f32 %v6558, 1.0
        %v6711 = vadd.f32 %v6560, 1.0
        %v6712 = vadd.f32 %v6562, 1.0
        %v6713 = vadd.f32 %v6564, 1.0
        %v6714 = vadd.f32 %v6566, 1.0
        %v6715 = vadd.f32 %v6568, 1.0
        %v6716 = vadd.f32 %v6570, 1.0
        %v6717 = vadd.f32 %v6572, 1.0
        %v6718 = vadd.f32 %v6574, 1.0
        %v6719 = vadd.f32 %v6576, 1.0
        %v6720 = vadd.f32 %v6578, 1.0
        %v6721 = vadd.f32 %v6580, 1.0
        %v6722 = vadd.f32 %v6582, 1.0
        %v6723 = vadd.f32 %v6584, 1.0
        %v6724 = vadd.f32 %v6586, 1.0
        %v6725 = vadd.f32 %v6588, 1.0
        %v6726 = vadd.f32 %v6590, 1.0
        %v6727 = vadd.f32 %v6592, 1.0
        %v6728 = vadd.f32 %v6594, 1.0
        %v6729 = vadd.f32 %v6596, 1.0
        %v6730 = vadd.f32 %v6598, 1.0
        %v6731 = vadd.f32 %v6600, 1.0
        %v6732 = vadd.f32 %v6602, 1.0
        %v6733 = vadd.f32 %v6604, 1.0
        %v6734 = vadd.f32 %v6606, 1.0
        %v6735 = vrcp.pop %v6607
        %v6736 = vmul.f32 1.0, %v6735
        %v6737 = vrcp.pop %v6608
        %v6738 = vmul.f32 1.0, %v6737
        %v6739 = vrcp.pop %v6609
        %v6740 = vmul.f32 1.0, %v6739
        %v6741 = vrcp.pop %v6610
        %v6742 = vmul.f32 1.0, %v6741
        %v6743 = vrcp.pop %v6611
        %v6744 = vmul.f32 1.0, %v6743
        %v6745 = vrcp.pop %v6612
        %v6746 = vmul.f32 1.0, %v6745
        %v6747 = vrcp.pop %v6613
        %v6748 = vmul.f32 1.0, %v6747
        %v6749 = vrcp.pop %v6614
        %v6750 = vmul.f32 1.0, %v6749
        %v6751 = vrcp.pop %v6615
        %v6752 = vmul.f32 1.0, %v6751
        %v6753 = vrcp.pop %v6616
        %v6754 = vmul.f32 1.0, %v6753
        %v6755 = vrcp.pop %v6617
        %v6756 = vmul.f32 1.0, %v6755
        %v6757 = vrcp.pop %v6618
        %v6758 = vmul.f32 1.0, %v6757
        %v6759 = vrcp.pop %v6619
        %v6760 = vmul.f32 1.0, %v6759
        %v6761 = vrcp.pop %v6620
        %v6762 = vmul.f32 1.0, %v6761
        %v6763 = vrcp.pop %v6621
        %v6764 = vmul.f32 1.0, %v6763
        %v6765 = vrcp.pop %v6622
        %v6766 = vmul.f32 1.0, %v6765
        %v6767 = vrcp.pop %v6623
        %v6768 = vmul.f32 1.0, %v6767
        %v6769 = vrcp.pop %v6624
        %v6770 = vmul.f32 1.0, %v6769
        %v6771 = vrcp.pop %v6625
        %v6772 = vmul.f32 1.0, %v6771
        %v6773 = vrcp.pop %v6626
        %v6774 = vmul.f32 1.0, %v6773
        %v6775 = vrcp.pop %v6627
        %v6776 = vmul.f32 1.0, %v6775
        %v6777 = vrcp.pop %v6628
        %v6778 = vmul.f32 1.0, %v6777
        %v6779 = vrcp.pop %v6629
        %v6780 = vmul.f32 1.0, %v6779
        %v6781 = vrcp.pop %v6630
        %v6782 = vmul.f32 1.0, %v6781
        %v6783 = vrcp.pop %v6631
        %v6784 = vmul.f32 1.0, %v6783
        %v6785 = vrcp.pop %v6632
        %v6786 = vmul.f32 1.0, %v6785
        %v6787 = vrcp.pop %v6633
        %v6788 = vmul.f32 1.0, %v6787
        %v6789 = vrcp.pop %v6634
        %v6790 = vmul.f32 1.0, %v6789
        %v6791 = vrcp.pop %v6635
        %v6792 = vmul.f32 1.0, %v6791
        %v6793 = vrcp.pop %v6636
        %v6794 = vmul.f32 1.0, %v6793
        %v6795 = vrcp.pop %v6637
        %v6796 = vmul.f32 1.0, %v6795
        %v6797 = vrcp.pop %v6638
        %v6798 = vmul.f32 1.0, %v6797
        %v6799 = vrcp.pop %v6639
        %v6800 = vmul.f32 1.0, %v6799
        %v6801 = vrcp.pop %v6640
        %v6802 = vmul.f32 1.0, %v6801
        %v6803 = vrcp.pop %v6641
        %v6804 = vmul.f32 1.0, %v6803
        %v6805 = vrcp.pop %v6642
        %v6806 = vmul.f32 1.0, %v6805
        %v6807 = vrcp.pop %v6643
        %v6808 = vmul.f32 1.0, %v6807
        %v6809 = vrcp.pop %v6644
        %v6810 = vmul.f32 1.0, %v6809
        %v6811 = vrcp.pop %v6645
        %v6812 = vmul.f32 1.0, %v6811
        %v6813 = vrcp.pop %v6646
        %v6814 = vmul.f32 1.0, %v6813
        %v6815 = vrcp.pop %v6647
        %v6816 = vmul.f32 1.0, %v6815
        %v6817 = vrcp.pop %v6648
        %v6818 = vmul.f32 1.0, %v6817
        %v6819 = vrcp.pop %v6649
        %v6820 = vmul.f32 1.0, %v6819
        %v6821 = vrcp.pop %v6650
        %v6822 = vmul.f32 1.0, %v6821
        %v6823 = vrcp.pop %v6651
        %v6824 = vmul.f32 1.0, %v6823
        %v6825 = vrcp.pop %v6652
        %v6826 = vmul.f32 1.0, %v6825
        %v6827 = vrcp.pop %v6653
        %v6828 = vmul.f32 1.0, %v6827
        %v6829 = vrcp.pop %v6654
        %v6830 = vmul.f32 1.0, %v6829
        %v6831 = vrcp.pop %v6655
        %v6832 = vmul.f32 1.0, %v6831
        %v6833 = vrcp.pop %v6656
        %v6834 = vmul.f32 1.0, %v6833
        %v6835 = vrcp.pop %v6657
        %v6836 = vmul.f32 1.0, %v6835
        %v6837 = vrcp.pop %v6658
        %v6838 = vmul.f32 1.0, %v6837
        %v6839 = vrcp.pop %v6659
        %v6840 = vmul.f32 1.0, %v6839
        %v6841 = vrcp.pop %v6660
        %v6842 = vmul.f32 1.0, %v6841
        %v6843 = vrcp.pop %v6661
        %v6844 = vmul.f32 1.0, %v6843
        %v6845 = vrcp.pop %v6662
        %v6846 = vmul.f32 1.0, %v6845
        %v6847 = vrcp.pop %v6663
        %v6848 = vmul.f32 1.0, %v6847
        %v6849 = vrcp.pop %v6664
        %v6850 = vmul.f32 1.0, %v6849
        %v6851 = vrcp.pop %v6665
        %v6852 = vmul.f32 1.0, %v6851
        %v6853 = vrcp.pop %v6666
        %v6854 = vmul.f32 1.0, %v6853
        %v6855 = vrcp.pop %v6667
        %v6856 = vmul.f32 1.0, %v6855
        %v6857 = vrcp.pop %v6668
        %v6858 = vmul.f32 1.0, %v6857
        %v6859 = vrcp.pop %v6669
        %v6860 = vmul.f32 1.0, %v6859
        %v6861 = vrcp.pop %v6670
        %v6862 = vmul.f32 1.0, %v6861
        %v6863 = vrcp.pop %v6671
        %v6864 = vmul.f32 1.0, %v6863
        %v6865 = vrcp.pop %v6672
        %v6866 = vmul.f32 1.0, %v6865
        %v6867 = vrcp.pop %v6673
        %v6868 = vmul.f32 1.0, %v6867
        %v6869 = vrcp.pop %v6674
        %v6870 = vmul.f32 1.0, %v6869
        %v6871 = vrcp.pop %v6675
        %v6872 = vmul.f32 1.0, %v6871
        %v6873 = vrcp.pop %v6676
        %v6874 = vmul.f32 1.0, %v6873
        %v6875 = vrcp.pop %v6677
        %v6876 = vmul.f32 1.0, %v6875
        %v6877 = vrcp.pop %v6678
        %v6878 = vmul.f32 1.0, %v6877
        %v6879 = vrcp.pop %v6679
        %v6880 = vmul.f32 1.0, %v6879
        %v6881 = vrcp.pop %v6680
        %v6882 = vmul.f32 1.0, %v6881
        %v6883 = vrcp.pop %v6681
        %v6884 = vmul.f32 1.0, %v6883
        %v6885 = vrcp.pop %v6682
        %v6886 = vmul.f32 1.0, %v6885
        %v6887 = vrcp.pop %v6683
        %v6888 = vmul.f32 1.0, %v6887
        %v6889 = vrcp.pop %v6684
        %v6890 = vmul.f32 1.0, %v6889
        %v6891 = vrcp.pop %v6685
        %v6892 = vmul.f32 1.0, %v6891
        %v6893 = vrcp.pop %v6686
        %v6894 = vmul.f32 1.0, %v6893
        %v6895 = vrcp.pop %v6687
        %v6896 = vmul.f32 1.0, %v6895
        %v6897 = vrcp.pop %v6688
        %v6898 = vmul.f32 1.0, %v6897
        %v6899 = vrcp.pop %v6689
        %v6900 = vmul.f32 1.0, %v6899
        %v6901 = vrcp.pop %v6690
        %v6902 = vmul.f32 1.0, %v6901
        %v6903 = vrcp.pop %v6691
        %v6904 = vmul.f32 1.0, %v6903
        %v6905 = vrcp.pop %v6692
        %v6906 = vmul.f32 1.0, %v6905
        %v6907 = vrcp.pop %v6693
        %v6908 = vmul.f32 1.0, %v6907
        %v6909 = vrcp.pop %v6694
        %v6910 = vmul.f32 1.0, %v6909
        %v6911 = vrcp.pop %v6695
        %v6912 = vmul.f32 1.0, %v6911
        %v6913 = vrcp.pop %v6696
        %v6914 = vmul.f32 1.0, %v6913
        %v6915 = vrcp.pop %v6697
        %v6916 = vmul.f32 1.0, %v6915
        %v6917 = vrcp.pop %v6698
        %v6918 = vmul.f32 1.0, %v6917
        %v6919 = vrcp.pop %v6699
        %v6920 = vmul.f32 1.0, %v6919
        %v6921 = vrcp.pop %v6700
        %v6922 = vmul.f32 1.0, %v6921
        %v6923 = vrcp.pop %v6701
        %v6924 = vmul.f32 1.0, %v6923
        %v6925 = vrcp.pop %v6702
        %v6926 = vmul.f32 1.0, %v6925
        %v6927 = vrcp.pop %v6703
        %v6928 = vmul.f32 1.0, %v6927
        %v6929 = vrcp.pop %v6704
        %v6930 = vmul.f32 1.0, %v6929
        %v6931 = vrcp.pop %v6705
        %v6932 = vmul.f32 1.0, %v6931
        %v6933 = vrcp.pop %v6706
        %v6934 = vmul.f32 1.0, %v6933
        %v6935 = vrcp.pop %v6707
        %v6936 = vmul.f32 1.0, %v6935
        %v6937 = vrcp.pop %v6708
        %v6938 = vmul.f32 1.0, %v6937
        %v6939 = vrcp.pop %v6709
        %v6940 = vmul.f32 1.0, %v6939
        %v6941 = vrcp.pop %v6710
        %v6942 = vmul.f32 1.0, %v6941
        %v6943 = vrcp.pop %v6711
        %v6944 = vmul.f32 1.0, %v6943
        %v6945 = vrcp.pop %v6712
        %v6946 = vmul.f32 1.0, %v6945
        %v6947 = vrcp.pop %v6713
        %v6948 = vmul.f32 1.0, %v6947
        %v6949 = vrcp.pop %v6714
        %v6950 = vmul.f32 1.0, %v6949
        %v6951 = vrcp.pop %v6715
        %v6952 = vmul.f32 1.0, %v6951
        %v6953 = vrcp.pop %v6716
        %v6954 = vmul.f32 1.0, %v6953
        %v6955 = vrcp.pop %v6717
        %v6956 = vmul.f32 1.0, %v6955
        %v6957 = vrcp.pop %v6718
        %v6958 = vmul.f32 1.0, %v6957
        %v6959 = vrcp.pop %v6719
        %v6960 = vmul.f32 1.0, %v6959
        %v6961 = vrcp.pop %v6720
        %v6962 = vmul.f32 1.0, %v6961
        %v6963 = vrcp.pop %v6721
        %v6964 = vmul.f32 1.0, %v6963
        %v6965 = vrcp.pop %v6722
        %v6966 = vmul.f32 1.0, %v6965
        %v6967 = vrcp.pop %v6723
        %v6968 = vmul.f32 1.0, %v6967
        %v6969 = vrcp.pop %v6724
        %v6970 = vmul.f32 1.0, %v6969
        %v6971 = vrcp.pop %v6725
        %v6972 = vmul.f32 1.0, %v6971
        %v6973 = vrcp.pop %v6726
        %v6974 = vmul.f32 1.0, %v6973
        %v6975 = vrcp.pop %v6727
        %v6976 = vmul.f32 1.0, %v6975
        %v6977 = vrcp.pop %v6728
        %v6978 = vmul.f32 1.0, %v6977
        %v6979 = vrcp.pop %v6729
        %v6980 = vmul.f32 1.0, %v6979
        %v6981 = vrcp.pop %v6730
        %v6982 = vmul.f32 1.0, %v6981
        %v6983 = vrcp.pop %v6731
        %v6984 = vmul.f32 1.0, %v6983
        %v6985 = vrcp.pop %v6732
        %v6986 = vmul.f32 1.0, %v6985
        %v6987 = vrcp.pop %v6733
        %v6988 = vmul.f32 1.0, %v6987
        %v6989 = vrcp.pop %v6734
        %v6990 = vmul.f32 1.0, %v6989
        %v6991 = vmul.f32 %v5678, %v6736
        %v6992 = vmul.f32 %v5680, %v6738
        %v6993 = vmul.f32 %v5791, %v6740
        %v6994 = vmul.f32 %v5793, %v6742
        %v6995 = vmul.f32 %v5904, %v6744
        %v6996 = vmul.f32 %v5906, %v6746
        %v6997 = vmul.f32 %v6017, %v6748
        %v6998 = vmul.f32 %v6019, %v6750
        %v6999 = vmul.f32 %v5682, %v6752
        %v7000 = vmul.f32 %v5684, %v6754
        %v7001 = vmul.f32 %v5795, %v6756
        %v7002 = vmul.f32 %v5797, %v6758
        %v7003 = vmul.f32 %v5908, %v6760
        %v7004 = vmul.f32 %v5910, %v6762
        %v7005 = vmul.f32 %v6021, %v6764
        %v7006 = vmul.f32 %v6023, %v6766
        %v7007 = vmul.f32 %v5688, %v6768
        %v7008 = vmul.f32 %v5690, %v6770
        %v7009 = vmul.f32 %v5801, %v6772
        %v7010 = vmul.f32 %v5803, %v6774
        %v7011 = vmul.f32 %v5914, %v6776
        %v7012 = vmul.f32 %v5916, %v6778
        %v7013 = vmul.f32 %v6027, %v6780
        %v7014 = vmul.f32 %v6029, %v6782
        %v7015 = vmul.f32 %v5692, %v6784
        %v7016 = vmul.f32 %v5694, %v6786
        %v7017 = vmul.f32 %v5805, %v6788
        %v7018 = vmul.f32 %v5807, %v6790
        %v7019 = vmul.f32 %v5918, %v6792
        %v7020 = vmul.f32 %v5920, %v6794
        %v7021 = vmul.f32 %v6031, %v6796
        %v7022 = vmul.f32 %v6033, %v6798
        %v7023 = vmul.f32 %v5698, %v6800
        %v7024 = vmul.f32 %v5700, %v6802
        %v7025 = vmul.f32 %v5811, %v6804
        %v7026 = vmul.f32 %v5813, %v6806
        %v7027 = vmul.f32 %v5924, %v6808
        %v7028 = vmul.f32 %v5926, %v6810
        %v7029 = vmul.f32 %v6037, %v6812
        %v7030 = vmul.f32 %v6039, %v6814
        %v7031 = vmul.f32 %v5702, %v6816
        %v7032 = vmul.f32 %v5704, %v6818
        %v7033 = vmul.f32 %v5815, %v6820
        %v7034 = vmul.f32 %v5817, %v6822
        %v7035 = vmul.f32 %v5928, %v6824
        %v7036 = vmul.f32 %v5930, %v6826
        %v7037 = vmul.f32 %v6041, %v6828
        %v7038 = vmul.f32 %v6043, %v6830
        %v7039 = vmul.f32 %v5708, %v6832
        %v7040 = vmul.f32 %v5710, %v6834
        %v7041 = vmul.f32 %v5821, %v6836
        %v7042 = vmul.f32 %v5823, %v6838
        %v7043 = vmul.f32 %v5934, %v6840
        %v7044 = vmul.f32 %v5936, %v6842
        %v7045 = vmul.f32 %v6047, %v6844
        %v7046 = vmul.f32 %v6049, %v6846
        %v7047 = vmul.f32 %v5712, %v6848
        %v7048 = vmul.f32 %v5714, %v6850
        %v7049 = vmul.f32 %v5825, %v6852
        %v7050 = vmul.f32 %v5827, %v6854
        %v7051 = vmul.f32 %v5938, %v6856
        %v7052 = vmul.f32 %v5940, %v6858
        %v7053 = vmul.f32 %v6051, %v6860
        %v7054 = vmul.f32 %v6053, %v6862
        %v7055 = vmul.f32 %v5718, %v6864
        %v7056 = vmul.f32 %v5720, %v6866
        %v7057 = vmul.f32 %v5831, %v6868
        %v7058 = vmul.f32 %v5833, %v6870
        %v7059 = vmul.f32 %v5944, %v6872
        %v7060 = vmul.f32 %v5946, %v6874
        %v7061 = vmul.f32 %v6057, %v6876
        %v7062 = vmul.f32 %v6059, %v6878
        %v7063 = vmul.f32 %v5722, %v6880
        %v7064 = vmul.f32 %v5724, %v6882
        %v7065 = vmul.f32 %v5835, %v6884
        %v7066 = vmul.f32 %v5837, %v6886
        %v7067 = vmul.f32 %v5948, %v6888
        %v7068 = vmul.f32 %v5950, %v6890
        %v7069 = vmul.f32 %v6061, %v6892
        %v7070 = vmul.f32 %v6063, %v6894
        %v7071 = vmul.f32 %v5728, %v6896
        %v7072 = vmul.f32 %v5730, %v6898
        %v7073 = vmul.f32 %v5841, %v6900
        %v7074 = vmul.f32 %v5843, %v6902
        %v7075 = vmul.f32 %v5954, %v6904
        %v7076 = vmul.f32 %v5956, %v6906
        %v7077 = vmul.f32 %v6067, %v6908
        %v7078 = vmul.f32 %v6069, %v6910
        %v7079 = vmul.f32 %v5732, %v6912
        %v7080 = vmul.f32 %v5734, %v6914
        %v7081 = vmul.f32 %v5845, %v6916
        %v7082 = vmul.f32 %v5847, %v6918
        %v7083 = vmul.f32 %v5958, %v6920
        %v7084 = vmul.f32 %v5960, %v6922
        %v7085 = vmul.f32 %v6071, %v6924
        %v7086 = vmul.f32 %v6073, %v6926
        %v7087 = vmul.f32 %v5738, %v6928
        %v7088 = vmul.f32 %v5740, %v6930
        %v7089 = vmul.f32 %v5851, %v6932
        %v7090 = vmul.f32 %v5853, %v6934
        %v7091 = vmul.f32 %v5964, %v6936
        %v7092 = vmul.f32 %v5966, %v6938
        %v7093 = vmul.f32 %v6077, %v6940
        %v7094 = vmul.f32 %v6079, %v6942
        %v7095 = vmul.f32 %v5742, %v6944
        %v7096 = vmul.f32 %v5744, %v6946
        %v7097 = vmul.f32 %v5855, %v6948
        %v7098 = vmul.f32 %v5857, %v6950
        %v7099 = vmul.f32 %v5968, %v6952
        %v7100 = vmul.f32 %v5970, %v6954
        %v7101 = vmul.f32 %v6081, %v6956
        %v7102 = vmul.f32 %v6083, %v6958
        %v7103 = vmul.f32 %v5748, %v6960
        %v7104 = vmul.f32 %v5750, %v6962
        %v7105 = vmul.f32 %v5861, %v6964
        %v7106 = vmul.f32 %v5863, %v6966
        %v7107 = vmul.f32 %v5974, %v6968
        %v7108 = vmul.f32 %v5976, %v6970
        %v7109 = vmul.f32 %v6087, %v6972
        %v7110 = vmul.f32 %v6089, %v6974
        %v7111 = vmul.f32 %v5752, %v6976
        %v7112 = vmul.f32 %v5754, %v6978
        %v7113 = vmul.f32 %v5865, %v6980
        %v7114 = vmul.f32 %v5867, %v6982
        %v7115 = vmul.f32 %v5978, %v6984
        %v7116 = vmul.f32 %v5980, %v6986
        %v7117 = vmul.f32 %v6091, %v6988
        %v7118 = vmul.f32 %v6093, %v6990
        %v7119 = vpack.c.bf16 %v6999, %v6991
        %v7120 = vpack.c.bf16 %v7000, %v6992
        %v7121 = vpack.c.bf16 %v7001, %v6993
        %v7122 = vpack.c.bf16 %v7002, %v6994
        %v7123 = vpack.c.bf16 %v7003, %v6995
        %v7124 = vpack.c.bf16 %v7004, %v6996
        %v7125 = vpack.c.bf16 %v7005, %v6997
        %v7126 = vpack.c.bf16 %v7006, %v6998
        %v7127 = vpack.c.bf16 %v7015, %v7007
        %v7128 = vpack.c.bf16 %v7016, %v7008
        %v7129 = vpack.c.bf16 %v7017, %v7009
        %v7130 = vpack.c.bf16 %v7018, %v7010
        %v7131 = vpack.c.bf16 %v7019, %v7011
        %v7132 = vpack.c.bf16 %v7020, %v7012
        %v7133 = vpack.c.bf16 %v7021, %v7013
        %v7134 = vpack.c.bf16 %v7022, %v7014
        %v7135 = vpack.c.bf16 %v7031, %v7023
        %v7136 = vpack.c.bf16 %v7032, %v7024
        %v7137 = vpack.c.bf16 %v7033, %v7025
        %v7138 = vpack.c.bf16 %v7034, %v7026
        %v7139 = vpack.c.bf16 %v7035, %v7027
        %v7140 = vpack.c.bf16 %v7036, %v7028
        %v7141 = vpack.c.bf16 %v7037, %v7029
        %v7142 = vpack.c.bf16 %v7038, %v7030
        %v7143 = vpack.c.bf16 %v7047, %v7039
        %v7144 = vpack.c.bf16 %v7048, %v7040
        %v7145 = vpack.c.bf16 %v7049, %v7041
        %v7146 = vpack.c.bf16 %v7050, %v7042
        %v7147 = vpack.c.bf16 %v7051, %v7043
        %v7148 = vpack.c.bf16 %v7052, %v7044
        %v7149 = vpack.c.bf16 %v7053, %v7045
        %v7150 = vpack.c.bf16 %v7054, %v7046
        %v7151 = vpack.c.bf16 %v7063, %v7055
        %v7152 = vpack.c.bf16 %v7064, %v7056
        %v7153 = vpack.c.bf16 %v7065, %v7057
        %v7154 = vpack.c.bf16 %v7066, %v7058
        %v7155 = vpack.c.bf16 %v7067, %v7059
        %v7156 = vpack.c.bf16 %v7068, %v7060
        %v7157 = vpack.c.bf16 %v7069, %v7061
        %v7158 = vpack.c.bf16 %v7070, %v7062
        %v7159 = vpack.c.bf16 %v7079, %v7071
        %v7160 = vpack.c.bf16 %v7080, %v7072
        %v7161 = vpack.c.bf16 %v7081, %v7073
        %v7162 = vpack.c.bf16 %v7082, %v7074
        %v7163 = vpack.c.bf16 %v7083, %v7075
        %v7164 = vpack.c.bf16 %v7084, %v7076
        %v7165 = vpack.c.bf16 %v7085, %v7077
        %v7166 = vpack.c.bf16 %v7086, %v7078
        %v7167 = vpack.c.bf16 %v7095, %v7087
        %v7168 = vpack.c.bf16 %v7096, %v7088
        %v7169 = vpack.c.bf16 %v7097, %v7089
        %v7170 = vpack.c.bf16 %v7098, %v7090
        %v7171 = vpack.c.bf16 %v7099, %v7091
        %v7172 = vpack.c.bf16 %v7100, %v7092
        %v7173 = vpack.c.bf16 %v7101, %v7093
        %v7174 = vpack.c.bf16 %v7102, %v7094
        %v7175 = vpack.c.bf16 %v7111, %v7103
        %v7176 = vpack.c.bf16 %v7112, %v7104
        %v7177 = vpack.c.bf16 %v7113, %v7105
        %v7178 = vpack.c.bf16 %v7114, %v7106
        %v7179 = vpack.c.bf16 %v7115, %v7107
        %v7180 = vpack.c.bf16 %v7116, %v7108
        %v7181 = vpack.c.bf16 %v7117, %v7109
        %v7182 = vpack.c.bf16 %v7118, %v7110
        %v7183 = vld [vmem:[%s622] sm:$0xff]
        %v7184 = vld [vmem:[%s622 + $0x8] sm:$0xff]
        %v7185 = vld [vmem:[%s622 + $0x10] sm:$0xff]
        %v7186 = vld [vmem:[%s622 + $0x18] sm:$0xff]
        %v7187 = vld [vmem:[%s622 + $0x20] sm:$0xff]
        %v7188 = vld [vmem:[%s622 + $0x28] sm:$0xff]
        %v7189 = vld [vmem:[%s622 + $0x30] sm:$0xff]
        %v7190 = vld [vmem:[%s622 + $0x38] sm:$0xff]
        %v7191 = vld [vmem:[%s622 + $0x40] sm:$0xff]
        %v7192 = vld [vmem:[%s622 + $0x48] sm:$0xff]
        %v7193 = vld [vmem:[%s622 + $0x50] sm:$0xff]
        %v7194 = vld [vmem:[%s622 + $0x58] sm:$0xff]
        %v7195 = vld [vmem:[%s622 + $0x60] sm:$0xff]
        %v7196 = vld [vmem:[%s622 + $0x68] sm:$0xff]
        %v7197 = vld [vmem:[%s622 + $0x70] sm:$0xff]
        %v7198 = vld [vmem:[%s622 + $0x78] sm:$0xff]
        %v7199 = vld [vmem:[%s622 + $0x80] sm:$0xff]
        %v7200 = vld [vmem:[%s622 + $0x88] sm:$0xff]
        %v7201 = vld [vmem:[%s622 + $0x90] sm:$0xff]
        %v7202 = vld [vmem:[%s622 + $0x98] sm:$0xff]
        %v7203 = vld [vmem:[%s622 + $0xa0] sm:$0xff]
        %v7204 = vld [vmem:[%s622 + $0xa8] sm:$0xff]
        %v7205 = vld [vmem:[%s622 + $0xb0] sm:$0xff]
        %v7206 = vld [vmem:[%s622 + $0xb8] sm:$0xff]
        %v7207 = vld [vmem:[%s622 + $0xc0] sm:$0xff]
        %v7208 = vld [vmem:[%s622 + $0xc8] sm:$0xff]
        %v7209 = vld [vmem:[%s622 + $0xd0] sm:$0xff]
        %v7210 = vld [vmem:[%s622 + $0xd8] sm:$0xff]
        %v7211 = vld [vmem:[%s622 + $0xe0] sm:$0xff]
        %v7212 = vld [vmem:[%s622 + $0xe8] sm:$0xff]
        %v7213 = vld [vmem:[%s622 + $0xf0] sm:$0xff]
        %v7214 = vld [vmem:[%s622 + $0xf8] sm:$0xff]
        %v7215 = vld [vmem:[%s622 + $0x100] sm:$0xff]
        %v7216 = vld [vmem:[%s622 + $0x108] sm:$0xff]
        %v7217 = vld [vmem:[%s622 + $0x110] sm:$0xff]
        %v7218 = vld [vmem:[%s622 + $0x118] sm:$0xff]
        %v7219 = vld [vmem:[%s622 + $0x120] sm:$0xff]
        %v7220 = vld [vmem:[%s622 + $0x128] sm:$0xff]
        %v7221 = vld [vmem:[%s622 + $0x130] sm:$0xff]
        %v7222 = vld [vmem:[%s622 + $0x138] sm:$0xff]
        %v7223 = vld [vmem:[%s622 + $0x140] sm:$0xff]
        %v7224 = vld [vmem:[%s622 + $0x148] sm:$0xff]
        %v7225 = vld [vmem:[%s622 + $0x150] sm:$0xff]
        %v7226 = vld [vmem:[%s622 + $0x158] sm:$0xff]
        %v7227 = vld [vmem:[%s622 + $0x160] sm:$0xff]
        %v7228 = vld [vmem:[%s622 + $0x168] sm:$0xff]
        %v7229 = vld [vmem:[%s622 + $0x170] sm:$0xff]
        %v7230 = vld [vmem:[%s622 + $0x178] sm:$0xff]
        %v7231 = vld [vmem:[%s622 + $0x180] sm:$0xff]
        %v7232 = vld [vmem:[%s622 + $0x188] sm:$0xff]
        %v7233 = vld [vmem:[%s622 + $0x190] sm:$0xff]
        %v7234 = vld [vmem:[%s622 + $0x198] sm:$0xff]
        %v7235 = vld [vmem:[%s622 + $0x1a0] sm:$0xff]
        %v7236 = vld [vmem:[%s622 + $0x1a8] sm:$0xff]
        %v7237 = vld [vmem:[%s622 + $0x1b0] sm:$0xff]
        %v7238 = vld [vmem:[%s622 + $0x1b8] sm:$0xff]
        %v7239 = vld [vmem:[%s622 + $0x1c0] sm:$0xff]
        %v7240 = vld [vmem:[%s622 + $0x1c8] sm:$0xff]
        %v7241 = vld [vmem:[%s622 + $0x1d0] sm:$0xff]
        %v7242 = vld [vmem:[%s622 + $0x1d8] sm:$0xff]
        %v7243 = vld [vmem:[%s622 + $0x1e0] sm:$0xff]
        %v7244 = vld [vmem:[%s622 + $0x1e8] sm:$0xff]
        %v7245 = vld [vmem:[%s622 + $0x1f0] sm:$0xff]
        %v7246 = vld [vmem:[%s622 + $0x1f8] sm:$0xff]
        %v7247 = vld [vmem:[%s622 + $0x200] sm:$0xff]
        %v7248 = vld [vmem:[%s622 + $0x208] sm:$0xff]
        %v7249 = vld [vmem:[%s622 + $0x210] sm:$0xff]
        %v7250 = vld [vmem:[%s622 + $0x218] sm:$0xff]
        %v7251 = vld [vmem:[%s622 + $0x220] sm:$0xff]
        %v7252 = vld [vmem:[%s622 + $0x228] sm:$0xff]
        %v7253 = vld [vmem:[%s622 + $0x230] sm:$0xff]
        %v7254 = vld [vmem:[%s622 + $0x238] sm:$0xff]
        %v7255 = vld [vmem:[%s622 + $0x240] sm:$0xff]
        %v7256 = vld [vmem:[%s622 + $0x248] sm:$0xff]
        %v7257 = vld [vmem:[%s622 + $0x250] sm:$0xff]
        %v7258 = vld [vmem:[%s622 + $0x258] sm:$0xff]
        %v7259 = vld [vmem:[%s622 + $0x260] sm:$0xff]
        %v7260 = vld [vmem:[%s622 + $0x268] sm:$0xff]
        %v7261 = vld [vmem:[%s622 + $0x270] sm:$0xff]
        %v7262 = vld [vmem:[%s622 + $0x278] sm:$0xff]
        %v7263 = vld [vmem:[%s622 + $0x280] sm:$0xff]
        %v7264 = vld [vmem:[%s622 + $0x288] sm:$0xff]
        %v7265 = vld [vmem:[%s622 + $0x290] sm:$0xff]
        %v7266 = vld [vmem:[%s622 + $0x298] sm:$0xff]
        %v7267 = vld [vmem:[%s622 + $0x2a0] sm:$0xff]
        %v7268 = vld [vmem:[%s622 + $0x2a8] sm:$0xff]
        %v7269 = vld [vmem:[%s622 + $0x2b0] sm:$0xff]
        %v7270 = vld [vmem:[%s622 + $0x2b8] sm:$0xff]
        %v7271 = vld [vmem:[%s622 + $0x2c0] sm:$0xff]
        %v7272 = vld [vmem:[%s622 + $0x2c8] sm:$0xff]
        %v7273 = vld [vmem:[%s622 + $0x2d0] sm:$0xff]
        %v7274 = vld [vmem:[%s622 + $0x2d8] sm:$0xff]
        %v7275 = vld [vmem:[%s622 + $0x2e0] sm:$0xff]
        %v7276 = vld [vmem:[%s622 + $0x2e8] sm:$0xff]
        %v7277 = vld [vmem:[%s622 + $0x2f0] sm:$0xff]
        %v7278 = vld [vmem:[%s622 + $0x2f8] sm:$0xff]
        %v7279 = vld [vmem:[%s622 + $0x300] sm:$0xff]
        %v7280 = vld [vmem:[%s622 + $0x308] sm:$0xff]
        %v7281 = vld [vmem:[%s622 + $0x310] sm:$0xff]
        %v7282 = vld [vmem:[%s622 + $0x318] sm:$0xff]
        %v7283 = vld [vmem:[%s622 + $0x320] sm:$0xff]
        %v7284 = vld [vmem:[%s622 + $0x328] sm:$0xff]
        %v7285 = vld [vmem:[%s622 + $0x330] sm:$0xff]
        %v7286 = vld [vmem:[%s622 + $0x338] sm:$0xff]
        %v7287 = vld [vmem:[%s622 + $0x340] sm:$0xff]
        %v7288 = vld [vmem:[%s622 + $0x348] sm:$0xff]
        %v7289 = vld [vmem:[%s622 + $0x350] sm:$0xff]
        %v7290 = vld [vmem:[%s622 + $0x358] sm:$0xff]
        %v7291 = vld [vmem:[%s622 + $0x360] sm:$0xff]
        %v7292 = vld [vmem:[%s622 + $0x368] sm:$0xff]
        %v7293 = vld [vmem:[%s622 + $0x370] sm:$0xff]
        %v7294 = vld [vmem:[%s622 + $0x378] sm:$0xff]
        %v7295 = vld [vmem:[%s622 + $0x380] sm:$0xff]
        %v7296 = vld [vmem:[%s622 + $0x388] sm:$0xff]
        %v7297 = vld [vmem:[%s622 + $0x390] sm:$0xff]
        %v7298 = vld [vmem:[%s622 + $0x398] sm:$0xff]
        %v7299 = vld [vmem:[%s622 + $0x3a0] sm:$0xff]
        %v7300 = vld [vmem:[%s622 + $0x3a8] sm:$0xff]
        %v7301 = vld [vmem:[%s622 + $0x3b0] sm:$0xff]
        %v7302 = vld [vmem:[%s622 + $0x3b8] sm:$0xff]
        %v7303 = vld [vmem:[%s622 + $0x3c0] sm:$0xff]
        %v7304 = vld [vmem:[%s622 + $0x3c8] sm:$0xff]
        %v7305 = vld [vmem:[%s622 + $0x3d0] sm:$0xff]
        %v7306 = vld [vmem:[%s622 + $0x3d8] sm:$0xff]
        %v7307 = vld [vmem:[%s622 + $0x3e0] sm:$0xff]
        %v7308 = vld [vmem:[%s622 + $0x3e8] sm:$0xff]
        %v7309 = vld [vmem:[%s622 + $0x3f0] sm:$0xff]
        %v7310 = vld [vmem:[%s622 + $0x3f8] sm:$0xff]
        %v7311 = vld [vmem:[%s775] sm:$0x3]
        %v7313 = vlaneseq
        %v7314 = vshrl.u32 %v7313, 7
        %v7315 = vsub.s32 0, %v7314
        %v7316 = vrot.slane %v7311, %v7315
        %v7317 = vlaneseq
        %v7318 = vshrl.u32 %v7317, 7
        %v7319 = vsub.s32 1, %v7318
        %v7320 = vrot.slane %v7311, %v7319
        %v7451 = vunpack.c.l.b16 %v7183
        %v7452 = vunpack.c.h.b16 %v7183
        %v7453 = vunpack.c.l.b16 %v7184
        %v7454 = vunpack.c.h.b16 %v7184
        %v7455 = vunpack.c.l.b16 %v7185
        %v7456 = vunpack.c.h.b16 %v7185
        %v7457 = vunpack.c.l.b16 %v7186
        %v7458 = vunpack.c.h.b16 %v7186
        %v7459 = vunpack.c.l.b16 %v7187
        %v7460 = vunpack.c.h.b16 %v7187
        %v7461 = vunpack.c.l.b16 %v7188
        %v7462 = vunpack.c.h.b16 %v7188
        %v7463 = vunpack.c.l.b16 %v7189
        %v7464 = vunpack.c.h.b16 %v7189
        %v7465 = vunpack.c.l.b16 %v7190
        %v7466 = vunpack.c.h.b16 %v7190
        %v7467 = vunpack.c.l.b16 %v7191
        %v7468 = vunpack.c.h.b16 %v7191
        %v7469 = vunpack.c.l.b16 %v7192
        %v7470 = vunpack.c.h.b16 %v7192
        %v7471 = vunpack.c.l.b16 %v7193
        %v7472 = vunpack.c.h.b16 %v7193
        %v7473 = vunpack.c.l.b16 %v7194
        %v7474 = vunpack.c.h.b16 %v7194
        %v7475 = vunpack.c.l.b16 %v7195
        %v7476 = vunpack.c.h.b16 %v7195
        %v7477 = vunpack.c.l.b16 %v7196
        %v7478 = vunpack.c.h.b16 %v7196
        %v7479 = vunpack.c.l.b16 %v7197
        %v7480 = vunpack.c.h.b16 %v7197
        %v7481 = vunpack.c.l.b16 %v7198
        %v7482 = vunpack.c.h.b16 %v7198
        %v7483 = vunpack.c.l.b16 %v7199
        %v7484 = vunpack.c.h.b16 %v7199
        %v7485 = vunpack.c.l.b16 %v7200
        %v7486 = vunpack.c.h.b16 %v7200
        %v7487 = vunpack.c.l.b16 %v7201
        %v7488 = vunpack.c.h.b16 %v7201
        %v7489 = vunpack.c.l.b16 %v7202
        %v7490 = vunpack.c.h.b16 %v7202
        %v7491 = vunpack.c.l.b16 %v7203
        %v7492 = vunpack.c.h.b16 %v7203
        %v7493 = vunpack.c.l.b16 %v7204
        %v7494 = vunpack.c.h.b16 %v7204
        %v7495 = vunpack.c.l.b16 %v7205
        %v7496 = vunpack.c.h.b16 %v7205
        %v7497 = vunpack.c.l.b16 %v7206
        %v7498 = vunpack.c.h.b16 %v7206
        %v7499 = vunpack.c.l.b16 %v7207
        %v7500 = vunpack.c.h.b16 %v7207
        %v7501 = vunpack.c.l.b16 %v7208
        %v7502 = vunpack.c.h.b16 %v7208
        %v7503 = vunpack.c.l.b16 %v7209
        %v7504 = vunpack.c.h.b16 %v7209
        %v7505 = vunpack.c.l.b16 %v7210
        %v7506 = vunpack.c.h.b16 %v7210
        %v7507 = vunpack.c.l.b16 %v7211
        %v7508 = vunpack.c.h.b16 %v7211
        %v7509 = vunpack.c.l.b16 %v7212
        %v7510 = vunpack.c.h.b16 %v7212
        %v7511 = vunpack.c.l.b16 %v7213
        %v7512 = vunpack.c.h.b16 %v7213
        %v7513 = vunpack.c.l.b16 %v7214
        %v7514 = vunpack.c.h.b16 %v7214
        %v7515 = vunpack.c.l.b16 %v7215
        %v7516 = vunpack.c.h.b16 %v7215
        %v7517 = vunpack.c.l.b16 %v7216
        %v7518 = vunpack.c.h.b16 %v7216
        %v7519 = vunpack.c.l.b16 %v7217
        %v7520 = vunpack.c.h.b16 %v7217
        %v7521 = vunpack.c.l.b16 %v7218
        %v7522 = vunpack.c.h.b16 %v7218
        %v7523 = vunpack.c.l.b16 %v7219
        %v7524 = vunpack.c.h.b16 %v7219
        %v7525 = vunpack.c.l.b16 %v7220
        %v7526 = vunpack.c.h.b16 %v7220
        %v7527 = vunpack.c.l.b16 %v7221
        %v7528 = vunpack.c.h.b16 %v7221
        %v7529 = vunpack.c.l.b16 %v7222
        %v7530 = vunpack.c.h.b16 %v7222
        %v7531 = vunpack.c.l.b16 %v7223
        %v7532 = vunpack.c.h.b16 %v7223
        %v7533 = vunpack.c.l.b16 %v7224
        %v7534 = vunpack.c.h.b16 %v7224
        %v7535 = vunpack.c.l.b16 %v7225
        %v7536 = vunpack.c.h.b16 %v7225
        %v7537 = vunpack.c.l.b16 %v7226
        %v7538 = vunpack.c.h.b16 %v7226
        %v7539 = vunpack.c.l.b16 %v7227
        %v7540 = vunpack.c.h.b16 %v7227
        %v7541 = vunpack.c.l.b16 %v7228
        %v7542 = vunpack.c.h.b16 %v7228
        %v7543 = vunpack.c.l.b16 %v7229
        %v7544 = vunpack.c.h.b16 %v7229
        %v7545 = vunpack.c.l.b16 %v7230
        %v7546 = vunpack.c.h.b16 %v7230
        %v7547 = vunpack.c.l.b16 %v7231
        %v7548 = vunpack.c.h.b16 %v7231
        %v7549 = vunpack.c.l.b16 %v7232
        %v7550 = vunpack.c.h.b16 %v7232
        %v7551 = vunpack.c.l.b16 %v7233
        %v7552 = vunpack.c.h.b16 %v7233
        %v7553 = vunpack.c.l.b16 %v7234
        %v7554 = vunpack.c.h.b16 %v7234
        %v7555 = vunpack.c.l.b16 %v7235
        %v7556 = vunpack.c.h.b16 %v7235
        %v7557 = vunpack.c.l.b16 %v7236
        %v7558 = vunpack.c.h.b16 %v7236
        %v7559 = vunpack.c.l.b16 %v7237
        %v7560 = vunpack.c.h.b16 %v7237
        %v7561 = vunpack.c.l.b16 %v7238
        %v7562 = vunpack.c.h.b16 %v7238
        %v7563 = vunpack.c.l.b16 %v7239
        %v7564 = vunpack.c.h.b16 %v7239
        %v7565 = vunpack.c.l.b16 %v7240
        %v7566 = vunpack.c.h.b16 %v7240
        %v7567 = vunpack.c.l.b16 %v7241
        %v7568 = vunpack.c.h.b16 %v7241
        %v7569 = vunpack.c.l.b16 %v7242
        %v7570 = vunpack.c.h.b16 %v7242
        %v7571 = vunpack.c.l.b16 %v7243
        %v7572 = vunpack.c.h.b16 %v7243
        %v7573 = vunpack.c.l.b16 %v7244
        %v7574 = vunpack.c.h.b16 %v7244
        %v7575 = vunpack.c.l.b16 %v7245
        %v7576 = vunpack.c.h.b16 %v7245
        %v7577 = vunpack.c.l.b16 %v7246
        %v7578 = vunpack.c.h.b16 %v7246
        %v7579 = vunpack.c.l.b16 %v7247
        %v7580 = vunpack.c.h.b16 %v7247
        %v7581 = vunpack.c.l.b16 %v7248
        %v7582 = vunpack.c.h.b16 %v7248
        %v7583 = vunpack.c.l.b16 %v7249
        %v7584 = vunpack.c.h.b16 %v7249
        %v7585 = vunpack.c.l.b16 %v7250
        %v7586 = vunpack.c.h.b16 %v7250
        %v7587 = vunpack.c.l.b16 %v7251
        %v7588 = vunpack.c.h.b16 %v7251
        %v7589 = vunpack.c.l.b16 %v7252
        %v7590 = vunpack.c.h.b16 %v7252
        %v7591 = vunpack.c.l.b16 %v7253
        %v7592 = vunpack.c.h.b16 %v7253
        %v7593 = vunpack.c.l.b16 %v7254
        %v7594 = vunpack.c.h.b16 %v7254
        %v7595 = vunpack.c.l.b16 %v7255
        %v7596 = vunpack.c.h.b16 %v7255
        %v7597 = vunpack.c.l.b16 %v7256
        %v7598 = vunpack.c.h.b16 %v7256
        %v7599 = vunpack.c.l.b16 %v7257
        %v7600 = vunpack.c.h.b16 %v7257
        %v7601 = vunpack.c.l.b16 %v7258
        %v7602 = vunpack.c.h.b16 %v7258
        %v7603 = vunpack.c.l.b16 %v7259
        %v7604 = vunpack.c.h.b16 %v7259
        %v7605 = vunpack.c.l.b16 %v7260
        %v7606 = vunpack.c.h.b16 %v7260
        %v7607 = vunpack.c.l.b16 %v7261
        %v7608 = vunpack.c.h.b16 %v7261
        %v7609 = vunpack.c.l.b16 %v7262
        %v7610 = vunpack.c.h.b16 %v7262
        %v7611 = vunpack.c.l.b16 %v7263
        %v7612 = vunpack.c.h.b16 %v7263
        %v7613 = vunpack.c.l.b16 %v7264
        %v7614 = vunpack.c.h.b16 %v7264
        %v7615 = vunpack.c.l.b16 %v7265
        %v7616 = vunpack.c.h.b16 %v7265
        %v7617 = vunpack.c.l.b16 %v7266
        %v7618 = vunpack.c.h.b16 %v7266
        %v7619 = vunpack.c.l.b16 %v7267
        %v7620 = vunpack.c.h.b16 %v7267
        %v7621 = vunpack.c.l.b16 %v7268
        %v7622 = vunpack.c.h.b16 %v7268
        %v7623 = vunpack.c.l.b16 %v7269
        %v7624 = vunpack.c.h.b16 %v7269
        %v7625 = vunpack.c.l.b16 %v7270
        %v7626 = vunpack.c.h.b16 %v7270
        %v7627 = vunpack.c.l.b16 %v7271
        %v7628 = vunpack.c.h.b16 %v7271
        %v7629 = vunpack.c.l.b16 %v7272
        %v7630 = vunpack.c.h.b16 %v7272
        %v7631 = vunpack.c.l.b16 %v7273
        %v7632 = vunpack.c.h.b16 %v7273
        %v7633 = vunpack.c.l.b16 %v7274
        %v7634 = vunpack.c.h.b16 %v7274
        %v7635 = vunpack.c.l.b16 %v7275
        %v7636 = vunpack.c.h.b16 %v7275
        %v7637 = vunpack.c.l.b16 %v7276
        %v7638 = vunpack.c.h.b16 %v7276
        %v7639 = vunpack.c.l.b16 %v7277
        %v7640 = vunpack.c.h.b16 %v7277
        %v7641 = vunpack.c.l.b16 %v7278
        %v7642 = vunpack.c.h.b16 %v7278
        %v7643 = vunpack.c.l.b16 %v7279
        %v7644 = vunpack.c.h.b16 %v7279
        %v7645 = vunpack.c.l.b16 %v7280
        %v7646 = vunpack.c.h.b16 %v7280
        %v7647 = vunpack.c.l.b16 %v7281
        %v7648 = vunpack.c.h.b16 %v7281
        %v7649 = vunpack.c.l.b16 %v7282
        %v7650 = vunpack.c.h.b16 %v7282
        %v7651 = vunpack.c.l.b16 %v7283
        %v7652 = vunpack.c.h.b16 %v7283
        %v7653 = vunpack.c.l.b16 %v7284
        %v7654 = vunpack.c.h.b16 %v7284
        %v7655 = vunpack.c.l.b16 %v7285
        %v7656 = vunpack.c.h.b16 %v7285
        %v7657 = vunpack.c.l.b16 %v7286
        %v7658 = vunpack.c.h.b16 %v7286
        %v7659 = vunpack.c.l.b16 %v7287
        %v7660 = vunpack.c.h.b16 %v7287
        %v7661 = vunpack.c.l.b16 %v7288
        %v7662 = vunpack.c.h.b16 %v7288
        %v7663 = vunpack.c.l.b16 %v7289
        %v7664 = vunpack.c.h.b16 %v7289
        %v7665 = vunpack.c.l.b16 %v7290
        %v7666 = vunpack.c.h.b16 %v7290
        %v7667 = vunpack.c.l.b16 %v7291
        %v7668 = vunpack.c.h.b16 %v7291
        %v7669 = vunpack.c.l.b16 %v7292
        %v7670 = vunpack.c.h.b16 %v7292
        %v7671 = vunpack.c.l.b16 %v7293
        %v7672 = vunpack.c.h.b16 %v7293
        %v7673 = vunpack.c.l.b16 %v7294
        %v7674 = vunpack.c.h.b16 %v7294
        %v7675 = vunpack.c.l.b16 %v7295
        %v7676 = vunpack.c.h.b16 %v7295
        %v7677 = vunpack.c.l.b16 %v7296
        %v7678 = vunpack.c.h.b16 %v7296
        %v7679 = vunpack.c.l.b16 %v7297
        %v7680 = vunpack.c.h.b16 %v7297
        %v7681 = vunpack.c.l.b16 %v7298
        %v7682 = vunpack.c.h.b16 %v7298
        %v7683 = vunpack.c.l.b16 %v7299
        %v7684 = vunpack.c.h.b16 %v7299
        %v7685 = vunpack.c.l.b16 %v7300
        %v7686 = vunpack.c.h.b16 %v7300
        %v7687 = vunpack.c.l.b16 %v7301
        %v7688 = vunpack.c.h.b16 %v7301
        %v7689 = vunpack.c.l.b16 %v7302
        %v7690 = vunpack.c.h.b16 %v7302
        %v7691 = vunpack.c.l.b16 %v7303
        %v7692 = vunpack.c.h.b16 %v7303
        %v7693 = vunpack.c.l.b16 %v7304
        %v7694 = vunpack.c.h.b16 %v7304
        %v7695 = vunpack.c.l.b16 %v7305
        %v7696 = vunpack.c.h.b16 %v7305
        %v7697 = vunpack.c.l.b16 %v7306
        %v7698 = vunpack.c.h.b16 %v7306
        %v7699 = vunpack.c.l.b16 %v7307
        %v7700 = vunpack.c.h.b16 %v7307
        %v7701 = vunpack.c.l.b16 %v7308
        %v7702 = vunpack.c.h.b16 %v7308
        %v7703 = vunpack.c.l.b16 %v7309
        %v7704 = vunpack.c.h.b16 %v7309
        %v7705 = vunpack.c.l.b16 %v7310
        %v7706 = vunpack.c.h.b16 %v7310
        %v7707 = vpack.c.b16 %v7453, %v7451
        %v7708 = vpack.c.b16 %v7454, %v7452
        %v7709 = vpack.c.b16 %v7457, %v7455
        %v7710 = vpack.c.b16 %v7458, %v7456
        %v7711 = vpack.c.b16 %v7461, %v7459
        %v7712 = vpack.c.b16 %v7462, %v7460
        %v7713 = vpack.c.b16 %v7465, %v7463
        %v7714 = vpack.c.b16 %v7466, %v7464
        %v7715 = vpack.c.b16 %v7469, %v7467
        %v7716 = vpack.c.b16 %v7470, %v7468
        %v7717 = vpack.c.b16 %v7473, %v7471
        %v7718 = vpack.c.b16 %v7474, %v7472
        %v7719 = vpack.c.b16 %v7477, %v7475
        %v7720 = vpack.c.b16 %v7478, %v7476
        %v7721 = vpack.c.b16 %v7481, %v7479
        %v7722 = vpack.c.b16 %v7482, %v7480
        %v7723 = vpack.c.b16 %v7485, %v7483
        %v7724 = vpack.c.b16 %v7486, %v7484
        %v7725 = vpack.c.b16 %v7489, %v7487
        %v7726 = vpack.c.b16 %v7490, %v7488
        %v7727 = vpack.c.b16 %v7493, %v7491
        %v7728 = vpack.c.b16 %v7494, %v7492
        %v7729 = vpack.c.b16 %v7497, %v7495
        %v7730 = vpack.c.b16 %v7498, %v7496
        %v7731 = vpack.c.b16 %v7501, %v7499
        %v7732 = vpack.c.b16 %v7502, %v7500
        %v7733 = vpack.c.b16 %v7505, %v7503
        %v7734 = vpack.c.b16 %v7506, %v7504
        %v7735 = vpack.c.b16 %v7509, %v7507
        %v7736 = vpack.c.b16 %v7510, %v7508
        %v7737 = vpack.c.b16 %v7513, %v7511
        %v7738 = vpack.c.b16 %v7514, %v7512
        %v7739 = vpack.c.b16 %v7517, %v7515
        %v7740 = vpack.c.b16 %v7518, %v7516
        %v7741 = vpack.c.b16 %v7521, %v7519
        %v7742 = vpack.c.b16 %v7522, %v7520
        %v7743 = vpack.c.b16 %v7525, %v7523
        %v7744 = vpack.c.b16 %v7526, %v7524
        %v7745 = vpack.c.b16 %v7529, %v7527
        %v7746 = vpack.c.b16 %v7530, %v7528
        %v7747 = vpack.c.b16 %v7533, %v7531
        %v7748 = vpack.c.b16 %v7534, %v7532
        %v7749 = vpack.c.b16 %v7537, %v7535
        %v7750 = vpack.c.b16 %v7538, %v7536
        %v7751 = vpack.c.b16 %v7541, %v7539
        %v7752 = vpack.c.b16 %v7542, %v7540
        %v7753 = vpack.c.b16 %v7545, %v7543
        %v7754 = vpack.c.b16 %v7546, %v7544
        %v7755 = vpack.c.b16 %v7549, %v7547
        %v7756 = vpack.c.b16 %v7550, %v7548
        %v7757 = vpack.c.b16 %v7553, %v7551
        %v7758 = vpack.c.b16 %v7554, %v7552
        %v7759 = vpack.c.b16 %v7557, %v7555
        %v7760 = vpack.c.b16 %v7558, %v7556
        %v7761 = vpack.c.b16 %v7561, %v7559
        %v7762 = vpack.c.b16 %v7562, %v7560
        %v7763 = vpack.c.b16 %v7565, %v7563
        %v7764 = vpack.c.b16 %v7566, %v7564
        %v7765 = vpack.c.b16 %v7569, %v7567
        %v7766 = vpack.c.b16 %v7570, %v7568
        %v7767 = vpack.c.b16 %v7573, %v7571
        %v7768 = vpack.c.b16 %v7574, %v7572
        %v7769 = vpack.c.b16 %v7577, %v7575
        %v7770 = vpack.c.b16 %v7578, %v7576
        %v7771 = vpack.c.b16 %v7581, %v7579
        %v7772 = vpack.c.b16 %v7582, %v7580
        %v7773 = vpack.c.b16 %v7585, %v7583
        %v7774 = vpack.c.b16 %v7586, %v7584
        %v7775 = vpack.c.b16 %v7589, %v7587
        %v7776 = vpack.c.b16 %v7590, %v7588
        %v7777 = vpack.c.b16 %v7593, %v7591
        %v7778 = vpack.c.b16 %v7594, %v7592
        %v7779 = vpack.c.b16 %v7597, %v7595
        %v7780 = vpack.c.b16 %v7598, %v7596
        %v7781 = vpack.c.b16 %v7601, %v7599
        %v7782 = vpack.c.b16 %v7602, %v7600
        %v7783 = vpack.c.b16 %v7605, %v7603
        %v7784 = vpack.c.b16 %v7606, %v7604
        %v7785 = vpack.c.b16 %v7609, %v7607
        %v7786 = vpack.c.b16 %v7610, %v7608
        %v7787 = vpack.c.b16 %v7613, %v7611
        %v7788 = vpack.c.b16 %v7614, %v7612
        %v7789 = vpack.c.b16 %v7617, %v7615
        %v7790 = vpack.c.b16 %v7618, %v7616
        %v7791 = vpack.c.b16 %v7621, %v7619
        %v7792 = vpack.c.b16 %v7622, %v7620
        %v7793 = vpack.c.b16 %v7625, %v7623
        %v7794 = vpack.c.b16 %v7626, %v7624
        %v7795 = vpack.c.b16 %v7629, %v7627
        %v7796 = vpack.c.b16 %v7630, %v7628
        %v7797 = vpack.c.b16 %v7633, %v7631
        %v7798 = vpack.c.b16 %v7634, %v7632
        %v7799 = vpack.c.b16 %v7637, %v7635
        %v7800 = vpack.c.b16 %v7638, %v7636
        %v7801 = vpack.c.b16 %v7641, %v7639
        %v7802 = vpack.c.b16 %v7642, %v7640
        %v7803 = vpack.c.b16 %v7645, %v7643
        %v7804 = vpack.c.b16 %v7646, %v7644
        %v7805 = vpack.c.b16 %v7649, %v7647
        %v7806 = vpack.c.b16 %v7650, %v7648
        %v7807 = vpack.c.b16 %v7653, %v7651
        %v7808 = vpack.c.b16 %v7654, %v7652
        %v7809 = vpack.c.b16 %v7657, %v7655
        %v7810 = vpack.c.b16 %v7658, %v7656
        %v7811 = vpack.c.b16 %v7661, %v7659
        %v7812 = vpack.c.b16 %v7662, %v7660
        %v7813 = vpack.c.b16 %v7665, %v7663
        %v7814 = vpack.c.b16 %v7666, %v7664
        %v7815 = vpack.c.b16 %v7669, %v7667
        %v7816 = vpack.c.b16 %v7670, %v7668
        %v7817 = vpack.c.b16 %v7673, %v7671
        %v7818 = vpack.c.b16 %v7674, %v7672
        %v7819 = vpack.c.b16 %v7677, %v7675
        %v7820 = vpack.c.b16 %v7678, %v7676
        %v7821 = vpack.c.b16 %v7681, %v7679
        %v7822 = vpack.c.b16 %v7682, %v7680
        %v7823 = vpack.c.b16 %v7685, %v7683
        %v7824 = vpack.c.b16 %v7686, %v7684
        %v7825 = vpack.c.b16 %v7689, %v7687
        %v7826 = vpack.c.b16 %v7690, %v7688
        %v7827 = vpack.c.b16 %v7693, %v7691
        %v7828 = vpack.c.b16 %v7694, %v7692
        %v7829 = vpack.c.b16 %v7697, %v7695
        %v7830 = vpack.c.b16 %v7698, %v7696
        %v7831 = vpack.c.b16 %v7701, %v7699
        %v7832 = vpack.c.b16 %v7702, %v7700
        %v7833 = vpack.c.b16 %v7705, %v7703
        %v7834 = vpack.c.b16 %v7706, %v7704
        %7963 = vmatprep.subr.bf16.mxu0 %v7708
        %7964 = vmatpush1.bf16.msra.mxu0 %v7707
        %7965 = vmatprep.subr.bf16.mxu0 %v7710
        %7966 = vmatpush1.bf16.msra.mxu0 %v7709
        %7967 = vmatprep.subr.bf16.mxu0 %v7712
        %7968 = vmatpush1.bf16.msra.mxu0 %v7711
        %7969 = vmatprep.subr.bf16.mxu0 %v7714
        %7970 = vmatpush1.bf16.msra.mxu0 %v7713
        %7971 = vmatprep.subr.bf16.mxu0 %v7716
        %7972 = vmatpush1.bf16.msra.mxu0 %v7715
        %7973 = vmatprep.subr.bf16.mxu0 %v7718
        %7974 = vmatpush1.bf16.msra.mxu0 %v7717
        %7975 = vmatprep.subr.bf16.mxu0 %v7720
        %7976 = vmatpush1.bf16.msra.mxu0 %v7719
        %7977 = vmatprep.subr.bf16.mxu0 %v7722
        %7978 = vmatpush1.bf16.msra.mxu0 %v7721
        %7979 = vmatprep.subr.bf16.mxu0 %v7724
        %7980 = vmatpush1.bf16.msra.mxu0 %v7723
        %7981 = vmatprep.subr.bf16.mxu0 %v7726
        %7982 = vmatpush1.bf16.msra.mxu0 %v7725
        %7983 = vmatprep.subr.bf16.mxu0 %v7728
        %7984 = vmatpush1.bf16.msra.mxu0 %v7727
        %7985 = vmatprep.subr.bf16.mxu0 %v7730
        %7986 = vmatpush1.bf16.msra.mxu0 %v7729
        %7987 = vmatprep.subr.bf16.mxu0 %v7732
        %7988 = vmatpush1.bf16.msra.mxu0 %v7731
        %7989 = vmatprep.subr.bf16.mxu0 %v7734
        %7990 = vmatpush1.bf16.msra.mxu0 %v7733
        %7991 = vmatprep.subr.bf16.mxu0 %v7736
        %7992 = vmatpush1.bf16.msra.mxu0 %v7735
        %7993 = vmatprep.subr.bf16.mxu0 %v7738
        %7994 = vmatpush1.bf16.msra.mxu0 %v7737
        %7995 = vmatprep.mubr.bf16.mxu0 %v7120
        %7996 = vmatmul.mubr.bf16.gmra.mrb[0].mxu0 %v7119
        %v7997 = vpop.f32.mrb[0].mxu0
        %v7998 = vadd.f32 %v7316, %v7997
        %v7999 = vpop.f32.mrb[0].mxu0
        %v8000 = vadd.f32 %v7320, %v7999
        %v8001 = vpop.f32.mrb[0].mxu0
        %v8002 = vadd.f32 %v7316, %v8001
        %v8003 = vpop.f32.mrb[0].mxu0
        %v8004 = vadd.f32 %v7320, %v8003
        %8005 = vmatprep.mubr.bf16.mxu0 %v7128
        %8006 = vmatmul.mubr.bf16.gmra.mrb[0].mxu0 %v7127
        %v8007 = vpop.f32.mrb[0].mxu0
        %v8008 = vadd.f32 %v7316, %v8007
        %v8009 = vpop.f32.mrb[0].mxu0
        %v8010 = vadd.f32 %v7320, %v8009
        %v8011 = vpop.f32.mrb[0].mxu0
        %v8012 = vadd.f32 %v7316, %v8011
        %v8013 = vpop.f32.mrb[0].mxu0
        %v8014 = vadd.f32 %v7320, %v8013
        %8015 = vmatprep.mubr.bf16.mxu0 %v7136
        %8016 = vmatmul.mubr.bf16.gmra.mrb[0].mxu0 %v7135
        %v8017 = vpop.f32.mrb[0].mxu0
        %v8018 = vadd.f32 %v7316, %v8017
        %v8019 = vpop.f32.mrb[0].mxu0
        %v8020 = vadd.f32 %v7320, %v8019
        %v8021 = vpop.f32.mrb[0].mxu0
        %v8022 = vadd.f32 %v7316, %v8021
        %v8023 = vpop.f32.mrb[0].mxu0
        %v8024 = vadd.f32 %v7320, %v8023
        %8025 = vmatprep.mubr.bf16.mxu0 %v7144
        %8026 = vmatmul.mubr.bf16.gmra.mrb[0].mxu0 %v7143
        %v8027 = vpop.f32.mrb[0].mxu0
        %v8028 = vadd.f32 %v7316, %v8027
        %v8029 = vpop.f32.mrb[0].mxu0
        %v8030 = vadd.f32 %v7320, %v8029
        %v8031 = vpop.f32.mrb[0].mxu0
        %v8032 = vadd.f32 %v7316, %v8031
        %v8033 = vpop.f32.mrb[0].mxu0
        %v8034 = vadd.f32 %v7320, %v8033
        %8035 = vmatprep.mubr.bf16.mxu0 %v7152
        %8036 = vmatmul.mubr.bf16.gmra.mrb[0].mxu0 %v7151
        %v8037 = vpop.f32.mrb[0].mxu0
        %v8038 = vadd.f32 %v7316, %v8037
        %v8039 = vpop.f32.mrb[0].mxu0
        %v8040 = vadd.f32 %v7320, %v8039
        %v8041 = vpop.f32.mrb[0].mxu0
        %v8042 = vadd.f32 %v7316, %v8041
        %v8043 = vpop.f32.mrb[0].mxu0
        %v8044 = vadd.f32 %v7320, %v8043
        %8045 = vmatprep.mubr.bf16.mxu0 %v7160
        %8046 = vmatmul.mubr.bf16.gmra.mrb[0].mxu0 %v7159
        %v8047 = vpop.f32.mrb[0].mxu0
        %v8048 = vadd.f32 %v7316, %v8047
        %v8049 = vpop.f32.mrb[0].mxu0
        %v8050 = vadd.f32 %v7320, %v8049
        %v8051 = vpop.f32.mrb[0].mxu0
        %v8052 = vadd.f32 %v7316, %v8051
        %v8053 = vpop.f32.mrb[0].mxu0
        %v8054 = vadd.f32 %v7320, %v8053
        %8055 = vmatprep.mubr.bf16.mxu0 %v7168
        %8056 = vmatmul.mubr.bf16.gmra.mrb[0].mxu0 %v7167
        %v8057 = vpop.f32.mrb[0].mxu0
        %v8058 = vadd.f32 %v7316, %v8057
        %v8059 = vpop.f32.mrb[0].mxu0
        %v8060 = vadd.f32 %v7320, %v8059
        %v8061 = vpop.f32.mrb[0].mxu0
        %v8062 = vadd.f32 %v7316, %v8061
        %v8063 = vpop.f32.mrb[0].mxu0
        %v8064 = vadd.f32 %v7320, %v8063
        %8065 = vmatprep.mubr.bf16.mxu0 %v7176
        %8066 = vmatmul.mubr.bf16.gmra.mrb[0].mxu0 %v7175
        %v8067 = vpop.f32.mrb[0].mxu0
        %v8068 = vadd.f32 %v7316, %v8067
        %v8069 = vpop.f32.mrb[0].mxu0
        %v8070 = vadd.f32 %v7320, %v8069
        %v8071 = vpop.f32.mrb[0].mxu0
        %v8072 = vadd.f32 %v7316, %v8071
        %v8073 = vpop.f32.mrb[0].mxu0
        %v8074 = vadd.f32 %v7320, %v8073
        %8075 = vdwg.mxu0
        %8076 = vmatprep.subr.bf16.mxu0 %v7740
        %8077 = vmatpush1.bf16.msra.mxu0 %v7739
        %8078 = vmatprep.subr.bf16.mxu0 %v7742
        %8079 = vmatpush1.bf16.msra.mxu0 %v7741
        %8080 = vmatprep.subr.bf16.mxu0 %v7744
        %8081 = vmatpush1.bf16.msra.mxu0 %v7743
        %8082 = vmatprep.subr.bf16.mxu0 %v7746
        %8083 = vmatpush1.bf16.msra.mxu0 %v7745
        %8084 = vmatprep.subr.bf16.mxu0 %v7748
        %8085 = vmatpush1.bf16.msra.mxu0 %v7747
        %8086 = vmatprep.subr.bf16.mxu0 %v7750
        %8087 = vmatpush1.bf16.msra.mxu0 %v7749
        %8088 = vmatprep.subr.bf16.mxu0 %v7752
        %8089 = vmatpush1.bf16.msra.mxu0 %v7751
        %8090 = vmatprep.subr.bf16.mxu0 %v7754
        %8091 = vmatpush1.bf16.msra.mxu0 %v7753
        %8092 = vmatprep.subr.bf16.mxu0 %v7756
        %8093 = vmatpush1.bf16.msra.mxu0 %v7755
        %8094 = vmatprep.subr.bf16.mxu0 %v7758
        %8095 = vmatpush1.bf16.msra.mxu0 %v7757
        %8096 = vmatprep.subr.bf16.mxu0 %v7760
        %8097 = vmatpush1.bf16.msra.mxu0 %v7759
        %8098 = vmatprep.subr.bf16.mxu0 %v7762
        %8099 = vmatpush1.bf16.msra.mxu0 %v7761
        %8100 = vmatprep.subr.bf16.mxu0 %v7764
        %8101 = vmatpush1.bf16.msra.mxu0 %v7763
        %8102 = vmatprep.subr.bf16.mxu0 %v7766
        %8103 = vmatpush1.bf16.msra.mxu0 %v7765
        %8104 = vmatprep.subr.bf16.mxu0 %v7768
        %8105 = vmatpush1.bf16.msra.mxu0 %v7767
        %8106 = vmatprep.subr.bf16.mxu0 %v7770
        %8107 = vmatpush1.bf16.msra.mxu0 %v7769
        %8108 = vmatprep.mubr.bf16.mxu0 %v7122
        %8109 = vmatmul.mubr.bf16.gmra.mrb[0].mxu0 %v7121
        %v8110 = vpop.f32.mrb[0].mxu0
        %v8111 = vadd.f32 %v7998, %v8110
        %v8112 = vpop.f32.mrb[0].mxu0
        %v8113 = vadd.f32 %v8000, %v8112
        %v8114 = vpop.f32.mrb[0].mxu0
        %v8115 = vadd.f32 %v8002, %v8114
        %v8116 = vpop.f32.mrb[0].mxu0
        %v8117 = vadd.f32 %v8004, %v8116
        %8118 = vmatprep.mubr.bf16.mxu0 %v7130
        %8119 = vmatmul.mubr.bf16.gmra.mrb[0].mxu0 %v7129
        %v8120 = vpop.f32.mrb[0].mxu0
        %v8121 = vadd.f32 %v8008, %v8120
        %v8122 = vpop.f32.mrb[0].mxu0
        %v8123 = vadd.f32 %v8010, %v8122
        %v8124 = vpop.f32.mrb[0].mxu0
        %v8125 = vadd.f32 %v8012, %v8124
        %v8126 = vpop.f32.mrb[0].mxu0
        %v8127 = vadd.f32 %v8014, %v8126
        %8128 = vmatprep.mubr.bf16.mxu0 %v7138
        %8129 = vmatmul.mubr.bf16.gmra.mrb[0].mxu0 %v7137
        %v8130 = vpop.f32.mrb[0].mxu0
        %v8131 = vadd.f32 %v8018, %v8130
        %v8132 = vpop.f32.mrb[0].mxu0
        %v8133 = vadd.f32 %v8020, %v8132
        %v8134 = vpop.f32.mrb[0].mxu0
        %v8135 = vadd.f32 %v8022, %v8134
        %v8136 = vpop.f32.mrb[0].mxu0
        %v8137 = vadd.f32 %v8024, %v8136
        %8138 = vmatprep.mubr.bf16.mxu0 %v7146
        %8139 = vmatmul.mubr.bf16.gmra.mrb[0].mxu0 %v7145
        %v8140 = vpop.f32.mrb[0].mxu0
        %v8141 = vadd.f32 %v8028, %v8140
        %v8142 = vpop.f32.mrb[0].mxu0
        %v8143 = vadd.f32 %v8030, %v8142
        %v8144 = vpop.f32.mrb[0].mxu0
        %v8145 = vadd.f32 %v8032, %v8144
        %v8146 = vpop.f32.mrb[0].mxu0
        %v8147 = vadd.f32 %v8034, %v8146
        %8148 = vmatprep.mubr.bf16.mxu0 %v7154
        %8149 = vmatmul.mubr.bf16.gmra.mrb[0].mxu0 %v7153
        %v8150 = vpop.f32.mrb[0].mxu0
        %v8151 = vadd.f32 %v8038, %v8150
        %v8152 = vpop.f32.mrb[0].mxu0
        %v8153 = vadd.f32 %v8040, %v8152
        %v8154 = vpop.f32.mrb[0].mxu0
        %v8155 = vadd.f32 %v8042, %v8154
        %v8156 = vpop.f32.mrb[0].mxu0
        %v8157 = vadd.f32 %v8044, %v8156
        %8158 = vmatprep.mubr.bf16.mxu0 %v7162
        %8159 = vmatmul.mubr.bf16.gmra.mrb[0].mxu0 %v7161
        %v8160 = vpop.f32.mrb[0].mxu0
        %v8161 = vadd.f32 %v8048, %v8160
        %v8162 = vpop.f32.mrb[0].mxu0
        %v8163 = vadd.f32 %v8050, %v8162
        %v8164 = vpop.f32.mrb[0].mxu0
        %v8165 = vadd.f32 %v8052, %v8164
        %v8166 = vpop.f32.mrb[0].mxu0
        %v8167 = vadd.f32 %v8054, %v8166
        %8168 = vmatprep.mubr.bf16.mxu0 %v7170
        %8169 = vmatmul.mubr.bf16.gmra.mrb[0].mxu0 %v7169
        %v8170 = vpop.f32.mrb[0].mxu0
        %v8171 = vadd.f32 %v8058, %v8170
        %v8172 = vpop.f32.mrb[0].mxu0
        %v8173 = vadd.f32 %v8060, %v8172
        %v8174 = vpop.f32.mrb[0].mxu0
        %v8175 = vadd.f32 %v8062, %v8174
        %v8176 = vpop.f32.mrb[0].mxu0
        %v8177 = vadd.f32 %v8064, %v8176
        %8178 = vmatprep.mubr.bf16.mxu0 %v7178
        %8179 = vmatmul.mubr.bf16.gmra.mrb[0].mxu0 %v7177
        %v8180 = vpop.f32.mrb[0].mxu0
        %v8181 = vadd.f32 %v8068, %v8180
        %v8182 = vpop.f32.mrb[0].mxu0
        %v8183 = vadd.f32 %v8070, %v8182
        %v8184 = vpop.f32.mrb[0].mxu0
        %v8185 = vadd.f32 %v8072, %v8184
        %v8186 = vpop.f32.mrb[0].mxu0
        %v8187 = vadd.f32 %v8074, %v8186
        %8188 = vdwg.mxu0
        %8189 = vmatprep.subr.bf16.mxu0 %v7772
        %8190 = vmatpush1.bf16.msra.mxu0 %v7771
        %8191 = vmatprep.subr.bf16.mxu0 %v7774
        %8192 = vmatpush1.bf16.msra.mxu0 %v7773
        %8193 = vmatprep.subr.bf16.mxu0 %v7776
        %8194 = vmatpush1.bf16.msra.mxu0 %v7775
        %8195 = vmatprep.subr.bf16.mxu0 %v7778
        %8196 = vmatpush1.bf16.msra.mxu0 %v7777
        %8197 = vmatprep.subr.bf16.mxu0 %v7780
        %8198 = vmatpush1.bf16.msra.mxu0 %v7779
        %8199 = vmatprep.subr.bf16.mxu0 %v7782
        %8200 = vmatpush1.bf16.msra.mxu0 %v7781
        %8201 = vmatprep.subr.bf16.mxu0 %v7784
        %8202 = vmatpush1.bf16.msra.mxu0 %v7783
        %8203 = vmatprep.subr.bf16.mxu0 %v7786
        %8204 = vmatpush1.bf16.msra.mxu0 %v7785
        %8205 = vmatprep.subr.bf16.mxu0 %v7788
        %8206 = vmatpush1.bf16.msra.mxu0 %v7787
        %8207 = vmatprep.subr.bf16.mxu0 %v7790
        %8208 = vmatpush1.bf16.msra.mxu0 %v7789
        %8209 = vmatprep.subr.bf16.mxu0 %v7792
        %8210 = vmatpush1.bf16.msra.mxu0 %v7791
        %8211 = vmatprep.subr.bf16.mxu0 %v7794
        %8212 = vmatpush1.bf16.msra.mxu0 %v7793
        %8213 = vmatprep.subr.bf16.mxu0 %v7796
        %8214 = vmatpush1.bf16.msra.mxu0 %v7795
        %8215 = vmatprep.subr.bf16.mxu0 %v7798
        %8216 = vmatpush1.bf16.msra.mxu0 %v7797
        %8217 = vmatprep.subr.bf16.mxu0 %v7800
        %8218 = vmatpush1.bf16.msra.mxu0 %v7799
        %8219 = vmatprep.subr.bf16.mxu0 %v7802
        %8220 = vmatpush1.bf16.msra.mxu0 %v7801
        %8221 = vmatprep.mubr.bf16.mxu0 %v7124
        %8222 = vmatmul.mubr.bf16.gmra.mrb[0].mxu0 %v7123
        %v8223 = vpop.f32.mrb[0].mxu0
        %v8224 = vadd.f32 %v8111, %v8223
        %v8225 = vpop.f32.mrb[0].mxu0
        %v8226 = vadd.f32 %v8113, %v8225
        %v8227 = vpop.f32.mrb[0].mxu0
        %v8228 = vadd.f32 %v8115, %v8227
        %v8229 = vpop.f32.mrb[0].mxu0
        %v8230 = vadd.f32 %v8117, %v8229
        %8231 = vmatprep.mubr.bf16.mxu0 %v7132
        %8232 = vmatmul.mubr.bf16.gmra.mrb[0].mxu0 %v7131
        %v8233 = vpop.f32.mrb[0].mxu0
        %v8234 = vadd.f32 %v8121, %v8233
        %v8235 = vpop.f32.mrb[0].mxu0
        %v8236 = vadd.f32 %v8123, %v8235
        %v8237 = vpop.f32.mrb[0].mxu0
        %v8238 = vadd.f32 %v8125, %v8237
        %v8239 = vpop.f32.mrb[0].mxu0
        %v8240 = vadd.f32 %v8127, %v8239
        %8241 = vmatprep.mubr.bf16.mxu0 %v7140
        %8242 = vmatmul.mubr.bf16.gmra.mrb[0].mxu0 %v7139
        %v8243 = vpop.f32.mrb[0].mxu0
        %v8244 = vadd.f32 %v8131, %v8243
        %v8245 = vpop.f32.mrb[0].mxu0
        %v8246 = vadd.f32 %v8133, %v8245
        %v8247 = vpop.f32.mrb[0].mxu0
        %v8248 = vadd.f32 %v8135, %v8247
        %v8249 = vpop.f32.mrb[0].mxu0
        %v8250 = vadd.f32 %v8137, %v8249
        %8251 = vmatprep.mubr.bf16.mxu0 %v7148
        %8252 = vmatmul.mubr.bf16.gmra.mrb[0].mxu0 %v7147
        %v8253 = vpop.f32.mrb[0].mxu0
        %v8254 = vadd.f32 %v8141, %v8253
        %v8255 = vpop.f32.mrb[0].mxu0
        %v8256 = vadd.f32 %v8143, %v8255
        %v8257 = vpop.f32.mrb[0].mxu0
        %v8258 = vadd.f32 %v8145, %v8257
        %v8259 = vpop.f32.mrb[0].mxu0
        %v8260 = vadd.f32 %v8147, %v8259
        %8261 = vmatprep.mubr.bf16.mxu0 %v7156
        %8262 = vmatmul.mubr.bf16.gmra.mrb[0].mxu0 %v7155
        %v8263 = vpop.f32.mrb[0].mxu0
        %v8264 = vadd.f32 %v8151, %v8263
        %v8265 = vpop.f32.mrb[0].mxu0
        %v8266 = vadd.f32 %v8153, %v8265
        %v8267 = vpop.f32.mrb[0].mxu0
        %v8268 = vadd.f32 %v8155, %v8267
        %v8269 = vpop.f32.mrb[0].mxu0
        %v8270 = vadd.f32 %v8157, %v8269
        %8271 = vmatprep.mubr.bf16.mxu0 %v7164
        %8272 = vmatmul.mubr.bf16.gmra.mrb[0].mxu0 %v7163
        %v8273 = vpop.f32.mrb[0].mxu0
        %v8274 = vadd.f32 %v8161, %v8273
        %v8275 = vpop.f32.mrb[0].mxu0
        %v8276 = vadd.f32 %v8163, %v8275
        %v8277 = vpop.f32.mrb[0].mxu0
        %v8278 = vadd.f32 %v8165, %v8277
        %v8279 = vpop.f32.mrb[0].mxu0
        %v8280 = vadd.f32 %v8167, %v8279
        %8281 = vmatprep.mubr.bf16.mxu0 %v7172
        %8282 = vmatmul.mubr.bf16.gmra.mrb[0].mxu0 %v7171
        %v8283 = vpop.f32.mrb[0].mxu0
        %v8284 = vadd.f32 %v8171, %v8283
        %v8285 = vpop.f32.mrb[0].mxu0
        %v8286 = vadd.f32 %v8173, %v8285
        %v8287 = vpop.f32.mrb[0].mxu0
        %v8288 = vadd.f32 %v8175, %v8287
        %v8289 = vpop.f32.mrb[0].mxu0
        %v8290 = vadd.f32 %v8177, %v8289
        %8291 = vmatprep.mubr.bf16.mxu0 %v7180
        %8292 = vmatmul.mubr.bf16.gmra.mrb[0].mxu0 %v7179
        %v8293 = vpop.f32.mrb[0].mxu0
        %v8294 = vadd.f32 %v8181, %v8293
        %v8295 = vpop.f32.mrb[0].mxu0
        %v8296 = vadd.f32 %v8183, %v8295
        %v8297 = vpop.f32.mrb[0].mxu0
        %v8298 = vadd.f32 %v8185, %v8297
        %v8299 = vpop.f32.mrb[0].mxu0
        %v8300 = vadd.f32 %v8187, %v8299
        %8301 = vdwg.mxu0
        %8302 = vmatprep.subr.bf16.mxu0 %v7804
        %8303 = vmatpush1.bf16.msra.mxu0 %v7803
        %8304 = vmatprep.subr.bf16.mxu0 %v7806
        %8305 = vmatpush1.bf16.msra.mxu0 %v7805
        %8306 = vmatprep.subr.bf16.mxu0 %v7808
        %8307 = vmatpush1.bf16.msra.mxu0 %v7807
        %8308 = vmatprep.subr.bf16.mxu0 %v7810
        %8309 = vmatpush1.bf16.msra.mxu0 %v7809
        %8310 = vmatprep.subr.bf16.mxu0 %v7812
        %8311 = vmatpush1.bf16.msra.mxu0 %v7811
        %8312 = vmatprep.subr.bf16.mxu0 %v7814
        %8313 = vmatpush1.bf16.msra.mxu0 %v7813
        %8314 = vmatprep.subr.bf16.mxu0 %v7816
        %8315 = vmatpush1.bf16.msra.mxu0 %v7815
        %8316 = vmatprep.subr.bf16.mxu0 %v7818
        %8317 = vmatpush1.bf16.msra.mxu0 %v7817
        %8318 = vmatprep.subr.bf16.mxu0 %v7820
        %8319 = vmatpush1.bf16.msra.mxu0 %v7819
        %8320 = vmatprep.subr.bf16.mxu0 %v7822
        %8321 = vmatpush1.bf16.msra.mxu0 %v7821
        %8322 = vmatprep.subr.bf16.mxu0 %v7824
        %8323 = vmatpush1.bf16.msra.mxu0 %v7823
        %8324 = vmatprep.subr.bf16.mxu0 %v7826
        %8325 = vmatpush1.bf16.msra.mxu0 %v7825
        %8326 = vmatprep.subr.bf16.mxu0 %v7828
        %8327 = vmatpush1.bf16.msra.mxu0 %v7827
        %8328 = vmatprep.subr.bf16.mxu0 %v7830
        %8329 = vmatpush1.bf16.msra.mxu0 %v7829
        %8330 = vmatprep.subr.bf16.mxu0 %v7832
        %8331 = vmatpush1.bf16.msra.mxu0 %v7831
        %8332 = vmatprep.subr.bf16.mxu0 %v7834
        %8333 = vmatpush1.bf16.msra.mxu0 %v7833
        %8334 = vmatprep.mubr.bf16.mxu0 %v7126
        %8335 = vmatmul.mubr.bf16.gmra.mrb[0].mxu0 %v7125
        %v8336 = vpop.f32.mrb[0].mxu0
        %v8337 = vadd.f32 %v8224, %v8336
        %v8338 = vpop.f32.mrb[0].mxu0
        %v8339 = vadd.f32 %v8226, %v8338
        %v8340 = vpop.f32.mrb[0].mxu0
        %v8341 = vadd.f32 %v8228, %v8340
        %v8342 = vpop.f32.mrb[0].mxu0
        %v8343 = vadd.f32 %v8230, %v8342
        %8344 = vmatprep.mubr.bf16.mxu0 %v7134
        %8345 = vmatmul.mubr.bf16.gmra.mrb[0].mxu0 %v7133
        %v8346 = vpop.f32.mrb[0].mxu0
        %v8347 = vadd.f32 %v8234, %v8346
        %v8348 = vpop.f32.mrb[0].mxu0
        %v8349 = vadd.f32 %v8236, %v8348
        %v8350 = vpop.f32.mrb[0].mxu0
        %v8351 = vadd.f32 %v8238, %v8350
        %v8352 = vpop.f32.mrb[0].mxu0
        %v8353 = vadd.f32 %v8240, %v8352
        %8354 = vmatprep.mubr.bf16.mxu0 %v7142
        %8355 = vmatmul.mubr.bf16.gmra.mrb[0].mxu0 %v7141
        %v8356 = vpop.f32.mrb[0].mxu0
        %v8357 = vadd.f32 %v8244, %v8356
        %v8358 = vpop.f32.mrb[0].mxu0
        %v8359 = vadd.f32 %v8246, %v8358
        %v8360 = vpop.f32.mrb[0].mxu0
        %v8361 = vadd.f32 %v8248, %v8360
        %v8362 = vpop.f32.mrb[0].mxu0
        %v8363 = vadd.f32 %v8250, %v8362
        %8364 = vmatprep.mubr.bf16.mxu0 %v7150
        %8365 = vmatmul.mubr.bf16.gmra.mrb[0].mxu0 %v7149
        %v8366 = vpop.f32.mrb[0].mxu0
        %v8367 = vadd.f32 %v8254, %v8366
        %v8368 = vpop.f32.mrb[0].mxu0
        %v8369 = vadd.f32 %v8256, %v8368
        %v8370 = vpop.f32.mrb[0].mxu0
        %v8371 = vadd.f32 %v8258, %v8370
        %v8372 = vpop.f32.mrb[0].mxu0
        %v8373 = vadd.f32 %v8260, %v8372
        %8374 = vmatprep.mubr.bf16.mxu0 %v7158
        %8375 = vmatmul.mubr.bf16.gmra.mrb[0].mxu0 %v7157
        %v8376 = vpop.f32.mrb[0].mxu0
        %v8377 = vadd.f32 %v8264, %v8376
        %v8378 = vpop.f32.mrb[0].mxu0
        %v8379 = vadd.f32 %v8266, %v8378
        %v8380 = vpop.f32.mrb[0].mxu0
        %v8381 = vadd.f32 %v8268, %v8380
        %v8382 = vpop.f32.mrb[0].mxu0
        %v8383 = vadd.f32 %v8270, %v8382
        %8384 = vmatprep.mubr.bf16.mxu0 %v7166
        %8385 = vmatmul.mubr.bf16.gmra.mrb[0].mxu0 %v7165
        %v8386 = vpop.f32.mrb[0].mxu0
        %v8387 = vadd.f32 %v8274, %v8386
        %v8388 = vpop.f32.mrb[0].mxu0
        %v8389 = vadd.f32 %v8276, %v8388
        %v8390 = vpop.f32.mrb[0].mxu0
        %v8391 = vadd.f32 %v8278, %v8390
        %v8392 = vpop.f32.mrb[0].mxu0
        %v8393 = vadd.f32 %v8280, %v8392
        %8394 = vmatprep.mubr.bf16.mxu0 %v7174
        %8395 = vmatmul.mubr.bf16.gmra.mrb[0].mxu0 %v7173
        %v8396 = vpop.f32.mrb[0].mxu0
        %v8397 = vadd.f32 %v8284, %v8396
        %v8398 = vpop.f32.mrb[0].mxu0
        %v8399 = vadd.f32 %v8286, %v8398
        %v8400 = vpop.f32.mrb[0].mxu0
        %v8401 = vadd.f32 %v8288, %v8400
        %v8402 = vpop.f32.mrb[0].mxu0
        %v8403 = vadd.f32 %v8290, %v8402
        %8404 = vmatprep.mubr.bf16.mxu0 %v7182
        %8405 = vmatmul.mubr.bf16.gmra.mrb[0].mxu0 %v7181
        %v8406 = vpop.f32.mrb[0].mxu0
        %v8407 = vadd.f32 %v8294, %v8406
        %v8408 = vpop.f32.mrb[0].mxu0
        %v8409 = vadd.f32 %v8296, %v8408
        %v8410 = vpop.f32.mrb[0].mxu0
        %v8411 = vadd.f32 %v8298, %v8410
        %v8412 = vpop.f32.mrb[0].mxu0
        %v8413 = vadd.f32 %v8300, %v8412
        %8414 = vdwg.mxu0
        %v8415 = vadd.f32 %v4441, %v8337
        %v8416 = vadd.f32 %v4442, %v8339
        %v8417 = vadd.f32 %v4443, %v8341
        %v8418 = vadd.f32 %v4444, %v8343
        %v8419 = vadd.f32 %v4445, %v8347
        %v8420 = vadd.f32 %v4446, %v8349
        %v8421 = vadd.f32 %v4447, %v8351
        %v8422 = vadd.f32 %v4448, %v8353
        %v8423 = vadd.f32 %v4449, %v8357
        %v8424 = vadd.f32 %v4450, %v8359
        %v8425 = vadd.f32 %v4451, %v8361
        %v8426 = vadd.f32 %v4452, %v8363
        %v8427 = vadd.f32 %v4453, %v8367
        %v8428 = vadd.f32 %v4454, %v8369
        %v8429 = vadd.f32 %v4455, %v8371
        %v8430 = vadd.f32 %v4456, %v8373
        %v8431 = vadd.f32 %v4457, %v8377
        %v8432 = vadd.f32 %v4458, %v8379
        %v8433 = vadd.f32 %v4459, %v8381
        %v8434 = vadd.f32 %v4460, %v8383
        %v8435 = vadd.f32 %v4461, %v8387
        %v8436 = vadd.f32 %v4462, %v8389
        %v8437 = vadd.f32 %v4463, %v8391
        %v8438 = vadd.f32 %v4464, %v8393
        %v8439 = vadd.f32 %v4465, %v8397
        %v8440 = vadd.f32 %v4466, %v8399
        %v8441 = vadd.f32 %v4467, %v8401
        %v8442 = vadd.f32 %v4468, %v8403
        %v8443 = vadd.f32 %v4469, %v8407
        %v8444 = vadd.f32 %v4470, %v8409
        %v8445 = vadd.f32 %v4471, %v8411
        %v8446 = vadd.f32 %v4472, %v8413
        %v8447 = vpack.c.bf16 %v8417, %v8415
        %v8448 = vpack.c.bf16 %v8418, %v8416
        %v8449 = vpack.c.bf16 %v8421, %v8419
        %v8450 = vpack.c.bf16 %v8422, %v8420
        %v8451 = vpack.c.bf16 %v8425, %v8423
        %v8452 = vpack.c.bf16 %v8426, %v8424
        %v8453 = vpack.c.bf16 %v8429, %v8427
        %v8454 = vpack.c.bf16 %v8430, %v8428
        %v8455 = vpack.c.bf16 %v8433, %v8431
        %v8456 = vpack.c.bf16 %v8434, %v8432
        %v8457 = vpack.c.bf16 %v8437, %v8435
        %v8458 = vpack.c.bf16 %v8438, %v8436
        %v8459 = vpack.c.bf16 %v8441, %v8439
        %v8460 = vpack.c.bf16 %v8442, %v8440
        %v8461 = vpack.c.bf16 %v8445, %v8443
        %v8462 = vpack.c.bf16 %v8446, %v8444
        %8463 = vst [vmem:[#allocation2] sm:$0xff] %v8447
        %8464 = vst [vmem:[#allocation2 + $0x8] sm:$0xff] %v8448
        %8465 = vst [vmem:[#allocation2 + $0x10] sm:$0xff] %v8449
        %8466 = vst [vmem:[#allocation2 + $0x18] sm:$0xff] %v8450
        %8467 = vst [vmem:[#allocation2 + $0x20] sm:$0xff] %v8451
        %8468 = vst [vmem:[#allocation2 + $0x28] sm:$0xff] %v8452
        %8469 = vst [vmem:[#allocation2 + $0x30] sm:$0xff] %v8453
        %8470 = vst [vmem:[#allocation2 + $0x38] sm:$0xff] %v8454
        %8471 = vst [vmem:[#allocation2 + $0x40] sm:$0xff] %v8455
        %8472 = vst [vmem:[#allocation2 + $0x48] sm:$0xff] %v8456
        %8473 = vst [vmem:[#allocation2 + $0x50] sm:$0xff] %v8457
        %8474 = vst [vmem:[#allocation2 + $0x58] sm:$0xff] %v8458
        %8475 = vst [vmem:[#allocation2 + $0x60] sm:$0xff] %v8459
        %8476 = vst [vmem:[#allocation2 + $0x68] sm:$0xff] %v8460
        %8477 = vst [vmem:[#allocation2 + $0x70] sm:$0xff] %v8461
        %8478 = vst [vmem:[#allocation2 + $0x78] sm:$0xff] %v8462
        %v8479 = vld [vmem:[%s738] sm:$0xf]
        %8480 = vmatprep.subr.bf16.mxu0 %v8448
        %8481 = vmatpush1.bf16.msra.mxu0 %v8447
        %8482 = vmatprep.subr.bf16.mxu0 %v8450
        %8483 = vmatpush1.bf16.msra.mxu0 %v8449
        %8484 = vmatprep.subr.bf16.mxu0 %v8452
        %8485 = vmatpush1.bf16.msra.mxu0 %v8451
        %8486 = vmatprep.subr.bf16.mxu0 %v8454
        %8487 = vmatpush1.bf16.msra.mxu0 %v8453
        %8488 = vmatprep.subr.bf16.mxu0 %v8456
        %8489 = vmatpush1.bf16.msra.mxu0 %v8455
        %8490 = vmatprep.subr.bf16.mxu0 %v8458
        %8491 = vmatpush1.bf16.msra.mxu0 %v8457
        %8492 = vmatprep.subr.bf16.mxu0 %v8460
        %8493 = vmatpush1.bf16.msra.mxu0 %v8459
        %8494 = vmatprep.subr.bf16.mxu0 %v8462
        %8495 = vmatpush1.bf16.msra.mxu0 %v8461
        %8496 = vmatprep.subr.bf16.mxu0 0
        %8497 = vmatpush1.bf16.msra.mxu0 0
        %8498 = vmatprep.subr.bf16.mxu0 0
        %8499 = vmatpush1.bf16.msra.mxu0 0
        %8500 = vmatprep.subr.bf16.mxu0 0
        %8501 = vmatpush1.bf16.msra.mxu0 0
        %8502 = vmatprep.subr.bf16.mxu0 0
        %8503 = vmatpush1.bf16.msra.mxu0 0
        %8504 = vmatprep.subr.bf16.mxu0 0
        %8505 = vmatpush1.bf16.msra.mxu0 0
        %8506 = vmatprep.subr.bf16.mxu0 0
        %8507 = vmatpush1.bf16.msra.mxu0 0
        %8508 = vmatprep.subr.bf16.mxu0 0
        %8509 = vmatpush1.bf16.msra.mxu0 0
        %8510 = vmatprep.subr.bf16.mxu0 0
        %8511 = vmatpush1.bf16.msra.mxu0 0
        %8512 = vmatprep.mubr.bf16.mxu0 0
        %8513 = vmatmul.mubr.bf16.gmra.mrb[0].mxu0 %v8479
        %v8514 = vpop.f32.mrb[0].mxu0
        %v8515 = vadd.f32 0.0, %v8514
        %v8516 = vpop.f32.mrb[0].mxu0
        %v8517 = vadd.f32 0.0, %v8516
        %v8518 = vpop.f32.mrb[0].mxu0
        %v8519 = vpop.f32.mrb[0].mxu0
        %8520 = vdwg.mxu0
        %v8521 = vpack.c.bf16 %v8515, %v8515
        %v8522 = vpack.c.bf16 %v8517, %v8517
        %v8525 = vunpack.c.l.b16 %v8521
        %v8526 = vunpack.c.l.b16 %v8522
        %v8527 = vpack.c.b16 %v8526, %v8525
        %8529 = vst [vmem:[%s784] sm:$0xff] %v8527
        %p8530 = scmp.lt.s32.totalorder %s36, 1
        %s8531 = scalar_select %p8530, %s36, 1
        %p8532 = scmp.lt.s32.totalorder %s35, 0
        %s8533 = scalar_select %p8532, %s35, 0
        %s8534 = smul.addr %s8533, 2
        %s8535 = smul.addr %s8531, 2
        %s8536 = sadd.s32 %s8534, %s8535
        %s8537 = smul.addr %s8536, 4
        %s8538 = scalar_lea.vmem %s14, %s8537
        // Predicated region
        $region93: #{_forward_impl.2} parent=75 // pred_check
          %p8539 = pneg %p427
        $region94: #{_forward_impl.2} parent=75 // pred_check_branch
          %8541 = sbr.rel (%p8539) target = $region96
        $region95: #{_forward_impl.2} parent=75 // pred_region
          _
        $region96: #{_forward_impl.2} parent=75 // pred_fallthru
          _
      $region76: #{_forward_impl.2} parent=5 // pred_fallthru
        _
      %p8542 = scmp.le.s32.totalorder 2, %s26
      // Predicated region
      $region97: #{_forward_impl.2} parent=5 // pred_check
        %p8543 = pneg %p8542
      $region98: #{_forward_impl.2} parent=5 // pred_check_branch
        %8545 = sbr.rel (%p8543) target = $region100
      $region99: #{_forward_impl.2} parent=5 // pred_region
        %s8546 = ssub.s32 %s26, 2
        // Predicated region
        $region101: #{_forward_impl.2} parent=99 // pred_check
          %p8547 = pneg %p433
        $region102: #{_forward_impl.2} parent=99 // pred_check_branch
          %8549 = sbr.rel (%p8547) target = $region104
        $region103: #{_forward_impl.2} parent=99 // pred_region
          %p8550 = scmp.lt.s32.totalorder %s38, 1
          %s8551 = scalar_select %p8550, %s38, 1
          %p8552 = scmp.lt.s32.totalorder %s37, 0
          %s8553 = scalar_select %p8552, %s37, 0
          %s8554 = smul.addr %s8553, 2
          %s8555 = smul.addr %s8551, 2
          %s8556 = sadd.s32 %s8554, %s8555
          %s8557 = smul.addr %s8556, 4
          %s8558 = scalar_lea.vmem %s14, %s8557
        $region104: #{_forward_impl.2} parent=99 // pred_fallthru
          _
      $region100: #{_forward_impl.2} parent=5 // pred_fallthru
        _
    $region6: #{_forward_impl.2} parent=1 // loop_footer
      %s30 = sadd.s32 1, %s26
    $region7: #{_forward_impl.2} parent=1 // loop_footer_branch
      %25 = sbr.rel target = $region3
    $region8: #{_forward_impl.2} parent=1 // loop_exit
      _
    %8559 = vsyncpa [#allocation4], 1
    %s8560 = scalar_lea.sflag [#allocation4], 1
    %8561 = vsyncpa %s8560, 1
    %8562 = vsyncpa [#allocation6], 1
    %s8563 = scalar_lea.sflag [#allocation6], 1
    %8564 = vsyncpa %s8563, 1

</llo_original>
